<compile_context>
chip_gen: v7x
topology: tpu7x:2x2x1
jax: 0.10.0
libtpu: 0.0.40
codegen_flags: <defaults>
</compile_context>

<pallas_src>
import functools
import numpy as np
import jax
import jax.numpy as jnp
from jax.experimental import pallas as pl
from jax.experimental.pallas import tpu as pltpu


def _round_up(x, m):
    return ((x + m - 1) // m) * m


def _pick_row_tile(R):
    """Rows (n, oh, ow) per grid block: 16-aligned, >=2 parallel blocks when rows
    allow it (keeps both v7x TensorCores busy), capped at 512 rows per MXU call."""
    if R >= 1024:
        return 512
    if R >= 32:
        return _round_up(-(-R // 2), 16)
    return _round_up(max(R, 1), 16)


# ------------- fused synapse (MXU matmul) + CUBA LIF neuron + spike count -------------

def _fused_layer_kernel(a_ref, w_ref, s_ref, cnt_ref, cur_ref, vol_ref, *,
                        alpha_c, alpha_v, threshold):
    # grid = (row_blocks [parallel], T [arbitrary, innermost])
    # a_ref:   (1, tr, Kp)  bf16 input spikes / im2col patches (time t-1)
    # w_ref:   (Kp, Np)     bf16 zero-padded weights (constant index -> resident)
    # s_ref:   (1, tr, Np)  bf16 output spikes at time t (delay-shifted)
    # cnt_ref: (tr, Np)     f32 per-feature spike counts (resident accumulator)
    # cur/vol: (tr, Np)     f32 CUBA state carried across the T axis in scratch
    t = pl.program_id(1)

    @pl.when(t == 0)
    def _init():
        # lava-dl cuba blocks delay-shift the output: y[..., 0] = 0, y[..., t] = spike[t-1]
        cur_ref[...] = jnp.zeros_like(cur_ref)
        vol_ref[...] = jnp.zeros_like(vol_ref)
        cnt_ref[...] = jnp.zeros_like(cnt_ref)
        s_ref[...] = jnp.zeros_like(s_ref)

    @pl.when(t > 0)
    def _step():
        # synaptic current for time t-1: one bf16 x bf16 -> f32 MXU matmul
        z = jnp.dot(a_ref[0], w_ref[...], preferred_element_type=jnp.float32)
        cur = alpha_c * cur_ref[...] + z
        vol = alpha_v * vol_ref[...] + cur
        fired = vol >= threshold
        spk = jnp.where(fired, 1.0, 0.0)
        cur_ref[...] = cur
        vol_ref[...] = jnp.where(fired, 0.0, vol)      # select-based reset (no sub+mul)
        cnt_ref[...] = cnt_ref[...] + spk
        s_ref[0] = spk.astype(s_ref.dtype)             # dense full-tile lane-aligned store


def fused_synapse_cuba(a, w, threshold=1.0, current_decay=0.25, voltage_decay=0.03):
    """a: (T, R, Kp) bf16 0/1 inputs, w: (Kp, Np) bf16 zero-padded weights.

    Returns (spikes (T, R, Np) bf16 delay-shifted, total spike count f32 scalar).
    The count equals sum(|y[..., 1:] > 0|) of the delay-shifted binary output.
    """
    T, R, Kp = a.shape
    _, Np = w.shape
    tr = _pick_row_tile(R)
    Rp = _round_up(R, tr)
    if Rp != R:
        a = jnp.pad(a, ((0, 0), (0, Rp - R), (0, 0)))
    nblk = Rp // tr

    kern = functools.partial(_fused_layer_kernel,
                             alpha_c=1.0 - current_decay,
                             alpha_v=1.0 - voltage_decay,
                             threshold=threshold)
    spikes, cnt = pl.pallas_call(
        kern,
        out_shape=(jax.ShapeDtypeStruct((T, Rp, Np), jnp.bfloat16),
                   jax.ShapeDtypeStruct((Rp, Np), jnp.float32)),
        grid=(nblk, T),
        in_specs=[
            # time step t consumes patches of time t-1 (delay shift); the t == 0
            # step fetches block 0 but never reads it.
            pl.BlockSpec((1, tr, Kp), lambda r, t: (jnp.maximum(t - 1, 0), r, 0)),
            pl.BlockSpec((Kp, Np), lambda r, t: (0, 0)),
        ],
        out_specs=(
            pl.BlockSpec((1, tr, Np), lambda r, t: (t, r, 0)),
            pl.BlockSpec((tr, Np), lambda r, t: (r, 0)),      # resident count accumulator
        ),
        scratch_shapes=[pltpu.VMEM((tr, Np), jnp.float32),    # cur
                        pltpu.VMEM((tr, Np), jnp.float32)],   # vol
        compiler_params=pltpu.CompilerParams(
            dimension_semantics=("parallel", "arbitrary"),
            vmem_limit_bytes=32 * 1024 * 1024),
    )(a, w)
    # Padded rows / lanes receive exactly-zero current (zero inputs, zero weight
    # columns) and never cross threshold, so slicing and the count stay exact.
    return spikes[:, :R], jnp.sum(cnt)


# ------------------------------ glue (JAX, no transposes) ------------------------------

NEURON = dict(threshold=1.0, current_decay=0.25, voltage_decay=0.03)

# name, type, kernel, stride, cin, cout
LAYERS = (
    ("conv1", "conv", 3, 2, 3, 32),
    ("conv2", "conv", 3, 1, 32, 64),
    ("conv3", "conv", 3, 2, 64, 128),
    ("conv4", "conv", 3, 1, 128, 256),
    ("conv5", "conv", 3, 2, 256, 64),
    ("fc1", "fc", None, None, 64, 128),
    ("fc2", "fc", None, None, 128, 10),
)


def _im2col(x, cin, k, stride, Kp):
    # x: (T, N, H, W, Cpad) channels-last bf16 spikes; only the first cin lanes are
    # real (trailing lanes are the previous layer's 128-lane padding, always zero,
    # and are dropped by the same gather).  Feature order (ki, kj, c); K-padding is
    # fused into the single concatenate materialization.
    T, N, H, W, _ = x.shape
    OH = (H - k) // stride + 1
    OW = (W - k) // stride + 1
    cols = []
    for i in range(k):
        for j in range(k):
            cols.append(x[:, :, i:i + stride * (OH - 1) + 1:stride,
                             j:j + stride * (OW - 1) + 1:stride, :cin])
    K = k * k * cin
    a = jnp.concatenate(cols, axis=-1).reshape(T, N * OH * OW, K)
    if Kp > K:
        a = jnp.pad(a, ((0, 0), (0, 0), (0, Kp - K)))
    return a, OH, OW


def conv_class_forward(x, params):
    # x: (N, Cin, H, W, T) spike tensor (lava-dl NCHWT convention)
    N, _, _, _, T = x.shape
    # Single layout move at the boundary: time-major, channels-last, bf16 (0/1, lossless).
    x = jnp.transpose(x, (4, 0, 2, 3, 1)).astype(jnp.bfloat16)     # (T, N, H, W, C)

    counts = []
    event_cost = jnp.float32(0.0)   # mirrors the reference; computed but not returned
    for name, ltype, k, stride, cin, cout in LAYERS:
        wp = params[name]
        Kp, Np = wp.shape
        if ltype == "conv":
            a, OH, OW = _im2col(x, cin, k, stride, Kp)
            F = N * OH * OW * cout
        else:
            # Flatten block: spatial is 1x1 here, so channels-last flatten matches
            # lava-dl's (c, h, w) flatten order.
            a = x.reshape(T, N, -1)
            Fin = a.shape[-1]
            if Fin < Kp:
                a = jnp.pad(a, ((0, 0), (0, 0), (0, Kp - Fin)))
            elif Fin > Kp:
                a = a[..., :Kp]     # drops previous layer's padding lanes only
            F = N * cout
        spikes, s = fused_synapse_cuba(a, wp, **NEURON)            # (T, R, Np) bf16, scalar
        if ltype == "conv":
            x = spikes.reshape(T, N, OH, OW, Np)
        else:
            x = spikes                                             # (T, N, Np)
        mean_rate = s / (F * T)
        event_cost = event_cost + jnp.square(jax.nn.relu(mean_rate - 0.01))
        counts.append(s)                                           # sum(|y[..., 1:] > 0|)

    out = jnp.transpose(x[:, :, :10].astype(jnp.float32), (1, 2, 0))   # (N, 10, T)
    count = jnp.stack(counts).reshape(1, -1).astype(jnp.float32)
    return out, count


# ------------------------------ weights ------------------------------

def init_weights(key):
    specs = dict(conv1=(32, 3, 3, 3), conv2=(64, 32, 3, 3), conv3=(128, 64, 3, 3),
                 conv4=(256, 128, 3, 3), conv5=(64, 256, 3, 3),
                 fc1=(128, 64), fc2=(10, 128))
    weights = {}
    for name, shape in specs.items():
        key, sub = jax.random.split(key)
        fan_in = int(np.prod(shape[1:]))
        weights[name] = jax.random.normal(sub, shape, jnp.float32) * (2.0 / np.sqrt(fan_in))
    return weights


def prepare_params(weights):
    """Pad + cast weight matrices to bf16 ONCE, outside the jit'd forward.
    Padded rows/columns are exactly zero so padded lanes never spike."""
    params = {}
    for name, ltype, k, stride, cin, cout in LAYERS:
        w = weights[name]
        if ltype == "conv":
            b = jnp.transpose(w, (2, 3, 1, 0)).reshape(k * k * cin, cout)   # (ki,kj,cin) rows
        else:
            b = w.T                                                         # (Fin, Cout)
        K, Nc = b.shape
        Kp, Np = _round_up(K, 128), _round_up(Nc, 128)
        params[name] = jnp.zeros((Kp, Np), jnp.bfloat16).at[:K, :Nc].set(b.astype(jnp.bfloat16))
    return params


if __name__ == "__main__":
    key = jax.random.PRNGKey(0)
    wkey, xkey = jax.random.split(key)
    weights = init_weights(wkey)
    params = prepare_params(weights)

    # 34x34 spatial input so the 5-conv stack reduces to 1x1, matching
    # Dense(1*1*64, 128) in the module; small batch and time.
    N, C, H, W, T = 2, 3, 34, 34, 8
    x = (jax.random.uniform(xkey, (N, C, H, W, T)) < 0.3).astype(jnp.float32)

    fwd = jax.jit(conv_class_forward)
    out, count = fwd(x, params)
    jax.block_until_ready((out, count))
    assert out.shape == (N, 10, T), out.shape
    assert count.shape == (1, 7), count.shape
    print("KERNEL_OK")
</pallas_src>

<mosaic_0001>
module attributes {stable_mosaic.version = 11 : i64} {
  func.func @_fused_layer_kernel(%arg0: i32, %arg1: i32, %arg2: memref<1x256x128xbf16, #tpu.memory_space<vmem>>, %arg3: memref<128x128xbf16, #tpu.memory_space<vmem>>, %arg4: memref<1x256x128xbf16, #tpu.memory_space<vmem>>, %arg5: memref<256x128xf32, #tpu.memory_space<vmem>>, %arg6: memref<256x128xf32, #tpu.memory_space<vmem>>, %arg7: memref<256x128xf32, #tpu.memory_space<vmem>>) attributes {dimension_semantics = [#tpu.dimension_semantics<parallel>, #tpu.dimension_semantics<arbitrary>], iteration_bounds = array<i64: 2, 8>, scalar_prefetch = 0 : i64, scratch_operands = 2 : i64, tpu.core_type = #tpu.core_type<tc>, window_params = [{transform_indices = @transform_0, window_bounds = array<i64: 1, 256, 128>}, {pipeline_mode = #tpu.pipeline_mode<synchronous>, transform_indices = @transform_1, window_bounds = array<i64: 128, 128>}, {transform_indices = @transform_2, window_bounds = array<i64: 1, 256, 128>}, {transform_indices = @transform_3, window_bounds = array<i64: 256, 128>}]} {
    %c0_i32 = arith.constant 0 : i32
    %0 = arith.cmpi eq, %arg1, %c0_i32 : i32
    %1 = arith.extui %0 : i1 to i32
    %c0_i32_0 = arith.constant 0 : i32
    %2 = arith.cmpi ne, %1, %c0_i32_0 : i32
    scf.if %2 {
      %cst = arith.constant 0.000000e+00 : f32
      %6 = vector.broadcast %cst : f32 to vector<256x128xf32>
      %c0 = arith.constant 0 : index
      %c0_3 = arith.constant 0 : index
      %7 = vector.load %arg6[%c0, %c0_3] : memref<256x128xf32, #tpu.memory_space<vmem>>, vector<256x128xf32>
      tpu.vector_store %arg6[%c0, %c0_3], %6 {strides = array<i32>} : memref<256x128xf32, #tpu.memory_space<vmem>>, vector<256x128xf32>,
      %cst_4 = arith.constant 0.000000e+00 : f32
      %8 = vector.broadcast %cst_4 : f32 to vector<256x128xf32>
      %c0_5 = arith.constant 0 : index
      %c0_6 = arith.constant 0 : index
      %9 = vector.load %arg7[%c0_5, %c0_6] : memref<256x128xf32, #tpu.memory_space<vmem>>, vector<256x128xf32>
      tpu.vector_store %arg7[%c0_5, %c0_6], %8 {strides = array<i32>} : memref<256x128xf32, #tpu.memory_space<vmem>>, vector<256x128xf32>,
      %cst_7 = arith.constant 0.000000e+00 : f32
      %10 = vector.broadcast %cst_7 : f32 to vector<256x128xf32>
      %c0_8 = arith.constant 0 : index
      %c0_9 = arith.constant 0 : index
      %11 = vector.load %arg5[%c0_8, %c0_9] : memref<256x128xf32, #tpu.memory_space<vmem>>, vector<256x128xf32>
      tpu.vector_store %arg5[%c0_8, %c0_9], %10 {strides = array<i32>} : memref<256x128xf32, #tpu.memory_space<vmem>>, vector<256x128xf32>,
      %cst_10 = arith.constant 0.000000e+00 : bf16
      %12 = vector.broadcast %cst_10 : bf16 to vector<1x256x128xbf16>
      %c0_11 = arith.constant 0 : index
      %c0_12 = arith.constant 0 : index
      %c0_13 = arith.constant 0 : index
      %13 = vector.load %arg4[%c0_11, %c0_12, %c0_13] : memref<1x256x128xbf16, #tpu.memory_space<vmem>>, vector<1x256x128xbf16>
      tpu.vector_store %arg4[%c0_11, %c0_12, %c0_13], %12 {strides = array<i32>} : memref<1x256x128xbf16, #tpu.memory_space<vmem>>, vector<1x256x128xbf16>,
    } else {
    }
    %c0_i32_1 = arith.constant 0 : i32
    %3 = arith.cmpi sgt, %arg1, %c0_i32_1 : i32
    %4 = arith.extui %3 : i1 to i32
    %c0_i32_2 = arith.constant 0 : i32
    %5 = arith.cmpi ne, %4, %c0_i32_2 : i32
    scf.if %5 {
      %c0 = arith.constant 0 : index
      %c0_3 = arith.constant 0 : index
      %c0_4 = arith.constant 0 : index
      %6 = vector.load %arg2[%c0, %c0_3, %c0_4] : memref<1x256x128xbf16, #tpu.memory_space<vmem>>, vector<1x256x128xbf16>
      %7 = vector.shape_cast %6 : vector<1x256x128xbf16> to vector<256x128xbf16>
      %c0_5 = arith.constant 0 : index
      %c0_6 = arith.constant 0 : index
      %8 = vector.load %arg3[%c0_5, %c0_6] : memref<128x128xbf16, #tpu.memory_space<vmem>>, vector<128x128xbf16>
      %cst = arith.constant dense<0.000000e+00> : vector<256x128xf32>
      %9 = tpu.matmul %7, %8, %cst {dimension_numbers = #tpu.dot_dimension_numbers<[1], [0], [0], [1], [0, 0, 1, 1], [], []>} : vector<256x128xbf16>, vector<128x128xbf16>, vector<256x128xf32> -> vector<256x128xf32>
      %c0_7 = arith.constant 0 : index
      %c0_8 = arith.constant 0 : index
      %10 = vector.load %arg6[%c0_7, %c0_8] : memref<256x128xf32, #tpu.memory_space<vmem>>, vector<256x128xf32>
      %cst_9 = arith.constant 7.500000e-01 : f32
      %11 = vector.broadcast %cst_9 : f32 to vector<256x128xf32>
      %12 = arith.mulf %11, %10 : vector<256x128xf32>
      %13 = arith.addf %12, %9 : vector<256x128xf32>
      %c0_10 = arith.constant 0 : index
      %c0_11 = arith.constant 0 : index
      %14 = vector.load %arg7[%c0_10, %c0_11] : memref<256x128xf32, #tpu.memory_space<vmem>>, vector<256x128xf32>
      %cst_12 = arith.constant 9.700000e-01 : f32
      %15 = vector.broadcast %cst_12 : f32 to vector<256x128xf32>
      %16 = arith.mulf %15, %14 : vector<256x128xf32>
      %17 = arith.addf %16, %13 : vector<256x128xf32>
      %cst_13 = arith.constant 1.000000e+00 : f32
      %18 = vector.broadcast %cst_13 : f32 to vector<256x128xf32>
      %19 = arith.cmpf oge, %17, %18 : vector<256x128xf32>
      %cst_14 = arith.constant 1.000000e+00 : f32
      %cst_15 = arith.constant 0.000000e+00 : f32
      %20 = vector.broadcast %cst_14 : f32 to vector<256x128xf32>
      %21 = vector.broadcast %cst_15 : f32 to vector<256x128xf32>
      %22 = arith.select %19, %20, %21 : vector<256x128xi1>, vector<256x128xf32>
      %c0_16 = arith.constant 0 : index
      %c0_17 = arith.constant 0 : index
      %23 = vector.load %arg6[%c0_16, %c0_17] : memref<256x128xf32, #tpu.memory_space<vmem>>, vector<256x128xf32>
      tpu.vector_store %arg6[%c0_16, %c0_17], %13 {strides = array<i32>} : memref<256x128xf32, #tpu.memory_space<vmem>>, vector<256x128xf32>,
      %cst_18 = arith.constant 0.000000e+00 : f32
      %24 = vector.broadcast %cst_18 : f32 to vector<256x128xf32>
      %25 = arith.select %19, %24, %17 : vector<256x128xi1>, vector<256x128xf32>
      %c0_19 = arith.constant 0 : index
      %c0_20 = arith.constant 0 : index
      %26 = vector.load %arg7[%c0_19, %c0_20] : memref<256x128xf32, #tpu.memory_space<vmem>>, vector<256x128xf32>
      tpu.vector_store %arg7[%c0_19, %c0_20], %25 {strides = array<i32>} : memref<256x128xf32, #tpu.memory_space<vmem>>, vector<256x128xf32>,
      %c0_21 = arith.constant 0 : index
      %c0_22 = arith.constant 0 : index
      %27 = vector.load %arg5[%c0_21, %c0_22] : memref<256x128xf32, #tpu.memory_space<vmem>>, vector<256x128xf32>
      %28 = arith.addf %27, %22 : vector<256x128xf32>
      %c0_23 = arith.constant 0 : index
      %c0_24 = arith.constant 0 : index
      %29 = vector.load %arg5[%c0_23, %c0_24] : memref<256x128xf32, #tpu.memory_space<vmem>>, vector<256x128xf32>
      tpu.vector_store %arg5[%c0_23, %c0_24], %28 {strides = array<i32>} : memref<256x128xf32, #tpu.memory_space<vmem>>, vector<256x128xf32>,
      %30 = arith.truncf %22 : vector<256x128xf32> to vector<256x128xbf16>
      %c0_25 = arith.constant 0 : index
      %c0_26 = arith.constant 0 : index
      %c0_27 = arith.constant 0 : index
      %31 = vector.load %arg4[%c0_25, %c0_26, %c0_27] : memref<1x256x128xbf16, #tpu.memory_space<vmem>>, vector<1x256x128xbf16>
      %32 = vector.shape_cast %31 : vector<1x256x128xbf16> to vector<256x128xbf16>
      %33 = vector.shape_cast %30 : vector<256x128xbf16> to vector<1x256x128xbf16>
      tpu.vector_store %arg4[%c0_25, %c0_26, %c0_27], %33 {strides = array<i32>} : memref<1x256x128xbf16, #tpu.memory_space<vmem>>, vector<1x256x128xbf16>,
    } else {
    }
    return
  }
  func.func @transform_0(%arg0: i32, %arg1: i32) -> (i32, i32, i32) {
    %c1_i32 = arith.constant 1 : i32
    %0 = arith.subi %arg1, %c1_i32 : i32
    %c0_i32 = arith.constant 0 : i32
    %1 = arith.maxsi %0, %c0_i32 : i32
    %c0_i32_0 = arith.constant 0 : i32
    %c0_i32_1 = arith.constant 0 : i32
    return %1, %arg0, %c0_i32_0 : i32, i32, i32
  }
  func.func @transform_1(%arg0: i32, %arg1: i32) -> (i32, i32) {
    %c0_i32 = arith.constant 0 : i32
    %c0_i32_0 = arith.constant 0 : i32
    %c0_i32_1 = arith.constant 0 : i32
    return %c0_i32, %c0_i32_0 : i32, i32
  }
  func.func @transform_2(%arg0: i32, %arg1: i32) -> (i32, i32, i32) {
    %c0_i32 = arith.constant 0 : i32
    %c0_i32_0 = arith.constant 0 : i32
    return %arg1, %arg0, %c0_i32 : i32, i32, i32
  }
  func.func @transform_3(%arg0: i32, %arg1: i32) -> (i32, i32) {
    %c0_i32 = arith.constant 0 : i32
    %c0_i32_0 = arith.constant 0 : i32
    return %arg0, %c0_i32 : i32, i32
  }
}

module attributes {stable_mosaic.version = 11 : i64} {
  func.func @_fused_layer_kernel(%arg0: i32, %arg1: i32, %arg2: memref<1x208x384xbf16, #tpu.memory_space<vmem>>, %arg3: memref<384x128xbf16, #tpu.memory_space<vmem>>, %arg4: memref<1x208x128xbf16, #tpu.memory_space<vmem>>, %arg5: memref<208x128xf32, #tpu.memory_space<vmem>>, %arg6: memref<208x128xf32, #tpu.memory_space<vmem>>, %arg7: memref<208x128xf32, #tpu.memory_space<vmem>>) attributes {dimension_semantics = [#tpu.dimension_semantics<parallel>, #tpu.dimension_semantics<arbitrary>], iteration_bounds = array<i64: 2, 8>, scalar_prefetch = 0 : i64, scratch_operands = 2 : i64, tpu.core_type = #tpu.core_type<tc>, window_params = [{transform_indices = @transform_0, window_bounds = array<i64: 1, 208, 384>}, {pipeline_mode = #tpu.pipeline_mode<synchronous>, transform_indices = @transform_1, window_bounds = array<i64: 384, 128>}, {transform_indices = @transform_2, window_bounds = array<i64: 1, 208, 128>}, {transform_indices = @transform_3, window_bounds = array<i64: 208, 128>}]} {
    %c0_i32 = arith.constant 0 : i32
    %0 = arith.cmpi eq, %arg1, %c0_i32 : i32
    %1 = arith.extui %0 : i1 to i32
    %c0_i32_0 = arith.constant 0 : i32
    %2 = arith.cmpi ne, %1, %c0_i32_0 : i32
    scf.if %2 {
      %cst = arith.constant 0.000000e+00 : f32
      %6 = vector.broadcast %cst : f32 to vector<208x128xf32>
      %c0 = arith.constant 0 : index
      %c0_3 = arith.constant 0 : index
      %7 = vector.load %arg6[%c0, %c0_3] : memref<208x128xf32, #tpu.memory_space<vmem>>, vector<208x128xf32>
      tpu.vector_store %arg6[%c0, %c0_3], %6 {strides = array<i32>} : memref<208x128xf32, #tpu.memory_space<vmem>>, vector<208x128xf32>,
      %cst_4 = arith.constant 0.000000e+00 : f32
      %8 = vector.broadcast %cst_4 : f32 to vector<208x128xf32>
      %c0_5 = arith.constant 0 : index
      %c0_6 = arith.constant 0 : index
      %9 = vector.load %arg7[%c0_5, %c0_6] : memref<208x128xf32, #tpu.memory_space<vmem>>, vector<208x128xf32>
      tpu.vector_store %arg7[%c0_5, %c0_6], %8 {strides = array<i32>} : memref<208x128xf32, #tpu.memory_space<vmem>>, vector<208x128xf32>,
      %cst_7 = arith.constant 0.000000e+00 : f32
      %10 = vector.broadcast %cst_7 : f32 to vector<208x128xf32>
      %c0_8 = arith.constant 0 : index
      %c0_9 = arith.constant 0 : index
      %11 = vector.load %arg5[%c0_8, %c0_9] : memref<208x128xf32, #tpu.memory_space<vmem>>, vector<208x128xf32>
      tpu.vector_store %arg5[%c0_8, %c0_9], %10 {strides = array<i32>} : memref<208x128xf32, #tpu.memory_space<vmem>>, vector<208x128xf32>,
      %cst_10 = arith.constant 0.000000e+00 : bf16
      %12 = vector.broadcast %cst_10 : bf16 to vector<1x208x128xbf16>
      %c0_11 = arith.constant 0 : index
      %c0_12 = arith.constant 0 : index
      %c0_13 = arith.constant 0 : index
      %13 = vector.load %arg4[%c0_11, %c0_12, %c0_13] : memref<1x208x128xbf16, #tpu.memory_space<vmem>>, vector<1x208x128xbf16>
      tpu.vector_store %arg4[%c0_11, %c0_12, %c0_13], %12 {strides = array<i32>} : memref<1x208x128xbf16, #tpu.memory_space<vmem>>, vector<1x208x128xbf16>,
    } else {
    }
    %c0_i32_1 = arith.constant 0 : i32
    %3 = arith.cmpi sgt, %arg1, %c0_i32_1 : i32
    %4 = arith.extui %3 : i1 to i32
    %c0_i32_2 = arith.constant 0 : i32
    %5 = arith.cmpi ne, %4, %c0_i32_2 : i32
    scf.if %5 {
      %c0 = arith.constant 0 : index
      %c0_3 = arith.constant 0 : index
      %c0_4 = arith.constant 0 : index
      %6 = vector.load %arg2[%c0, %c0_3, %c0_4] : memref<1x208x384xbf16, #tpu.memory_space<vmem>>, vector<1x208x384xbf16>
      %7 = vector.shape_cast %6 : vector<1x208x384xbf16> to vector<208x384xbf16>
      %c0_5 = arith.constant 0 : index
      %c0_6 = arith.constant 0 : index
      %8 = vector.load %arg3[%c0_5, %c0_6] : memref<384x128xbf16, #tpu.memory_space<vmem>>, vector<384x128xbf16>
      %cst = arith.constant dense<0.000000e+00> : vector<208x128xf32>
      %9 = tpu.matmul %7, %8, %cst {dimension_numbers = #tpu.dot_dimension_numbers<[1], [0], [0], [1], [0, 0, 1, 1], [], []>} : vector<208x384xbf16>, vector<384x128xbf16>, vector<208x128xf32> -> vector<208x128xf32>
      %c0_7 = arith.constant 0 : index
      %c0_8 = arith.constant 0 : index
      %10 = vector.load %arg6[%c0_7, %c0_8] : memref<208x128xf32, #tpu.memory_space<vmem>>, vector<208x128xf32>
      %cst_9 = arith.constant 7.500000e-01 : f32
      %11 = vector.broadcast %cst_9 : f32 to vector<208x128xf32>
      %12 = arith.mulf %11, %10 : vector<208x128xf32>
      %13 = arith.addf %12, %9 : vector<208x128xf32>
      %c0_10 = arith.constant 0 : index
      %c0_11 = arith.constant 0 : index
      %14 = vector.load %arg7[%c0_10, %c0_11] : memref<208x128xf32, #tpu.memory_space<vmem>>, vector<208x128xf32>
      %cst_12 = arith.constant 9.700000e-01 : f32
      %15 = vector.broadcast %cst_12 : f32 to vector<208x128xf32>
      %16 = arith.mulf %15, %14 : vector<208x128xf32>
      %17 = arith.addf %16, %13 : vector<208x128xf32>
      %cst_13 = arith.constant 1.000000e+00 : f32
      %18 = vector.broadcast %cst_13 : f32 to vector<208x128xf32>
      %19 = arith.cmpf oge, %17, %18 : vector<208x128xf32>
      %cst_14 = arith.constant 1.000000e+00 : f32
      %cst_15 = arith.constant 0.000000e+00 : f32
      %20 = vector.broadcast %cst_14 : f32 to vector<208x128xf32>
      %21 = vector.broadcast %cst_15 : f32 to vector<208x128xf32>
      %22 = arith.select %19, %20, %21 : vector<208x128xi1>, vector<208x128xf32>
      %c0_16 = arith.constant 0 : index
      %c0_17 = arith.constant 0 : index
      %23 = vector.load %arg6[%c0_16, %c0_17] : memref<208x128xf32, #tpu.memory_space<vmem>>, vector<208x128xf32>
      tpu.vector_store %arg6[%c0_16, %c0_17], %13 {strides = array<i32>} : memref<208x128xf32, #tpu.memory_space<vmem>>, vector<208x128xf32>,
      %cst_18 = arith.constant 0.000000e+00 : f32
      %24 = vector.broadcast %cst_18 : f32 to vector<208x128xf32>
      %25 = arith.select %19, %24, %17 : vector<208x128xi1>, vector<208x128xf32>
      %c0_19 = arith.constant 0 : index
      %c0_20 = arith.constant 0 : index
      %26 = vector.load %arg7[%c0_19, %c0_20] : memref<208x128xf32, #tpu.memory_space<vmem>>, vector<208x128xf32>
      tpu.vector_store %arg7[%c0_19, %c0_20], %25 {strides = array<i32>} : memref<208x128xf32, #tpu.memory_space<vmem>>, vector<208x128xf32>,
      %c0_21 = arith.constant 0 : index
      %c0_22 = arith.constant 0 : index
      %27 = vector.load %arg5[%c0_21, %c0_22] : memref<208x128xf32, #tpu.memory_space<vmem>>, vector<208x128xf32>
      %28 = arith.addf %27, %22 : vector<208x128xf32>
      %c0_23 = arith.constant 0 : index
      %c0_24 = arith.constant 0 : index
      %29 = vector.load %arg5[%c0_23, %c0_24] : memref<208x128xf32, #tpu.memory_space<vmem>>, vector<208x128xf32>
      tpu.vector_store %arg5[%c0_23, %c0_24], %28 {strides = array<i32>} : memref<208x128xf32, #tpu.memory_space<vmem>>, vector<208x128xf32>,
      %30 = arith.truncf %22 : vector<208x128xf32> to vector<208x128xbf16>
      %c0_25 = arith.constant 0 : index
      %c0_26 = arith.constant 0 : index
      %c0_27 = arith.constant 0 : index
      %31 = vector.load %arg4[%c0_25, %c0_26, %c0_27] : memref<1x208x128xbf16, #tpu.memory_space<vmem>>, vector<1x208x128xbf16>
      %32 = vector.shape_cast %31 : vector<1x208x128xbf16> to vector<208x128xbf16>
      %33 = vector.shape_cast %30 : vector<208x128xbf16> to vector<1x208x128xbf16>
      tpu.vector_store %arg4[%c0_25, %c0_26, %c0_27], %33 {strides = array<i32>} : memref<1x208x128xbf16, #tpu.memory_space<vmem>>, vector<1x208x128xbf16>,
    } else {
    }
    return
  }
  func.func @transform_0(%arg0: i32, %arg1: i32) -> (i32, i32, i32) {
    %c1_i32 = arith.constant 1 : i32
    %0 = arith.subi %arg1, %c1_i32 : i32
    %c0_i32 = arith.constant 0 : i32
    %1 = arith.maxsi %0, %c0_i32 : i32
    %c0_i32_0 = arith.constant 0 : i32
    %c0_i32_1 = arith.constant 0 : i32
    return %1, %arg0, %c0_i32_0 : i32, i32, i32
  }
  func.func @transform_1(%arg0: i32, %arg1: i32) -> (i32, i32) {
    %c0_i32 = arith.constant 0 : i32
    %c0_i32_0 = arith.constant 0 : i32
    %c0_i32_1 = arith.constant 0 : i32
    return %c0_i32, %c0_i32_0 : i32, i32
  }
  func.func @transform_2(%arg0: i32, %arg1: i32) -> (i32, i32, i32) {
    %c0_i32 = arith.constant 0 : i32
    %c0_i32_0 = arith.constant 0 : i32
    return %arg1, %arg0, %c0_i32 : i32, i32, i32
  }
  func.func @transform_3(%arg0: i32, %arg1: i32) -> (i32, i32) {
    %c0_i32 = arith.constant 0 : i32
    %c0_i32_0 = arith.constant 0 : i32
    return %arg0, %c0_i32 : i32, i32
  }
}

module attributes {stable_mosaic.version = 11 : i64} {
  func.func @_fused_layer_kernel(%arg0: i32, %arg1: i32, %arg2: memref<1x48x640xbf16, #tpu.memory_space<vmem>>, %arg3: memref<640x128xbf16, #tpu.memory_space<vmem>>, %arg4: memref<1x48x128xbf16, #tpu.memory_space<vmem>>, %arg5: memref<48x128xf32, #tpu.memory_space<vmem>>, %arg6: memref<48x128xf32, #tpu.memory_space<vmem>>, %arg7: memref<48x128xf32, #tpu.memory_space<vmem>>) attributes {dimension_semantics = [#tpu.dimension_semantics<parallel>, #tpu.dimension_semantics<arbitrary>], iteration_bounds = array<i64: 2, 8>, scalar_prefetch = 0 : i64, scratch_operands = 2 : i64, tpu.core_type = #tpu.core_type<tc>, window_params = [{transform_indices = @transform_0, window_bounds = array<i64: 1, 48, 640>}, {pipeline_mode = #tpu.pipeline_mode<synchronous>, transform_indices = @transform_1, window_bounds = array<i64: 640, 128>}, {transform_indices = @transform_2, window_bounds = array<i64: 1, 48, 128>}, {transform_indices = @transform_3, window_bounds = array<i64: 48, 128>}]} {
    %c0_i32 = arith.constant 0 : i32
    %0 = arith.cmpi eq, %arg1, %c0_i32 : i32
    %1 = arith.extui %0 : i1 to i32
    %c0_i32_0 = arith.constant 0 : i32
    %2 = arith.cmpi ne, %1, %c0_i32_0 : i32
    scf.if %2 {
      %cst = arith.constant 0.000000e+00 : f32
      %6 = vector.broadcast %cst : f32 to vector<48x128xf32>
      %c0 = arith.constant 0 : index
      %c0_3 = arith.constant 0 : index
      %7 = vector.load %arg6[%c0, %c0_3] : memref<48x128xf32, #tpu.memory_space<vmem>>, vector<48x128xf32>
      tpu.vector_store %arg6[%c0, %c0_3], %6 {strides = array<i32>} : memref<48x128xf32, #tpu.memory_space<vmem>>, vector<48x128xf32>,
      %cst_4 = arith.constant 0.000000e+00 : f32
      %8 = vector.broadcast %cst_4 : f32 to vector<48x128xf32>
      %c0_5 = arith.constant 0 : index
      %c0_6 = arith.constant 0 : index
      %9 = vector.load %arg7[%c0_5, %c0_6] : memref<48x128xf32, #tpu.memory_space<vmem>>, vector<48x128xf32>
      tpu.vector_store %arg7[%c0_5, %c0_6], %8 {strides = array<i32>} : memref<48x128xf32, #tpu.memory_space<vmem>>, vector<48x128xf32>,
      %cst_7 = arith.constant 0.000000e+00 : f32
      %10 = vector.broadcast %cst_7 : f32 to vector<48x128xf32>
      %c0_8 = arith.constant 0 : index
      %c0_9 = arith.constant 0 : index
      %11 = vector.load %arg5[%c0_8, %c0_9] : memref<48x128xf32, #tpu.memory_space<vmem>>, vector<48x128xf32>
      tpu.vector_store %arg5[%c0_8, %c0_9], %10 {strides = array<i32>} : memref<48x128xf32, #tpu.memory_space<vmem>>, vector<48x128xf32>,
      %cst_10 = arith.constant 0.000000e+00 : bf16
      %12 = vector.broadcast %cst_10 : bf16 to vector<1x48x128xbf16>
      %c0_11 = arith.constant 0 : index
      %c0_12 = arith.constant 0 : index
      %c0_13 = arith.constant 0 : index
      %13 = vector.load %arg4[%c0_11, %c0_12, %c0_13] : memref<1x48x128xbf16, #tpu.memory_space<vmem>>, vector<1x48x128xbf16>
      tpu.vector_store %arg4[%c0_11, %c0_12, %c0_13], %12 {strides = array<i32>} : memref<1x48x128xbf16, #tpu.memory_space<vmem>>, vector<1x48x128xbf16>,
    } else {
    }
    %c0_i32_1 = arith.constant 0 : i32
    %3 = arith.cmpi sgt, %arg1, %c0_i32_1 : i32
    %4 = arith.extui %3 : i1 to i32
    %c0_i32_2 = arith.constant 0 : i32
    %5 = arith.cmpi ne, %4, %c0_i32_2 : i32
    scf.if %5 {
      %c0 = arith.constant 0 : index
      %c0_3 = arith.constant 0 : index
      %c0_4 = arith.constant 0 : index
      %6 = vector.load %arg2[%c0, %c0_3, %c0_4] : memref<1x48x640xbf16, #tpu.memory_space<vmem>>, vector<1x48x640xbf16>
      %7 = vector.shape_cast %6 : vector<1x48x640xbf16> to vector<48x640xbf16>
      %c0_5 = arith.constant 0 : index
      %c0_6 = arith.constant 0 : index
      %8 = vector.load %arg3[%c0_5, %c0_6] : memref<640x128xbf16, #tpu.memory_space<vmem>>, vector<640x128xbf16>
      %cst = arith.constant dense<0.000000e+00> : vector<48x128xf32>
      %9 = tpu.matmul %7, %8, %cst {dimension_numbers = #tpu.dot_dimension_numbers<[1], [0], [0], [1], [0, 0, 1, 1], [], []>} : vector<48x640xbf16>, vector<640x128xbf16>, vector<48x128xf32> -> vector<48x128xf32>
      %c0_7 = arith.constant 0 : index
      %c0_8 = arith.constant 0 : index
      %10 = vector.load %arg6[%c0_7, %c0_8] : memref<48x128xf32, #tpu.memory_space<vmem>>, vector<48x128xf32>
      %cst_9 = arith.constant 7.500000e-01 : f32
      %11 = vector.broadcast %cst_9 : f32 to vector<48x128xf32>
      %12 = arith.mulf %11, %10 : vector<48x128xf32>
      %13 = arith.addf %12, %9 : vector<48x128xf32>
      %c0_10 = arith.constant 0 : index
      %c0_11 = arith.constant 0 : index
      %14 = vector.load %arg7[%c0_10, %c0_11] : memref<48x128xf32, #tpu.memory_space<vmem>>, vector<48x128xf32>
      %cst_12 = arith.constant 9.700000e-01 : f32
      %15 = vector.broadcast %cst_12 : f32 to vector<48x128xf32>
      %16 = arith.mulf %15, %14 : vector<48x128xf32>
      %17 = arith.addf %16, %13 : vector<48x128xf32>
      %cst_13 = arith.constant 1.000000e+00 : f32
      %18 = vector.broadcast %cst_13 : f32 to vector<48x128xf32>
      %19 = arith.cmpf oge, %17, %18 : vector<48x128xf32>
      %cst_14 = arith.constant 1.000000e+00 : f32
      %cst_15 = arith.constant 0.000000e+00 : f32
      %20 = vector.broadcast %cst_14 : f32 to vector<48x128xf32>
      %21 = vector.broadcast %cst_15 : f32 to vector<48x128xf32>
      %22 = arith.select %19, %20, %21 : vector<48x128xi1>, vector<48x128xf32>
      %c0_16 = arith.constant 0 : index
      %c0_17 = arith.constant 0 : index
      %23 = vector.load %arg6[%c0_16, %c0_17] : memref<48x128xf32, #tpu.memory_space<vmem>>, vector<48x128xf32>
      tpu.vector_store %arg6[%c0_16, %c0_17], %13 {strides = array<i32>} : memref<48x128xf32, #tpu.memory_space<vmem>>, vector<48x128xf32>,
      %cst_18 = arith.constant 0.000000e+00 : f32
      %24 = vector.broadcast %cst_18 : f32 to vector<48x128xf32>
      %25 = arith.select %19, %24, %17 : vector<48x128xi1>, vector<48x128xf32>
      %c0_19 = arith.constant 0 : index
      %c0_20 = arith.constant 0 : index
      %26 = vector.load %arg7[%c0_19, %c0_20] : memref<48x128xf32, #tpu.memory_space<vmem>>, vector<48x128xf32>
      tpu.vector_store %arg7[%c0_19, %c0_20], %25 {strides = array<i32>} : memref<48x128xf32, #tpu.memory_space<vmem>>, vector<48x128xf32>,
      %c0_21 = arith.constant 0 : index
      %c0_22 = arith.constant 0 : index
      %27 = vector.load %arg5[%c0_21, %c0_22] : memref<48x128xf32, #tpu.memory_space<vmem>>, vector<48x128xf32>
      %28 = arith.addf %27, %22 : vector<48x128xf32>
      %c0_23 = arith.constant 0 : index
      %c0_24 = arith.constant 0 : index
      %29 = vector.load %arg5[%c0_23, %c0_24] : memref<48x128xf32, #tpu.memory_space<vmem>>, vector<48x128xf32>
      tpu.vector_store %arg5[%c0_23, %c0_24], %28 {strides = array<i32>} : memref<48x128xf32, #tpu.memory_space<vmem>>, vector<48x128xf32>,
      %30 = arith.truncf %22 : vector<48x128xf32> to vector<48x128xbf16>
      %c0_25 = arith.constant 0 : index
      %c0_26 = arith.constant 0 : index
      %c0_27 = arith.constant 0 : index
      %31 = vector.load %arg4[%c0_25, %c0_26, %c0_27] : memref<1x48x128xbf16, #tpu.memory_space<vmem>>, vector<1x48x128xbf16>
      %32 = vector.shape_cast %31 : vector<1x48x128xbf16> to vector<48x128xbf16>
      %33 = vector.shape_cast %30 : vector<48x128xbf16> to vector<1x48x128xbf16>
      tpu.vector_store %arg4[%c0_25, %c0_26, %c0_27], %33 {strides = array<i32>} : memref<1x48x128xbf16, #tpu.memory_space<vmem>>, vector<1x48x128xbf16>,
    } else {
    }
    return
  }
  func.func @transform_0(%arg0: i32, %arg1: i32) -> (i32, i32, i32) {
    %c1_i32 = arith.constant 1 : i32
    %0 = arith.subi %arg1, %c1_i32 : i32
    %c0_i32 = arith.constant 0 : i32
    %1 = arith.maxsi %0, %c0_i32 : i32
    %c0_i32_0 = arith.constant 0 : i32
    %c0_i32_1 = arith.constant 0 : i32
    return %1, %arg0, %c0_i32_0 : i32, i32, i32
  }
  func.func @transform_1(%arg0: i32, %arg1: i32) -> (i32, i32) {
    %c0_i32 = arith.constant 0 : i32
    %c0_i32_0 = arith.constant 0 : i32
    %c0_i32_1 = arith.constant 0 : i32
    return %c0_i32, %c0_i32_0 : i32, i32
  }
  func.func @transform_2(%arg0: i32, %arg1: i32) -> (i32, i32, i32) {
    %c0_i32 = arith.constant 0 : i32
    %c0_i32_0 = arith.constant 0 : i32
    return %arg1, %arg0, %c0_i32 : i32, i32, i32
  }
  func.func @transform_3(%arg0: i32, %arg1: i32) -> (i32, i32) {
    %c0_i32 = arith.constant 0 : i32
    %c0_i32_0 = arith.constant 0 : i32
    return %arg0, %c0_i32 : i32, i32
  }
}

module attributes {stable_mosaic.version = 11 : i64} {
  func.func @_fused_layer_kernel(%arg0: i32, %arg1: i32, %arg2: memref<1x16x1152xbf16, #tpu.memory_space<vmem>>, %arg3: memref<1152x256xbf16, #tpu.memory_space<vmem>>, %arg4: memref<1x16x256xbf16, #tpu.memory_space<vmem>>, %arg5: memref<16x256xf32, #tpu.memory_space<vmem>>, %arg6: memref<16x256xf32, #tpu.memory_space<vmem>>, %arg7: memref<16x256xf32, #tpu.memory_space<vmem>>) attributes {dimension_semantics = [#tpu.dimension_semantics<parallel>, #tpu.dimension_semantics<arbitrary>], iteration_bounds = array<i64: 2, 8>, scalar_prefetch = 0 : i64, scratch_operands = 2 : i64, tpu.core_type = #tpu.core_type<tc>, window_params = [{transform_indices = @transform_0, window_bounds = array<i64: 1, 16, 1152>}, {pipeline_mode = #tpu.pipeline_mode<synchronous>, transform_indices = @transform_1, window_bounds = array<i64: 1152, 256>}, {transform_indices = @transform_2, window_bounds = array<i64: 1, 16, 256>}, {transform_indices = @transform_3, window_bounds = array<i64: 16, 256>}]} {
    %c0_i32 = arith.constant 0 : i32
    %0 = arith.cmpi eq, %arg1, %c0_i32 : i32
    %1 = arith.extui %0 : i1 to i32
    %c0_i32_0 = arith.constant 0 : i32
    %2 = arith.cmpi ne, %1, %c0_i32_0 : i32
    scf.if %2 {
      %cst = arith.constant 0.000000e+00 : f32
      %6 = vector.broadcast %cst : f32 to vector<16x256xf32>
      %c0 = arith.constant 0 : index
      %c0_3 = arith.constant 0 : index
      %7 = vector.load %arg6[%c0, %c0_3] : memref<16x256xf32, #tpu.memory_space<vmem>>, vector<16x256xf32>
      tpu.vector_store %arg6[%c0, %c0_3], %6 {strides = array<i32>} : memref<16x256xf32, #tpu.memory_space<vmem>>, vector<16x256xf32>,
      %cst_4 = arith.constant 0.000000e+00 : f32
      %8 = vector.broadcast %cst_4 : f32 to vector<16x256xf32>
      %c0_5 = arith.constant 0 : index
      %c0_6 = arith.constant 0 : index
      %9 = vector.load %arg7[%c0_5, %c0_6] : memref<16x256xf32, #tpu.memory_space<vmem>>, vector<16x256xf32>
      tpu.vector_store %arg7[%c0_5, %c0_6], %8 {strides = array<i32>} : memref<16x256xf32, #tpu.memory_space<vmem>>, vector<16x256xf32>,
      %cst_7 = arith.constant 0.000000e+00 : f32
      %10 = vector.broadcast %cst_7 : f32 to vector<16x256xf32>
      %c0_8 = arith.constant 0 : index
      %c0_9 = arith.constant 0 : index
      %11 = vector.load %arg5[%c0_8, %c0_9] : memref<16x256xf32, #tpu.memory_space<vmem>>, vector<16x256xf32>
      tpu.vector_store %arg5[%c0_8, %c0_9], %10 {strides = array<i32>} : memref<16x256xf32, #tpu.memory_space<vmem>>, vector<16x256xf32>,
      %cst_10 = arith.constant 0.000000e+00 : bf16
      %12 = vector.broadcast %cst_10 : bf16 to vector<1x16x256xbf16>
      %c0_11 = arith.constant 0 : index
      %c0_12 = arith.constant 0 : index
      %c0_13 = arith.constant 0 : index
      %13 = vector.load %arg4[%c0_11, %c0_12, %c0_13] : memref<1x16x256xbf16, #tpu.memory_space<vmem>>, vector<1x16x256xbf16>
      tpu.vector_store %arg4[%c0_11, %c0_12, %c0_13], %12 {strides = array<i32>} : memref<1x16x256xbf16, #tpu.memory_space<vmem>>, vector<1x16x256xbf16>,
    } else {
    }
    %c0_i32_1 = arith.constant 0 : i32
    %3 = arith.cmpi sgt, %arg1, %c0_i32_1 : i32
    %4 = arith.extui %3 : i1 to i32
    %c0_i32_2 = arith.constant 0 : i32
    %5 = arith.cmpi ne, %4, %c0_i32_2 : i32
    scf.if %5 {
      %c0 = arith.constant 0 : index
      %c0_3 = arith.constant 0 : index
      %c0_4 = arith.constant 0 : index
      %6 = vector.load %arg2[%c0, %c0_3, %c0_4] : memref<1x16x1152xbf16, #tpu.memory_space<vmem>>, vector<1x16x1152xbf16>
      %7 = vector.shape_cast %6 : vector<1x16x1152xbf16> to vector<16x1152xbf16>
      %c0_5 = arith.constant 0 : index
      %c0_6 = arith.constant 0 : index
      %8 = vector.load %arg3[%c0_5, %c0_6] : memref<1152x256xbf16, #tpu.memory_space<vmem>>, vector<1152x256xbf16>
      %cst = arith.constant dense<0.000000e+00> : vector<16x256xf32>
      %9 = tpu.matmul %7, %8, %cst {dimension_numbers = #tpu.dot_dimension_numbers<[1], [0], [0], [1], [0, 0, 1, 1], [], []>} : vector<16x1152xbf16>, vector<1152x256xbf16>, vector<16x256xf32> -> vector<16x256xf32>
      %c0_7 = arith.constant 0 : index
      %c0_8 = arith.constant 0 : index
      %10 = vector.load %arg6[%c0_7, %c0_8] : memref<16x256xf32, #tpu.memory_space<vmem>>, vector<16x256xf32>
      %cst_9 = arith.constant 7.500000e-01 : f32
      %11 = vector.broadcast %cst_9 : f32 to vector<16x256xf32>
      %12 = arith.mulf %11, %10 : vector<16x256xf32>
      %13 = arith.addf %12, %9 : vector<16x256xf32>
      %c0_10 = arith.constant 0 : index
      %c0_11 = arith.constant 0 : index
      %14 = vector.load %arg7[%c0_10, %c0_11] : memref<16x256xf32, #tpu.memory_space<vmem>>, vector<16x256xf32>
      %cst_12 = arith.constant 9.700000e-01 : f32
      %15 = vector.broadcast %cst_12 : f32 to vector<16x256xf32>
      %16 = arith.mulf %15, %14 : vector<16x256xf32>
      %17 = arith.addf %16, %13 : vector<16x256xf32>
      %cst_13 = arith.constant 1.000000e+00 : f32
      %18 = vector.broadcast %cst_13 : f32 to vector<16x256xf32>
      %19 = arith.cmpf oge, %17, %18 : vector<16x256xf32>
      %cst_14 = arith.constant 1.000000e+00 : f32
      %cst_15 = arith.constant 0.000000e+00 : f32
      %20 = vector.broadcast %cst_14 : f32 to vector<16x256xf32>
      %21 = vector.broadcast %cst_15 : f32 to vector<16x256xf32>
      %22 = arith.select %19, %20, %21 : vector<16x256xi1>, vector<16x256xf32>
      %c0_16 = arith.constant 0 : index
      %c0_17 = arith.constant 0 : index
      %23 = vector.load %arg6[%c0_16, %c0_17] : memref<16x256xf32, #tpu.memory_space<vmem>>, vector<16x256xf32>
      tpu.vector_store %arg6[%c0_16, %c0_17], %13 {strides = array<i32>} : memref<16x256xf32, #tpu.memory_space<vmem>>, vector<16x256xf32>,
      %cst_18 = arith.constant 0.000000e+00 : f32
      %24 = vector.broadcast %cst_18 : f32 to vector<16x256xf32>
      %25 = arith.select %19, %24, %17 : vector<16x256xi1>, vector<16x256xf32>
      %c0_19 = arith.constant 0 : index
      %c0_20 = arith.constant 0 : index
      %26 = vector.load %arg7[%c0_19, %c0_20] : memref<16x256xf32, #tpu.memory_space<vmem>>, vector<16x256xf32>
      tpu.vector_store %arg7[%c0_19, %c0_20], %25 {strides = array<i32>} : memref<16x256xf32, #tpu.memory_space<vmem>>, vector<16x256xf32>,
      %c0_21 = arith.constant 0 : index
      %c0_22 = arith.constant 0 : index
      %27 = vector.load %arg5[%c0_21, %c0_22] : memref<16x256xf32, #tpu.memory_space<vmem>>, vector<16x256xf32>
      %28 = arith.addf %27, %22 : vector<16x256xf32>
      %c0_23 = arith.constant 0 : index
      %c0_24 = arith.constant 0 : index
      %29 = vector.load %arg5[%c0_23, %c0_24] : memref<16x256xf32, #tpu.memory_space<vmem>>, vector<16x256xf32>
      tpu.vector_store %arg5[%c0_23, %c0_24], %28 {strides = array<i32>} : memref<16x256xf32, #tpu.memory_space<vmem>>, vector<16x256xf32>,
      %30 = arith.truncf %22 : vector<16x256xf32> to vector<16x256xbf16>
      %c0_25 = arith.constant 0 : index
      %c0_26 = arith.constant 0 : index
      %c0_27 = arith.constant 0 : index
      %31 = vector.load %arg4[%c0_25, %c0_26, %c0_27] : memref<1x16x256xbf16, #tpu.memory_space<vmem>>, vector<1x16x256xbf16>
      %32 = vector.shape_cast %31 : vector<1x16x256xbf16> to vector<16x256xbf16>
      %33 = vector.shape_cast %30 : vector<16x256xbf16> to vector<1x16x256xbf16>
      tpu.vector_store %arg4[%c0_25, %c0_26, %c0_27], %33 {strides = array<i32>} : memref<1x16x256xbf16, #tpu.memory_space<vmem>>, vector<1x16x256xbf16>,
    } else {
    }
    return
  }
  func.func @transform_0(%arg0: i32, %arg1: i32) -> (i32, i32, i32) {
    %c1_i32 = arith.constant 1 : i32
    %0 = arith.subi %arg1, %c1_i32 : i32
    %c0_i32 = arith.constant 0 : i32
    %1 = arith.maxsi %0, %c0_i32 : i32
    %c0_i32_0 = arith.constant 0 : i32
    %c0_i32_1 = arith.constant 0 : i32
    return %1, %arg0, %c0_i32_0 : i32, i32, i32
  }
  func.func @transform_1(%arg0: i32, %arg1: i32) -> (i32, i32) {
    %c0_i32 = arith.constant 0 : i32
    %c0_i32_0 = arith.constant 0 : i32
    %c0_i32_1 = arith.constant 0 : i32
    return %c0_i32, %c0_i32_0 : i32, i32
  }
  func.func @transform_2(%arg0: i32, %arg1: i32) -> (i32, i32, i32) {
    %c0_i32 = arith.constant 0 : i32
    %c0_i32_0 = arith.constant 0 : i32
    return %arg1, %arg0, %c0_i32 : i32, i32, i32
  }
  func.func @transform_3(%arg0: i32, %arg1: i32) -> (i32, i32) {
    %c0_i32 = arith.constant 0 : i32
    %c0_i32_0 = arith.constant 0 : i32
    return %arg0, %c0_i32 : i32, i32
  }
}

module attributes {stable_mosaic.version = 11 : i64} {
  func.func @_fused_layer_kernel(%arg0: i32, %arg1: i32, %arg2: memref<1x16x128xbf16, #tpu.memory_space<vmem>>, %arg3: memref<128x128xbf16, #tpu.memory_space<vmem>>, %arg4: memref<1x16x128xbf16, #tpu.memory_space<vmem>>, %arg5: memref<16x128xf32, #tpu.memory_space<vmem>>, %arg6: memref<16x128xf32, #tpu.memory_space<vmem>>, %arg7: memref<16x128xf32, #tpu.memory_space<vmem>>) attributes {dimension_semantics = [#tpu.dimension_semantics<parallel>, #tpu.dimension_semantics<arbitrary>], iteration_bounds = array<i64: 1, 8>, scalar_prefetch = 0 : i64, scratch_operands = 2 : i64, tpu.core_type = #tpu.core_type<tc>, window_params = [{transform_indices = @transform_0, window_bounds = array<i64: 1, 16, 128>}, {pipeline_mode = #tpu.pipeline_mode<synchronous>, transform_indices = @transform_1, window_bounds = array<i64: 128, 128>}, {transform_indices = @transform_2, window_bounds = array<i64: 1, 16, 128>}, {transform_indices = @transform_3, window_bounds = array<i64: 16, 128>}]} {
    %c0_i32 = arith.constant 0 : i32
    %0 = arith.cmpi eq, %arg1, %c0_i32 : i32
    %1 = arith.extui %0 : i1 to i32
    %c0_i32_0 = arith.constant 0 : i32
    %2 = arith.cmpi ne, %1, %c0_i32_0 : i32
    scf.if %2 {
      %cst = arith.constant 0.000000e+00 : f32
      %6 = vector.broadcast %cst : f32 to vector<16x128xf32>
      %c0 = arith.constant 0 : index
      %c0_3 = arith.constant 0 : index
      %7 = vector.load %arg6[%c0, %c0_3] : memref<16x128xf32, #tpu.memory_space<vmem>>, vector<16x128xf32>
      tpu.vector_store %arg6[%c0, %c0_3], %6 {strides = array<i32>} : memref<16x128xf32, #tpu.memory_space<vmem>>, vector<16x128xf32>,
      %cst_4 = arith.constant 0.000000e+00 : f32
      %8 = vector.broadcast %cst_4 : f32 to vector<16x128xf32>
      %c0_5 = arith.constant 0 : index
      %c0_6 = arith.constant 0 : index
      %9 = vector.load %arg7[%c0_5, %c0_6] : memref<16x128xf32, #tpu.memory_space<vmem>>, vector<16x128xf32>
      tpu.vector_store %arg7[%c0_5, %c0_6], %8 {strides = array<i32>} : memref<16x128xf32, #tpu.memory_space<vmem>>, vector<16x128xf32>,
      %cst_7 = arith.constant 0.000000e+00 : f32
      %10 = vector.broadcast %cst_7 : f32 to vector<16x128xf32>
      %c0_8 = arith.constant 0 : index
      %c0_9 = arith.constant 0 : index
      %11 = vector.load %arg5[%c0_8, %c0_9] : memref<16x128xf32, #tpu.memory_space<vmem>>, vector<16x128xf32>
      tpu.vector_store %arg5[%c0_8, %c0_9], %10 {strides = array<i32>} : memref<16x128xf32, #tpu.memory_space<vmem>>, vector<16x128xf32>,
      %cst_10 = arith.constant 0.000000e+00 : bf16
      %12 = vector.broadcast %cst_10 : bf16 to vector<1x16x128xbf16>
      %c0_11 = arith.constant 0 : index
      %c0_12 = arith.constant 0 : index
      %c0_13 = arith.constant 0 : index
      %13 = vector.load %arg4[%c0_11, %c0_12, %c0_13] : memref<1x16x128xbf16, #tpu.memory_space<vmem>>, vector<1x16x128xbf16>
      tpu.vector_store %arg4[%c0_11, %c0_12, %c0_13], %12 {strides = array<i32>} : memref<1x16x128xbf16, #tpu.memory_space<vmem>>, vector<1x16x128xbf16>,
    } else {
    }
    %c0_i32_1 = arith.constant 0 : i32
    %3 = arith.cmpi sgt, %arg1, %c0_i32_1 : i32
    %4 = arith.extui %3 : i1 to i32
    %c0_i32_2 = arith.constant 0 : i32
    %5 = arith.cmpi ne, %4, %c0_i32_2 : i32
    scf.if %5 {
      %c0 = arith.constant 0 : index
      %c0_3 = arith.constant 0 : index
      %c0_4 = arith.constant 0 : index
      %6 = vector.load %arg2[%c0, %c0_3, %c0_4] : memref<1x16x128xbf16, #tpu.memory_space<vmem>>, vector<1x16x128xbf16>
      %7 = vector.shape_cast %6 : vector<1x16x128xbf16> to vector<16x128xbf16>
      %c0_5 = arith.constant 0 : index
      %c0_6 = arith.constant 0 : index
      %8 = vector.load %arg3[%c0_5, %c0_6] : memref<128x128xbf16, #tpu.memory_space<vmem>>, vector<128x128xbf16>
      %cst = arith.constant dense<0.000000e+00> : vector<16x128xf32>
      %9 = tpu.matmul %7, %8, %cst {dimension_numbers = #tpu.dot_dimension_numbers<[1], [0], [0], [1], [0, 0, 1, 1], [], []>} : vector<16x128xbf16>, vector<128x128xbf16>, vector<16x128xf32> -> vector<16x128xf32>
      %c0_7 = arith.constant 0 : index
      %c0_8 = arith.constant 0 : index
      %10 = vector.load %arg6[%c0_7, %c0_8] : memref<16x128xf32, #tpu.memory_space<vmem>>, vector<16x128xf32>
      %cst_9 = arith.constant 7.500000e-01 : f32
      %11 = vector.broadcast %cst_9 : f32 to vector<16x128xf32>
      %12 = arith.mulf %11, %10 : vector<16x128xf32>
      %13 = arith.addf %12, %9 : vector<16x128xf32>
      %c0_10 = arith.constant 0 : index
      %c0_11 = arith.constant 0 : index
      %14 = vector.load %arg7[%c0_10, %c0_11] : memref<16x128xf32, #tpu.memory_space<vmem>>, vector<16x128xf32>
      %cst_12 = arith.constant 9.700000e-01 : f32
      %15 = vector.broadcast %cst_12 : f32 to vector<16x128xf32>
      %16 = arith.mulf %15, %14 : vector<16x128xf32>
      %17 = arith.addf %16, %13 : vector<16x128xf32>
      %cst_13 = arith.constant 1.000000e+00 : f32
      %18 = vector.broadcast %cst_13 : f32 to vector<16x128xf32>
      %19 = arith.cmpf oge, %17, %18 : vector<16x128xf32>
      %cst_14 = arith.constant 1.000000e+00 : f32
      %cst_15 = arith.constant 0.000000e+00 : f32
      %20 = vector.broadcast %cst_14 : f32 to vector<16x128xf32>
      %21 = vector.broadcast %cst_15 : f32 to vector<16x128xf32>
      %22 = arith.select %19, %20, %21 : vector<16x128xi1>, vector<16x128xf32>
      %c0_16 = arith.constant 0 : index
      %c0_17 = arith.constant 0 : index
      %23 = vector.load %arg6[%c0_16, %c0_17] : memref<16x128xf32, #tpu.memory_space<vmem>>, vector<16x128xf32>
      tpu.vector_store %arg6[%c0_16, %c0_17], %13 {strides = array<i32>} : memref<16x128xf32, #tpu.memory_space<vmem>>, vector<16x128xf32>,
      %cst_18 = arith.constant 0.000000e+00 : f32
      %24 = vector.broadcast %cst_18 : f32 to vector<16x128xf32>
      %25 = arith.select %19, %24, %17 : vector<16x128xi1>, vector<16x128xf32>
      %c0_19 = arith.constant 0 : index
      %c0_20 = arith.constant 0 : index
      %26 = vector.load %arg7[%c0_19, %c0_20] : memref<16x128xf32, #tpu.memory_space<vmem>>, vector<16x128xf32>
      tpu.vector_store %arg7[%c0_19, %c0_20], %25 {strides = array<i32>} : memref<16x128xf32, #tpu.memory_space<vmem>>, vector<16x128xf32>,
      %c0_21 = arith.constant 0 : index
      %c0_22 = arith.constant 0 : index
      %27 = vector.load %arg5[%c0_21, %c0_22] : memref<16x128xf32, #tpu.memory_space<vmem>>, vector<16x128xf32>
      %28 = arith.addf %27, %22 : vector<16x128xf32>
      %c0_23 = arith.constant 0 : index
      %c0_24 = arith.constant 0 : index
      %29 = vector.load %arg5[%c0_23, %c0_24] : memref<16x128xf32, #tpu.memory_space<vmem>>, vector<16x128xf32>
      tpu.vector_store %arg5[%c0_23, %c0_24], %28 {strides = array<i32>} : memref<16x128xf32, #tpu.memory_space<vmem>>, vector<16x128xf32>,
      %30 = arith.truncf %22 : vector<16x128xf32> to vector<16x128xbf16>
      %c0_25 = arith.constant 0 : index
      %c0_26 = arith.constant 0 : index
      %c0_27 = arith.constant 0 : index
      %31 = vector.load %arg4[%c0_25, %c0_26, %c0_27] : memref<1x16x128xbf16, #tpu.memory_space<vmem>>, vector<1x16x128xbf16>
      %32 = vector.shape_cast %31 : vector<1x16x128xbf16> to vector<16x128xbf16>
      %33 = vector.shape_cast %30 : vector<16x128xbf16> to vector<1x16x128xbf16>
      tpu.vector_store %arg4[%c0_25, %c0_26, %c0_27], %33 {strides = array<i32>} : memref<1x16x128xbf16, #tpu.memory_space<vmem>>, vector<1x16x128xbf16>,
    } else {
    }
    return
  }
  func.func @transform_0(%arg0: i32, %arg1: i32) -> (i32, i32, i32) {
    %c1_i32 = arith.constant 1 : i32
    %0 = arith.subi %arg1, %c1_i32 : i32
    %c0_i32 = arith.constant 0 : i32
    %1 = arith.maxsi %0, %c0_i32 : i32
    %c0_i32_0 = arith.constant 0 : i32
    %c0_i32_1 = arith.constant 0 : i32
    return %1, %arg0, %c0_i32_0 : i32, i32, i32
  }
  func.func @transform_1(%arg0: i32, %arg1: i32) -> (i32, i32) {
    %c0_i32 = arith.constant 0 : i32
    %c0_i32_0 = arith.constant 0 : i32
    %c0_i32_1 = arith.constant 0 : i32
    return %c0_i32, %c0_i32_0 : i32, i32
  }
  func.func @transform_2(%arg0: i32, %arg1: i32) -> (i32, i32, i32) {
    %c0_i32 = arith.constant 0 : i32
    %c0_i32_0 = arith.constant 0 : i32
    return %arg1, %arg0, %c0_i32 : i32, i32, i32
  }
  func.func @transform_3(%arg0: i32, %arg1: i32) -> (i32, i32) {
    %c0_i32 = arith.constant 0 : i32
    %c0_i32_0 = arith.constant 0 : i32
    return %arg0, %c0_i32 : i32, i32
  }
}

module attributes {stable_mosaic.version = 11 : i64} {
  func.func @_fused_layer_kernel(%arg0: i32, %arg1: i32, %arg2: memref<1x16x2304xbf16, #tpu.memory_space<vmem>>, %arg3: memref<2304x128xbf16, #tpu.memory_space<vmem>>, %arg4: memref<1x16x128xbf16, #tpu.memory_space<vmem>>, %arg5: memref<16x128xf32, #tpu.memory_space<vmem>>, %arg6: memref<16x128xf32, #tpu.memory_space<vmem>>, %arg7: memref<16x128xf32, #tpu.memory_space<vmem>>) attributes {dimension_semantics = [#tpu.dimension_semantics<parallel>, #tpu.dimension_semantics<arbitrary>], iteration_bounds = array<i64: 1, 8>, scalar_prefetch = 0 : i64, scratch_operands = 2 : i64, tpu.core_type = #tpu.core_type<tc>, window_params = [{transform_indices = @transform_0, window_bounds = array<i64: 1, 16, 2304>}, {pipeline_mode = #tpu.pipeline_mode<synchronous>, transform_indices = @transform_1, window_bounds = array<i64: 2304, 128>}, {transform_indices = @transform_2, window_bounds = array<i64: 1, 16, 128>}, {transform_indices = @transform_3, window_bounds = array<i64: 16, 128>}]} {
    %c0_i32 = arith.constant 0 : i32
    %0 = arith.cmpi eq, %arg1, %c0_i32 : i32
    %1 = arith.extui %0 : i1 to i32
    %c0_i32_0 = arith.constant 0 : i32
    %2 = arith.cmpi ne, %1, %c0_i32_0 : i32
    scf.if %2 {
      %cst = arith.constant 0.000000e+00 : f32
      %6 = vector.broadcast %cst : f32 to vector<16x128xf32>
      %c0 = arith.constant 0 : index
      %c0_3 = arith.constant 0 : index
      %7 = vector.load %arg6[%c0, %c0_3] : memref<16x128xf32, #tpu.memory_space<vmem>>, vector<16x128xf32>
      tpu.vector_store %arg6[%c0, %c0_3], %6 {strides = array<i32>} : memref<16x128xf32, #tpu.memory_space<vmem>>, vector<16x128xf32>,
      %cst_4 = arith.constant 0.000000e+00 : f32
      %8 = vector.broadcast %cst_4 : f32 to vector<16x128xf32>
      %c0_5 = arith.constant 0 : index
      %c0_6 = arith.constant 0 : index
      %9 = vector.load %arg7[%c0_5, %c0_6] : memref<16x128xf32, #tpu.memory_space<vmem>>, vector<16x128xf32>
      tpu.vector_store %arg7[%c0_5, %c0_6], %8 {strides = array<i32>} : memref<16x128xf32, #tpu.memory_space<vmem>>, vector<16x128xf32>,
      %cst_7 = arith.constant 0.000000e+00 : f32
      %10 = vector.broadcast %cst_7 : f32 to vector<16x128xf32>
      %c0_8 = arith.constant 0 : index
      %c0_9 = arith.constant 0 : index
      %11 = vector.load %arg5[%c0_8, %c0_9] : memref<16x128xf32, #tpu.memory_space<vmem>>, vector<16x128xf32>
      tpu.vector_store %arg5[%c0_8, %c0_9], %10 {strides = array<i32>} : memref<16x128xf32, #tpu.memory_space<vmem>>, vector<16x128xf32>,
      %cst_10 = arith.constant 0.000000e+00 : bf16
      %12 = vector.broadcast %cst_10 : bf16 to vector<1x16x128xbf16>
      %c0_11 = arith.constant 0 : index
      %c0_12 = arith.constant 0 : index
      %c0_13 = arith.constant 0 : index
      %13 = vector.load %arg4[%c0_11, %c0_12, %c0_13] : memref<1x16x128xbf16, #tpu.memory_space<vmem>>, vector<1x16x128xbf16>
      tpu.vector_store %arg4[%c0_11, %c0_12, %c0_13], %12 {strides = array<i32>} : memref<1x16x128xbf16, #tpu.memory_space<vmem>>, vector<1x16x128xbf16>,
    } else {
    }
    %c0_i32_1 = arith.constant 0 : i32
    %3 = arith.cmpi sgt, %arg1, %c0_i32_1 : i32
    %4 = arith.extui %3 : i1 to i32
    %c0_i32_2 = arith.constant 0 : i32
    %5 = arith.cmpi ne, %4, %c0_i32_2 : i32
    scf.if %5 {
      %c0 = arith.constant 0 : index
      %c0_3 = arith.constant 0 : index
      %c0_4 = arith.constant 0 : index
      %6 = vector.load %arg2[%c0, %c0_3, %c0_4] : memref<1x16x2304xbf16, #tpu.memory_space<vmem>>, vector<1x16x2304xbf16>
      %7 = vector.shape_cast %6 : vector<1x16x2304xbf16> to vector<16x2304xbf16>
      %c0_5 = arith.constant 0 : index
      %c0_6 = arith.constant 0 : index
      %8 = vector.load %arg3[%c0_5, %c0_6] : memref<2304x128xbf16, #tpu.memory_space<vmem>>, vector<2304x128xbf16>
      %cst = arith.constant dense<0.000000e+00> : vector<16x128xf32>
      %9 = tpu.matmul %7, %8, %cst {dimension_numbers = #tpu.dot_dimension_numbers<[1], [0], [0], [1], [0, 0, 1, 1], [], []>} : vector<16x2304xbf16>, vector<2304x128xbf16>, vector<16x128xf32> -> vector<16x128xf32>
      %c0_7 = arith.constant 0 : index
      %c0_8 = arith.constant 0 : index
      %10 = vector.load %arg6[%c0_7, %c0_8] : memref<16x128xf32, #tpu.memory_space<vmem>>, vector<16x128xf32>
      %cst_9 = arith.constant 7.500000e-01 : f32
      %11 = vector.broadcast %cst_9 : f32 to vector<16x128xf32>
      %12 = arith.mulf %11, %10 : vector<16x128xf32>
      %13 = arith.addf %12, %9 : vector<16x128xf32>
      %c0_10 = arith.constant 0 : index
      %c0_11 = arith.constant 0 : index
      %14 = vector.load %arg7[%c0_10, %c0_11] : memref<16x128xf32, #tpu.memory_space<vmem>>, vector<16x128xf32>
      %cst_12 = arith.constant 9.700000e-01 : f32
      %15 = vector.broadcast %cst_12 : f32 to vector<16x128xf32>
      %16 = arith.mulf %15, %14 : vector<16x128xf32>
      %17 = arith.addf %16, %13 : vector<16x128xf32>
      %cst_13 = arith.constant 1.000000e+00 : f32
      %18 = vector.broadcast %cst_13 : f32 to vector<16x128xf32>
      %19 = arith.cmpf oge, %17, %18 : vector<16x128xf32>
      %cst_14 = arith.constant 1.000000e+00 : f32
      %cst_15 = arith.constant 0.000000e+00 : f32
      %20 = vector.broadcast %cst_14 : f32 to vector<16x128xf32>
      %21 = vector.broadcast %cst_15 : f32 to vector<16x128xf32>
      %22 = arith.select %19, %20, %21 : vector<16x128xi1>, vector<16x128xf32>
      %c0_16 = arith.constant 0 : index
      %c0_17 = arith.constant 0 : index
      %23 = vector.load %arg6[%c0_16, %c0_17] : memref<16x128xf32, #tpu.memory_space<vmem>>, vector<16x128xf32>
      tpu.vector_store %arg6[%c0_16, %c0_17], %13 {strides = array<i32>} : memref<16x128xf32, #tpu.memory_space<vmem>>, vector<16x128xf32>,
      %cst_18 = arith.constant 0.000000e+00 : f32
      %24 = vector.broadcast %cst_18 : f32 to vector<16x128xf32>
      %25 = arith.select %19, %24, %17 : vector<16x128xi1>, vector<16x128xf32>
      %c0_19 = arith.constant 0 : index
      %c0_20 = arith.constant 0 : index
      %26 = vector.load %arg7[%c0_19, %c0_20] : memref<16x128xf32, #tpu.memory_space<vmem>>, vector<16x128xf32>
      tpu.vector_store %arg7[%c0_19, %c0_20], %25 {strides = array<i32>} : memref<16x128xf32, #tpu.memory_space<vmem>>, vector<16x128xf32>,
      %c0_21 = arith.constant 0 : index
      %c0_22 = arith.constant 0 : index
      %27 = vector.load %arg5[%c0_21, %c0_22] : memref<16x128xf32, #tpu.memory_space<vmem>>, vector<16x128xf32>
      %28 = arith.addf %27, %22 : vector<16x128xf32>
      %c0_23 = arith.constant 0 : index
      %c0_24 = arith.constant 0 : index
      %29 = vector.load %arg5[%c0_23, %c0_24] : memref<16x128xf32, #tpu.memory_space<vmem>>, vector<16x128xf32>
      tpu.vector_store %arg5[%c0_23, %c0_24], %28 {strides = array<i32>} : memref<16x128xf32, #tpu.memory_space<vmem>>, vector<16x128xf32>,
      %30 = arith.truncf %22 : vector<16x128xf32> to vector<16x128xbf16>
      %c0_25 = arith.constant 0 : index
      %c0_26 = arith.constant 0 : index
      %c0_27 = arith.constant 0 : index
      %31 = vector.load %arg4[%c0_25, %c0_26, %c0_27] : memref<1x16x128xbf16, #tpu.memory_space<vmem>>, vector<1x16x128xbf16>
      %32 = vector.shape_cast %31 : vector<1x16x128xbf16> to vector<16x128xbf16>
      %33 = vector.shape_cast %30 : vector<16x128xbf16> to vector<1x16x128xbf16>
      tpu.vector_store %arg4[%c0_25, %c0_26, %c0_27], %33 {strides = array<i32>} : memref<1x16x128xbf16, #tpu.memory_space<vmem>>, vector<1x16x128xbf16>,
    } else {
    }
    return
  }
  func.func @transform_0(%arg0: i32, %arg1: i32) -> (i32, i32, i32) {
    %c1_i32 = arith.constant 1 : i32
    %0 = arith.subi %arg1, %c1_i32 : i32
    %c0_i32 = arith.constant 0 : i32
    %1 = arith.maxsi %0, %c0_i32 : i32
    %c0_i32_0 = arith.constant 0 : i32
    %c0_i32_1 = arith.constant 0 : i32
    return %1, %arg0, %c0_i32_0 : i32, i32, i32
  }
  func.func @transform_1(%arg0: i32, %arg1: i32) -> (i32, i32) {
    %c0_i32 = arith.constant 0 : i32
    %c0_i32_0 = arith.constant 0 : i32
    %c0_i32_1 = arith.constant 0 : i32
    return %c0_i32, %c0_i32_0 : i32, i32
  }
  func.func @transform_2(%arg0: i32, %arg1: i32) -> (i32, i32, i32) {
    %c0_i32 = arith.constant 0 : i32
    %c0_i32_0 = arith.constant 0 : i32
    return %arg1, %arg0, %c0_i32 : i32, i32, i32
  }
  func.func @transform_3(%arg0: i32, %arg1: i32) -> (i32, i32) {
    %c0_i32 = arith.constant 0 : i32
    %c0_i32_0 = arith.constant 0 : i32
    return %arg0, %c0_i32 : i32, i32
  }
}

</mosaic_0001>

<llo_original>
// kernel: conv_class_forward.7
$region0: #{conv_class_forward.7}
  #allocation0 [shape = 'u32[]', space=smem, size = 0x4, offset = 0x4, fixed_abs, tag = 'smem constant byte address 0x4 - core index']
  #allocation1 [shape = 'u32[144,128]{1,0:T(1,128)}', space=vmem, size = 0x12000, scoped, tag = 'internal scratch']
  #allocation2 [shape = 'f32[256,128]{1,0:T(8,128)}', space=vmem, size = 0x20000, scoped, tag = 'scratch operand']
  #allocation3 [shape = 'f32[256,128]{1,0:T(8,128)}', space=vmem, size = 0x20000, scoped, tag = 'scratch operand']
  %s0 = inlined_call_operand.vmem [shape: bf16[8,512,128], index: 0, kind: input, shape index: {}]
  %s1 = inlined_call_operand.vmem [shape: bf16[128,128], index: 1, kind: input, shape index: {}]
  %s2 = inlined_call_operand.vmem [shape: bf16[8,512,128], index: 2, kind: output, shape index: {0}]
  %s3 = inlined_call_operand.vmem [shape: f32[512,128], index: 3, kind: output, shape index: {1}]
  %4 = xla_tuple %s2, %s3
  %s5 = sld [smem:[#allocation0]]
  $region57: #{conv_class_forward.7} parent=0
    _
  %s7 = ssub.s32 1, %s5
  %s8 = scalar_select 0, %s7, %s5
  loop: start=0, step=1, limit=18
  $region2: #{conv_class_forward.7} parent=0 // loop_pre_header
    _
  $region3: #{conv_class_forward.7} parent=0 // loop_header
    %s10 = sphi 0, %s14
    %p11 = scmp.ge.s32.totalorder %s10, 18
    %s17 = sphi 0, %s29
    %s18 = sphi 0, %s25
    %s19 = sphi 0, %s17
    %s20 = sphi 0, %s18
    %s21 = sphi 0, %s19
    %s22 = sphi 0, %s20
    %s40 = sphi 0, %s42
    %s43 = sphi 0, %s40
    %s44 = sphi 0, %s43
    %s60 = sphi 0, %s44
    %s64 = sphi 0, %s64
    %s66 = sphi 0, %s64
    %s67 = sphi 0, %s66
    %s81 = sphi 0, %s67
    %s89 = sphi 0, %s91
    %s92 = sphi 0, %s89
    %s93 = sphi 0, %s92
    %s109 = sphi 0, %s93
    %s115 = sphi 0, %s117
    %s118 = sphi 0, %s115
    %s119 = sphi 0, %s118
    %s135 = sphi 0, %s119
  $region4: #{conv_class_forward.7} parent=0 // loop_header_branch
    %13 = sbr.rel (%p11) target = $region8
  $region5: #{conv_class_forward.7} parent=0 // loop_body
    %s15 = ssub.s32 %s10, 1
    %s16 = ssub.s32 %s10, 2
    %s23 = sadd.s32 1, %s18
    %p24 = scmp.ge.s32.totalorder %s23, 8
    %s25 = scalar_select %p24, 0, %s23
    %s26 = sadd.s32 1, %s17
    %s27 = scalar_select %p24, %s26, %s17
    %p28 = scmp.ge.s32.totalorder %s27, 2
    %s29 = scalar_select %p28, 0, %s27
    %s30 = ssub.s32 %s18, 1
    %p31 = scmp.gt.s32.totalorder %s30, 0
    %s32 = scalar_select %p31, %s30, 0
    %s33 = ssub.s32 %s25, 1
    %p34 = scmp.gt.s32.totalorder %s33, 0
    %s35 = scalar_select %p34, %s33, 0
    %s36 = ssub.s32 %s32, %s35
    %s37 = ssub.s32 %s17, %s29
    %s38 = sor.u32 %s36, %s37
    %p39 = scmp.eq.s32.totalorder %s38, 0
    %s41 = sadd.s32 %s40, 1
    %s42 = scalar_select %p39, %s40, %s41
    %p45 = pneg %p39
    %p46 = scmp.eq.s32.totalorder %s10, 15
    %p47 = por %p45, %p46
    %p48 = scmp.ne.s32.totalorder %s40, %s43
    %p49 = scmp.eq.s32.totalorder %s10, 0
    %p50 = por %p48, %p49
    %p51 = scmp.ne.s32.totalorder %s40, %s43
    %p52 = scmp.eq.s32.totalorder %s15, 15
    %p53 = por %p51, %p52
    %p54 = scmp.ne.s32.totalorder %s43, %s44
    %p55 = scmp.eq.s32.totalorder %s15, 0
    %p56 = por %p54, %p55
    %p57 = scmp.ne.s32.totalorder %s43, %s44
    %p58 = scmp.eq.s32.totalorder %s16, 15
    %p59 = por %p57, %p58
    %p61 = scmp.ne.s32.totalorder %s44, %s60
    %p62 = scmp.eq.s32.totalorder %s16, 0
    %p63 = por %p61, %p62
    %s65 = sadd.s32 %s64, 1
    %p68 = scmp.eq.s32.totalorder %s10, 15
    %p69 = scmp.ne.s32.totalorder %s64, %s66
    %p70 = scmp.eq.s32.totalorder %s10, 0
    %p71 = por %p69, %p70
    %p72 = scmp.ne.s32.totalorder %s64, %s66
    %p73 = scmp.eq.s32.totalorder %s15, 15
    %p74 = por %p72, %p73
    %p75 = scmp.ne.s32.totalorder %s66, %s67
    %p76 = scmp.eq.s32.totalorder %s15, 0
    %p77 = por %p75, %p76
    %p78 = scmp.ne.s32.totalorder %s66, %s67
    %p79 = scmp.eq.s32.totalorder %s16, 15
    %p80 = por %p78, %p79
    %p82 = scmp.ne.s32.totalorder %s67, %s81
    %p83 = scmp.eq.s32.totalorder %s16, 0
    %p84 = por %p82, %p83
    %s85 = ssub.s32 %s18, %s25
    %s86 = ssub.s32 %s17, %s29
    %s87 = sor.u32 %s85, %s86
    %p88 = scmp.eq.s32.totalorder %s87, 0
    %s90 = sadd.s32 %s89, 1
    %s91 = scalar_select %p88, %s89, %s90
    %p94 = pneg %p88
    %p95 = scmp.eq.s32.totalorder %s10, 15
    %p96 = por %p94, %p95
    %p97 = scmp.ne.s32.totalorder %s89, %s92
    %p98 = scmp.eq.s32.totalorder %s10, 0
    %p99 = por %p97, %p98
    %p100 = scmp.ne.s32.totalorder %s89, %s92
    %p101 = scmp.eq.s32.totalorder %s15, 15
    %p102 = por %p100, %p101
    %p103 = scmp.ne.s32.totalorder %s92, %s93
    %p104 = scmp.eq.s32.totalorder %s15, 0
    %p105 = por %p103, %p104
    %p106 = scmp.ne.s32.totalorder %s92, %s93
    %p107 = scmp.eq.s32.totalorder %s16, 15
    %p108 = por %p106, %p107
    %p110 = scmp.ne.s32.totalorder %s93, %s109
    %p111 = scmp.eq.s32.totalorder %s16, 0
    %p112 = por %p110, %p111
    %s113 = ssub.s32 %s17, %s29
    %p114 = scmp.eq.s32.totalorder %s113, 0
    %s116 = sadd.s32 %s115, 1
    %s117 = scalar_select %p114, %s115, %s116
    %p120 = pneg %p114
    %p121 = scmp.eq.s32.totalorder %s10, 15
    %p122 = por %p120, %p121
    %p123 = scmp.ne.s32.totalorder %s115, %s118
    %p124 = scmp.eq.s32.totalorder %s10, 0
    %p125 = por %p123, %p124
    %p126 = scmp.ne.s32.totalorder %s115, %s118
    %p127 = scmp.eq.s32.totalorder %s15, 15
    %p128 = por %p126, %p127
    %p129 = scmp.ne.s32.totalorder %s118, %s119
    %p130 = scmp.eq.s32.totalorder %s15, 0
    %p131 = por %p129, %p130
    %p132 = scmp.ne.s32.totalorder %s118, %s119
    %p133 = scmp.eq.s32.totalorder %s16, 15
    %p134 = por %p132, %p133
    %p136 = scmp.ne.s32.totalorder %s119, %s135
    %p137 = scmp.eq.s32.totalorder %s16, 0
    %p138 = por %p136, %p137
    %p139 = scmp.le.s32.totalorder 1, %s10
    %p140 = scmp.lt.s32.totalorder %s10, 17
    %p141 = pnand %p139, %p140
    %p142 = pneg %p141
    // Predicated region
    $region9: #{conv_class_forward.7} parent=5 // pred_check
      _
    $region10: #{conv_class_forward.7} parent=5 // pred_check_branch
      %144 = sbr.rel (%p141) target = $region12
    $region11: #{conv_class_forward.7} parent=5 // pred_region
      %s145 = ssub.s32 %s10, 1
      // Predicated region
      $region13: #{conv_class_forward.7} parent=11 // pred_check
        %p146 = pneg %p77
      $region14: #{conv_class_forward.7} parent=11 // pred_check_branch
        %148 = sbr.rel (%p146) target = $region16
      $region15: #{conv_class_forward.7} parent=11 // pred_region
        _
      $region16: #{conv_class_forward.7} parent=11 // pred_fallthru
        _
    $region12: #{conv_class_forward.7} parent=5 // pred_fallthru
      _
    %p149 = scmp.lt.s32.totalorder %s10, 16
    // Predicated region
    $region17: #{conv_class_forward.7} parent=5 // pred_check
      %p150 = pneg %p149
    $region18: #{conv_class_forward.7} parent=5 // pred_check_branch
      %152 = sbr.rel (%p150) target = $region20
    $region19: #{conv_class_forward.7} parent=5 // pred_region
      // Predicated region
      $region21: #{conv_class_forward.7} parent=19 // pred_check
        %p153 = pneg %p50
      $region22: #{conv_class_forward.7} parent=19 // pred_check_branch
        %155 = sbr.rel (%p153) target = $region24
      $region23: #{conv_class_forward.7} parent=19 // pred_region
        %s156 = ssub.s32 %s18, 1
        %p157 = scmp.gt.s32.totalorder %s156, 0
        %s158 = scalar_select %p157, %s156, 0
        %s159 = smul.u32 32, %s17
        %p160 = scmp.lt.s32.totalorder %s158, 7
        %s161 = scalar_select %p160, %s158, 7
        %p162 = scmp.lt.s32.totalorder %s159, 63
        %s163 = scalar_select %p162, %s159, 63
        %s164 = smul.addr %s161, 64
        %s165 = sadd.s32 %s163, %s164
        %s166 = smul.addr %s165, 4
        %s167 = scalar_lea.vmem %s0, %s166
        %s168 = ssub.s32 %s18, 1
        %p169 = scmp.gt.s32.totalorder %s168, 0
        %s170 = scalar_select %p169, %s168, 0
        %s171 = smul.u32 32, %s17
      $region24: #{conv_class_forward.7} parent=19 // pred_fallthru
        _
    $region20: #{conv_class_forward.7} parent=5 // pred_fallthru
      _
    %p172 = scmp.le.s32.totalorder 1, %s10
    %p173 = scmp.lt.s32.totalorder %s10, 17
    %p174 = pnand %p172, %p173
    %p175 = pneg %p174
    // Predicated region
    $region25: #{conv_class_forward.7} parent=5 // pred_check
      _
    $region26: #{conv_class_forward.7} parent=5 // pred_check_branch
      %177 = sbr.rel (%p174) target = $region28
    $region27: #{conv_class_forward.7} parent=5 // pred_region
      %s178 = ssub.s32 %s10, 1
      %s179 = ssub.s32 %s20, 1
      %p180 = scmp.gt.s32.totalorder %s179, 0
      %s181 = scalar_select %p180, %s179, 0
      %s182 = smul.u32 32, %s19
      %p183 = scmp.lt.s32.totalorder %s181, 7
      %s184 = scalar_select %p183, %s181, 7
      %p185 = scmp.lt.s32.totalorder %s182, 63
      %s186 = scalar_select %p185, %s182, 63
      %s187 = smul.addr %s184, 64
      %s188 = sadd.s32 %s186, %s187
      %s189 = smul.addr %s188, 4
      %s190 = scalar_lea.vmem %s0, %s189
      %p191 = pneg %p56
      %p192 = pneg %p53
      %p193 = pneg %p77
      %p194 = pneg %p74
      %p195 = pneg %p105
      %p196 = pneg %p102
      %s197 = smul.u32 32, %s19
      %p198 = scmp.lt.s32.totalorder %s20, 7
      %s199 = scalar_select %p198, %s20, 7
      %p200 = scmp.lt.s32.totalorder %s197, 63
      %s201 = scalar_select %p200, %s197, 63
      %s202 = smul.addr %s199, 64
      %s203 = sadd.s32 %s201, %s202
      %s204 = smul.addr %s203, 4
      %s205 = scalar_lea.vmem %s2, %s204
      %p206 = pneg %p131
      %p207 = pneg %p128
      %s208 = smul.u32 32, %s19
      %p209 = scmp.lt.s32.totalorder %s208, 63
      %s210 = scalar_select %p209, %s208, 63
      %s211 = smul.addr %s210, 8
      %s212 = scalar_lea.vmem %s3, %s211
      %s213 = ssub.s32 %s20, 1
      %p214 = scmp.gt.s32.totalorder %s213, 0
      %s215 = scalar_select %p214, %s213, 0
      %s216 = smul.u32 32, %s19
      %p217 = scmp.lt.s32.totalorder %s215, 7
      %s218 = scalar_select %p217, %s215, 7
      %p219 = scmp.lt.s32.totalorder %s216, 63
      %s220 = scalar_select %p219, %s216, 63
      %s221 = smul.addr %s218, 64
      %s222 = sadd.s32 %s220, %s221
      %s223 = smul.addr %s222, 4
      %s224 = scalar_lea.vmem %s0, %s223
      %s225 = ssub.s32 %s20, 1
      %p226 = scmp.gt.s32.totalorder %s225, 0
      %s227 = scalar_select %p226, %s225, 0
      %s228 = smul.u32 32, %s19
      %s229 = smul.u32 32, %s19
      %p230 = scmp.lt.s32.totalorder %s20, 7
      %s231 = scalar_select %p230, %s20, 7
      %p232 = scmp.lt.s32.totalorder %s229, 63
      %s233 = scalar_select %p232, %s229, 63
      %s234 = smul.addr %s231, 64
      %s235 = sadd.s32 %s233, %s234
      %s236 = smul.addr %s235, 4
      %s237 = scalar_lea.vmem %s2, %s236
      %s238 = smul.u32 32, %s19
      %s239 = smul.u32 32, %s19
      %p240 = scmp.lt.s32.totalorder %s239, 63
      %s241 = scalar_select %p240, %s239, 63
      %s242 = smul.addr %s241, 8
      %s243 = scalar_lea.vmem %s3, %s242
      %s244 = smul.u32 32, %s19
      %p246 = scmp.eq.s32.totalorder %s20, 0
      // Predicated region
      $region29: #{conv_class_forward.7} parent=27 // pred_check
        %p247 = pneg %p246
      $region30: #{conv_class_forward.7} parent=27 // pred_check_branch
        %249 = sbr.rel (%p247) target = $region32
      $region31: #{conv_class_forward.7} parent=27 // pred_region
        %250 = vst [vmem:[#allocation2] sm:$0xff] 0.0
        %251 = vst [vmem:[#allocation2 + $0x8] sm:$0xff] 0.0
        %252 = vst [vmem:[#allocation2 + $0x10] sm:$0xff] 0.0
        %253 = vst [vmem:[#allocation2 + $0x18] sm:$0xff] 0.0
        %254 = vst [vmem:[#allocation2 + $0x20] sm:$0xff] 0.0
        %255 = vst [vmem:[#allocation2 + $0x28] sm:$0xff] 0.0
        %256 = vst [vmem:[#allocation2 + $0x30] sm:$0xff] 0.0
        %257 = vst [vmem:[#allocation2 + $0x38] sm:$0xff] 0.0
        %258 = vst [vmem:[#allocation2 + $0x40] sm:$0xff] 0.0
        %259 = vst [vmem:[#allocation2 + $0x48] sm:$0xff] 0.0
        %260 = vst [vmem:[#allocation2 + $0x50] sm:$0xff] 0.0
        %261 = vst [vmem:[#allocation2 + $0x58] sm:$0xff] 0.0
        %262 = vst [vmem:[#allocation2 + $0x60] sm:$0xff] 0.0
        %263 = vst [vmem:[#allocation2 + $0x68] sm:$0xff] 0.0
        %264 = vst [vmem:[#allocation2 + $0x70] sm:$0xff] 0.0
        %265 = vst [vmem:[#allocation2 + $0x78] sm:$0xff] 0.0
        %266 = vst [vmem:[#allocation2 + $0x80] sm:$0xff] 0.0
        %267 = vst [vmem:[#allocation2 + $0x88] sm:$0xff] 0.0
        %268 = vst [vmem:[#allocation2 + $0x90] sm:$0xff] 0.0
        %269 = vst [vmem:[#allocation2 + $0x98] sm:$0xff] 0.0
        %270 = vst [vmem:[#allocation2 + $0xa0] sm:$0xff] 0.0
        %271 = vst [vmem:[#allocation2 + $0xa8] sm:$0xff] 0.0
        %272 = vst [vmem:[#allocation2 + $0xb0] sm:$0xff] 0.0
        %273 = vst [vmem:[#allocation2 + $0xb8] sm:$0xff] 0.0
        %274 = vst [vmem:[#allocation2 + $0xc0] sm:$0xff] 0.0
        %275 = vst [vmem:[#allocation2 + $0xc8] sm:$0xff] 0.0
        %276 = vst [vmem:[#allocation2 + $0xd0] sm:$0xff] 0.0
        %277 = vst [vmem:[#allocation2 + $0xd8] sm:$0xff] 0.0
        %278 = vst [vmem:[#allocation2 + $0xe0] sm:$0xff] 0.0
        %279 = vst [vmem:[#allocation2 + $0xe8] sm:$0xff] 0.0
        %280 = vst [vmem:[#allocation2 + $0xf0] sm:$0xff] 0.0
        %281 = vst [vmem:[#allocation2 + $0xf8] sm:$0xff] 0.0
        %282 = vst [vmem:[#allocation3] sm:$0xff] 0.0
        %283 = vst [vmem:[#allocation3 + $0x8] sm:$0xff] 0.0
        %284 = vst [vmem:[#allocation3 + $0x10] sm:$0xff] 0.0
        %285 = vst [vmem:[#allocation3 + $0x18] sm:$0xff] 0.0
        %286 = vst [vmem:[#allocation3 + $0x20] sm:$0xff] 0.0
        %287 = vst [vmem:[#allocation3 + $0x28] sm:$0xff] 0.0
        %288 = vst [vmem:[#allocation3 + $0x30] sm:$0xff] 0.0
        %289 = vst [vmem:[#allocation3 + $0x38] sm:$0xff] 0.0
        %290 = vst [vmem:[#allocation3 + $0x40] sm:$0xff] 0.0
        %291 = vst [vmem:[#allocation3 + $0x48] sm:$0xff] 0.0
        %292 = vst [vmem:[#allocation3 + $0x50] sm:$0xff] 0.0
        %293 = vst [vmem:[#allocation3 + $0x58] sm:$0xff] 0.0
        %294 = vst [vmem:[#allocation3 + $0x60] sm:$0xff] 0.0
        %295 = vst [vmem:[#allocation3 + $0x68] sm:$0xff] 0.0
        %296 = vst [vmem:[#allocation3 + $0x70] sm:$0xff] 0.0
        %297 = vst [vmem:[#allocation3 + $0x78] sm:$0xff] 0.0
        %298 = vst [vmem:[#allocation3 + $0x80] sm:$0xff] 0.0
        %299 = vst [vmem:[#allocation3 + $0x88] sm:$0xff] 0.0
        %300 = vst [vmem:[#allocation3 + $0x90] sm:$0xff] 0.0
        %301 = vst [vmem:[#allocation3 + $0x98] sm:$0xff] 0.0
        %302 = vst [vmem:[#allocation3 + $0xa0] sm:$0xff] 0.0
        %303 = vst [vmem:[#allocation3 + $0xa8] sm:$0xff] 0.0
        %304 = vst [vmem:[#allocation3 + $0xb0] sm:$0xff] 0.0
        %305 = vst [vmem:[#allocation3 + $0xb8] sm:$0xff] 0.0
        %306 = vst [vmem:[#allocation3 + $0xc0] sm:$0xff] 0.0
        %307 = vst [vmem:[#allocation3 + $0xc8] sm:$0xff] 0.0
        %308 = vst [vmem:[#allocation3 + $0xd0] sm:$0xff] 0.0
        %309 = vst [vmem:[#allocation3 + $0xd8] sm:$0xff] 0.0
        %310 = vst [vmem:[#allocation3 + $0xe0] sm:$0xff] 0.0
        %311 = vst [vmem:[#allocation3 + $0xe8] sm:$0xff] 0.0
        %312 = vst [vmem:[#allocation3 + $0xf0] sm:$0xff] 0.0
        %313 = vst [vmem:[#allocation3 + $0xf8] sm:$0xff] 0.0
        %314 = vst [vmem:[%s243] sm:$0xff] 0.0
        %315 = vst [vmem:[%s243 + $0x8] sm:$0xff] 0.0
        %316 = vst [vmem:[%s243 + $0x10] sm:$0xff] 0.0
        %317 = vst [vmem:[%s243 + $0x18] sm:$0xff] 0.0
        %318 = vst [vmem:[%s243 + $0x20] sm:$0xff] 0.0
        %319 = vst [vmem:[%s243 + $0x28] sm:$0xff] 0.0
        %320 = vst [vmem:[%s243 + $0x30] sm:$0xff] 0.0
        %321 = vst [vmem:[%s243 + $0x38] sm:$0xff] 0.0
        %322 = vst [vmem:[%s243 + $0x40] sm:$0xff] 0.0
        %323 = vst [vmem:[%s243 + $0x48] sm:$0xff] 0.0
        %324 = vst [vmem:[%s243 + $0x50] sm:$0xff] 0.0
        %325 = vst [vmem:[%s243 + $0x58] sm:$0xff] 0.0
        %326 = vst [vmem:[%s243 + $0x60] sm:$0xff] 0.0
        %327 = vst [vmem:[%s243 + $0x68] sm:$0xff] 0.0
        %328 = vst [vmem:[%s243 + $0x70] sm:$0xff] 0.0
        %329 = vst [vmem:[%s243 + $0x78] sm:$0xff] 0.0
        %330 = vst [vmem:[%s243 + $0x80] sm:$0xff] 0.0
        %331 = vst [vmem:[%s243 + $0x88] sm:$0xff] 0.0
        %332 = vst [vmem:[%s243 + $0x90] sm:$0xff] 0.0
        %333 = vst [vmem:[%s243 + $0x98] sm:$0xff] 0.0
        %334 = vst [vmem:[%s243 + $0xa0] sm:$0xff] 0.0
        %335 = vst [vmem:[%s243 + $0xa8] sm:$0xff] 0.0
        %336 = vst [vmem:[%s243 + $0xb0] sm:$0xff] 0.0
        %337 = vst [vmem:[%s243 + $0xb8] sm:$0xff] 0.0
        %338 = vst [vmem:[%s243 + $0xc0] sm:$0xff] 0.0
        %339 = vst [vmem:[%s243 + $0xc8] sm:$0xff] 0.0
        %340 = vst [vmem:[%s243 + $0xd0] sm:$0xff] 0.0
        %341 = vst [vmem:[%s243 + $0xd8] sm:$0xff] 0.0
        %342 = vst [vmem:[%s243 + $0xe0] sm:$0xff] 0.0
        %343 = vst [vmem:[%s243 + $0xe8] sm:$0xff] 0.0
        %344 = vst [vmem:[%s243 + $0xf0] sm:$0xff] 0.0
        %345 = vst [vmem:[%s243 + $0xf8] sm:$0xff] 0.0
        %346 = vst [vmem:[%s237] sm:$0xf] 0
        %347 = vst [vmem:[%s237 + $0x4] sm:$0xf] 0
        %348 = vst [vmem:[%s237 + $0x8] sm:$0xf] 0
        %349 = vst [vmem:[%s237 + $0xc] sm:$0xf] 0
        %350 = vst [vmem:[%s237 + $0x10] sm:$0xf] 0
        %351 = vst [vmem:[%s237 + $0x14] sm:$0xf] 0
        %352 = vst [vmem:[%s237 + $0x18] sm:$0xf] 0
        %353 = vst [vmem:[%s237 + $0x1c] sm:$0xf] 0
        %354 = vst [vmem:[%s237 + $0x20] sm:$0xf] 0
        %355 = vst [vmem:[%s237 + $0x24] sm:$0xf] 0
        %356 = vst [vmem:[%s237 + $0x28] sm:$0xf] 0
        %357 = vst [vmem:[%s237 + $0x2c] sm:$0xf] 0
        %358 = vst [vmem:[%s237 + $0x30] sm:$0xf] 0
        %359 = vst [vmem:[%s237 + $0x34] sm:$0xf] 0
        %360 = vst [vmem:[%s237 + $0x38] sm:$0xf] 0
        %361 = vst [vmem:[%s237 + $0x3c] sm:$0xf] 0
        %362 = vst [vmem:[%s237 + $0x40] sm:$0xf] 0
        %363 = vst [vmem:[%s237 + $0x44] sm:$0xf] 0
        %364 = vst [vmem:[%s237 + $0x48] sm:$0xf] 0
        %365 = vst [vmem:[%s237 + $0x4c] sm:$0xf] 0
        %366 = vst [vmem:[%s237 + $0x50] sm:$0xf] 0
        %367 = vst [vmem:[%s237 + $0x54] sm:$0xf] 0
        %368 = vst [vmem:[%s237 + $0x58] sm:$0xf] 0
        %369 = vst [vmem:[%s237 + $0x5c] sm:$0xf] 0
        %370 = vst [vmem:[%s237 + $0x60] sm:$0xf] 0
        %371 = vst [vmem:[%s237 + $0x64] sm:$0xf] 0
        %372 = vst [vmem:[%s237 + $0x68] sm:$0xf] 0
        %373 = vst [vmem:[%s237 + $0x6c] sm:$0xf] 0
        %374 = vst [vmem:[%s237 + $0x70] sm:$0xf] 0
        %375 = vst [vmem:[%s237 + $0x74] sm:$0xf] 0
        %376 = vst [vmem:[%s237 + $0x78] sm:$0xf] 0
        %377 = vst [vmem:[%s237 + $0x7c] sm:$0xf] 0
      $region32: #{conv_class_forward.7} parent=27 // pred_fallthru
        _
      %p378 = scmp.gt.s32.totalorder %s20, 0
      // Predicated region
      $region33: #{conv_class_forward.7} parent=27 // pred_check
        %p379 = pneg %p378
      $region34: #{conv_class_forward.7} parent=27 // pred_check_branch
        %381 = sbr.rel (%p379) target = $region36
      $region35: #{conv_class_forward.7} parent=27 // pred_region
        %v382 = vld [vmem:[%s224] sm:$0xf]
        %v383 = vld [vmem:[%s224 + $0x4] sm:$0xf]
        %v384 = vld [vmem:[%s224 + $0x8] sm:$0xf]
        %v385 = vld [vmem:[%s224 + $0xc] sm:$0xf]
        %v386 = vld [vmem:[%s224 + $0x10] sm:$0xf]
        %v387 = vld [vmem:[%s224 + $0x14] sm:$0xf]
        %v388 = vld [vmem:[%s224 + $0x18] sm:$0xf]
        %v389 = vld [vmem:[%s224 + $0x1c] sm:$0xf]
        %v390 = vld [vmem:[%s224 + $0x20] sm:$0xf]
        %v391 = vld [vmem:[%s224 + $0x24] sm:$0xf]
        %v392 = vld [vmem:[%s224 + $0x28] sm:$0xf]
        %v393 = vld [vmem:[%s224 + $0x2c] sm:$0xf]
        %v394 = vld [vmem:[%s224 + $0x30] sm:$0xf]
        %v395 = vld [vmem:[%s224 + $0x34] sm:$0xf]
        %v396 = vld [vmem:[%s224 + $0x38] sm:$0xf]
        %v397 = vld [vmem:[%s224 + $0x3c] sm:$0xf]
        %v398 = vld [vmem:[%s224 + $0x40] sm:$0xf]
        %v399 = vld [vmem:[%s224 + $0x44] sm:$0xf]
        %v400 = vld [vmem:[%s224 + $0x48] sm:$0xf]
        %v401 = vld [vmem:[%s224 + $0x4c] sm:$0xf]
        %v402 = vld [vmem:[%s224 + $0x50] sm:$0xf]
        %v403 = vld [vmem:[%s224 + $0x54] sm:$0xf]
        %v404 = vld [vmem:[%s224 + $0x58] sm:$0xf]
        %v405 = vld [vmem:[%s224 + $0x5c] sm:$0xf]
        %v406 = vld [vmem:[%s224 + $0x60] sm:$0xf]
        %v407 = vld [vmem:[%s224 + $0x64] sm:$0xf]
        %v408 = vld [vmem:[%s224 + $0x68] sm:$0xf]
        %v409 = vld [vmem:[%s224 + $0x6c] sm:$0xf]
        %v410 = vld [vmem:[%s224 + $0x70] sm:$0xf]
        %v411 = vld [vmem:[%s224 + $0x74] sm:$0xf]
        %v412 = vld [vmem:[%s224 + $0x78] sm:$0xf]
        %v413 = vld [vmem:[%s224 + $0x7c] sm:$0xf]
        %v414 = vld [vmem:[%s1] sm:$0xf]
        %v415 = vld [vmem:[%s1 + $0x4] sm:$0xf]
        %v416 = vld [vmem:[%s1 + $0x8] sm:$0xf]
        %v417 = vld [vmem:[%s1 + $0xc] sm:$0xf]
        %v418 = vld [vmem:[%s1 + $0x10] sm:$0xf]
        %v419 = vld [vmem:[%s1 + $0x14] sm:$0xf]
        %v420 = vld [vmem:[%s1 + $0x18] sm:$0xf]
        %v421 = vld [vmem:[%s1 + $0x1c] sm:$0xf]
        %v422 = vld [vmem:[%s1 + $0x20] sm:$0xf]
        %v423 = vld [vmem:[%s1 + $0x24] sm:$0xf]
        %v424 = vld [vmem:[%s1 + $0x28] sm:$0xf]
        %v425 = vld [vmem:[%s1 + $0x2c] sm:$0xf]
        %v426 = vld [vmem:[%s1 + $0x30] sm:$0xf]
        %v427 = vld [vmem:[%s1 + $0x34] sm:$0xf]
        %v428 = vld [vmem:[%s1 + $0x38] sm:$0xf]
        %v429 = vld [vmem:[%s1 + $0x3c] sm:$0xf]
        %v462 = vunpack.c.l.b16 %v382
        %v463 = vunpack.c.l.b16 %v383
        %v464 = vunpack.c.l.b16 %v384
        %v465 = vunpack.c.l.b16 %v385
        %v466 = vunpack.c.l.b16 %v386
        %v467 = vunpack.c.l.b16 %v387
        %v468 = vunpack.c.l.b16 %v388
        %v469 = vunpack.c.l.b16 %v389
        %v470 = vunpack.c.l.b16 %v390
        %v471 = vunpack.c.l.b16 %v391
        %v472 = vunpack.c.l.b16 %v392
        %v473 = vunpack.c.l.b16 %v393
        %v474 = vunpack.c.l.b16 %v394
        %v475 = vunpack.c.l.b16 %v395
        %v476 = vunpack.c.l.b16 %v396
        %v477 = vunpack.c.l.b16 %v397
        %v478 = vunpack.c.l.b16 %v398
        %v479 = vunpack.c.l.b16 %v399
        %v480 = vunpack.c.l.b16 %v400
        %v481 = vunpack.c.l.b16 %v401
        %v482 = vunpack.c.l.b16 %v402
        %v483 = vunpack.c.l.b16 %v403
        %v484 = vunpack.c.l.b16 %v404
        %v485 = vunpack.c.l.b16 %v405
        %v486 = vunpack.c.l.b16 %v406
        %v487 = vunpack.c.l.b16 %v407
        %v488 = vunpack.c.l.b16 %v408
        %v489 = vunpack.c.l.b16 %v409
        %v490 = vunpack.c.l.b16 %v410
        %v491 = vunpack.c.l.b16 %v411
        %v492 = vunpack.c.l.b16 %v412
        %v493 = vunpack.c.l.b16 %v413
        %v494 = vpack.c.b16 %v463, %v462
        %v495 = vpack.c.b16 %v465, %v464
        %v496 = vpack.c.b16 %v467, %v466
        %v497 = vpack.c.b16 %v469, %v468
        %v498 = vpack.c.b16 %v471, %v470
        %v499 = vpack.c.b16 %v473, %v472
        %v500 = vpack.c.b16 %v475, %v474
        %v501 = vpack.c.b16 %v477, %v476
        %v502 = vpack.c.b16 %v479, %v478
        %v503 = vpack.c.b16 %v481, %v480
        %v504 = vpack.c.b16 %v483, %v482
        %v505 = vpack.c.b16 %v485, %v484
        %v506 = vpack.c.b16 %v487, %v486
        %v507 = vpack.c.b16 %v489, %v488
        %v508 = vpack.c.b16 %v491, %v490
        %v509 = vpack.c.b16 %v493, %v492
        %v542 = vunpack.c.l.b16 %v414
        %v543 = vunpack.c.l.b16 %v415
        %v544 = vunpack.c.l.b16 %v416
        %v545 = vunpack.c.l.b16 %v417
        %v546 = vunpack.c.l.b16 %v418
        %v547 = vunpack.c.l.b16 %v419
        %v548 = vunpack.c.l.b16 %v420
        %v549 = vunpack.c.l.b16 %v421
        %v550 = vunpack.c.l.b16 %v422
        %v551 = vunpack.c.l.b16 %v423
        %v552 = vunpack.c.l.b16 %v424
        %v553 = vunpack.c.l.b16 %v425
        %v554 = vunpack.c.l.b16 %v426
        %v555 = vunpack.c.l.b16 %v427
        %v556 = vunpack.c.l.b16 %v428
        %v557 = vunpack.c.l.b16 %v429
        %v558 = vpack.c.b16 %v543, %v542
        %v559 = vpack.c.b16 %v545, %v544
        %v560 = vpack.c.b16 %v547, %v546
        %v561 = vpack.c.b16 %v549, %v548
        %v562 = vpack.c.b16 %v551, %v550
        %v563 = vpack.c.b16 %v553, %v552
        %v564 = vpack.c.b16 %v555, %v554
        %v565 = vpack.c.b16 %v557, %v556
        %574 = vmatprep.subr.bf16.mxu0 0
        %575 = vmatpush1.bf16.msra.mxu0 %v558
        %576 = vmatprep.subr.bf16.mxu0 0
        %577 = vmatpush1.bf16.msra.mxu0 %v559
        %578 = vmatprep.subr.bf16.mxu0 0
        %579 = vmatpush1.bf16.msra.mxu0 %v560
        %580 = vmatprep.subr.bf16.mxu0 0
        %581 = vmatpush1.bf16.msra.mxu0 %v561
        %582 = vmatprep.subr.bf16.mxu0 0
        %583 = vmatpush1.bf16.msra.mxu0 %v562
        %584 = vmatprep.subr.bf16.mxu0 0
        %585 = vmatpush1.bf16.msra.mxu0 %v563
        %586 = vmatprep.subr.bf16.mxu0 0
        %587 = vmatpush1.bf16.msra.mxu0 %v564
        %588 = vmatprep.subr.bf16.mxu0 0
        %589 = vmatpush1.bf16.msra.mxu0 %v565
        %590 = vmatprep.subr.bf16.mxu0 0
        %591 = vmatpush1.bf16.msra.mxu0 0
        %592 = vmatprep.subr.bf16.mxu0 0
        %593 = vmatpush1.bf16.msra.mxu0 0
        %594 = vmatprep.subr.bf16.mxu0 0
        %595 = vmatpush1.bf16.msra.mxu0 0
        %596 = vmatprep.subr.bf16.mxu0 0
        %597 = vmatpush1.bf16.msra.mxu0 0
        %598 = vmatprep.subr.bf16.mxu0 0
        %599 = vmatpush1.bf16.msra.mxu0 0
        %600 = vmatprep.subr.bf16.mxu0 0
        %601 = vmatpush1.bf16.msra.mxu0 0
        %602 = vmatprep.subr.bf16.mxu0 0
        %603 = vmatpush1.bf16.msra.mxu0 0
        %604 = vmatprep.subr.bf16.mxu0 0
        %605 = vmatpush1.bf16.msra.mxu0 0
        %606 = vmatprep.mubr.bf16.mxu0 0
        %607 = vmatmul.mubr.bf16.gmra.mrb[0].mxu0 %v494
        %v608 = vpop.f32.mrb[0].mxu0
        %v609 = vadd.f32 0.0, %v608
        %v610 = vpop.f32.mrb[0].mxu0
        %v611 = vpop.f32.mrb[0].mxu0
        %v612 = vadd.f32 0.0, %v611
        %v613 = vpop.f32.mrb[0].mxu0
        %614 = vmatprep.mubr.bf16.mxu0 0
        %615 = vmatmul.mubr.bf16.gmra.mrb[0].mxu0 %v495
        %v616 = vpop.f32.mrb[0].mxu0
        %v617 = vadd.f32 0.0, %v616
        %v618 = vpop.f32.mrb[0].mxu0
        %v619 = vpop.f32.mrb[0].mxu0
        %v620 = vadd.f32 0.0, %v619
        %v621 = vpop.f32.mrb[0].mxu0
        %622 = vmatprep.mubr.bf16.mxu0 0
        %623 = vmatmul.mubr.bf16.gmra.mrb[0].mxu0 %v496
        %v624 = vpop.f32.mrb[0].mxu0
        %v625 = vadd.f32 0.0, %v624
        %v626 = vpop.f32.mrb[0].mxu0
        %v627 = vpop.f32.mrb[0].mxu0
        %v628 = vadd.f32 0.0, %v627
        %v629 = vpop.f32.mrb[0].mxu0
        %630 = vmatprep.mubr.bf16.mxu0 0
        %631 = vmatmul.mubr.bf16.gmra.mrb[0].mxu0 %v497
        %v632 = vpop.f32.mrb[0].mxu0
        %v633 = vadd.f32 0.0, %v632
        %v634 = vpop.f32.mrb[0].mxu0
        %v635 = vpop.f32.mrb[0].mxu0
        %v636 = vadd.f32 0.0, %v635
        %v637 = vpop.f32.mrb[0].mxu0
        %638 = vmatprep.mubr.bf16.mxu0 0
        %639 = vmatmul.mubr.bf16.gmra.mrb[0].mxu0 %v498
        %v640 = vpop.f32.mrb[0].mxu0
        %v641 = vadd.f32 0.0, %v640
        %v642 = vpop.f32.mrb[0].mxu0
        %v643 = vpop.f32.mrb[0].mxu0
        %v644 = vadd.f32 0.0, %v643
        %v645 = vpop.f32.mrb[0].mxu0
        %646 = vmatprep.mubr.bf16.mxu0 0
        %647 = vmatmul.mubr.bf16.gmra.mrb[0].mxu0 %v499
        %v648 = vpop.f32.mrb[0].mxu0
        %v649 = vadd.f32 0.0, %v648
        %v650 = vpop.f32.mrb[0].mxu0
        %v651 = vpop.f32.mrb[0].mxu0
        %v652 = vadd.f32 0.0, %v651
        %v653 = vpop.f32.mrb[0].mxu0
        %654 = vmatprep.mubr.bf16.mxu0 0
        %655 = vmatmul.mubr.bf16.gmra.mrb[0].mxu0 %v500
        %v656 = vpop.f32.mrb[0].mxu0
        %v657 = vadd.f32 0.0, %v656
        %v658 = vpop.f32.mrb[0].mxu0
        %v659 = vpop.f32.mrb[0].mxu0
        %v660 = vadd.f32 0.0, %v659
        %v661 = vpop.f32.mrb[0].mxu0
        %662 = vmatprep.mubr.bf16.mxu0 0
        %663 = vmatmul.mubr.bf16.gmra.mrb[0].mxu0 %v501
        %v664 = vpop.f32.mrb[0].mxu0
        %v665 = vadd.f32 0.0, %v664
        %v666 = vpop.f32.mrb[0].mxu0
        %v667 = vpop.f32.mrb[0].mxu0
        %v668 = vadd.f32 0.0, %v667
        %v669 = vpop.f32.mrb[0].mxu0
        %670 = vmatprep.mubr.bf16.mxu0 0
        %671 = vmatmul.mubr.bf16.gmra.mrb[0].mxu0 %v502
        %v672 = vpop.f32.mrb[0].mxu0
        %v673 = vadd.f32 0.0, %v672
        %v674 = vpop.f32.mrb[0].mxu0
        %v675 = vpop.f32.mrb[0].mxu0
        %v676 = vadd.f32 0.0, %v675
        %v677 = vpop.f32.mrb[0].mxu0
        %678 = vmatprep.mubr.bf16.mxu0 0
        %679 = vmatmul.mubr.bf16.gmra.mrb[0].mxu0 %v503
        %v680 = vpop.f32.mrb[0].mxu0
        %v681 = vadd.f32 0.0, %v680
        %v682 = vpop.f32.mrb[0].mxu0
        %v683 = vpop.f32.mrb[0].mxu0
        %v684 = vadd.f32 0.0, %v683
        %v685 = vpop.f32.mrb[0].mxu0
        %686 = vmatprep.mubr.bf16.mxu0 0
        %687 = vmatmul.mubr.bf16.gmra.mrb[0].mxu0 %v504
        %v688 = vpop.f32.mrb[0].mxu0
        %v689 = vadd.f32 0.0, %v688
        %v690 = vpop.f32.mrb[0].mxu0
        %v691 = vpop.f32.mrb[0].mxu0
        %v692 = vadd.f32 0.0, %v691
        %v693 = vpop.f32.mrb[0].mxu0
        %694 = vmatprep.mubr.bf16.mxu0 0
        %695 = vmatmul.mubr.bf16.gmra.mrb[0].mxu0 %v505
        %v696 = vpop.f32.mrb[0].mxu0
        %v697 = vadd.f32 0.0, %v696
        %v698 = vpop.f32.mrb[0].mxu0
        %v699 = vpop.f32.mrb[0].mxu0
        %v700 = vadd.f32 0.0, %v699
        %v701 = vpop.f32.mrb[0].mxu0
        %702 = vmatprep.mubr.bf16.mxu0 0
        %703 = vmatmul.mubr.bf16.gmra.mrb[0].mxu0 %v506
        %v704 = vpop.f32.mrb[0].mxu0
        %v705 = vadd.f32 0.0, %v704
        %v706 = vpop.f32.mrb[0].mxu0
        %v707 = vpop.f32.mrb[0].mxu0
        %v708 = vadd.f32 0.0, %v707
        %v709 = vpop.f32.mrb[0].mxu0
        %710 = vmatprep.mubr.bf16.mxu0 0
        %711 = vmatmul.mubr.bf16.gmra.mrb[0].mxu0 %v507
        %v712 = vpop.f32.mrb[0].mxu0
        %v713 = vadd.f32 0.0, %v712
        %v714 = vpop.f32.mrb[0].mxu0
        %v715 = vpop.f32.mrb[0].mxu0
        %v716 = vadd.f32 0.0, %v715
        %v717 = vpop.f32.mrb[0].mxu0
        %718 = vmatprep.mubr.bf16.mxu0 0
        %719 = vmatmul.mubr.bf16.gmra.mrb[0].mxu0 %v508
        %v720 = vpop.f32.mrb[0].mxu0
        %v721 = vadd.f32 0.0, %v720
        %v722 = vpop.f32.mrb[0].mxu0
        %v723 = vpop.f32.mrb[0].mxu0
        %v724 = vadd.f32 0.0, %v723
        %v725 = vpop.f32.mrb[0].mxu0
        %726 = vmatprep.mubr.bf16.mxu0 0
        %727 = vmatmul.mubr.bf16.gmra.mrb[0].mxu0 %v509
        %v728 = vpop.f32.mrb[0].mxu0
        %v729 = vadd.f32 0.0, %v728
        %v730 = vpop.f32.mrb[0].mxu0
        %v731 = vpop.f32.mrb[0].mxu0
        %v732 = vadd.f32 0.0, %v731
        %v733 = vpop.f32.mrb[0].mxu0
        %734 = vdwg.mxu0
        %v735 = vld [vmem:[#allocation2] sm:$0xff]
        %v736 = vld [vmem:[#allocation2 + $0x8] sm:$0xff]
        %v737 = vld [vmem:[#allocation2 + $0x10] sm:$0xff]
        %v738 = vld [vmem:[#allocation2 + $0x18] sm:$0xff]
        %v739 = vld [vmem:[#allocation2 + $0x20] sm:$0xff]
        %v740 = vld [vmem:[#allocation2 + $0x28] sm:$0xff]
        %v741 = vld [vmem:[#allocation2 + $0x30] sm:$0xff]
        %v742 = vld [vmem:[#allocation2 + $0x38] sm:$0xff]
        %v743 = vld [vmem:[#allocation2 + $0x40] sm:$0xff]
        %v744 = vld [vmem:[#allocation2 + $0x48] sm:$0xff]
        %v745 = vld [vmem:[#allocation2 + $0x50] sm:$0xff]
        %v746 = vld [vmem:[#allocation2 + $0x58] sm:$0xff]
        %v747 = vld [vmem:[#allocation2 + $0x60] sm:$0xff]
        %v748 = vld [vmem:[#allocation2 + $0x68] sm:$0xff]
        %v749 = vld [vmem:[#allocation2 + $0x70] sm:$0xff]
        %v750 = vld [vmem:[#allocation2 + $0x78] sm:$0xff]
        %v751 = vld [vmem:[#allocation2 + $0x80] sm:$0xff]
        %v752 = vld [vmem:[#allocation2 + $0x88] sm:$0xff]
        %v753 = vld [vmem:[#allocation2 + $0x90] sm:$0xff]
        %v754 = vld [vmem:[#allocation2 + $0x98] sm:$0xff]
        %v755 = vld [vmem:[#allocation2 + $0xa0] sm:$0xff]
        %v756 = vld [vmem:[#allocation2 + $0xa8] sm:$0xff]
        %v757 = vld [vmem:[#allocation2 + $0xb0] sm:$0xff]
        %v758 = vld [vmem:[#allocation2 + $0xb8] sm:$0xff]
        %v759 = vld [vmem:[#allocation2 + $0xc0] sm:$0xff]
        %v760 = vld [vmem:[#allocation2 + $0xc8] sm:$0xff]
        %v761 = vld [vmem:[#allocation2 + $0xd0] sm:$0xff]
        %v762 = vld [vmem:[#allocation2 + $0xd8] sm:$0xff]
        %v763 = vld [vmem:[#allocation2 + $0xe0] sm:$0xff]
        %v764 = vld [vmem:[#allocation2 + $0xe8] sm:$0xff]
        %v765 = vld [vmem:[#allocation2 + $0xf0] sm:$0xff]
        %v766 = vld [vmem:[#allocation2 + $0xf8] sm:$0xff]
        %v767 = vmul.f32 %v735, 0.75
        %v768 = vmul.f32 %v736, 0.75
        %v769 = vmul.f32 %v737, 0.75
        %v770 = vmul.f32 %v738, 0.75
        %v771 = vmul.f32 %v739, 0.75
        %v772 = vmul.f32 %v740, 0.75
        %v773 = vmul.f32 %v741, 0.75
        %v774 = vmul.f32 %v742, 0.75
        %v775 = vmul.f32 %v743, 0.75
        %v776 = vmul.f32 %v744, 0.75
        %v777 = vmul.f32 %v745, 0.75
        %v778 = vmul.f32 %v746, 0.75
        %v779 = vmul.f32 %v747, 0.75
        %v780 = vmul.f32 %v748, 0.75
        %v781 = vmul.f32 %v749, 0.75
        %v782 = vmul.f32 %v750, 0.75
        %v783 = vmul.f32 %v751, 0.75
        %v784 = vmul.f32 %v752, 0.75
        %v785 = vmul.f32 %v753, 0.75
        %v786 = vmul.f32 %v754, 0.75
        %v787 = vmul.f32 %v755, 0.75
        %v788 = vmul.f32 %v756, 0.75
        %v789 = vmul.f32 %v757, 0.75
        %v790 = vmul.f32 %v758, 0.75
        %v791 = vmul.f32 %v759, 0.75
        %v792 = vmul.f32 %v760, 0.75
        %v793 = vmul.f32 %v761, 0.75
        %v794 = vmul.f32 %v762, 0.75
        %v795 = vmul.f32 %v763, 0.75
        %v796 = vmul.f32 %v764, 0.75
        %v797 = vmul.f32 %v765, 0.75
        %v798 = vmul.f32 %v766, 0.75
        %v799 = vadd.f32 %v767, %v609
        %v800 = vadd.f32 %v768, %v612
        %v801 = vadd.f32 %v769, %v617
        %v802 = vadd.f32 %v770, %v620
        %v803 = vadd.f32 %v771, %v625
        %v804 = vadd.f32 %v772, %v628
        %v805 = vadd.f32 %v773, %v633
        %v806 = vadd.f32 %v774, %v636
        %v807 = vadd.f32 %v775, %v641
        %v808 = vadd.f32 %v776, %v644
        %v809 = vadd.f32 %v777, %v649
        %v810 = vadd.f32 %v778, %v652
        %v811 = vadd.f32 %v779, %v657
        %v812 = vadd.f32 %v780, %v660
        %v813 = vadd.f32 %v781, %v665
        %v814 = vadd.f32 %v782, %v668
        %v815 = vadd.f32 %v783, %v673
        %v816 = vadd.f32 %v784, %v676
        %v817 = vadd.f32 %v785, %v681
        %v818 = vadd.f32 %v786, %v684
        %v819 = vadd.f32 %v787, %v689
        %v820 = vadd.f32 %v788, %v692
        %v821 = vadd.f32 %v789, %v697
        %v822 = vadd.f32 %v790, %v700
        %v823 = vadd.f32 %v791, %v705
        %v824 = vadd.f32 %v792, %v708
        %v825 = vadd.f32 %v793, %v713
        %v826 = vadd.f32 %v794, %v716
        %v827 = vadd.f32 %v795, %v721
        %v828 = vadd.f32 %v796, %v724
        %v829 = vadd.f32 %v797, %v729
        %v830 = vadd.f32 %v798, %v732
        %v831 = vld [vmem:[#allocation3] sm:$0xff]
        %v832 = vld [vmem:[#allocation3 + $0x8] sm:$0xff]
        %v833 = vld [vmem:[#allocation3 + $0x10] sm:$0xff]
        %v834 = vld [vmem:[#allocation3 + $0x18] sm:$0xff]
        %v835 = vld [vmem:[#allocation3 + $0x20] sm:$0xff]
        %v836 = vld [vmem:[#allocation3 + $0x28] sm:$0xff]
        %v837 = vld [vmem:[#allocation3 + $0x30] sm:$0xff]
        %v838 = vld [vmem:[#allocation3 + $0x38] sm:$0xff]
        %v839 = vld [vmem:[#allocation3 + $0x40] sm:$0xff]
        %v840 = vld [vmem:[#allocation3 + $0x48] sm:$0xff]
        %v841 = vld [vmem:[#allocation3 + $0x50] sm:$0xff]
        %v842 = vld [vmem:[#allocation3 + $0x58] sm:$0xff]
        %v843 = vld [vmem:[#allocation3 + $0x60] sm:$0xff]
        %v844 = vld [vmem:[#allocation3 + $0x68] sm:$0xff]
        %v845 = vld [vmem:[#allocation3 + $0x70] sm:$0xff]
        %v846 = vld [vmem:[#allocation3 + $0x78] sm:$0xff]
        %v847 = vld [vmem:[#allocation3 + $0x80] sm:$0xff]
        %v848 = vld [vmem:[#allocation3 + $0x88] sm:$0xff]
        %v849 = vld [vmem:[#allocation3 + $0x90] sm:$0xff]
        %v850 = vld [vmem:[#allocation3 + $0x98] sm:$0xff]
        %v851 = vld [vmem:[#allocation3 + $0xa0] sm:$0xff]
        %v852 = vld [vmem:[#allocation3 + $0xa8] sm:$0xff]
        %v853 = vld [vmem:[#allocation3 + $0xb0] sm:$0xff]
        %v854 = vld [vmem:[#allocation3 + $0xb8] sm:$0xff]
        %v855 = vld [vmem:[#allocation3 + $0xc0] sm:$0xff]
        %v856 = vld [vmem:[#allocation3 + $0xc8] sm:$0xff]
        %v857 = vld [vmem:[#allocation3 + $0xd0] sm:$0xff]
        %v858 = vld [vmem:[#allocation3 + $0xd8] sm:$0xff]
        %v859 = vld [vmem:[#allocation3 + $0xe0] sm:$0xff]
        %v860 = vld [vmem:[#allocation3 + $0xe8] sm:$0xff]
        %v861 = vld [vmem:[#allocation3 + $0xf0] sm:$0xff]
        %v862 = vld [vmem:[#allocation3 + $0xf8] sm:$0xff]
        %v863 = vmul.f32 %v831, 0.97
        %v864 = vmul.f32 %v832, 0.97
        %v865 = vmul.f32 %v833, 0.97
        %v866 = vmul.f32 %v834, 0.97
        %v867 = vmul.f32 %v835, 0.97
        %v868 = vmul.f32 %v836, 0.97
        %v869 = vmul.f32 %v837, 0.97
        %v870 = vmul.f32 %v838, 0.97
        %v871 = vmul.f32 %v839, 0.97
        %v872 = vmul.f32 %v840, 0.97
        %v873 = vmul.f32 %v841, 0.97
        %v874 = vmul.f32 %v842, 0.97
        %v875 = vmul.f32 %v843, 0.97
        %v876 = vmul.f32 %v844, 0.97
        %v877 = vmul.f32 %v845, 0.97
        %v878 = vmul.f32 %v846, 0.97
        %v879 = vmul.f32 %v847, 0.97
        %v880 = vmul.f32 %v848, 0.97
        %v881 = vmul.f32 %v849, 0.97
        %v882 = vmul.f32 %v850, 0.97
        %v883 = vmul.f32 %v851, 0.97
        %v884 = vmul.f32 %v852, 0.97
        %v885 = vmul.f32 %v853, 0.97
        %v886 = vmul.f32 %v854, 0.97
        %v887 = vmul.f32 %v855, 0.97
        %v888 = vmul.f32 %v856, 0.97
        %v889 = vmul.f32 %v857, 0.97
        %v890 = vmul.f32 %v858, 0.97
        %v891 = vmul.f32 %v859, 0.97
        %v892 = vmul.f32 %v860, 0.97
        %v893 = vmul.f32 %v861, 0.97
        %v894 = vmul.f32 %v862, 0.97
        %v895 = vadd.f32 %v863, %v799
        %v896 = vadd.f32 %v864, %v800
        %v897 = vadd.f32 %v865, %v801
        %v898 = vadd.f32 %v866, %v802
        %v899 = vadd.f32 %v867, %v803
        %v900 = vadd.f32 %v868, %v804
        %v901 = vadd.f32 %v869, %v805
        %v902 = vadd.f32 %v870, %v806
        %v903 = vadd.f32 %v871, %v807
        %v904 = vadd.f32 %v872, %v808
        %v905 = vadd.f32 %v873, %v809
        %v906 = vadd.f32 %v874, %v810
        %v907 = vadd.f32 %v875, %v811
        %v908 = vadd.f32 %v876, %v812
        %v909 = vadd.f32 %v877, %v813
        %v910 = vadd.f32 %v878, %v814
        %v911 = vadd.f32 %v879, %v815
        %v912 = vadd.f32 %v880, %v816
        %v913 = vadd.f32 %v881, %v817
        %v914 = vadd.f32 %v882, %v818
        %v915 = vadd.f32 %v883, %v819
        %v916 = vadd.f32 %v884, %v820
        %v917 = vadd.f32 %v885, %v821
        %v918 = vadd.f32 %v886, %v822
        %v919 = vadd.f32 %v887, %v823
        %v920 = vadd.f32 %v888, %v824
        %v921 = vadd.f32 %v889, %v825
        %v922 = vadd.f32 %v890, %v826
        %v923 = vadd.f32 %v891, %v827
        %v924 = vadd.f32 %v892, %v828
        %v925 = vadd.f32 %v893, %v829
        %v926 = vadd.f32 %v894, %v830
        %vm927 = vcmp.ge.f32.partialorder %v895, 1.0
        %vm928 = vcmp.ge.f32.partialorder %v896, 1.0
        %vm929 = vcmp.ge.f32.partialorder %v897, 1.0
        %vm930 = vcmp.ge.f32.partialorder %v898, 1.0
        %vm931 = vcmp.ge.f32.partialorder %v899, 1.0
        %vm932 = vcmp.ge.f32.partialorder %v900, 1.0
        %vm933 = vcmp.ge.f32.partialorder %v901, 1.0
        %vm934 = vcmp.ge.f32.partialorder %v902, 1.0
        %vm935 = vcmp.ge.f32.partialorder %v903, 1.0
        %vm936 = vcmp.ge.f32.partialorder %v904, 1.0
        %vm937 = vcmp.ge.f32.partialorder %v905, 1.0
        %vm938 = vcmp.ge.f32.partialorder %v906, 1.0
        %vm939 = vcmp.ge.f32.partialorder %v907, 1.0
        %vm940 = vcmp.ge.f32.partialorder %v908, 1.0
        %vm941 = vcmp.ge.f32.partialorder %v909, 1.0
        %vm942 = vcmp.ge.f32.partialorder %v910, 1.0
        %vm943 = vcmp.ge.f32.partialorder %v911, 1.0
        %vm944 = vcmp.ge.f32.partialorder %v912, 1.0
        %vm945 = vcmp.ge.f32.partialorder %v913, 1.0
        %vm946 = vcmp.ge.f32.partialorder %v914, 1.0
        %vm947 = vcmp.ge.f32.partialorder %v915, 1.0
        %vm948 = vcmp.ge.f32.partialorder %v916, 1.0
        %vm949 = vcmp.ge.f32.partialorder %v917, 1.0
        %vm950 = vcmp.ge.f32.partialorder %v918, 1.0
        %vm951 = vcmp.ge.f32.partialorder %v919, 1.0
        %vm952 = vcmp.ge.f32.partialorder %v920, 1.0
        %vm953 = vcmp.ge.f32.partialorder %v921, 1.0
        %vm954 = vcmp.ge.f32.partialorder %v922, 1.0
        %vm955 = vcmp.ge.f32.partialorder %v923, 1.0
        %vm956 = vcmp.ge.f32.partialorder %v924, 1.0
        %vm957 = vcmp.ge.f32.partialorder %v925, 1.0
        %vm958 = vcmp.ge.f32.partialorder %v926, 1.0
        %v959 = vsel %vm927, 1.0, 0.0
        %v960 = vsel %vm928, 1.0, 0.0
        %v961 = vsel %vm929, 1.0, 0.0
        %v962 = vsel %vm930, 1.0, 0.0
        %v963 = vsel %vm931, 1.0, 0.0
        %v964 = vsel %vm932, 1.0, 0.0
        %v965 = vsel %vm933, 1.0, 0.0
        %v966 = vsel %vm934, 1.0, 0.0
        %v967 = vsel %vm935, 1.0, 0.0
        %v968 = vsel %vm936, 1.0, 0.0
        %v969 = vsel %vm937, 1.0, 0.0
        %v970 = vsel %vm938, 1.0, 0.0
        %v971 = vsel %vm939, 1.0, 0.0
        %v972 = vsel %vm940, 1.0, 0.0
        %v973 = vsel %vm941, 1.0, 0.0
        %v974 = vsel %vm942, 1.0, 0.0
        %v975 = vsel %vm943, 1.0, 0.0
        %v976 = vsel %vm944, 1.0, 0.0
        %v977 = vsel %vm945, 1.0, 0.0
        %v978 = vsel %vm946, 1.0, 0.0
        %v979 = vsel %vm947, 1.0, 0.0
        %v980 = vsel %vm948, 1.0, 0.0
        %v981 = vsel %vm949, 1.0, 0.0
        %v982 = vsel %vm950, 1.0, 0.0
        %v983 = vsel %vm951, 1.0, 0.0
        %v984 = vsel %vm952, 1.0, 0.0
        %v985 = vsel %vm953, 1.0, 0.0
        %v986 = vsel %vm954, 1.0, 0.0
        %v987 = vsel %vm955, 1.0, 0.0
        %v988 = vsel %vm956, 1.0, 0.0
        %v989 = vsel %vm957, 1.0, 0.0
        %v990 = vsel %vm958, 1.0, 0.0
        %991 = vst [vmem:[#allocation2] sm:$0xff] %v799
        %992 = vst [vmem:[#allocation2 + $0x8] sm:$0xff] %v800
        %993 = vst [vmem:[#allocation2 + $0x10] sm:$0xff] %v801
        %994 = vst [vmem:[#allocation2 + $0x18] sm:$0xff] %v802
        %995 = vst [vmem:[#allocation2 + $0x20] sm:$0xff] %v803
        %996 = vst [vmem:[#allocation2 + $0x28] sm:$0xff] %v804
        %997 = vst [vmem:[#allocation2 + $0x30] sm:$0xff] %v805
        %998 = vst [vmem:[#allocation2 + $0x38] sm:$0xff] %v806
        %999 = vst [vmem:[#allocation2 + $0x40] sm:$0xff] %v807
        %1000 = vst [vmem:[#allocation2 + $0x48] sm:$0xff] %v808
        %1001 = vst [vmem:[#allocation2 + $0x50] sm:$0xff] %v809
        %1002 = vst [vmem:[#allocation2 + $0x58] sm:$0xff] %v810
        %1003 = vst [vmem:[#allocation2 + $0x60] sm:$0xff] %v811
        %1004 = vst [vmem:[#allocation2 + $0x68] sm:$0xff] %v812
        %1005 = vst [vmem:[#allocation2 + $0x70] sm:$0xff] %v813
        %1006 = vst [vmem:[#allocation2 + $0x78] sm:$0xff] %v814
        %1007 = vst [vmem:[#allocation2 + $0x80] sm:$0xff] %v815
        %1008 = vst [vmem:[#allocation2 + $0x88] sm:$0xff] %v816
        %1009 = vst [vmem:[#allocation2 + $0x90] sm:$0xff] %v817
        %1010 = vst [vmem:[#allocation2 + $0x98] sm:$0xff] %v818
        %1011 = vst [vmem:[#allocation2 + $0xa0] sm:$0xff] %v819
        %1012 = vst [vmem:[#allocation2 + $0xa8] sm:$0xff] %v820
        %1013 = vst [vmem:[#allocation2 + $0xb0] sm:$0xff] %v821
        %1014 = vst [vmem:[#allocation2 + $0xb8] sm:$0xff] %v822
        %1015 = vst [vmem:[#allocation2 + $0xc0] sm:$0xff] %v823
        %1016 = vst [vmem:[#allocation2 + $0xc8] sm:$0xff] %v824
        %1017 = vst [vmem:[#allocation2 + $0xd0] sm:$0xff] %v825
        %1018 = vst [vmem:[#allocation2 + $0xd8] sm:$0xff] %v826
        %1019 = vst [vmem:[#allocation2 + $0xe0] sm:$0xff] %v827
        %1020 = vst [vmem:[#allocation2 + $0xe8] sm:$0xff] %v828
        %1021 = vst [vmem:[#allocation2 + $0xf0] sm:$0xff] %v829
        %1022 = vst [vmem:[#allocation2 + $0xf8] sm:$0xff] %v830
        %v1023 = vsel %vm927, 0.0, %v895
        %v1024 = vsel %vm928, 0.0, %v896
        %v1025 = vsel %vm929, 0.0, %v897
        %v1026 = vsel %vm930, 0.0, %v898
        %v1027 = vsel %vm931, 0.0, %v899
        %v1028 = vsel %vm932, 0.0, %v900
        %v1029 = vsel %vm933, 0.0, %v901
        %v1030 = vsel %vm934, 0.0, %v902
        %v1031 = vsel %vm935, 0.0, %v903
        %v1032 = vsel %vm936, 0.0, %v904
        %v1033 = vsel %vm937, 0.0, %v905
        %v1034 = vsel %vm938, 0.0, %v906
        %v1035 = vsel %vm939, 0.0, %v907
        %v1036 = vsel %vm940, 0.0, %v908
        %v1037 = vsel %vm941, 0.0, %v909
        %v1038 = vsel %vm942, 0.0, %v910
        %v1039 = vsel %vm943, 0.0, %v911
        %v1040 = vsel %vm944, 0.0, %v912
        %v1041 = vsel %vm945, 0.0, %v913
        %v1042 = vsel %vm946, 0.0, %v914
        %v1043 = vsel %vm947, 0.0, %v915
        %v1044 = vsel %vm948, 0.0, %v916
        %v1045 = vsel %vm949, 0.0, %v917
        %v1046 = vsel %vm950, 0.0, %v918
        %v1047 = vsel %vm951, 0.0, %v919
        %v1048 = vsel %vm952, 0.0, %v920
        %v1049 = vsel %vm953, 0.0, %v921
        %v1050 = vsel %vm954, 0.0, %v922
        %v1051 = vsel %vm955, 0.0, %v923
        %v1052 = vsel %vm956, 0.0, %v924
        %v1053 = vsel %vm957, 0.0, %v925
        %v1054 = vsel %vm958, 0.0, %v926
        %1055 = vst [vmem:[#allocation3] sm:$0xff] %v1023
        %1056 = vst [vmem:[#allocation3 + $0x8] sm:$0xff] %v1024
        %1057 = vst [vmem:[#allocation3 + $0x10] sm:$0xff] %v1025
        %1058 = vst [vmem:[#allocation3 + $0x18] sm:$0xff] %v1026
        %1059 = vst [vmem:[#allocation3 + $0x20] sm:$0xff] %v1027
        %1060 = vst [vmem:[#allocation3 + $0x28] sm:$0xff] %v1028
        %1061 = vst [vmem:[#allocation3 + $0x30] sm:$0xff] %v1029
        %1062 = vst [vmem:[#allocation3 + $0x38] sm:$0xff] %v1030
        %1063 = vst [vmem:[#allocation3 + $0x40] sm:$0xff] %v1031
        %1064 = vst [vmem:[#allocation3 + $0x48] sm:$0xff] %v1032
        %1065 = vst [vmem:[#allocation3 + $0x50] sm:$0xff] %v1033
        %1066 = vst [vmem:[#allocation3 + $0x58] sm:$0xff] %v1034
        %1067 = vst [vmem:[#allocation3 + $0x60] sm:$0xff] %v1035
        %1068 = vst [vmem:[#allocation3 + $0x68] sm:$0xff] %v1036
        %1069 = vst [vmem:[#allocation3 + $0x70] sm:$0xff] %v1037
        %1070 = vst [vmem:[#allocation3 + $0x78] sm:$0xff] %v1038
        %1071 = vst [vmem:[#allocation3 + $0x80] sm:$0xff] %v1039
        %1072 = vst [vmem:[#allocation3 + $0x88] sm:$0xff] %v1040
        %1073 = vst [vmem:[#allocation3 + $0x90] sm:$0xff] %v1041
        %1074 = vst [vmem:[#allocation3 + $0x98] sm:$0xff] %v1042
        %1075 = vst [vmem:[#allocation3 + $0xa0] sm:$0xff] %v1043
        %1076 = vst [vmem:[#allocation3 + $0xa8] sm:$0xff] %v1044
        %1077 = vst [vmem:[#allocation3 + $0xb0] sm:$0xff] %v1045
        %1078 = vst [vmem:[#allocation3 + $0xb8] sm:$0xff] %v1046
        %1079 = vst [vmem:[#allocation3 + $0xc0] sm:$0xff] %v1047
        %1080 = vst [vmem:[#allocation3 + $0xc8] sm:$0xff] %v1048
        %1081 = vst [vmem:[#allocation3 + $0xd0] sm:$0xff] %v1049
        %1082 = vst [vmem:[#allocation3 + $0xd8] sm:$0xff] %v1050
        %1083 = vst [vmem:[#allocation3 + $0xe0] sm:$0xff] %v1051
        %1084 = vst [vmem:[#allocation3 + $0xe8] sm:$0xff] %v1052
        %1085 = vst [vmem:[#allocation3 + $0xf0] sm:$0xff] %v1053
        %1086 = vst [vmem:[#allocation3 + $0xf8] sm:$0xff] %v1054
        %v1087 = vld [vmem:[%s243] sm:$0xff]
        %v1088 = vld [vmem:[%s243 + $0x8] sm:$0xff]
        %v1089 = vld [vmem:[%s243 + $0x10] sm:$0xff]
        %v1090 = vld [vmem:[%s243 + $0x18] sm:$0xff]
        %v1091 = vld [vmem:[%s243 + $0x20] sm:$0xff]
        %v1092 = vld [vmem:[%s243 + $0x28] sm:$0xff]
        %v1093 = vld [vmem:[%s243 + $0x30] sm:$0xff]
        %v1094 = vld [vmem:[%s243 + $0x38] sm:$0xff]
        %v1095 = vld [vmem:[%s243 + $0x40] sm:$0xff]
        %v1096 = vld [vmem:[%s243 + $0x48] sm:$0xff]
        %v1097 = vld [vmem:[%s243 + $0x50] sm:$0xff]
        %v1098 = vld [vmem:[%s243 + $0x58] sm:$0xff]
        %v1099 = vld [vmem:[%s243 + $0x60] sm:$0xff]
        %v1100 = vld [vmem:[%s243 + $0x68] sm:$0xff]
        %v1101 = vld [vmem:[%s243 + $0x70] sm:$0xff]
        %v1102 = vld [vmem:[%s243 + $0x78] sm:$0xff]
        %v1103 = vld [vmem:[%s243 + $0x80] sm:$0xff]
        %v1104 = vld [vmem:[%s243 + $0x88] sm:$0xff]
        %v1105 = vld [vmem:[%s243 + $0x90] sm:$0xff]
        %v1106 = vld [vmem:[%s243 + $0x98] sm:$0xff]
        %v1107 = vld [vmem:[%s243 + $0xa0] sm:$0xff]
        %v1108 = vld [vmem:[%s243 + $0xa8] sm:$0xff]
        %v1109 = vld [vmem:[%s243 + $0xb0] sm:$0xff]
        %v1110 = vld [vmem:[%s243 + $0xb8] sm:$0xff]
        %v1111 = vld [vmem:[%s243 + $0xc0] sm:$0xff]
        %v1112 = vld [vmem:[%s243 + $0xc8] sm:$0xff]
        %v1113 = vld [vmem:[%s243 + $0xd0] sm:$0xff]
        %v1114 = vld [vmem:[%s243 + $0xd8] sm:$0xff]
        %v1115 = vld [vmem:[%s243 + $0xe0] sm:$0xff]
        %v1116 = vld [vmem:[%s243 + $0xe8] sm:$0xff]
        %v1117 = vld [vmem:[%s243 + $0xf0] sm:$0xff]
        %v1118 = vld [vmem:[%s243 + $0xf8] sm:$0xff]
        %v1119 = vadd.f32 %v1087, %v959
        %v1120 = vadd.f32 %v1088, %v960
        %v1121 = vadd.f32 %v1089, %v961
        %v1122 = vadd.f32 %v1090, %v962
        %v1123 = vadd.f32 %v1091, %v963
        %v1124 = vadd.f32 %v1092, %v964
        %v1125 = vadd.f32 %v1093, %v965
        %v1126 = vadd.f32 %v1094, %v966
        %v1127 = vadd.f32 %v1095, %v967
        %v1128 = vadd.f32 %v1096, %v968
        %v1129 = vadd.f32 %v1097, %v969
        %v1130 = vadd.f32 %v1098, %v970
        %v1131 = vadd.f32 %v1099, %v971
        %v1132 = vadd.f32 %v1100, %v972
        %v1133 = vadd.f32 %v1101, %v973
        %v1134 = vadd.f32 %v1102, %v974
        %v1135 = vadd.f32 %v1103, %v975
        %v1136 = vadd.f32 %v1104, %v976
        %v1137 = vadd.f32 %v1105, %v977
        %v1138 = vadd.f32 %v1106, %v978
        %v1139 = vadd.f32 %v1107, %v979
        %v1140 = vadd.f32 %v1108, %v980
        %v1141 = vadd.f32 %v1109, %v981
        %v1142 = vadd.f32 %v1110, %v982
        %v1143 = vadd.f32 %v1111, %v983
        %v1144 = vadd.f32 %v1112, %v984
        %v1145 = vadd.f32 %v1113, %v985
        %v1146 = vadd.f32 %v1114, %v986
        %v1147 = vadd.f32 %v1115, %v987
        %v1148 = vadd.f32 %v1116, %v988
        %v1149 = vadd.f32 %v1117, %v989
        %v1150 = vadd.f32 %v1118, %v990
        %1151 = vst [vmem:[%s243] sm:$0xff] %v1119
        %1152 = vst [vmem:[%s243 + $0x8] sm:$0xff] %v1120
        %1153 = vst [vmem:[%s243 + $0x10] sm:$0xff] %v1121
        %1154 = vst [vmem:[%s243 + $0x18] sm:$0xff] %v1122
        %1155 = vst [vmem:[%s243 + $0x20] sm:$0xff] %v1123
        %1156 = vst [vmem:[%s243 + $0x28] sm:$0xff] %v1124
        %1157 = vst [vmem:[%s243 + $0x30] sm:$0xff] %v1125
        %1158 = vst [vmem:[%s243 + $0x38] sm:$0xff] %v1126
        %1159 = vst [vmem:[%s243 + $0x40] sm:$0xff] %v1127
        %1160 = vst [vmem:[%s243 + $0x48] sm:$0xff] %v1128
        %1161 = vst [vmem:[%s243 + $0x50] sm:$0xff] %v1129
        %1162 = vst [vmem:[%s243 + $0x58] sm:$0xff] %v1130
        %1163 = vst [vmem:[%s243 + $0x60] sm:$0xff] %v1131
        %1164 = vst [vmem:[%s243 + $0x68] sm:$0xff] %v1132
        %1165 = vst [vmem:[%s243 + $0x70] sm:$0xff] %v1133
        %1166 = vst [vmem:[%s243 + $0x78] sm:$0xff] %v1134
        %1167 = vst [vmem:[%s243 + $0x80] sm:$0xff] %v1135
        %1168 = vst [vmem:[%s243 + $0x88] sm:$0xff] %v1136
        %1169 = vst [vmem:[%s243 + $0x90] sm:$0xff] %v1137
        %1170 = vst [vmem:[%s243 + $0x98] sm:$0xff] %v1138
        %1171 = vst [vmem:[%s243 + $0xa0] sm:$0xff] %v1139
        %1172 = vst [vmem:[%s243 + $0xa8] sm:$0xff] %v1140
        %1173 = vst [vmem:[%s243 + $0xb0] sm:$0xff] %v1141
        %1174 = vst [vmem:[%s243 + $0xb8] sm:$0xff] %v1142
        %1175 = vst [vmem:[%s243 + $0xc0] sm:$0xff] %v1143
        %1176 = vst [vmem:[%s243 + $0xc8] sm:$0xff] %v1144
        %1177 = vst [vmem:[%s243 + $0xd0] sm:$0xff] %v1145
        %1178 = vst [vmem:[%s243 + $0xd8] sm:$0xff] %v1146
        %1179 = vst [vmem:[%s243 + $0xe0] sm:$0xff] %v1147
        %1180 = vst [vmem:[%s243 + $0xe8] sm:$0xff] %v1148
        %1181 = vst [vmem:[%s243 + $0xf0] sm:$0xff] %v1149
        %1182 = vst [vmem:[%s243 + $0xf8] sm:$0xff] %v1150
        %v1183 = vpack.c.bf16 %v960, %v959
        %v1184 = vpack.c.bf16 %v962, %v961
        %v1185 = vpack.c.bf16 %v964, %v963
        %v1186 = vpack.c.bf16 %v966, %v965
        %v1187 = vpack.c.bf16 %v968, %v967
        %v1188 = vpack.c.bf16 %v970, %v969
        %v1189 = vpack.c.bf16 %v972, %v971
        %v1190 = vpack.c.bf16 %v974, %v973
        %v1191 = vpack.c.bf16 %v976, %v975
        %v1192 = vpack.c.bf16 %v978, %v977
        %v1193 = vpack.c.bf16 %v980, %v979
        %v1194 = vpack.c.bf16 %v982, %v981
        %v1195 = vpack.c.bf16 %v984, %v983
        %v1196 = vpack.c.bf16 %v986, %v985
        %v1197 = vpack.c.bf16 %v988, %v987
        %v1198 = vpack.c.bf16 %v990, %v989
        %v1215 = vunpack.c.l.b16 %v1183
        %v1216 = vunpack.c.h.b16 %v1183
        %v1217 = vunpack.c.l.b16 %v1184
        %v1218 = vunpack.c.h.b16 %v1184
        %v1219 = vunpack.c.l.b16 %v1185
        %v1220 = vunpack.c.h.b16 %v1185
        %v1221 = vunpack.c.l.b16 %v1186
        %v1222 = vunpack.c.h.b16 %v1186
        %v1223 = vunpack.c.l.b16 %v1187
        %v1224 = vunpack.c.h.b16 %v1187
        %v1225 = vunpack.c.l.b16 %v1188
        %v1226 = vunpack.c.h.b16 %v1188
        %v1227 = vunpack.c.l.b16 %v1189
        %v1228 = vunpack.c.h.b16 %v1189
        %v1229 = vunpack.c.l.b16 %v1190
        %v1230 = vunpack.c.h.b16 %v1190
        %v1231 = vunpack.c.l.b16 %v1191
        %v1232 = vunpack.c.h.b16 %v1191
        %v1233 = vunpack.c.l.b16 %v1192
        %v1234 = vunpack.c.h.b16 %v1192
        %v1235 = vunpack.c.l.b16 %v1193
        %v1236 = vunpack.c.h.b16 %v1193
        %v1237 = vunpack.c.l.b16 %v1194
        %v1238 = vunpack.c.h.b16 %v1194
        %v1239 = vunpack.c.l.b16 %v1195
        %v1240 = vunpack.c.h.b16 %v1195
        %v1241 = vunpack.c.l.b16 %v1196
        %v1242 = vunpack.c.h.b16 %v1196
        %v1243 = vunpack.c.l.b16 %v1197
        %v1244 = vunpack.c.h.b16 %v1197
        %v1245 = vunpack.c.l.b16 %v1198
        %v1246 = vunpack.c.h.b16 %v1198
        %v1247 = vpack.c.b16 %v1215, %v1215
        %v1248 = vpack.c.b16 %v1216, %v1216
        %v1249 = vpack.c.b16 %v1217, %v1217
        %v1250 = vpack.c.b16 %v1218, %v1218
        %v1251 = vpack.c.b16 %v1219, %v1219
        %v1252 = vpack.c.b16 %v1220, %v1220
        %v1253 = vpack.c.b16 %v1221, %v1221
        %v1254 = vpack.c.b16 %v1222, %v1222
        %v1255 = vpack.c.b16 %v1223, %v1223
        %v1256 = vpack.c.b16 %v1224, %v1224
        %v1257 = vpack.c.b16 %v1225, %v1225
        %v1258 = vpack.c.b16 %v1226, %v1226
        %v1259 = vpack.c.b16 %v1227, %v1227
        %v1260 = vpack.c.b16 %v1228, %v1228
        %v1261 = vpack.c.b16 %v1229, %v1229
        %v1262 = vpack.c.b16 %v1230, %v1230
        %v1263 = vpack.c.b16 %v1231, %v1231
        %v1264 = vpack.c.b16 %v1232, %v1232
        %v1265 = vpack.c.b16 %v1233, %v1233
        %v1266 = vpack.c.b16 %v1234, %v1234
        %v1267 = vpack.c.b16 %v1235, %v1235
        %v1268 = vpack.c.b16 %v1236, %v1236
        %v1269 = vpack.c.b16 %v1237, %v1237
        %v1270 = vpack.c.b16 %v1238, %v1238
        %v1271 = vpack.c.b16 %v1239, %v1239
        %v1272 = vpack.c.b16 %v1240, %v1240
        %v1273 = vpack.c.b16 %v1241, %v1241
        %v1274 = vpack.c.b16 %v1242, %v1242
        %v1275 = vpack.c.b16 %v1243, %v1243
        %v1276 = vpack.c.b16 %v1244, %v1244
        %v1277 = vpack.c.b16 %v1245, %v1245
        %v1278 = vpack.c.b16 %v1246, %v1246
        %1311 = vst [vmem:[%s237] sm:$0xf] %v1247
        %1312 = vst [vmem:[%s237 + $0x4] sm:$0xf] %v1248
        %1313 = vst [vmem:[%s237 + $0x8] sm:$0xf] %v1249
        %1314 = vst [vmem:[%s237 + $0xc] sm:$0xf] %v1250
        %1315 = vst [vmem:[%s237 + $0x10] sm:$0xf] %v1251
        %1316 = vst [vmem:[%s237 + $0x14] sm:$0xf] %v1252
        %1317 = vst [vmem:[%s237 + $0x18] sm:$0xf] %v1253
        %1318 = vst [vmem:[%s237 + $0x1c] sm:$0xf] %v1254
        %1319 = vst [vmem:[%s237 + $0x20] sm:$0xf] %v1255
        %1320 = vst [vmem:[%s237 + $0x24] sm:$0xf] %v1256
        %1321 = vst [vmem:[%s237 + $0x28] sm:$0xf] %v1257
        %1322 = vst [vmem:[%s237 + $0x2c] sm:$0xf] %v1258
        %1323 = vst [vmem:[%s237 + $0x30] sm:$0xf] %v1259
        %1324 = vst [vmem:[%s237 + $0x34] sm:$0xf] %v1260
        %1325 = vst [vmem:[%s237 + $0x38] sm:$0xf] %v1261
        %1326 = vst [vmem:[%s237 + $0x3c] sm:$0xf] %v1262
        %1327 = vst [vmem:[%s237 + $0x40] sm:$0xf] %v1263
        %1328 = vst [vmem:[%s237 + $0x44] sm:$0xf] %v1264
        %1329 = vst [vmem:[%s237 + $0x48] sm:$0xf] %v1265
        %1330 = vst [vmem:[%s237 + $0x4c] sm:$0xf] %v1266
        %1331 = vst [vmem:[%s237 + $0x50] sm:$0xf] %v1267
        %1332 = vst [vmem:[%s237 + $0x54] sm:$0xf] %v1268
        %1333 = vst [vmem:[%s237 + $0x58] sm:$0xf] %v1269
        %1334 = vst [vmem:[%s237 + $0x5c] sm:$0xf] %v1270
        %1335 = vst [vmem:[%s237 + $0x60] sm:$0xf] %v1271
        %1336 = vst [vmem:[%s237 + $0x64] sm:$0xf] %v1272
        %1337 = vst [vmem:[%s237 + $0x68] sm:$0xf] %v1273
        %1338 = vst [vmem:[%s237 + $0x6c] sm:$0xf] %v1274
        %1339 = vst [vmem:[%s237 + $0x70] sm:$0xf] %v1275
        %1340 = vst [vmem:[%s237 + $0x74] sm:$0xf] %v1276
        %1341 = vst [vmem:[%s237 + $0x78] sm:$0xf] %v1277
        %1342 = vst [vmem:[%s237 + $0x7c] sm:$0xf] %v1278
      $region36: #{conv_class_forward.7} parent=27 // pred_fallthru
        _
      %s1343 = smul.u32 32, %s19
      %p1344 = scmp.lt.s32.totalorder %s20, 7
      %s1345 = scalar_select %p1344, %s20, 7
      %p1346 = scmp.lt.s32.totalorder %s1343, 63
      %s1347 = scalar_select %p1346, %s1343, 63
      %s1348 = smul.addr %s1345, 64
      %s1349 = sadd.s32 %s1347, %s1348
      %s1350 = smul.addr %s1349, 4
      %s1351 = scalar_lea.vmem %s2, %s1350
      %s1352 = smul.u32 32, %s19
      %p1353 = scmp.lt.s32.totalorder %s1352, 63
      %s1354 = scalar_select %p1353, %s1352, 63
      %s1355 = smul.addr %s1354, 8
      %s1356 = scalar_lea.vmem %s3, %s1355
      // Predicated region
      $region37: #{conv_class_forward.7} parent=27 // pred_check
        %p1357 = pneg %p102
      $region38: #{conv_class_forward.7} parent=27 // pred_check_branch
        %1359 = sbr.rel (%p1357) target = $region40
      $region39: #{conv_class_forward.7} parent=27 // pred_region
        %s1360 = smul.u32 32, %s19
      $region40: #{conv_class_forward.7} parent=27 // pred_fallthru
        _
      // Predicated region
      $region41: #{conv_class_forward.7} parent=27 // pred_check
        %p1361 = pneg %p128
      $region42: #{conv_class_forward.7} parent=27 // pred_check_branch
        %1363 = sbr.rel (%p1361) target = $region44
      $region43: #{conv_class_forward.7} parent=27 // pred_region
        %s1364 = smul.u32 32, %s19
      $region44: #{conv_class_forward.7} parent=27 // pred_fallthru
        _
    $region28: #{conv_class_forward.7} parent=5 // pred_fallthru
      _
    %p1365 = scmp.le.s32.totalorder 2, %s10
    // Predicated region
    $region45: #{conv_class_forward.7} parent=5 // pred_check
      %p1366 = pneg %p1365
    $region46: #{conv_class_forward.7} parent=5 // pred_check_branch
      %1368 = sbr.rel (%p1366) target = $region48
    $region47: #{conv_class_forward.7} parent=5 // pred_region
      %s1369 = ssub.s32 %s10, 2
      // Predicated region
      $region49: #{conv_class_forward.7} parent=47 // pred_check
        %p1370 = pneg %p108
      $region50: #{conv_class_forward.7} parent=47 // pred_check_branch
        %1372 = sbr.rel (%p1370) target = $region52
      $region51: #{conv_class_forward.7} parent=47 // pred_region
        %s1373 = smul.u32 32, %s21
        %p1374 = scmp.lt.s32.totalorder %s22, 7
        %s1375 = scalar_select %p1374, %s22, 7
        %p1376 = scmp.lt.s32.totalorder %s1373, 63
        %s1377 = scalar_select %p1376, %s1373, 63
        %s1378 = smul.addr %s1375, 64
        %s1379 = sadd.s32 %s1377, %s1378
        %s1380 = smul.addr %s1379, 4
        %s1381 = scalar_lea.vmem %s2, %s1380
      $region52: #{conv_class_forward.7} parent=47 // pred_fallthru
        _
      // Predicated region
      $region53: #{conv_class_forward.7} parent=47 // pred_check
        %p1382 = pneg %p134
      $region54: #{conv_class_forward.7} parent=47 // pred_check_branch
        %1384 = sbr.rel (%p1382) target = $region56
      $region55: #{conv_class_forward.7} parent=47 // pred_region
        %s1385 = smul.u32 32, %s21
        %p1386 = scmp.lt.s32.totalorder %s1385, 63
        %s1387 = scalar_select %p1386, %s1385, 63
        %s1388 = smul.addr %s1387, 8
        %s1389 = scalar_lea.vmem %s3, %s1388
      $region56: #{conv_class_forward.7} parent=47 // pred_fallthru
        _
    $region48: #{conv_class_forward.7} parent=5 // pred_fallthru
      _
  $region6: #{conv_class_forward.7} parent=0 // loop_footer
    %s14 = sadd.s32 1, %s10
  $region7: #{conv_class_forward.7} parent=0 // loop_footer_branch
    %9 = sbr.rel target = $region3
  $region8: #{conv_class_forward.7} parent=0 // loop_exit
    _

// kernel: conv_class_forward.8
$region0: #{conv_class_forward.8}
  #allocation0 [shape = 'u32[]', space=smem, size = 0x4, offset = 0x4, fixed_abs, tag = 'smem constant byte address 0x4 - core index']
  #allocation1 [shape = 'u32[144,128]{1,0:T(1,128)}', space=vmem, size = 0x12000, scoped, tag = 'internal scratch']
  #allocation2 [shape = 'f32[208,128]{1,0:T(8,128)}', space=vmem, size = 0x1a000, scoped, tag = 'scratch operand']
  #allocation3 [shape = 'f32[208,128]{1,0:T(8,128)}', space=vmem, size = 0x1a000, scoped, tag = 'scratch operand']
  %s0 = inlined_call_operand.vmem [shape: bf16[8,416,384], index: 0, kind: input, shape index: {}]
  %s1 = inlined_call_operand.vmem [shape: bf16[384,128], index: 1, kind: input, shape index: {}]
  %s2 = inlined_call_operand.vmem [shape: bf16[8,416,128], index: 2, kind: output, shape index: {0}]
  %s3 = inlined_call_operand.vmem [shape: f32[416,128], index: 3, kind: output, shape index: {1}]
  %4 = xla_tuple %s2, %s3
  %s5 = sld [smem:[#allocation0]]
  $region57: #{conv_class_forward.8} parent=0
    _
  %s7 = ssub.s32 1, %s5
  %s8 = scalar_select 0, %s7, %s5
  loop: start=0, step=1, limit=18
  $region2: #{conv_class_forward.8} parent=0 // loop_pre_header
    _
  $region3: #{conv_class_forward.8} parent=0 // loop_header
    %s10 = sphi 0, %s14
    %p11 = scmp.ge.s32.totalorder %s10, 18
    %s17 = sphi 0, %s29
    %s18 = sphi 0, %s25
    %s19 = sphi 0, %s17
    %s20 = sphi 0, %s18
    %s21 = sphi 0, %s19
    %s22 = sphi 0, %s20
    %s40 = sphi 0, %s42
    %s43 = sphi 0, %s40
    %s44 = sphi 0, %s43
    %s60 = sphi 0, %s44
    %s64 = sphi 0, %s64
    %s66 = sphi 0, %s64
    %s67 = sphi 0, %s66
    %s81 = sphi 0, %s67
    %s89 = sphi 0, %s91
    %s92 = sphi 0, %s89
    %s93 = sphi 0, %s92
    %s109 = sphi 0, %s93
    %s115 = sphi 0, %s117
    %s118 = sphi 0, %s115
    %s119 = sphi 0, %s118
    %s135 = sphi 0, %s119
  $region4: #{conv_class_forward.8} parent=0 // loop_header_branch
    %13 = sbr.rel (%p11) target = $region8
  $region5: #{conv_class_forward.8} parent=0 // loop_body
    %s15 = ssub.s32 %s10, 1
    %s16 = ssub.s32 %s10, 2
    %s23 = sadd.s32 1, %s18
    %p24 = scmp.ge.s32.totalorder %s23, 8
    %s25 = scalar_select %p24, 0, %s23
    %s26 = sadd.s32 1, %s17
    %s27 = scalar_select %p24, %s26, %s17
    %p28 = scmp.ge.s32.totalorder %s27, 2
    %s29 = scalar_select %p28, 0, %s27
    %s30 = ssub.s32 %s18, 1
    %p31 = scmp.gt.s32.totalorder %s30, 0
    %s32 = scalar_select %p31, %s30, 0
    %s33 = ssub.s32 %s25, 1
    %p34 = scmp.gt.s32.totalorder %s33, 0
    %s35 = scalar_select %p34, %s33, 0
    %s36 = ssub.s32 %s32, %s35
    %s37 = ssub.s32 %s17, %s29
    %s38 = sor.u32 %s36, %s37
    %p39 = scmp.eq.s32.totalorder %s38, 0
    %s41 = sadd.s32 %s40, 1
    %s42 = scalar_select %p39, %s40, %s41
    %p45 = pneg %p39
    %p46 = scmp.eq.s32.totalorder %s10, 15
    %p47 = por %p45, %p46
    %p48 = scmp.ne.s32.totalorder %s40, %s43
    %p49 = scmp.eq.s32.totalorder %s10, 0
    %p50 = por %p48, %p49
    %p51 = scmp.ne.s32.totalorder %s40, %s43
    %p52 = scmp.eq.s32.totalorder %s15, 15
    %p53 = por %p51, %p52
    %p54 = scmp.ne.s32.totalorder %s43, %s44
    %p55 = scmp.eq.s32.totalorder %s15, 0
    %p56 = por %p54, %p55
    %p57 = scmp.ne.s32.totalorder %s43, %s44
    %p58 = scmp.eq.s32.totalorder %s16, 15
    %p59 = por %p57, %p58
    %p61 = scmp.ne.s32.totalorder %s44, %s60
    %p62 = scmp.eq.s32.totalorder %s16, 0
    %p63 = por %p61, %p62
    %s65 = sadd.s32 %s64, 1
    %p68 = scmp.eq.s32.totalorder %s10, 15
    %p69 = scmp.ne.s32.totalorder %s64, %s66
    %p70 = scmp.eq.s32.totalorder %s10, 0
    %p71 = por %p69, %p70
    %p72 = scmp.ne.s32.totalorder %s64, %s66
    %p73 = scmp.eq.s32.totalorder %s15, 15
    %p74 = por %p72, %p73
    %p75 = scmp.ne.s32.totalorder %s66, %s67
    %p76 = scmp.eq.s32.totalorder %s15, 0
    %p77 = por %p75, %p76
    %p78 = scmp.ne.s32.totalorder %s66, %s67
    %p79 = scmp.eq.s32.totalorder %s16, 15
    %p80 = por %p78, %p79
    %p82 = scmp.ne.s32.totalorder %s67, %s81
    %p83 = scmp.eq.s32.totalorder %s16, 0
    %p84 = por %p82, %p83
    %s85 = ssub.s32 %s18, %s25
    %s86 = ssub.s32 %s17, %s29
    %s87 = sor.u32 %s85, %s86
    %p88 = scmp.eq.s32.totalorder %s87, 0
    %s90 = sadd.s32 %s89, 1
    %s91 = scalar_select %p88, %s89, %s90
    %p94 = pneg %p88
    %p95 = scmp.eq.s32.totalorder %s10, 15
    %p96 = por %p94, %p95
    %p97 = scmp.ne.s32.totalorder %s89, %s92
    %p98 = scmp.eq.s32.totalorder %s10, 0
    %p99 = por %p97, %p98
    %p100 = scmp.ne.s32.totalorder %s89, %s92
    %p101 = scmp.eq.s32.totalorder %s15, 15
    %p102 = por %p100, %p101
    %p103 = scmp.ne.s32.totalorder %s92, %s93
    %p104 = scmp.eq.s32.totalorder %s15, 0
    %p105 = por %p103, %p104
    %p106 = scmp.ne.s32.totalorder %s92, %s93
    %p107 = scmp.eq.s32.totalorder %s16, 15
    %p108 = por %p106, %p107
    %p110 = scmp.ne.s32.totalorder %s93, %s109
    %p111 = scmp.eq.s32.totalorder %s16, 0
    %p112 = por %p110, %p111
    %s113 = ssub.s32 %s17, %s29
    %p114 = scmp.eq.s32.totalorder %s113, 0
    %s116 = sadd.s32 %s115, 1
    %s117 = scalar_select %p114, %s115, %s116
    %p120 = pneg %p114
    %p121 = scmp.eq.s32.totalorder %s10, 15
    %p122 = por %p120, %p121
    %p123 = scmp.ne.s32.totalorder %s115, %s118
    %p124 = scmp.eq.s32.totalorder %s10, 0
    %p125 = por %p123, %p124
    %p126 = scmp.ne.s32.totalorder %s115, %s118
    %p127 = scmp.eq.s32.totalorder %s15, 15
    %p128 = por %p126, %p127
    %p129 = scmp.ne.s32.totalorder %s118, %s119
    %p130 = scmp.eq.s32.totalorder %s15, 0
    %p131 = por %p129, %p130
    %p132 = scmp.ne.s32.totalorder %s118, %s119
    %p133 = scmp.eq.s32.totalorder %s16, 15
    %p134 = por %p132, %p133
    %p136 = scmp.ne.s32.totalorder %s119, %s135
    %p137 = scmp.eq.s32.totalorder %s16, 0
    %p138 = por %p136, %p137
    %p139 = scmp.le.s32.totalorder 1, %s10
    %p140 = scmp.lt.s32.totalorder %s10, 17
    %p141 = pnand %p139, %p140
    %p142 = pneg %p141
    // Predicated region
    $region9: #{conv_class_forward.8} parent=5 // pred_check
      _
    $region10: #{conv_class_forward.8} parent=5 // pred_check_branch
      %144 = sbr.rel (%p141) target = $region12
    $region11: #{conv_class_forward.8} parent=5 // pred_region
      %s145 = ssub.s32 %s10, 1
      // Predicated region
      $region13: #{conv_class_forward.8} parent=11 // pred_check
        %p146 = pneg %p77
      $region14: #{conv_class_forward.8} parent=11 // pred_check_branch
        %148 = sbr.rel (%p146) target = $region16
      $region15: #{conv_class_forward.8} parent=11 // pred_region
        _
      $region16: #{conv_class_forward.8} parent=11 // pred_fallthru
        _
    $region12: #{conv_class_forward.8} parent=5 // pred_fallthru
      _
    %p149 = scmp.lt.s32.totalorder %s10, 16
    // Predicated region
    $region17: #{conv_class_forward.8} parent=5 // pred_check
      %p150 = pneg %p149
    $region18: #{conv_class_forward.8} parent=5 // pred_check_branch
      %152 = sbr.rel (%p150) target = $region20
    $region19: #{conv_class_forward.8} parent=5 // pred_region
      // Predicated region
      $region21: #{conv_class_forward.8} parent=19 // pred_check
        %p153 = pneg %p50
      $region22: #{conv_class_forward.8} parent=19 // pred_check_branch
        %155 = sbr.rel (%p153) target = $region24
      $region23: #{conv_class_forward.8} parent=19 // pred_region
        %s156 = ssub.s32 %s18, 1
        %p157 = scmp.gt.s32.totalorder %s156, 0
        %s158 = scalar_select %p157, %s156, 0
        %s159 = smul.u32 26, %s17
        %p160 = scmp.lt.s32.totalorder %s158, 7
        %s161 = scalar_select %p160, %s158, 7
        %p162 = scmp.lt.s32.totalorder %s159, 51
        %s163 = scalar_select %p162, %s159, 51
        %s164 = smul.addr %s163, 3
        %s165 = smul.addr %s161, 156
        %s166 = sadd.s32 %s164, %s165
        %s167 = smul.addr %s166, 4
        %s168 = scalar_lea.vmem %s0, %s167
        %s169 = ssub.s32 %s18, 1
        %p170 = scmp.gt.s32.totalorder %s169, 0
        %s171 = scalar_select %p170, %s169, 0
        %s172 = smul.u32 26, %s17
      $region24: #{conv_class_forward.8} parent=19 // pred_fallthru
        _
    $region20: #{conv_class_forward.8} parent=5 // pred_fallthru
      _
    %p173 = scmp.le.s32.totalorder 1, %s10
    %p174 = scmp.lt.s32.totalorder %s10, 17
    %p175 = pnand %p173, %p174
    %p176 = pneg %p175
    // Predicated region
    $region25: #{conv_class_forward.8} parent=5 // pred_check
      _
    $region26: #{conv_class_forward.8} parent=5 // pred_check_branch
      %178 = sbr.rel (%p175) target = $region28
    $region27: #{conv_class_forward.8} parent=5 // pred_region
      %s179 = ssub.s32 %s10, 1
      %s180 = ssub.s32 %s20, 1
      %p181 = scmp.gt.s32.totalorder %s180, 0
      %s182 = scalar_select %p181, %s180, 0
      %s183 = smul.u32 26, %s19
      %p184 = scmp.lt.s32.totalorder %s182, 7
      %s185 = scalar_select %p184, %s182, 7
      %p186 = scmp.lt.s32.totalorder %s183, 51
      %s187 = scalar_select %p186, %s183, 51
      %s188 = smul.addr %s187, 3
      %s189 = smul.addr %s185, 156
      %s190 = sadd.s32 %s188, %s189
      %s191 = smul.addr %s190, 4
      %s192 = scalar_lea.vmem %s0, %s191
      %p193 = pneg %p56
      %p194 = pneg %p53
      %p195 = pneg %p77
      %p196 = pneg %p74
      %p197 = pneg %p105
      %p198 = pneg %p102
      %s199 = smul.u32 26, %s19
      %p200 = scmp.lt.s32.totalorder %s20, 7
      %s201 = scalar_select %p200, %s20, 7
      %p202 = scmp.lt.s32.totalorder %s199, 51
      %s203 = scalar_select %p202, %s199, 51
      %s204 = smul.addr %s201, 52
      %s205 = sadd.s32 %s203, %s204
      %s206 = smul.addr %s205, 4
      %s207 = scalar_lea.vmem %s2, %s206
      %p208 = pneg %p131
      %p209 = pneg %p128
      %s210 = smul.u32 26, %s19
      %p211 = scmp.lt.s32.totalorder %s210, 51
      %s212 = scalar_select %p211, %s210, 51
      %s213 = smul.addr %s212, 8
      %s214 = scalar_lea.vmem %s3, %s213
      %s215 = ssub.s32 %s20, 1
      %p216 = scmp.gt.s32.totalorder %s215, 0
      %s217 = scalar_select %p216, %s215, 0
      %s218 = smul.u32 26, %s19
      %p219 = scmp.lt.s32.totalorder %s217, 7
      %s220 = scalar_select %p219, %s217, 7
      %p221 = scmp.lt.s32.totalorder %s218, 51
      %s222 = scalar_select %p221, %s218, 51
      %s223 = smul.addr %s222, 3
      %s224 = smul.addr %s220, 156
      %s225 = sadd.s32 %s223, %s224
      %s226 = smul.addr %s225, 4
      %s227 = scalar_lea.vmem %s0, %s226
      %s228 = ssub.s32 %s20, 1
      %p229 = scmp.gt.s32.totalorder %s228, 0
      %s230 = scalar_select %p229, %s228, 0
      %s231 = smul.u32 26, %s19
      %s232 = smul.u32 26, %s19
      %p233 = scmp.lt.s32.totalorder %s20, 7
      %s234 = scalar_select %p233, %s20, 7
      %p235 = scmp.lt.s32.totalorder %s232, 51
      %s236 = scalar_select %p235, %s232, 51
      %s237 = smul.addr %s234, 52
      %s238 = sadd.s32 %s236, %s237
      %s239 = smul.addr %s238, 4
      %s240 = scalar_lea.vmem %s2, %s239
      %s241 = smul.u32 26, %s19
      %s242 = smul.u32 26, %s19
      %p243 = scmp.lt.s32.totalorder %s242, 51
      %s244 = scalar_select %p243, %s242, 51
      %s245 = smul.addr %s244, 8
      %s246 = scalar_lea.vmem %s3, %s245
      %s247 = smul.u32 26, %s19
      %p249 = scmp.eq.s32.totalorder %s20, 0
      // Predicated region
      $region29: #{conv_class_forward.8} parent=27 // pred_check
        %p250 = pneg %p249
      $region30: #{conv_class_forward.8} parent=27 // pred_check_branch
        %252 = sbr.rel (%p250) target = $region32
      $region31: #{conv_class_forward.8} parent=27 // pred_region
        %253 = vst [vmem:[#allocation2] sm:$0xff] 0.0
        %254 = vst [vmem:[#allocation2 + $0x8] sm:$0xff] 0.0
        %255 = vst [vmem:[#allocation2 + $0x10] sm:$0xff] 0.0
        %256 = vst [vmem:[#allocation2 + $0x18] sm:$0xff] 0.0
        %257 = vst [vmem:[#allocation2 + $0x20] sm:$0xff] 0.0
        %258 = vst [vmem:[#allocation2 + $0x28] sm:$0xff] 0.0
        %259 = vst [vmem:[#allocation2 + $0x30] sm:$0xff] 0.0
        %260 = vst [vmem:[#allocation2 + $0x38] sm:$0xff] 0.0
        %261 = vst [vmem:[#allocation2 + $0x40] sm:$0xff] 0.0
        %262 = vst [vmem:[#allocation2 + $0x48] sm:$0xff] 0.0
        %263 = vst [vmem:[#allocation2 + $0x50] sm:$0xff] 0.0
        %264 = vst [vmem:[#allocation2 + $0x58] sm:$0xff] 0.0
        %265 = vst [vmem:[#allocation2 + $0x60] sm:$0xff] 0.0
        %266 = vst [vmem:[#allocation2 + $0x68] sm:$0xff] 0.0
        %267 = vst [vmem:[#allocation2 + $0x70] sm:$0xff] 0.0
        %268 = vst [vmem:[#allocation2 + $0x78] sm:$0xff] 0.0
        %269 = vst [vmem:[#allocation2 + $0x80] sm:$0xff] 0.0
        %270 = vst [vmem:[#allocation2 + $0x88] sm:$0xff] 0.0
        %271 = vst [vmem:[#allocation2 + $0x90] sm:$0xff] 0.0
        %272 = vst [vmem:[#allocation2 + $0x98] sm:$0xff] 0.0
        %273 = vst [vmem:[#allocation2 + $0xa0] sm:$0xff] 0.0
        %274 = vst [vmem:[#allocation2 + $0xa8] sm:$0xff] 0.0
        %275 = vst [vmem:[#allocation2 + $0xb0] sm:$0xff] 0.0
        %276 = vst [vmem:[#allocation2 + $0xb8] sm:$0xff] 0.0
        %277 = vst [vmem:[#allocation2 + $0xc0] sm:$0xff] 0.0
        %278 = vst [vmem:[#allocation2 + $0xc8] sm:$0xff] 0.0
        %279 = vst [vmem:[#allocation3] sm:$0xff] 0.0
        %280 = vst [vmem:[#allocation3 + $0x8] sm:$0xff] 0.0
        %281 = vst [vmem:[#allocation3 + $0x10] sm:$0xff] 0.0
        %282 = vst [vmem:[#allocation3 + $0x18] sm:$0xff] 0.0
        %283 = vst [vmem:[#allocation3 + $0x20] sm:$0xff] 0.0
        %284 = vst [vmem:[#allocation3 + $0x28] sm:$0xff] 0.0
        %285 = vst [vmem:[#allocation3 + $0x30] sm:$0xff] 0.0
        %286 = vst [vmem:[#allocation3 + $0x38] sm:$0xff] 0.0
        %287 = vst [vmem:[#allocation3 + $0x40] sm:$0xff] 0.0
        %288 = vst [vmem:[#allocation3 + $0x48] sm:$0xff] 0.0
        %289 = vst [vmem:[#allocation3 + $0x50] sm:$0xff] 0.0
        %290 = vst [vmem:[#allocation3 + $0x58] sm:$0xff] 0.0
        %291 = vst [vmem:[#allocation3 + $0x60] sm:$0xff] 0.0
        %292 = vst [vmem:[#allocation3 + $0x68] sm:$0xff] 0.0
        %293 = vst [vmem:[#allocation3 + $0x70] sm:$0xff] 0.0
        %294 = vst [vmem:[#allocation3 + $0x78] sm:$0xff] 0.0
        %295 = vst [vmem:[#allocation3 + $0x80] sm:$0xff] 0.0
        %296 = vst [vmem:[#allocation3 + $0x88] sm:$0xff] 0.0
        %297 = vst [vmem:[#allocation3 + $0x90] sm:$0xff] 0.0
        %298 = vst [vmem:[#allocation3 + $0x98] sm:$0xff] 0.0
        %299 = vst [vmem:[#allocation3 + $0xa0] sm:$0xff] 0.0
        %300 = vst [vmem:[#allocation3 + $0xa8] sm:$0xff] 0.0
        %301 = vst [vmem:[#allocation3 + $0xb0] sm:$0xff] 0.0
        %302 = vst [vmem:[#allocation3 + $0xb8] sm:$0xff] 0.0
        %303 = vst [vmem:[#allocation3 + $0xc0] sm:$0xff] 0.0
        %304 = vst [vmem:[#allocation3 + $0xc8] sm:$0xff] 0.0
        %305 = vst [vmem:[%s246] sm:$0xff] 0.0
        %306 = vst [vmem:[%s246 + $0x8] sm:$0xff] 0.0
        %307 = vst [vmem:[%s246 + $0x10] sm:$0xff] 0.0
        %308 = vst [vmem:[%s246 + $0x18] sm:$0xff] 0.0
        %309 = vst [vmem:[%s246 + $0x20] sm:$0xff] 0.0
        %310 = vst [vmem:[%s246 + $0x28] sm:$0xff] 0.0
        %311 = vst [vmem:[%s246 + $0x30] sm:$0xff] 0.0
        %312 = vst [vmem:[%s246 + $0x38] sm:$0xff] 0.0
        %313 = vst [vmem:[%s246 + $0x40] sm:$0xff] 0.0
        %314 = vst [vmem:[%s246 + $0x48] sm:$0xff] 0.0
        %315 = vst [vmem:[%s246 + $0x50] sm:$0xff] 0.0
        %316 = vst [vmem:[%s246 + $0x58] sm:$0xff] 0.0
        %317 = vst [vmem:[%s246 + $0x60] sm:$0xff] 0.0
        %318 = vst [vmem:[%s246 + $0x68] sm:$0xff] 0.0
        %319 = vst [vmem:[%s246 + $0x70] sm:$0xff] 0.0
        %320 = vst [vmem:[%s246 + $0x78] sm:$0xff] 0.0
        %321 = vst [vmem:[%s246 + $0x80] sm:$0xff] 0.0
        %322 = vst [vmem:[%s246 + $0x88] sm:$0xff] 0.0
        %323 = vst [vmem:[%s246 + $0x90] sm:$0xff] 0.0
        %324 = vst [vmem:[%s246 + $0x98] sm:$0xff] 0.0
        %325 = vst [vmem:[%s246 + $0xa0] sm:$0xff] 0.0
        %326 = vst [vmem:[%s246 + $0xa8] sm:$0xff] 0.0
        %327 = vst [vmem:[%s246 + $0xb0] sm:$0xff] 0.0
        %328 = vst [vmem:[%s246 + $0xb8] sm:$0xff] 0.0
        %329 = vst [vmem:[%s246 + $0xc0] sm:$0xff] 0.0
        %330 = vst [vmem:[%s246 + $0xc8] sm:$0xff] 0.0
        %331 = vst [vmem:[%s240] sm:$0xf] 0
        %332 = vst [vmem:[%s240 + $0x4] sm:$0xf] 0
        %333 = vst [vmem:[%s240 + $0x8] sm:$0xf] 0
        %334 = vst [vmem:[%s240 + $0xc] sm:$0xf] 0
        %335 = vst [vmem:[%s240 + $0x10] sm:$0xf] 0
        %336 = vst [vmem:[%s240 + $0x14] sm:$0xf] 0
        %337 = vst [vmem:[%s240 + $0x18] sm:$0xf] 0
        %338 = vst [vmem:[%s240 + $0x1c] sm:$0xf] 0
        %339 = vst [vmem:[%s240 + $0x20] sm:$0xf] 0
        %340 = vst [vmem:[%s240 + $0x24] sm:$0xf] 0
        %341 = vst [vmem:[%s240 + $0x28] sm:$0xf] 0
        %342 = vst [vmem:[%s240 + $0x2c] sm:$0xf] 0
        %343 = vst [vmem:[%s240 + $0x30] sm:$0xf] 0
        %344 = vst [vmem:[%s240 + $0x34] sm:$0xf] 0
        %345 = vst [vmem:[%s240 + $0x38] sm:$0xf] 0
        %346 = vst [vmem:[%s240 + $0x3c] sm:$0xf] 0
        %347 = vst [vmem:[%s240 + $0x40] sm:$0xf] 0
        %348 = vst [vmem:[%s240 + $0x44] sm:$0xf] 0
        %349 = vst [vmem:[%s240 + $0x48] sm:$0xf] 0
        %350 = vst [vmem:[%s240 + $0x4c] sm:$0xf] 0
        %351 = vst [vmem:[%s240 + $0x50] sm:$0xf] 0
        %352 = vst [vmem:[%s240 + $0x54] sm:$0xf] 0
        %353 = vst [vmem:[%s240 + $0x58] sm:$0xf] 0
        %354 = vst [vmem:[%s240 + $0x5c] sm:$0xf] 0
        %355 = vst [vmem:[%s240 + $0x60] sm:$0xf] 0
        %356 = vst [vmem:[%s240 + $0x64] sm:$0xf] 0
      $region32: #{conv_class_forward.8} parent=27 // pred_fallthru
        _
      %p357 = scmp.gt.s32.totalorder %s20, 0
      // Predicated region
      $region33: #{conv_class_forward.8} parent=27 // pred_check
        %p358 = pneg %p357
      $region34: #{conv_class_forward.8} parent=27 // pred_check_branch
        %360 = sbr.rel (%p358) target = $region36
      $region35: #{conv_class_forward.8} parent=27 // pred_region
        %v361 = vld [vmem:[%s227] sm:$0xff]
        %v362 = vld [vmem:[%s227 + $0x8] sm:$0xf]
        %v363 = vld [vmem:[%s227 + $0xc] sm:$0xff]
        %v364 = vld [vmem:[%s227 + $0x14] sm:$0xf]
        %v365 = vld [vmem:[%s227 + $0x18] sm:$0xff]
        %v366 = vld [vmem:[%s227 + $0x20] sm:$0xf]
        %v367 = vld [vmem:[%s227 + $0x24] sm:$0xff]
        %v368 = vld [vmem:[%s227 + $0x2c] sm:$0xf]
        %v369 = vld [vmem:[%s227 + $0x30] sm:$0xff]
        %v370 = vld [vmem:[%s227 + $0x38] sm:$0xf]
        %v371 = vld [vmem:[%s227 + $0x3c] sm:$0xff]
        %v372 = vld [vmem:[%s227 + $0x44] sm:$0xf]
        %v373 = vld [vmem:[%s227 + $0x48] sm:$0xff]
        %v374 = vld [vmem:[%s227 + $0x50] sm:$0xf]
        %v375 = vld [vmem:[%s227 + $0x54] sm:$0xff]
        %v376 = vld [vmem:[%s227 + $0x5c] sm:$0xf]
        %v377 = vld [vmem:[%s227 + $0x60] sm:$0xff]
        %v378 = vld [vmem:[%s227 + $0x68] sm:$0xf]
        %v379 = vld [vmem:[%s227 + $0x6c] sm:$0xff]
        %v380 = vld [vmem:[%s227 + $0x74] sm:$0xf]
        %v381 = vld [vmem:[%s227 + $0x78] sm:$0xff]
        %v382 = vld [vmem:[%s227 + $0x80] sm:$0xf]
        %v383 = vld [vmem:[%s227 + $0x84] sm:$0xff]
        %v384 = vld [vmem:[%s227 + $0x8c] sm:$0xf]
        %v385 = vld [vmem:[%s227 + $0x90] sm:$0xff]
        %v386 = vld [vmem:[%s227 + $0x98] sm:$0xf]
        %v387 = vld [vmem:[%s227 + $0x9c] sm:$0xff]
        %v388 = vld [vmem:[%s227 + $0xa4] sm:$0xf]
        %v389 = vld [vmem:[%s227 + $0xa8] sm:$0xff]
        %v390 = vld [vmem:[%s227 + $0xb0] sm:$0xf]
        %v391 = vld [vmem:[%s227 + $0xb4] sm:$0xff]
        %v392 = vld [vmem:[%s227 + $0xbc] sm:$0xf]
        %v393 = vld [vmem:[%s227 + $0xc0] sm:$0xff]
        %v394 = vld [vmem:[%s227 + $0xc8] sm:$0xf]
        %v395 = vld [vmem:[%s227 + $0xcc] sm:$0xff]
        %v396 = vld [vmem:[%s227 + $0xd4] sm:$0xf]
        %v397 = vld [vmem:[%s227 + $0xd8] sm:$0xff]
        %v398 = vld [vmem:[%s227 + $0xe0] sm:$0xf]
        %v399 = vld [vmem:[%s227 + $0xe4] sm:$0xff]
        %v400 = vld [vmem:[%s227 + $0xec] sm:$0xf]
        %v401 = vld [vmem:[%s227 + $0xf0] sm:$0xff]
        %v402 = vld [vmem:[%s227 + $0xf8] sm:$0xf]
        %v403 = vld [vmem:[%s227 + $0xfc] sm:$0xff]
        %v404 = vld [vmem:[%s227 + $0x104] sm:$0xf]
        %v405 = vld [vmem:[%s227 + $0x108] sm:$0xff]
        %v406 = vld [vmem:[%s227 + $0x110] sm:$0xf]
        %v407 = vld [vmem:[%s227 + $0x114] sm:$0xff]
        %v408 = vld [vmem:[%s227 + $0x11c] sm:$0xf]
        %v409 = vld [vmem:[%s227 + $0x120] sm:$0xff]
        %v410 = vld [vmem:[%s227 + $0x128] sm:$0xf]
        %v411 = vld [vmem:[%s227 + $0x12c] sm:$0xff]
        %v412 = vld [vmem:[%s227 + $0x134] sm:$0xf]
        %v413 = vld [vmem:[%s1] sm:$0xf]
        %v414 = vld [vmem:[%s1 + $0x4] sm:$0xf]
        %v415 = vld [vmem:[%s1 + $0x8] sm:$0xf]
        %v416 = vld [vmem:[%s1 + $0xc] sm:$0xf]
        %v417 = vld [vmem:[%s1 + $0x10] sm:$0xf]
        %v418 = vld [vmem:[%s1 + $0x14] sm:$0xf]
        %v419 = vld [vmem:[%s1 + $0x18] sm:$0xf]
        %v420 = vld [vmem:[%s1 + $0x1c] sm:$0xf]
        %v421 = vld [vmem:[%s1 + $0x20] sm:$0xf]
        %v422 = vld [vmem:[%s1 + $0x24] sm:$0xf]
        %v423 = vld [vmem:[%s1 + $0x28] sm:$0xf]
        %v424 = vld [vmem:[%s1 + $0x2c] sm:$0xf]
        %v425 = vld [vmem:[%s1 + $0x30] sm:$0xf]
        %v426 = vld [vmem:[%s1 + $0x34] sm:$0xf]
        %v427 = vld [vmem:[%s1 + $0x38] sm:$0xf]
        %v428 = vld [vmem:[%s1 + $0x3c] sm:$0xf]
        %v429 = vld [vmem:[%s1 + $0x40] sm:$0xf]
        %v430 = vld [vmem:[%s1 + $0x44] sm:$0xf]
        %v431 = vld [vmem:[%s1 + $0x48] sm:$0xf]
        %v432 = vld [vmem:[%s1 + $0x4c] sm:$0xf]
        %v433 = vld [vmem:[%s1 + $0x50] sm:$0xf]
        %v434 = vld [vmem:[%s1 + $0x54] sm:$0xf]
        %v435 = vld [vmem:[%s1 + $0x58] sm:$0xf]
        %v436 = vld [vmem:[%s1 + $0x5c] sm:$0xf]
        %v437 = vld [vmem:[%s1 + $0x60] sm:$0xf]
        %v438 = vld [vmem:[%s1 + $0x64] sm:$0xf]
        %v439 = vld [vmem:[%s1 + $0x68] sm:$0xf]
        %v440 = vld [vmem:[%s1 + $0x6c] sm:$0xf]
        %v441 = vld [vmem:[%s1 + $0x70] sm:$0xf]
        %v442 = vld [vmem:[%s1 + $0x74] sm:$0xf]
        %v443 = vld [vmem:[%s1 + $0x78] sm:$0xf]
        %v444 = vld [vmem:[%s1 + $0x7c] sm:$0xf]
        %v445 = vld [vmem:[%s1 + $0x80] sm:$0xf]
        %v446 = vld [vmem:[%s1 + $0x84] sm:$0xf]
        %v447 = vld [vmem:[%s1 + $0x88] sm:$0xf]
        %v448 = vld [vmem:[%s1 + $0x8c] sm:$0xf]
        %v449 = vld [vmem:[%s1 + $0x90] sm:$0xf]
        %v450 = vld [vmem:[%s1 + $0x94] sm:$0xf]
        %v451 = vld [vmem:[%s1 + $0x98] sm:$0xf]
        %v452 = vld [vmem:[%s1 + $0x9c] sm:$0xf]
        %v453 = vld [vmem:[%s1 + $0xa0] sm:$0xf]
        %v454 = vld [vmem:[%s1 + $0xa4] sm:$0xf]
        %v455 = vld [vmem:[%s1 + $0xa8] sm:$0xf]
        %v456 = vld [vmem:[%s1 + $0xac] sm:$0xf]
        %v457 = vld [vmem:[%s1 + $0xb0] sm:$0xf]
        %v458 = vld [vmem:[%s1 + $0xb4] sm:$0xf]
        %v459 = vld [vmem:[%s1 + $0xb8] sm:$0xf]
        %v460 = vld [vmem:[%s1 + $0xbc] sm:$0xf]
        %v513 = vunpack.c.l.b16 %v361
        %v514 = vunpack.c.h.b16 %v361
        %v515 = vunpack.c.l.b16 %v362
        %v516 = vunpack.c.l.b16 %v363
        %v517 = vunpack.c.h.b16 %v363
        %v518 = vunpack.c.l.b16 %v364
        %v519 = vunpack.c.l.b16 %v365
        %v520 = vunpack.c.h.b16 %v365
        %v521 = vunpack.c.l.b16 %v366
        %v522 = vunpack.c.l.b16 %v367
        %v523 = vunpack.c.h.b16 %v367
        %v524 = vunpack.c.l.b16 %v368
        %v525 = vunpack.c.l.b16 %v369
        %v526 = vunpack.c.h.b16 %v369
        %v527 = vunpack.c.l.b16 %v370
        %v528 = vunpack.c.l.b16 %v371
        %v529 = vunpack.c.h.b16 %v371
        %v530 = vunpack.c.l.b16 %v372
        %v531 = vunpack.c.l.b16 %v373
        %v532 = vunpack.c.h.b16 %v373
        %v533 = vunpack.c.l.b16 %v374
        %v534 = vunpack.c.l.b16 %v375
        %v535 = vunpack.c.h.b16 %v375
        %v536 = vunpack.c.l.b16 %v376
        %v537 = vunpack.c.l.b16 %v377
        %v538 = vunpack.c.h.b16 %v377
        %v539 = vunpack.c.l.b16 %v378
        %v540 = vunpack.c.l.b16 %v379
        %v541 = vunpack.c.h.b16 %v379
        %v542 = vunpack.c.l.b16 %v380
        %v543 = vunpack.c.l.b16 %v381
        %v544 = vunpack.c.h.b16 %v381
        %v545 = vunpack.c.l.b16 %v382
        %v546 = vunpack.c.l.b16 %v383
        %v547 = vunpack.c.h.b16 %v383
        %v548 = vunpack.c.l.b16 %v384
        %v549 = vunpack.c.l.b16 %v385
        %v550 = vunpack.c.h.b16 %v385
        %v551 = vunpack.c.l.b16 %v386
        %v552 = vunpack.c.l.b16 %v387
        %v553 = vunpack.c.h.b16 %v387
        %v554 = vunpack.c.l.b16 %v388
        %v555 = vunpack.c.l.b16 %v389
        %v556 = vunpack.c.h.b16 %v389
        %v557 = vunpack.c.l.b16 %v390
        %v558 = vunpack.c.l.b16 %v391
        %v559 = vunpack.c.h.b16 %v391
        %v560 = vunpack.c.l.b16 %v392
        %v561 = vunpack.c.l.b16 %v393
        %v562 = vunpack.c.h.b16 %v393
        %v563 = vunpack.c.l.b16 %v394
        %v564 = vunpack.c.l.b16 %v395
        %v565 = vunpack.c.h.b16 %v395
        %v566 = vunpack.c.l.b16 %v396
        %v567 = vunpack.c.l.b16 %v397
        %v568 = vunpack.c.h.b16 %v397
        %v569 = vunpack.c.l.b16 %v398
        %v570 = vunpack.c.l.b16 %v399
        %v571 = vunpack.c.h.b16 %v399
        %v572 = vunpack.c.l.b16 %v400
        %v573 = vunpack.c.l.b16 %v401
        %v574 = vunpack.c.h.b16 %v401
        %v575 = vunpack.c.l.b16 %v402
        %v576 = vunpack.c.l.b16 %v403
        %v577 = vunpack.c.h.b16 %v403
        %v578 = vunpack.c.l.b16 %v404
        %v579 = vunpack.c.l.b16 %v405
        %v580 = vunpack.c.h.b16 %v405
        %v581 = vunpack.c.l.b16 %v406
        %v582 = vunpack.c.l.b16 %v407
        %v583 = vunpack.c.h.b16 %v407
        %v584 = vunpack.c.l.b16 %v408
        %v585 = vunpack.c.l.b16 %v409
        %v586 = vunpack.c.h.b16 %v409
        %v587 = vunpack.c.l.b16 %v410
        %v588 = vunpack.c.l.b16 %v411
        %v589 = vunpack.c.h.b16 %v411
        %v590 = vunpack.c.l.b16 %v412
        %v591 = vpack.c.b16 %v516, %v513
        %v592 = vpack.c.b16 %v517, %v514
        %v593 = vpack.c.b16 %v518, %v515
        %v594 = vpack.c.b16 %v522, %v519
        %v595 = vpack.c.b16 %v523, %v520
        %v596 = vpack.c.b16 %v524, %v521
        %v597 = vpack.c.b16 %v528, %v525
        %v598 = vpack.c.b16 %v529, %v526
        %v599 = vpack.c.b16 %v530, %v527
        %v600 = vpack.c.b16 %v534, %v531
        %v601 = vpack.c.b16 %v535, %v532
        %v602 = vpack.c.b16 %v536, %v533
        %v603 = vpack.c.b16 %v540, %v537
        %v604 = vpack.c.b16 %v541, %v538
        %v605 = vpack.c.b16 %v542, %v539
        %v606 = vpack.c.b16 %v546, %v543
        %v607 = vpack.c.b16 %v547, %v544
        %v608 = vpack.c.b16 %v548, %v545
        %v609 = vpack.c.b16 %v552, %v549
        %v610 = vpack.c.b16 %v553, %v550
        %v611 = vpack.c.b16 %v554, %v551
        %v612 = vpack.c.b16 %v558, %v555
        %v613 = vpack.c.b16 %v559, %v556
        %v614 = vpack.c.b16 %v560, %v557
        %v615 = vpack.c.b16 %v564, %v561
        %v616 = vpack.c.b16 %v565, %v562
        %v617 = vpack.c.b16 %v566, %v563
        %v618 = vpack.c.b16 %v570, %v567
        %v619 = vpack.c.b16 %v571, %v568
        %v620 = vpack.c.b16 %v572, %v569
        %v621 = vpack.c.b16 %v576, %v573
        %v622 = vpack.c.b16 %v577, %v574
        %v623 = vpack.c.b16 %v578, %v575
        %v624 = vpack.c.b16 %v582, %v579
        %v625 = vpack.c.b16 %v583, %v580
        %v626 = vpack.c.b16 %v584, %v581
        %v627 = vpack.c.b16 %v588, %v585
        %v628 = vpack.c.b16 %v589, %v586
        %v629 = vpack.c.b16 %v590, %v587
        %v717 = vunpack.c.l.b16 %v413
        %v718 = vunpack.c.l.b16 %v414
        %v719 = vunpack.c.l.b16 %v415
        %v720 = vunpack.c.l.b16 %v416
        %v721 = vunpack.c.l.b16 %v417
        %v722 = vunpack.c.l.b16 %v418
        %v723 = vunpack.c.l.b16 %v419
        %v724 = vunpack.c.l.b16 %v420
        %v725 = vunpack.c.l.b16 %v421
        %v726 = vunpack.c.l.b16 %v422
        %v727 = vunpack.c.l.b16 %v423
        %v728 = vunpack.c.l.b16 %v424
        %v729 = vunpack.c.l.b16 %v425
        %v730 = vunpack.c.l.b16 %v426
        %v731 = vunpack.c.l.b16 %v427
        %v732 = vunpack.c.l.b16 %v428
        %v733 = vunpack.c.l.b16 %v429
        %v734 = vunpack.c.l.b16 %v430
        %v735 = vunpack.c.l.b16 %v431
        %v736 = vunpack.c.l.b16 %v432
        %v737 = vunpack.c.l.b16 %v433
        %v738 = vunpack.c.l.b16 %v434
        %v739 = vunpack.c.l.b16 %v435
        %v740 = vunpack.c.l.b16 %v436
        %v741 = vunpack.c.l.b16 %v437
        %v742 = vunpack.c.l.b16 %v438
        %v743 = vunpack.c.l.b16 %v439
        %v744 = vunpack.c.l.b16 %v440
        %v745 = vunpack.c.l.b16 %v441
        %v746 = vunpack.c.l.b16 %v442
        %v747 = vunpack.c.l.b16 %v443
        %v748 = vunpack.c.l.b16 %v444
        %v749 = vunpack.c.l.b16 %v445
        %v750 = vunpack.c.l.b16 %v446
        %v751 = vunpack.c.l.b16 %v447
        %v752 = vunpack.c.l.b16 %v448
        %v753 = vunpack.c.l.b16 %v449
        %v754 = vunpack.c.l.b16 %v450
        %v755 = vunpack.c.l.b16 %v451
        %v756 = vunpack.c.l.b16 %v452
        %v757 = vunpack.c.l.b16 %v453
        %v758 = vunpack.c.l.b16 %v454
        %v759 = vunpack.c.l.b16 %v455
        %v760 = vunpack.c.l.b16 %v456
        %v761 = vunpack.c.l.b16 %v457
        %v762 = vunpack.c.l.b16 %v458
        %v763 = vunpack.c.l.b16 %v459
        %v764 = vunpack.c.l.b16 %v460
        %v765 = vpack.c.b16 %v718, %v717
        %v766 = vpack.c.b16 %v720, %v719
        %v767 = vpack.c.b16 %v722, %v721
        %v768 = vpack.c.b16 %v724, %v723
        %v769 = vpack.c.b16 %v726, %v725
        %v770 = vpack.c.b16 %v728, %v727
        %v771 = vpack.c.b16 %v730, %v729
        %v772 = vpack.c.b16 %v732, %v731
        %v773 = vpack.c.b16 %v734, %v733
        %v774 = vpack.c.b16 %v736, %v735
        %v775 = vpack.c.b16 %v738, %v737
        %v776 = vpack.c.b16 %v740, %v739
        %v777 = vpack.c.b16 %v742, %v741
        %v778 = vpack.c.b16 %v744, %v743
        %v779 = vpack.c.b16 %v746, %v745
        %v780 = vpack.c.b16 %v748, %v747
        %v781 = vpack.c.b16 %v750, %v749
        %v782 = vpack.c.b16 %v752, %v751
        %v783 = vpack.c.b16 %v754, %v753
        %v784 = vpack.c.b16 %v756, %v755
        %v785 = vpack.c.b16 %v758, %v757
        %v786 = vpack.c.b16 %v760, %v759
        %v787 = vpack.c.b16 %v762, %v761
        %v788 = vpack.c.b16 %v764, %v763
        %813 = vmatprep.subr.bf16.mxu0 0
        %814 = vmatpush1.bf16.msra.mxu0 %v765
        %815 = vmatprep.subr.bf16.mxu0 0
        %816 = vmatpush1.bf16.msra.mxu0 %v766
        %817 = vmatprep.subr.bf16.mxu0 0
        %818 = vmatpush1.bf16.msra.mxu0 %v767
        %819 = vmatprep.subr.bf16.mxu0 0
        %820 = vmatpush1.bf16.msra.mxu0 %v768
        %821 = vmatprep.subr.bf16.mxu0 0
        %822 = vmatpush1.bf16.msra.mxu0 %v769
        %823 = vmatprep.subr.bf16.mxu0 0
        %824 = vmatpush1.bf16.msra.mxu0 %v770
        %825 = vmatprep.subr.bf16.mxu0 0
        %826 = vmatpush1.bf16.msra.mxu0 %v771
        %827 = vmatprep.subr.bf16.mxu0 0
        %828 = vmatpush1.bf16.msra.mxu0 %v772
        %829 = vmatprep.subr.bf16.mxu0 0
        %830 = vmatpush1.bf16.msra.mxu0 %v773
        %831 = vmatprep.subr.bf16.mxu0 0
        %832 = vmatpush1.bf16.msra.mxu0 %v774
        %833 = vmatprep.subr.bf16.mxu0 0
        %834 = vmatpush1.bf16.msra.mxu0 %v775
        %835 = vmatprep.subr.bf16.mxu0 0
        %836 = vmatpush1.bf16.msra.mxu0 %v776
        %837 = vmatprep.subr.bf16.mxu0 0
        %838 = vmatpush1.bf16.msra.mxu0 %v777
        %839 = vmatprep.subr.bf16.mxu0 0
        %840 = vmatpush1.bf16.msra.mxu0 %v778
        %841 = vmatprep.subr.bf16.mxu0 0
        %842 = vmatpush1.bf16.msra.mxu0 %v779
        %843 = vmatprep.subr.bf16.mxu0 0
        %844 = vmatpush1.bf16.msra.mxu0 %v780
        %845 = vmatprep.mubr.bf16.mxu0 %v592
        %846 = vmatmul.mubr.bf16.gmra.mrb[0].mxu0 %v591
        %v847 = vpop.f32.mrb[0].mxu0
        %v848 = vadd.f32 0.0, %v847
        %v849 = vpop.f32.mrb[0].mxu0
        %v850 = vpop.f32.mrb[0].mxu0
        %v851 = vadd.f32 0.0, %v850
        %v852 = vpop.f32.mrb[0].mxu0
        %853 = vmatprep.mubr.bf16.mxu0 %v595
        %854 = vmatmul.mubr.bf16.gmra.mrb[0].mxu0 %v594
        %v855 = vpop.f32.mrb[0].mxu0
        %v856 = vadd.f32 0.0, %v855
        %v857 = vpop.f32.mrb[0].mxu0
        %v858 = vpop.f32.mrb[0].mxu0
        %v859 = vadd.f32 0.0, %v858
        %v860 = vpop.f32.mrb[0].mxu0
        %861 = vmatprep.mubr.bf16.mxu0 %v598
        %862 = vmatmul.mubr.bf16.gmra.mrb[0].mxu0 %v597
        %v863 = vpop.f32.mrb[0].mxu0
        %v864 = vadd.f32 0.0, %v863
        %v865 = vpop.f32.mrb[0].mxu0
        %v866 = vpop.f32.mrb[0].mxu0
        %v867 = vadd.f32 0.0, %v866
        %v868 = vpop.f32.mrb[0].mxu0
        %869 = vmatprep.mubr.bf16.mxu0 %v601
        %870 = vmatmul.mubr.bf16.gmra.mrb[0].mxu0 %v600
        %v871 = vpop.f32.mrb[0].mxu0
        %v872 = vadd.f32 0.0, %v871
        %v873 = vpop.f32.mrb[0].mxu0
        %v874 = vpop.f32.mrb[0].mxu0
        %v875 = vadd.f32 0.0, %v874
        %v876 = vpop.f32.mrb[0].mxu0
        %877 = vmatprep.mubr.bf16.mxu0 %v604
        %878 = vmatmul.mubr.bf16.gmra.mrb[0].mxu0 %v603
        %v879 = vpop.f32.mrb[0].mxu0
        %v880 = vadd.f32 0.0, %v879
        %v881 = vpop.f32.mrb[0].mxu0
        %v882 = vpop.f32.mrb[0].mxu0
        %v883 = vadd.f32 0.0, %v882
        %v884 = vpop.f32.mrb[0].mxu0
        %885 = vmatprep.mubr.bf16.mxu0 %v607
        %886 = vmatmul.mubr.bf16.gmra.mrb[0].mxu0 %v606
        %v887 = vpop.f32.mrb[0].mxu0
        %v888 = vadd.f32 0.0, %v887
        %v889 = vpop.f32.mrb[0].mxu0
        %v890 = vpop.f32.mrb[0].mxu0
        %v891 = vadd.f32 0.0, %v890
        %v892 = vpop.f32.mrb[0].mxu0
        %893 = vmatprep.mubr.bf16.mxu0 %v610
        %894 = vmatmul.mubr.bf16.gmra.mrb[0].mxu0 %v609
        %v895 = vpop.f32.mrb[0].mxu0
        %v896 = vadd.f32 0.0, %v895
        %v897 = vpop.f32.mrb[0].mxu0
        %v898 = vpop.f32.mrb[0].mxu0
        %v899 = vadd.f32 0.0, %v898
        %v900 = vpop.f32.mrb[0].mxu0
        %901 = vmatprep.mubr.bf16.mxu0 %v613
        %902 = vmatmul.mubr.bf16.gmra.mrb[0].mxu0 %v612
        %v903 = vpop.f32.mrb[0].mxu0
        %v904 = vadd.f32 0.0, %v903
        %v905 = vpop.f32.mrb[0].mxu0
        %v906 = vpop.f32.mrb[0].mxu0
        %v907 = vadd.f32 0.0, %v906
        %v908 = vpop.f32.mrb[0].mxu0
        %909 = vmatprep.mubr.bf16.mxu0 %v616
        %910 = vmatmul.mubr.bf16.gmra.mrb[0].mxu0 %v615
        %v911 = vpop.f32.mrb[0].mxu0
        %v912 = vadd.f32 0.0, %v911
        %v913 = vpop.f32.mrb[0].mxu0
        %v914 = vpop.f32.mrb[0].mxu0
        %v915 = vadd.f32 0.0, %v914
        %v916 = vpop.f32.mrb[0].mxu0
        %917 = vmatprep.mubr.bf16.mxu0 %v619
        %918 = vmatmul.mubr.bf16.gmra.mrb[0].mxu0 %v618
        %v919 = vpop.f32.mrb[0].mxu0
        %v920 = vadd.f32 0.0, %v919
        %v921 = vpop.f32.mrb[0].mxu0
        %v922 = vpop.f32.mrb[0].mxu0
        %v923 = vadd.f32 0.0, %v922
        %v924 = vpop.f32.mrb[0].mxu0
        %925 = vmatprep.mubr.bf16.mxu0 %v622
        %926 = vmatmul.mubr.bf16.gmra.mrb[0].mxu0 %v621
        %v927 = vpop.f32.mrb[0].mxu0
        %v928 = vadd.f32 0.0, %v927
        %v929 = vpop.f32.mrb[0].mxu0
        %v930 = vpop.f32.mrb[0].mxu0
        %v931 = vadd.f32 0.0, %v930
        %v932 = vpop.f32.mrb[0].mxu0
        %933 = vmatprep.mubr.bf16.mxu0 %v625
        %934 = vmatmul.mubr.bf16.gmra.mrb[0].mxu0 %v624
        %v935 = vpop.f32.mrb[0].mxu0
        %v936 = vadd.f32 0.0, %v935
        %v937 = vpop.f32.mrb[0].mxu0
        %v938 = vpop.f32.mrb[0].mxu0
        %v939 = vadd.f32 0.0, %v938
        %v940 = vpop.f32.mrb[0].mxu0
        %941 = vmatprep.mubr.bf16.mxu0 %v628
        %942 = vmatmul.mubr.bf16.gmra.mrb[0].mxu0 %v627
        %v943 = vpop.f32.mrb[0].mxu0
        %v944 = vadd.f32 0.0, %v943
        %v945 = vpop.f32.mrb[0].mxu0
        %v946 = vpop.f32.mrb[0].mxu0
        %v947 = vadd.f32 0.0, %v946
        %v948 = vpop.f32.mrb[0].mxu0
        %949 = vdwg.mxu0
        %950 = vmatprep.subr.bf16.mxu0 0
        %951 = vmatpush1.bf16.msra.mxu0 %v781
        %952 = vmatprep.subr.bf16.mxu0 0
        %953 = vmatpush1.bf16.msra.mxu0 %v782
        %954 = vmatprep.subr.bf16.mxu0 0
        %955 = vmatpush1.bf16.msra.mxu0 %v783
        %956 = vmatprep.subr.bf16.mxu0 0
        %957 = vmatpush1.bf16.msra.mxu0 %v784
        %958 = vmatprep.subr.bf16.mxu0 0
        %959 = vmatpush1.bf16.msra.mxu0 %v785
        %960 = vmatprep.subr.bf16.mxu0 0
        %961 = vmatpush1.bf16.msra.mxu0 %v786
        %962 = vmatprep.subr.bf16.mxu0 0
        %963 = vmatpush1.bf16.msra.mxu0 %v787
        %964 = vmatprep.subr.bf16.mxu0 0
        %965 = vmatpush1.bf16.msra.mxu0 %v788
        %966 = vmatprep.subr.bf16.mxu0 0
        %967 = vmatpush1.bf16.msra.mxu0 0
        %968 = vmatprep.subr.bf16.mxu0 0
        %969 = vmatpush1.bf16.msra.mxu0 0
        %970 = vmatprep.subr.bf16.mxu0 0
        %971 = vmatpush1.bf16.msra.mxu0 0
        %972 = vmatprep.subr.bf16.mxu0 0
        %973 = vmatpush1.bf16.msra.mxu0 0
        %974 = vmatprep.subr.bf16.mxu0 0
        %975 = vmatpush1.bf16.msra.mxu0 0
        %976 = vmatprep.subr.bf16.mxu0 0
        %977 = vmatpush1.bf16.msra.mxu0 0
        %978 = vmatprep.subr.bf16.mxu0 0
        %979 = vmatpush1.bf16.msra.mxu0 0
        %980 = vmatprep.subr.bf16.mxu0 0
        %981 = vmatpush1.bf16.msra.mxu0 0
        %982 = vmatprep.mubr.bf16.mxu0 0
        %983 = vmatmul.mubr.bf16.gmra.mrb[0].mxu0 %v593
        %v984 = vpop.f32.mrb[0].mxu0
        %v985 = vadd.f32 %v848, %v984
        %v986 = vpop.f32.mrb[0].mxu0
        %v987 = vpop.f32.mrb[0].mxu0
        %v988 = vadd.f32 %v851, %v987
        %v989 = vpop.f32.mrb[0].mxu0
        %990 = vmatprep.mubr.bf16.mxu0 0
        %991 = vmatmul.mubr.bf16.gmra.mrb[0].mxu0 %v596
        %v992 = vpop.f32.mrb[0].mxu0
        %v993 = vadd.f32 %v856, %v992
        %v994 = vpop.f32.mrb[0].mxu0
        %v995 = vpop.f32.mrb[0].mxu0
        %v996 = vadd.f32 %v859, %v995
        %v997 = vpop.f32.mrb[0].mxu0
        %998 = vmatprep.mubr.bf16.mxu0 0
        %999 = vmatmul.mubr.bf16.gmra.mrb[0].mxu0 %v599
        %v1000 = vpop.f32.mrb[0].mxu0
        %v1001 = vadd.f32 %v864, %v1000
        %v1002 = vpop.f32.mrb[0].mxu0
        %v1003 = vpop.f32.mrb[0].mxu0
        %v1004 = vadd.f32 %v867, %v1003
        %v1005 = vpop.f32.mrb[0].mxu0
        %1006 = vmatprep.mubr.bf16.mxu0 0
        %1007 = vmatmul.mubr.bf16.gmra.mrb[0].mxu0 %v602
        %v1008 = vpop.f32.mrb[0].mxu0
        %v1009 = vadd.f32 %v872, %v1008
        %v1010 = vpop.f32.mrb[0].mxu0
        %v1011 = vpop.f32.mrb[0].mxu0
        %v1012 = vadd.f32 %v875, %v1011
        %v1013 = vpop.f32.mrb[0].mxu0
        %1014 = vmatprep.mubr.bf16.mxu0 0
        %1015 = vmatmul.mubr.bf16.gmra.mrb[0].mxu0 %v605
        %v1016 = vpop.f32.mrb[0].mxu0
        %v1017 = vadd.f32 %v880, %v1016
        %v1018 = vpop.f32.mrb[0].mxu0
        %v1019 = vpop.f32.mrb[0].mxu0
        %v1020 = vadd.f32 %v883, %v1019
        %v1021 = vpop.f32.mrb[0].mxu0
        %1022 = vmatprep.mubr.bf16.mxu0 0
        %1023 = vmatmul.mubr.bf16.gmra.mrb[0].mxu0 %v608
        %v1024 = vpop.f32.mrb[0].mxu0
        %v1025 = vadd.f32 %v888, %v1024
        %v1026 = vpop.f32.mrb[0].mxu0
        %v1027 = vpop.f32.mrb[0].mxu0
        %v1028 = vadd.f32 %v891, %v1027
        %v1029 = vpop.f32.mrb[0].mxu0
        %1030 = vmatprep.mubr.bf16.mxu0 0
        %1031 = vmatmul.mubr.bf16.gmra.mrb[0].mxu0 %v611
        %v1032 = vpop.f32.mrb[0].mxu0
        %v1033 = vadd.f32 %v896, %v1032
        %v1034 = vpop.f32.mrb[0].mxu0
        %v1035 = vpop.f32.mrb[0].mxu0
        %v1036 = vadd.f32 %v899, %v1035
        %v1037 = vpop.f32.mrb[0].mxu0
        %1038 = vmatprep.mubr.bf16.mxu0 0
        %1039 = vmatmul.mubr.bf16.gmra.mrb[0].mxu0 %v614
        %v1040 = vpop.f32.mrb[0].mxu0
        %v1041 = vadd.f32 %v904, %v1040
        %v1042 = vpop.f32.mrb[0].mxu0
        %v1043 = vpop.f32.mrb[0].mxu0
        %v1044 = vadd.f32 %v907, %v1043
        %v1045 = vpop.f32.mrb[0].mxu0
        %1046 = vmatprep.mubr.bf16.mxu0 0
        %1047 = vmatmul.mubr.bf16.gmra.mrb[0].mxu0 %v617
        %v1048 = vpop.f32.mrb[0].mxu0
        %v1049 = vadd.f32 %v912, %v1048
        %v1050 = vpop.f32.mrb[0].mxu0
        %v1051 = vpop.f32.mrb[0].mxu0
        %v1052 = vadd.f32 %v915, %v1051
        %v1053 = vpop.f32.mrb[0].mxu0
        %1054 = vmatprep.mubr.bf16.mxu0 0
        %1055 = vmatmul.mubr.bf16.gmra.mrb[0].mxu0 %v620
        %v1056 = vpop.f32.mrb[0].mxu0
        %v1057 = vadd.f32 %v920, %v1056
        %v1058 = vpop.f32.mrb[0].mxu0
        %v1059 = vpop.f32.mrb[0].mxu0
        %v1060 = vadd.f32 %v923, %v1059
        %v1061 = vpop.f32.mrb[0].mxu0
        %1062 = vmatprep.mubr.bf16.mxu0 0
        %1063 = vmatmul.mubr.bf16.gmra.mrb[0].mxu0 %v623
        %v1064 = vpop.f32.mrb[0].mxu0
        %v1065 = vadd.f32 %v928, %v1064
        %v1066 = vpop.f32.mrb[0].mxu0
        %v1067 = vpop.f32.mrb[0].mxu0
        %v1068 = vadd.f32 %v931, %v1067
        %v1069 = vpop.f32.mrb[0].mxu0
        %1070 = vmatprep.mubr.bf16.mxu0 0
        %1071 = vmatmul.mubr.bf16.gmra.mrb[0].mxu0 %v626
        %v1072 = vpop.f32.mrb[0].mxu0
        %v1073 = vadd.f32 %v936, %v1072
        %v1074 = vpop.f32.mrb[0].mxu0
        %v1075 = vpop.f32.mrb[0].mxu0
        %v1076 = vadd.f32 %v939, %v1075
        %v1077 = vpop.f32.mrb[0].mxu0
        %1078 = vmatprep.mubr.bf16.mxu0 0
        %1079 = vmatmul.mubr.bf16.gmra.mrb[0].mxu0 %v629
        %v1080 = vpop.f32.mrb[0].mxu0
        %v1081 = vadd.f32 %v944, %v1080
        %v1082 = vpop.f32.mrb[0].mxu0
        %v1083 = vpop.f32.mrb[0].mxu0
        %v1084 = vadd.f32 %v947, %v1083
        %v1085 = vpop.f32.mrb[0].mxu0
        %1086 = vdwg.mxu0
        %v1087 = vld [vmem:[#allocation2] sm:$0xff]
        %v1088 = vld [vmem:[#allocation2 + $0x8] sm:$0xff]
        %v1089 = vld [vmem:[#allocation2 + $0x10] sm:$0xff]
        %v1090 = vld [vmem:[#allocation2 + $0x18] sm:$0xff]
        %v1091 = vld [vmem:[#allocation2 + $0x20] sm:$0xff]
        %v1092 = vld [vmem:[#allocation2 + $0x28] sm:$0xff]
        %v1093 = vld [vmem:[#allocation2 + $0x30] sm:$0xff]
        %v1094 = vld [vmem:[#allocation2 + $0x38] sm:$0xff]
        %v1095 = vld [vmem:[#allocation2 + $0x40] sm:$0xff]
        %v1096 = vld [vmem:[#allocation2 + $0x48] sm:$0xff]
        %v1097 = vld [vmem:[#allocation2 + $0x50] sm:$0xff]
        %v1098 = vld [vmem:[#allocation2 + $0x58] sm:$0xff]
        %v1099 = vld [vmem:[#allocation2 + $0x60] sm:$0xff]
        %v1100 = vld [vmem:[#allocation2 + $0x68] sm:$0xff]
        %v1101 = vld [vmem:[#allocation2 + $0x70] sm:$0xff]
        %v1102 = vld [vmem:[#allocation2 + $0x78] sm:$0xff]
        %v1103 = vld [vmem:[#allocation2 + $0x80] sm:$0xff]
        %v1104 = vld [vmem:[#allocation2 + $0x88] sm:$0xff]
        %v1105 = vld [vmem:[#allocation2 + $0x90] sm:$0xff]
        %v1106 = vld [vmem:[#allocation2 + $0x98] sm:$0xff]
        %v1107 = vld [vmem:[#allocation2 + $0xa0] sm:$0xff]
        %v1108 = vld [vmem:[#allocation2 + $0xa8] sm:$0xff]
        %v1109 = vld [vmem:[#allocation2 + $0xb0] sm:$0xff]
        %v1110 = vld [vmem:[#allocation2 + $0xb8] sm:$0xff]
        %v1111 = vld [vmem:[#allocation2 + $0xc0] sm:$0xff]
        %v1112 = vld [vmem:[#allocation2 + $0xc8] sm:$0xff]
        %v1113 = vmul.f32 %v1087, 0.75
        %v1114 = vmul.f32 %v1088, 0.75
        %v1115 = vmul.f32 %v1089, 0.75
        %v1116 = vmul.f32 %v1090, 0.75
        %v1117 = vmul.f32 %v1091, 0.75
        %v1118 = vmul.f32 %v1092, 0.75
        %v1119 = vmul.f32 %v1093, 0.75
        %v1120 = vmul.f32 %v1094, 0.75
        %v1121 = vmul.f32 %v1095, 0.75
        %v1122 = vmul.f32 %v1096, 0.75
        %v1123 = vmul.f32 %v1097, 0.75
        %v1124 = vmul.f32 %v1098, 0.75
        %v1125 = vmul.f32 %v1099, 0.75
        %v1126 = vmul.f32 %v1100, 0.75
        %v1127 = vmul.f32 %v1101, 0.75
        %v1128 = vmul.f32 %v1102, 0.75
        %v1129 = vmul.f32 %v1103, 0.75
        %v1130 = vmul.f32 %v1104, 0.75
        %v1131 = vmul.f32 %v1105, 0.75
        %v1132 = vmul.f32 %v1106, 0.75
        %v1133 = vmul.f32 %v1107, 0.75
        %v1134 = vmul.f32 %v1108, 0.75
        %v1135 = vmul.f32 %v1109, 0.75
        %v1136 = vmul.f32 %v1110, 0.75
        %v1137 = vmul.f32 %v1111, 0.75
        %v1138 = vmul.f32 %v1112, 0.75
        %v1139 = vadd.f32 %v1113, %v985
        %v1140 = vadd.f32 %v1114, %v988
        %v1141 = vadd.f32 %v1115, %v993
        %v1142 = vadd.f32 %v1116, %v996
        %v1143 = vadd.f32 %v1117, %v1001
        %v1144 = vadd.f32 %v1118, %v1004
        %v1145 = vadd.f32 %v1119, %v1009
        %v1146 = vadd.f32 %v1120, %v1012
        %v1147 = vadd.f32 %v1121, %v1017
        %v1148 = vadd.f32 %v1122, %v1020
        %v1149 = vadd.f32 %v1123, %v1025
        %v1150 = vadd.f32 %v1124, %v1028
        %v1151 = vadd.f32 %v1125, %v1033
        %v1152 = vadd.f32 %v1126, %v1036
        %v1153 = vadd.f32 %v1127, %v1041
        %v1154 = vadd.f32 %v1128, %v1044
        %v1155 = vadd.f32 %v1129, %v1049
        %v1156 = vadd.f32 %v1130, %v1052
        %v1157 = vadd.f32 %v1131, %v1057
        %v1158 = vadd.f32 %v1132, %v1060
        %v1159 = vadd.f32 %v1133, %v1065
        %v1160 = vadd.f32 %v1134, %v1068
        %v1161 = vadd.f32 %v1135, %v1073
        %v1162 = vadd.f32 %v1136, %v1076
        %v1163 = vadd.f32 %v1137, %v1081
        %v1164 = vadd.f32 %v1138, %v1084
        %v1165 = vld [vmem:[#allocation3] sm:$0xff]
        %v1166 = vld [vmem:[#allocation3 + $0x8] sm:$0xff]
        %v1167 = vld [vmem:[#allocation3 + $0x10] sm:$0xff]
        %v1168 = vld [vmem:[#allocation3 + $0x18] sm:$0xff]
        %v1169 = vld [vmem:[#allocation3 + $0x20] sm:$0xff]
        %v1170 = vld [vmem:[#allocation3 + $0x28] sm:$0xff]
        %v1171 = vld [vmem:[#allocation3 + $0x30] sm:$0xff]
        %v1172 = vld [vmem:[#allocation3 + $0x38] sm:$0xff]
        %v1173 = vld [vmem:[#allocation3 + $0x40] sm:$0xff]
        %v1174 = vld [vmem:[#allocation3 + $0x48] sm:$0xff]
        %v1175 = vld [vmem:[#allocation3 + $0x50] sm:$0xff]
        %v1176 = vld [vmem:[#allocation3 + $0x58] sm:$0xff]
        %v1177 = vld [vmem:[#allocation3 + $0x60] sm:$0xff]
        %v1178 = vld [vmem:[#allocation3 + $0x68] sm:$0xff]
        %v1179 = vld [vmem:[#allocation3 + $0x70] sm:$0xff]
        %v1180 = vld [vmem:[#allocation3 + $0x78] sm:$0xff]
        %v1181 = vld [vmem:[#allocation3 + $0x80] sm:$0xff]
        %v1182 = vld [vmem:[#allocation3 + $0x88] sm:$0xff]
        %v1183 = vld [vmem:[#allocation3 + $0x90] sm:$0xff]
        %v1184 = vld [vmem:[#allocation3 + $0x98] sm:$0xff]
        %v1185 = vld [vmem:[#allocation3 + $0xa0] sm:$0xff]
        %v1186 = vld [vmem:[#allocation3 + $0xa8] sm:$0xff]
        %v1187 = vld [vmem:[#allocation3 + $0xb0] sm:$0xff]
        %v1188 = vld [vmem:[#allocation3 + $0xb8] sm:$0xff]
        %v1189 = vld [vmem:[#allocation3 + $0xc0] sm:$0xff]
        %v1190 = vld [vmem:[#allocation3 + $0xc8] sm:$0xff]
        %v1191 = vmul.f32 %v1165, 0.97
        %v1192 = vmul.f32 %v1166, 0.97
        %v1193 = vmul.f32 %v1167, 0.97
        %v1194 = vmul.f32 %v1168, 0.97
        %v1195 = vmul.f32 %v1169, 0.97
        %v1196 = vmul.f32 %v1170, 0.97
        %v1197 = vmul.f32 %v1171, 0.97
        %v1198 = vmul.f32 %v1172, 0.97
        %v1199 = vmul.f32 %v1173, 0.97
        %v1200 = vmul.f32 %v1174, 0.97
        %v1201 = vmul.f32 %v1175, 0.97
        %v1202 = vmul.f32 %v1176, 0.97
        %v1203 = vmul.f32 %v1177, 0.97
        %v1204 = vmul.f32 %v1178, 0.97
        %v1205 = vmul.f32 %v1179, 0.97
        %v1206 = vmul.f32 %v1180, 0.97
        %v1207 = vmul.f32 %v1181, 0.97
        %v1208 = vmul.f32 %v1182, 0.97
        %v1209 = vmul.f32 %v1183, 0.97
        %v1210 = vmul.f32 %v1184, 0.97
        %v1211 = vmul.f32 %v1185, 0.97
        %v1212 = vmul.f32 %v1186, 0.97
        %v1213 = vmul.f32 %v1187, 0.97
        %v1214 = vmul.f32 %v1188, 0.97
        %v1215 = vmul.f32 %v1189, 0.97
        %v1216 = vmul.f32 %v1190, 0.97
        %v1217 = vadd.f32 %v1191, %v1139
        %v1218 = vadd.f32 %v1192, %v1140
        %v1219 = vadd.f32 %v1193, %v1141
        %v1220 = vadd.f32 %v1194, %v1142
        %v1221 = vadd.f32 %v1195, %v1143
        %v1222 = vadd.f32 %v1196, %v1144
        %v1223 = vadd.f32 %v1197, %v1145
        %v1224 = vadd.f32 %v1198, %v1146
        %v1225 = vadd.f32 %v1199, %v1147
        %v1226 = vadd.f32 %v1200, %v1148
        %v1227 = vadd.f32 %v1201, %v1149
        %v1228 = vadd.f32 %v1202, %v1150
        %v1229 = vadd.f32 %v1203, %v1151
        %v1230 = vadd.f32 %v1204, %v1152
        %v1231 = vadd.f32 %v1205, %v1153
        %v1232 = vadd.f32 %v1206, %v1154
        %v1233 = vadd.f32 %v1207, %v1155
        %v1234 = vadd.f32 %v1208, %v1156
        %v1235 = vadd.f32 %v1209, %v1157
        %v1236 = vadd.f32 %v1210, %v1158
        %v1237 = vadd.f32 %v1211, %v1159
        %v1238 = vadd.f32 %v1212, %v1160
        %v1239 = vadd.f32 %v1213, %v1161
        %v1240 = vadd.f32 %v1214, %v1162
        %v1241 = vadd.f32 %v1215, %v1163
        %v1242 = vadd.f32 %v1216, %v1164
        %vm1243 = vcmp.ge.f32.partialorder %v1217, 1.0
        %vm1244 = vcmp.ge.f32.partialorder %v1218, 1.0
        %vm1245 = vcmp.ge.f32.partialorder %v1219, 1.0
        %vm1246 = vcmp.ge.f32.partialorder %v1220, 1.0
        %vm1247 = vcmp.ge.f32.partialorder %v1221, 1.0
        %vm1248 = vcmp.ge.f32.partialorder %v1222, 1.0
        %vm1249 = vcmp.ge.f32.partialorder %v1223, 1.0
        %vm1250 = vcmp.ge.f32.partialorder %v1224, 1.0
        %vm1251 = vcmp.ge.f32.partialorder %v1225, 1.0
        %vm1252 = vcmp.ge.f32.partialorder %v1226, 1.0
        %vm1253 = vcmp.ge.f32.partialorder %v1227, 1.0
        %vm1254 = vcmp.ge.f32.partialorder %v1228, 1.0
        %vm1255 = vcmp.ge.f32.partialorder %v1229, 1.0
        %vm1256 = vcmp.ge.f32.partialorder %v1230, 1.0
        %vm1257 = vcmp.ge.f32.partialorder %v1231, 1.0
        %vm1258 = vcmp.ge.f32.partialorder %v1232, 1.0
        %vm1259 = vcmp.ge.f32.partialorder %v1233, 1.0
        %vm1260 = vcmp.ge.f32.partialorder %v1234, 1.0
        %vm1261 = vcmp.ge.f32.partialorder %v1235, 1.0
        %vm1262 = vcmp.ge.f32.partialorder %v1236, 1.0
        %vm1263 = vcmp.ge.f32.partialorder %v1237, 1.0
        %vm1264 = vcmp.ge.f32.partialorder %v1238, 1.0
        %vm1265 = vcmp.ge.f32.partialorder %v1239, 1.0
        %vm1266 = vcmp.ge.f32.partialorder %v1240, 1.0
        %vm1267 = vcmp.ge.f32.partialorder %v1241, 1.0
        %vm1268 = vcmp.ge.f32.partialorder %v1242, 1.0
        %v1269 = vsel %vm1243, 1.0, 0.0
        %v1270 = vsel %vm1244, 1.0, 0.0
        %v1271 = vsel %vm1245, 1.0, 0.0
        %v1272 = vsel %vm1246, 1.0, 0.0
        %v1273 = vsel %vm1247, 1.0, 0.0
        %v1274 = vsel %vm1248, 1.0, 0.0
        %v1275 = vsel %vm1249, 1.0, 0.0
        %v1276 = vsel %vm1250, 1.0, 0.0
        %v1277 = vsel %vm1251, 1.0, 0.0
        %v1278 = vsel %vm1252, 1.0, 0.0
        %v1279 = vsel %vm1253, 1.0, 0.0
        %v1280 = vsel %vm1254, 1.0, 0.0
        %v1281 = vsel %vm1255, 1.0, 0.0
        %v1282 = vsel %vm1256, 1.0, 0.0
        %v1283 = vsel %vm1257, 1.0, 0.0
        %v1284 = vsel %vm1258, 1.0, 0.0
        %v1285 = vsel %vm1259, 1.0, 0.0
        %v1286 = vsel %vm1260, 1.0, 0.0
        %v1287 = vsel %vm1261, 1.0, 0.0
        %v1288 = vsel %vm1262, 1.0, 0.0
        %v1289 = vsel %vm1263, 1.0, 0.0
        %v1290 = vsel %vm1264, 1.0, 0.0
        %v1291 = vsel %vm1265, 1.0, 0.0
        %v1292 = vsel %vm1266, 1.0, 0.0
        %v1293 = vsel %vm1267, 1.0, 0.0
        %v1294 = vsel %vm1268, 1.0, 0.0
        %1295 = vst [vmem:[#allocation2] sm:$0xff] %v1139
        %1296 = vst [vmem:[#allocation2 + $0x8] sm:$0xff] %v1140
        %1297 = vst [vmem:[#allocation2 + $0x10] sm:$0xff] %v1141
        %1298 = vst [vmem:[#allocation2 + $0x18] sm:$0xff] %v1142
        %1299 = vst [vmem:[#allocation2 + $0x20] sm:$0xff] %v1143
        %1300 = vst [vmem:[#allocation2 + $0x28] sm:$0xff] %v1144
        %1301 = vst [vmem:[#allocation2 + $0x30] sm:$0xff] %v1145
        %1302 = vst [vmem:[#allocation2 + $0x38] sm:$0xff] %v1146
        %1303 = vst [vmem:[#allocation2 + $0x40] sm:$0xff] %v1147
        %1304 = vst [vmem:[#allocation2 + $0x48] sm:$0xff] %v1148
        %1305 = vst [vmem:[#allocation2 + $0x50] sm:$0xff] %v1149
        %1306 = vst [vmem:[#allocation2 + $0x58] sm:$0xff] %v1150
        %1307 = vst [vmem:[#allocation2 + $0x60] sm:$0xff] %v1151
        %1308 = vst [vmem:[#allocation2 + $0x68] sm:$0xff] %v1152
        %1309 = vst [vmem:[#allocation2 + $0x70] sm:$0xff] %v1153
        %1310 = vst [vmem:[#allocation2 + $0x78] sm:$0xff] %v1154
        %1311 = vst [vmem:[#allocation2 + $0x80] sm:$0xff] %v1155
        %1312 = vst [vmem:[#allocation2 + $0x88] sm:$0xff] %v1156
        %1313 = vst [vmem:[#allocation2 + $0x90] sm:$0xff] %v1157
        %1314 = vst [vmem:[#allocation2 + $0x98] sm:$0xff] %v1158
        %1315 = vst [vmem:[#allocation2 + $0xa0] sm:$0xff] %v1159
        %1316 = vst [vmem:[#allocation2 + $0xa8] sm:$0xff] %v1160
        %1317 = vst [vmem:[#allocation2 + $0xb0] sm:$0xff] %v1161
        %1318 = vst [vmem:[#allocation2 + $0xb8] sm:$0xff] %v1162
        %1319 = vst [vmem:[#allocation2 + $0xc0] sm:$0xff] %v1163
        %1320 = vst [vmem:[#allocation2 + $0xc8] sm:$0xff] %v1164
        %v1321 = vsel %vm1243, 0.0, %v1217
        %v1322 = vsel %vm1244, 0.0, %v1218
        %v1323 = vsel %vm1245, 0.0, %v1219
        %v1324 = vsel %vm1246, 0.0, %v1220
        %v1325 = vsel %vm1247, 0.0, %v1221
        %v1326 = vsel %vm1248, 0.0, %v1222
        %v1327 = vsel %vm1249, 0.0, %v1223
        %v1328 = vsel %vm1250, 0.0, %v1224
        %v1329 = vsel %vm1251, 0.0, %v1225
        %v1330 = vsel %vm1252, 0.0, %v1226
        %v1331 = vsel %vm1253, 0.0, %v1227
        %v1332 = vsel %vm1254, 0.0, %v1228
        %v1333 = vsel %vm1255, 0.0, %v1229
        %v1334 = vsel %vm1256, 0.0, %v1230
        %v1335 = vsel %vm1257, 0.0, %v1231
        %v1336 = vsel %vm1258, 0.0, %v1232
        %v1337 = vsel %vm1259, 0.0, %v1233
        %v1338 = vsel %vm1260, 0.0, %v1234
        %v1339 = vsel %vm1261, 0.0, %v1235
        %v1340 = vsel %vm1262, 0.0, %v1236
        %v1341 = vsel %vm1263, 0.0, %v1237
        %v1342 = vsel %vm1264, 0.0, %v1238
        %v1343 = vsel %vm1265, 0.0, %v1239
        %v1344 = vsel %vm1266, 0.0, %v1240
        %v1345 = vsel %vm1267, 0.0, %v1241
        %v1346 = vsel %vm1268, 0.0, %v1242
        %1347 = vst [vmem:[#allocation3] sm:$0xff] %v1321
        %1348 = vst [vmem:[#allocation3 + $0x8] sm:$0xff] %v1322
        %1349 = vst [vmem:[#allocation3 + $0x10] sm:$0xff] %v1323
        %1350 = vst [vmem:[#allocation3 + $0x18] sm:$0xff] %v1324
        %1351 = vst [vmem:[#allocation3 + $0x20] sm:$0xff] %v1325
        %1352 = vst [vmem:[#allocation3 + $0x28] sm:$0xff] %v1326
        %1353 = vst [vmem:[#allocation3 + $0x30] sm:$0xff] %v1327
        %1354 = vst [vmem:[#allocation3 + $0x38] sm:$0xff] %v1328
        %1355 = vst [vmem:[#allocation3 + $0x40] sm:$0xff] %v1329
        %1356 = vst [vmem:[#allocation3 + $0x48] sm:$0xff] %v1330
        %1357 = vst [vmem:[#allocation3 + $0x50] sm:$0xff] %v1331
        %1358 = vst [vmem:[#allocation3 + $0x58] sm:$0xff] %v1332
        %1359 = vst [vmem:[#allocation3 + $0x60] sm:$0xff] %v1333
        %1360 = vst [vmem:[#allocation3 + $0x68] sm:$0xff] %v1334
        %1361 = vst [vmem:[#allocation3 + $0x70] sm:$0xff] %v1335
        %1362 = vst [vmem:[#allocation3 + $0x78] sm:$0xff] %v1336
        %1363 = vst [vmem:[#allocation3 + $0x80] sm:$0xff] %v1337
        %1364 = vst [vmem:[#allocation3 + $0x88] sm:$0xff] %v1338
        %1365 = vst [vmem:[#allocation3 + $0x90] sm:$0xff] %v1339
        %1366 = vst [vmem:[#allocation3 + $0x98] sm:$0xff] %v1340
        %1367 = vst [vmem:[#allocation3 + $0xa0] sm:$0xff] %v1341
        %1368 = vst [vmem:[#allocation3 + $0xa8] sm:$0xff] %v1342
        %1369 = vst [vmem:[#allocation3 + $0xb0] sm:$0xff] %v1343
        %1370 = vst [vmem:[#allocation3 + $0xb8] sm:$0xff] %v1344
        %1371 = vst [vmem:[#allocation3 + $0xc0] sm:$0xff] %v1345
        %1372 = vst [vmem:[#allocation3 + $0xc8] sm:$0xff] %v1346
        %v1373 = vld [vmem:[%s246] sm:$0xff]
        %v1374 = vld [vmem:[%s246 + $0x8] sm:$0xff]
        %v1375 = vld [vmem:[%s246 + $0x10] sm:$0xff]
        %v1376 = vld [vmem:[%s246 + $0x18] sm:$0xff]
        %v1377 = vld [vmem:[%s246 + $0x20] sm:$0xff]
        %v1378 = vld [vmem:[%s246 + $0x28] sm:$0xff]
        %v1379 = vld [vmem:[%s246 + $0x30] sm:$0xff]
        %v1380 = vld [vmem:[%s246 + $0x38] sm:$0xff]
        %v1381 = vld [vmem:[%s246 + $0x40] sm:$0xff]
        %v1382 = vld [vmem:[%s246 + $0x48] sm:$0xff]
        %v1383 = vld [vmem:[%s246 + $0x50] sm:$0xff]
        %v1384 = vld [vmem:[%s246 + $0x58] sm:$0xff]
        %v1385 = vld [vmem:[%s246 + $0x60] sm:$0xff]
        %v1386 = vld [vmem:[%s246 + $0x68] sm:$0xff]
        %v1387 = vld [vmem:[%s246 + $0x70] sm:$0xff]
        %v1388 = vld [vmem:[%s246 + $0x78] sm:$0xff]
        %v1389 = vld [vmem:[%s246 + $0x80] sm:$0xff]
        %v1390 = vld [vmem:[%s246 + $0x88] sm:$0xff]
        %v1391 = vld [vmem:[%s246 + $0x90] sm:$0xff]
        %v1392 = vld [vmem:[%s246 + $0x98] sm:$0xff]
        %v1393 = vld [vmem:[%s246 + $0xa0] sm:$0xff]
        %v1394 = vld [vmem:[%s246 + $0xa8] sm:$0xff]
        %v1395 = vld [vmem:[%s246 + $0xb0] sm:$0xff]
        %v1396 = vld [vmem:[%s246 + $0xb8] sm:$0xff]
        %v1397 = vld [vmem:[%s246 + $0xc0] sm:$0xff]
        %v1398 = vld [vmem:[%s246 + $0xc8] sm:$0xff]
        %v1399 = vadd.f32 %v1373, %v1269
        %v1400 = vadd.f32 %v1374, %v1270
        %v1401 = vadd.f32 %v1375, %v1271
        %v1402 = vadd.f32 %v1376, %v1272
        %v1403 = vadd.f32 %v1377, %v1273
        %v1404 = vadd.f32 %v1378, %v1274
        %v1405 = vadd.f32 %v1379, %v1275
        %v1406 = vadd.f32 %v1380, %v1276
        %v1407 = vadd.f32 %v1381, %v1277
        %v1408 = vadd.f32 %v1382, %v1278
        %v1409 = vadd.f32 %v1383, %v1279
        %v1410 = vadd.f32 %v1384, %v1280
        %v1411 = vadd.f32 %v1385, %v1281
        %v1412 = vadd.f32 %v1386, %v1282
        %v1413 = vadd.f32 %v1387, %v1283
        %v1414 = vadd.f32 %v1388, %v1284
        %v1415 = vadd.f32 %v1389, %v1285
        %v1416 = vadd.f32 %v1390, %v1286
        %v1417 = vadd.f32 %v1391, %v1287
        %v1418 = vadd.f32 %v1392, %v1288
        %v1419 = vadd.f32 %v1393, %v1289
        %v1420 = vadd.f32 %v1394, %v1290
        %v1421 = vadd.f32 %v1395, %v1291
        %v1422 = vadd.f32 %v1396, %v1292
        %v1423 = vadd.f32 %v1397, %v1293
        %v1424 = vadd.f32 %v1398, %v1294
        %1425 = vst [vmem:[%s246] sm:$0xff] %v1399
        %1426 = vst [vmem:[%s246 + $0x8] sm:$0xff] %v1400
        %1427 = vst [vmem:[%s246 + $0x10] sm:$0xff] %v1401
        %1428 = vst [vmem:[%s246 + $0x18] sm:$0xff] %v1402
        %1429 = vst [vmem:[%s246 + $0x20] sm:$0xff] %v1403
        %1430 = vst [vmem:[%s246 + $0x28] sm:$0xff] %v1404
        %1431 = vst [vmem:[%s246 + $0x30] sm:$0xff] %v1405
        %1432 = vst [vmem:[%s246 + $0x38] sm:$0xff] %v1406
        %1433 = vst [vmem:[%s246 + $0x40] sm:$0xff] %v1407
        %1434 = vst [vmem:[%s246 + $0x48] sm:$0xff] %v1408
        %1435 = vst [vmem:[%s246 + $0x50] sm:$0xff] %v1409
        %1436 = vst [vmem:[%s246 + $0x58] sm:$0xff] %v1410
        %1437 = vst [vmem:[%s246 + $0x60] sm:$0xff] %v1411
        %1438 = vst [vmem:[%s246 + $0x68] sm:$0xff] %v1412
        %1439 = vst [vmem:[%s246 + $0x70] sm:$0xff] %v1413
        %1440 = vst [vmem:[%s246 + $0x78] sm:$0xff] %v1414
        %1441 = vst [vmem:[%s246 + $0x80] sm:$0xff] %v1415
        %1442 = vst [vmem:[%s246 + $0x88] sm:$0xff] %v1416
        %1443 = vst [vmem:[%s246 + $0x90] sm:$0xff] %v1417
        %1444 = vst [vmem:[%s246 + $0x98] sm:$0xff] %v1418
        %1445 = vst [vmem:[%s246 + $0xa0] sm:$0xff] %v1419
        %1446 = vst [vmem:[%s246 + $0xa8] sm:$0xff] %v1420
        %1447 = vst [vmem:[%s246 + $0xb0] sm:$0xff] %v1421
        %1448 = vst [vmem:[%s246 + $0xb8] sm:$0xff] %v1422
        %1449 = vst [vmem:[%s246 + $0xc0] sm:$0xff] %v1423
        %1450 = vst [vmem:[%s246 + $0xc8] sm:$0xff] %v1424
        %v1451 = vpack.c.bf16 %v1270, %v1269
        %v1452 = vpack.c.bf16 %v1272, %v1271
        %v1453 = vpack.c.bf16 %v1274, %v1273
        %v1454 = vpack.c.bf16 %v1276, %v1275
        %v1455 = vpack.c.bf16 %v1278, %v1277
        %v1456 = vpack.c.bf16 %v1280, %v1279
        %v1457 = vpack.c.bf16 %v1282, %v1281
        %v1458 = vpack.c.bf16 %v1284, %v1283
        %v1459 = vpack.c.bf16 %v1286, %v1285
        %v1460 = vpack.c.bf16 %v1288, %v1287
        %v1461 = vpack.c.bf16 %v1290, %v1289
        %v1462 = vpack.c.bf16 %v1292, %v1291
        %v1463 = vpack.c.bf16 %v1294, %v1293
        %v1477 = vunpack.c.l.b16 %v1451
        %v1478 = vunpack.c.h.b16 %v1451
        %v1479 = vunpack.c.l.b16 %v1452
        %v1480 = vunpack.c.h.b16 %v1452
        %v1481 = vunpack.c.l.b16 %v1453
        %v1482 = vunpack.c.h.b16 %v1453
        %v1483 = vunpack.c.l.b16 %v1454
        %v1484 = vunpack.c.h.b16 %v1454
        %v1485 = vunpack.c.l.b16 %v1455
        %v1486 = vunpack.c.h.b16 %v1455
        %v1487 = vunpack.c.l.b16 %v1456
        %v1488 = vunpack.c.h.b16 %v1456
        %v1489 = vunpack.c.l.b16 %v1457
        %v1490 = vunpack.c.h.b16 %v1457
        %v1491 = vunpack.c.l.b16 %v1458
        %v1492 = vunpack.c.h.b16 %v1458
        %v1493 = vunpack.c.l.b16 %v1459
        %v1494 = vunpack.c.h.b16 %v1459
        %v1495 = vunpack.c.l.b16 %v1460
        %v1496 = vunpack.c.h.b16 %v1460
        %v1497 = vunpack.c.l.b16 %v1461
        %v1498 = vunpack.c.h.b16 %v1461
        %v1499 = vunpack.c.l.b16 %v1462
        %v1500 = vunpack.c.h.b16 %v1462
        %v1501 = vunpack.c.l.b16 %v1463
        %v1502 = vunpack.c.h.b16 %v1463
        %v1503 = vpack.c.b16 %v1477, %v1477
        %v1504 = vpack.c.b16 %v1478, %v1478
        %v1505 = vpack.c.b16 %v1479, %v1479
        %v1506 = vpack.c.b16 %v1480, %v1480
        %v1507 = vpack.c.b16 %v1481, %v1481
        %v1508 = vpack.c.b16 %v1482, %v1482
        %v1509 = vpack.c.b16 %v1483, %v1483
        %v1510 = vpack.c.b16 %v1484, %v1484
        %v1511 = vpack.c.b16 %v1485, %v1485
        %v1512 = vpack.c.b16 %v1486, %v1486
        %v1513 = vpack.c.b16 %v1487, %v1487
        %v1514 = vpack.c.b16 %v1488, %v1488
        %v1515 = vpack.c.b16 %v1489, %v1489
        %v1516 = vpack.c.b16 %v1490, %v1490
        %v1517 = vpack.c.b16 %v1491, %v1491
        %v1518 = vpack.c.b16 %v1492, %v1492
        %v1519 = vpack.c.b16 %v1493, %v1493
        %v1520 = vpack.c.b16 %v1494, %v1494
        %v1521 = vpack.c.b16 %v1495, %v1495
        %v1522 = vpack.c.b16 %v1496, %v1496
        %v1523 = vpack.c.b16 %v1497, %v1497
        %v1524 = vpack.c.b16 %v1498, %v1498
        %v1525 = vpack.c.b16 %v1499, %v1499
        %v1526 = vpack.c.b16 %v1500, %v1500
        %v1527 = vpack.c.b16 %v1501, %v1501
        %v1528 = vpack.c.b16 %v1502, %v1502
        %1555 = vst [vmem:[%s240] sm:$0xf] %v1503
        %1556 = vst [vmem:[%s240 + $0x4] sm:$0xf] %v1504
        %1557 = vst [vmem:[%s240 + $0x8] sm:$0xf] %v1505
        %1558 = vst [vmem:[%s240 + $0xc] sm:$0xf] %v1506
        %1559 = vst [vmem:[%s240 + $0x10] sm:$0xf] %v1507
        %1560 = vst [vmem:[%s240 + $0x14] sm:$0xf] %v1508
        %1561 = vst [vmem:[%s240 + $0x18] sm:$0xf] %v1509
        %1562 = vst [vmem:[%s240 + $0x1c] sm:$0xf] %v1510
        %1563 = vst [vmem:[%s240 + $0x20] sm:$0xf] %v1511
        %1564 = vst [vmem:[%s240 + $0x24] sm:$0xf] %v1512
        %1565 = vst [vmem:[%s240 + $0x28] sm:$0xf] %v1513
        %1566 = vst [vmem:[%s240 + $0x2c] sm:$0xf] %v1514
        %1567 = vst [vmem:[%s240 + $0x30] sm:$0xf] %v1515
        %1568 = vst [vmem:[%s240 + $0x34] sm:$0xf] %v1516
        %1569 = vst [vmem:[%s240 + $0x38] sm:$0xf] %v1517
        %1570 = vst [vmem:[%s240 + $0x3c] sm:$0xf] %v1518
        %1571 = vst [vmem:[%s240 + $0x40] sm:$0xf] %v1519
        %1572 = vst [vmem:[%s240 + $0x44] sm:$0xf] %v1520
        %1573 = vst [vmem:[%s240 + $0x48] sm:$0xf] %v1521
        %1574 = vst [vmem:[%s240 + $0x4c] sm:$0xf] %v1522
        %1575 = vst [vmem:[%s240 + $0x50] sm:$0xf] %v1523
        %1576 = vst [vmem:[%s240 + $0x54] sm:$0xf] %v1524
        %1577 = vst [vmem:[%s240 + $0x58] sm:$0xf] %v1525
        %1578 = vst [vmem:[%s240 + $0x5c] sm:$0xf] %v1526
        %1579 = vst [vmem:[%s240 + $0x60] sm:$0xf] %v1527
        %1580 = vst [vmem:[%s240 + $0x64] sm:$0xf] %v1528
      $region36: #{conv_class_forward.8} parent=27 // pred_fallthru
        _
      %s1581 = smul.u32 26, %s19
      %p1582 = scmp.lt.s32.totalorder %s20, 7
      %s1583 = scalar_select %p1582, %s20, 7
      %p1584 = scmp.lt.s32.totalorder %s1581, 51
      %s1585 = scalar_select %p1584, %s1581, 51
      %s1586 = smul.addr %s1583, 52
      %s1587 = sadd.s32 %s1585, %s1586
      %s1588 = smul.addr %s1587, 4
      %s1589 = scalar_lea.vmem %s2, %s1588
      %s1590 = smul.u32 26, %s19
      %p1591 = scmp.lt.s32.totalorder %s1590, 51
      %s1592 = scalar_select %p1591, %s1590, 51
      %s1593 = smul.addr %s1592, 8
      %s1594 = scalar_lea.vmem %s3, %s1593
      // Predicated region
      $region37: #{conv_class_forward.8} parent=27 // pred_check
        %p1595 = pneg %p102
      $region38: #{conv_class_forward.8} parent=27 // pred_check_branch
        %1597 = sbr.rel (%p1595) target = $region40
      $region39: #{conv_class_forward.8} parent=27 // pred_region
        %s1598 = smul.u32 26, %s19
      $region40: #{conv_class_forward.8} parent=27 // pred_fallthru
        _
      // Predicated region
      $region41: #{conv_class_forward.8} parent=27 // pred_check
        %p1599 = pneg %p128
      $region42: #{conv_class_forward.8} parent=27 // pred_check_branch
        %1601 = sbr.rel (%p1599) target = $region44
      $region43: #{conv_class_forward.8} parent=27 // pred_region
        %s1602 = smul.u32 26, %s19
      $region44: #{conv_class_forward.8} parent=27 // pred_fallthru
        _
    $region28: #{conv_class_forward.8} parent=5 // pred_fallthru
      _
    %p1603 = scmp.le.s32.totalorder 2, %s10
    // Predicated region
    $region45: #{conv_class_forward.8} parent=5 // pred_check
      %p1604 = pneg %p1603
    $region46: #{conv_class_forward.8} parent=5 // pred_check_branch
      %1606 = sbr.rel (%p1604) target = $region48
    $region47: #{conv_class_forward.8} parent=5 // pred_region
      %s1607 = ssub.s32 %s10, 2
      // Predicated region
      $region49: #{conv_class_forward.8} parent=47 // pred_check
        %p1608 = pneg %p108
      $region50: #{conv_class_forward.8} parent=47 // pred_check_branch
        %1610 = sbr.rel (%p1608) target = $region52
      $region51: #{conv_class_forward.8} parent=47 // pred_region
        %s1611 = smul.u32 26, %s21
        %p1612 = scmp.lt.s32.totalorder %s22, 7
        %s1613 = scalar_select %p1612, %s22, 7
        %p1614 = scmp.lt.s32.totalorder %s1611, 51
        %s1615 = scalar_select %p1614, %s1611, 51
        %s1616 = smul.addr %s1613, 52
        %s1617 = sadd.s32 %s1615, %s1616
        %s1618 = smul.addr %s1617, 4
        %s1619 = scalar_lea.vmem %s2, %s1618
      $region52: #{conv_class_forward.8} parent=47 // pred_fallthru
        _
      // Predicated region
      $region53: #{conv_class_forward.8} parent=47 // pred_check
        %p1620 = pneg %p134
      $region54: #{conv_class_forward.8} parent=47 // pred_check_branch
        %1622 = sbr.rel (%p1620) target = $region56
      $region55: #{conv_class_forward.8} parent=47 // pred_region
        %s1623 = smul.u32 26, %s21
        %p1624 = scmp.lt.s32.totalorder %s1623, 51
        %s1625 = scalar_select %p1624, %s1623, 51
        %s1626 = smul.addr %s1625, 8
        %s1627 = scalar_lea.vmem %s3, %s1626
      $region56: #{conv_class_forward.8} parent=47 // pred_fallthru
        _
    $region48: #{conv_class_forward.8} parent=5 // pred_fallthru
      _
  $region6: #{conv_class_forward.8} parent=0 // loop_footer
    %s14 = sadd.s32 1, %s10
  $region7: #{conv_class_forward.8} parent=0 // loop_footer_branch
    %9 = sbr.rel target = $region3
  $region8: #{conv_class_forward.8} parent=0 // loop_exit
    _

// kernel: conv_class_forward.9
$region0: #{conv_class_forward.9}
  #allocation0 [shape = 'u32[]', space=smem, size = 0x4, offset = 0x4, fixed_abs, tag = 'smem constant byte address 0x4 - core index']
  #allocation1 [shape = 'u32[144,128]{1,0:T(1,128)}', space=vmem, size = 0x12000, scoped, tag = 'internal scratch']
  #allocation2 [shape = 'f32[48,128]{1,0:T(8,128)}', space=vmem, size = 0x6000, scoped, tag = 'scratch operand']
  #allocation3 [shape = 'f32[48,128]{1,0:T(8,128)}', space=vmem, size = 0x6000, scoped, tag = 'scratch operand']
  %s0 = inlined_call_operand.vmem [shape: bf16[8,96,640], index: 0, kind: input, shape index: {}]
  %s1 = inlined_call_operand.vmem [shape: bf16[640,128], index: 1, kind: input, shape index: {}]
  %s2 = inlined_call_operand.vmem [shape: bf16[8,96,128], index: 2, kind: output, shape index: {0}]
  %s3 = inlined_call_operand.vmem [shape: f32[96,128], index: 3, kind: output, shape index: {1}]
  %4 = xla_tuple %s2, %s3
  %s5 = sld [smem:[#allocation0]]
  $region57: #{conv_class_forward.9} parent=0
    _
  %s7 = ssub.s32 1, %s5
  %s8 = scalar_select 0, %s7, %s5
  loop: start=0, step=1, limit=18
  $region2: #{conv_class_forward.9} parent=0 // loop_pre_header
    _
  $region3: #{conv_class_forward.9} parent=0 // loop_header
    %s10 = sphi 0, %s14
    %p11 = scmp.ge.s32.totalorder %s10, 18
    %s17 = sphi 0, %s29
    %s18 = sphi 0, %s25
    %s19 = sphi 0, %s17
    %s20 = sphi 0, %s18
    %s21 = sphi 0, %s19
    %s22 = sphi 0, %s20
    %s40 = sphi 0, %s42
    %s43 = sphi 0, %s40
    %s44 = sphi 0, %s43
    %s60 = sphi 0, %s44
    %s64 = sphi 0, %s64
    %s66 = sphi 0, %s64
    %s67 = sphi 0, %s66
    %s81 = sphi 0, %s67
    %s89 = sphi 0, %s91
    %s92 = sphi 0, %s89
    %s93 = sphi 0, %s92
    %s109 = sphi 0, %s93
    %s115 = sphi 0, %s117
    %s118 = sphi 0, %s115
    %s119 = sphi 0, %s118
    %s135 = sphi 0, %s119
  $region4: #{conv_class_forward.9} parent=0 // loop_header_branch
    %13 = sbr.rel (%p11) target = $region8
  $region5: #{conv_class_forward.9} parent=0 // loop_body
    %s15 = ssub.s32 %s10, 1
    %s16 = ssub.s32 %s10, 2
    %s23 = sadd.s32 1, %s18
    %p24 = scmp.ge.s32.totalorder %s23, 8
    %s25 = scalar_select %p24, 0, %s23
    %s26 = sadd.s32 1, %s17
    %s27 = scalar_select %p24, %s26, %s17
    %p28 = scmp.ge.s32.totalorder %s27, 2
    %s29 = scalar_select %p28, 0, %s27
    %s30 = ssub.s32 %s18, 1
    %p31 = scmp.gt.s32.totalorder %s30, 0
    %s32 = scalar_select %p31, %s30, 0
    %s33 = ssub.s32 %s25, 1
    %p34 = scmp.gt.s32.totalorder %s33, 0
    %s35 = scalar_select %p34, %s33, 0
    %s36 = ssub.s32 %s32, %s35
    %s37 = ssub.s32 %s17, %s29
    %s38 = sor.u32 %s36, %s37
    %p39 = scmp.eq.s32.totalorder %s38, 0
    %s41 = sadd.s32 %s40, 1
    %s42 = scalar_select %p39, %s40, %s41
    %p45 = pneg %p39
    %p46 = scmp.eq.s32.totalorder %s10, 15
    %p47 = por %p45, %p46
    %p48 = scmp.ne.s32.totalorder %s40, %s43
    %p49 = scmp.eq.s32.totalorder %s10, 0
    %p50 = por %p48, %p49
    %p51 = scmp.ne.s32.totalorder %s40, %s43
    %p52 = scmp.eq.s32.totalorder %s15, 15
    %p53 = por %p51, %p52
    %p54 = scmp.ne.s32.totalorder %s43, %s44
    %p55 = scmp.eq.s32.totalorder %s15, 0
    %p56 = por %p54, %p55
    %p57 = scmp.ne.s32.totalorder %s43, %s44
    %p58 = scmp.eq.s32.totalorder %s16, 15
    %p59 = por %p57, %p58
    %p61 = scmp.ne.s32.totalorder %s44, %s60
    %p62 = scmp.eq.s32.totalorder %s16, 0
    %p63 = por %p61, %p62
    %s65 = sadd.s32 %s64, 1
    %p68 = scmp.eq.s32.totalorder %s10, 15
    %p69 = scmp.ne.s32.totalorder %s64, %s66
    %p70 = scmp.eq.s32.totalorder %s10, 0
    %p71 = por %p69, %p70
    %p72 = scmp.ne.s32.totalorder %s64, %s66
    %p73 = scmp.eq.s32.totalorder %s15, 15
    %p74 = por %p72, %p73
    %p75 = scmp.ne.s32.totalorder %s66, %s67
    %p76 = scmp.eq.s32.totalorder %s15, 0
    %p77 = por %p75, %p76
    %p78 = scmp.ne.s32.totalorder %s66, %s67
    %p79 = scmp.eq.s32.totalorder %s16, 15
    %p80 = por %p78, %p79
    %p82 = scmp.ne.s32.totalorder %s67, %s81
    %p83 = scmp.eq.s32.totalorder %s16, 0
    %p84 = por %p82, %p83
    %s85 = ssub.s32 %s18, %s25
    %s86 = ssub.s32 %s17, %s29
    %s87 = sor.u32 %s85, %s86
    %p88 = scmp.eq.s32.totalorder %s87, 0
    %s90 = sadd.s32 %s89, 1
    %s91 = scalar_select %p88, %s89, %s90
    %p94 = pneg %p88
    %p95 = scmp.eq.s32.totalorder %s10, 15
    %p96 = por %p94, %p95
    %p97 = scmp.ne.s32.totalorder %s89, %s92
    %p98 = scmp.eq.s32.totalorder %s10, 0
    %p99 = por %p97, %p98
    %p100 = scmp.ne.s32.totalorder %s89, %s92
    %p101 = scmp.eq.s32.totalorder %s15, 15
    %p102 = por %p100, %p101
    %p103 = scmp.ne.s32.totalorder %s92, %s93
    %p104 = scmp.eq.s32.totalorder %s15, 0
    %p105 = por %p103, %p104
    %p106 = scmp.ne.s32.totalorder %s92, %s93
    %p107 = scmp.eq.s32.totalorder %s16, 15
    %p108 = por %p106, %p107
    %p110 = scmp.ne.s32.totalorder %s93, %s109
    %p111 = scmp.eq.s32.totalorder %s16, 0
    %p112 = por %p110, %p111
    %s113 = ssub.s32 %s17, %s29
    %p114 = scmp.eq.s32.totalorder %s113, 0
    %s116 = sadd.s32 %s115, 1
    %s117 = scalar_select %p114, %s115, %s116
    %p120 = pneg %p114
    %p121 = scmp.eq.s32.totalorder %s10, 15
    %p122 = por %p120, %p121
    %p123 = scmp.ne.s32.totalorder %s115, %s118
    %p124 = scmp.eq.s32.totalorder %s10, 0
    %p125 = por %p123, %p124
    %p126 = scmp.ne.s32.totalorder %s115, %s118
    %p127 = scmp.eq.s32.totalorder %s15, 15
    %p128 = por %p126, %p127
    %p129 = scmp.ne.s32.totalorder %s118, %s119
    %p130 = scmp.eq.s32.totalorder %s15, 0
    %p131 = por %p129, %p130
    %p132 = scmp.ne.s32.totalorder %s118, %s119
    %p133 = scmp.eq.s32.totalorder %s16, 15
    %p134 = por %p132, %p133
    %p136 = scmp.ne.s32.totalorder %s119, %s135
    %p137 = scmp.eq.s32.totalorder %s16, 0
    %p138 = por %p136, %p137
    %p139 = scmp.le.s32.totalorder 1, %s10
    %p140 = scmp.lt.s32.totalorder %s10, 17
    %p141 = pnand %p139, %p140
    %p142 = pneg %p141
    // Predicated region
    $region9: #{conv_class_forward.9} parent=5 // pred_check
      _
    $region10: #{conv_class_forward.9} parent=5 // pred_check_branch
      %144 = sbr.rel (%p141) target = $region12
    $region11: #{conv_class_forward.9} parent=5 // pred_region
      %s145 = ssub.s32 %s10, 1
      // Predicated region
      $region13: #{conv_class_forward.9} parent=11 // pred_check
        %p146 = pneg %p77
      $region14: #{conv_class_forward.9} parent=11 // pred_check_branch
        %148 = sbr.rel (%p146) target = $region16
      $region15: #{conv_class_forward.9} parent=11 // pred_region
        _
      $region16: #{conv_class_forward.9} parent=11 // pred_fallthru
        _
    $region12: #{conv_class_forward.9} parent=5 // pred_fallthru
      _
    %p149 = scmp.lt.s32.totalorder %s10, 16
    // Predicated region
    $region17: #{conv_class_forward.9} parent=5 // pred_check
      %p150 = pneg %p149
    $region18: #{conv_class_forward.9} parent=5 // pred_check_branch
      %152 = sbr.rel (%p150) target = $region20
    $region19: #{conv_class_forward.9} parent=5 // pred_region
      // Predicated region
      $region21: #{conv_class_forward.9} parent=19 // pred_check
        %p153 = pneg %p50
      $region22: #{conv_class_forward.9} parent=19 // pred_check_branch
        %155 = sbr.rel (%p153) target = $region24
      $region23: #{conv_class_forward.9} parent=19 // pred_region
        %s156 = ssub.s32 %s18, 1
        %p157 = scmp.gt.s32.totalorder %s156, 0
        %s158 = scalar_select %p157, %s156, 0
        %s159 = smul.u32 6, %s17
        %p160 = scmp.lt.s32.totalorder %s158, 7
        %s161 = scalar_select %p160, %s158, 7
        %p162 = scmp.lt.s32.totalorder %s159, 11
        %s163 = scalar_select %p162, %s159, 11
        %s164 = smul.addr %s163, 5
        %s165 = smul.addr %s161, 60
        %s166 = sadd.s32 %s164, %s165
        %s167 = smul.addr %s166, 4
        %s168 = scalar_lea.vmem %s0, %s167
        %s169 = ssub.s32 %s18, 1
        %p170 = scmp.gt.s32.totalorder %s169, 0
        %s171 = scalar_select %p170, %s169, 0
        %s172 = smul.u32 6, %s17
      $region24: #{conv_class_forward.9} parent=19 // pred_fallthru
        _
    $region20: #{conv_class_forward.9} parent=5 // pred_fallthru
      _
    %p173 = scmp.le.s32.totalorder 1, %s10
    %p174 = scmp.lt.s32.totalorder %s10, 17
    %p175 = pnand %p173, %p174
    %p176 = pneg %p175
    // Predicated region
    $region25: #{conv_class_forward.9} parent=5 // pred_check
      _
    $region26: #{conv_class_forward.9} parent=5 // pred_check_branch
      %178 = sbr.rel (%p175) target = $region28
    $region27: #{conv_class_forward.9} parent=5 // pred_region
      %s179 = ssub.s32 %s10, 1
      %s180 = ssub.s32 %s20, 1
      %p181 = scmp.gt.s32.totalorder %s180, 0
      %s182 = scalar_select %p181, %s180, 0
      %s183 = smul.u32 6, %s19
      %p184 = scmp.lt.s32.totalorder %s182, 7
      %s185 = scalar_select %p184, %s182, 7
      %p186 = scmp.lt.s32.totalorder %s183, 11
      %s187 = scalar_select %p186, %s183, 11
      %s188 = smul.addr %s187, 5
      %s189 = smul.addr %s185, 60
      %s190 = sadd.s32 %s188, %s189
      %s191 = smul.addr %s190, 4
      %s192 = scalar_lea.vmem %s0, %s191
      %p193 = pneg %p56
      %p194 = pneg %p53
      %p195 = pneg %p77
      %p196 = pneg %p74
      %p197 = pneg %p105
      %p198 = pneg %p102
      %s199 = smul.u32 6, %s19
      %p200 = scmp.lt.s32.totalorder %s20, 7
      %s201 = scalar_select %p200, %s20, 7
      %p202 = scmp.lt.s32.totalorder %s199, 11
      %s203 = scalar_select %p202, %s199, 11
      %s204 = smul.addr %s201, 12
      %s205 = sadd.s32 %s203, %s204
      %s206 = smul.addr %s205, 4
      %s207 = scalar_lea.vmem %s2, %s206
      %p208 = pneg %p131
      %p209 = pneg %p128
      %s210 = smul.u32 6, %s19
      %p211 = scmp.lt.s32.totalorder %s210, 11
      %s212 = scalar_select %p211, %s210, 11
      %s213 = smul.addr %s212, 8
      %s214 = scalar_lea.vmem %s3, %s213
      %s215 = ssub.s32 %s20, 1
      %p216 = scmp.gt.s32.totalorder %s215, 0
      %s217 = scalar_select %p216, %s215, 0
      %s218 = smul.u32 6, %s19
      %p219 = scmp.lt.s32.totalorder %s217, 7
      %s220 = scalar_select %p219, %s217, 7
      %p221 = scmp.lt.s32.totalorder %s218, 11
      %s222 = scalar_select %p221, %s218, 11
      %s223 = smul.addr %s222, 5
      %s224 = smul.addr %s220, 60
      %s225 = sadd.s32 %s223, %s224
      %s226 = smul.addr %s225, 4
      %s227 = scalar_lea.vmem %s0, %s226
      %s228 = ssub.s32 %s20, 1
      %p229 = scmp.gt.s32.totalorder %s228, 0
      %s230 = scalar_select %p229, %s228, 0
      %s231 = smul.u32 6, %s19
      %s232 = smul.u32 6, %s19
      %p233 = scmp.lt.s32.totalorder %s20, 7
      %s234 = scalar_select %p233, %s20, 7
      %p235 = scmp.lt.s32.totalorder %s232, 11
      %s236 = scalar_select %p235, %s232, 11
      %s237 = smul.addr %s234, 12
      %s238 = sadd.s32 %s236, %s237
      %s239 = smul.addr %s238, 4
      %s240 = scalar_lea.vmem %s2, %s239
      %s241 = smul.u32 6, %s19
      %s242 = smul.u32 6, %s19
      %p243 = scmp.lt.s32.totalorder %s242, 11
      %s244 = scalar_select %p243, %s242, 11
      %s245 = smul.addr %s244, 8
      %s246 = scalar_lea.vmem %s3, %s245
      %s247 = smul.u32 6, %s19
      %p249 = scmp.eq.s32.totalorder %s20, 0
      // Predicated region
      $region29: #{conv_class_forward.9} parent=27 // pred_check
        %p250 = pneg %p249
      $region30: #{conv_class_forward.9} parent=27 // pred_check_branch
        %252 = sbr.rel (%p250) target = $region32
      $region31: #{conv_class_forward.9} parent=27 // pred_region
        %253 = vst [vmem:[#allocation2] sm:$0xff] 0.0
        %254 = vst [vmem:[#allocation2 + $0x8] sm:$0xff] 0.0
        %255 = vst [vmem:[#allocation2 + $0x10] sm:$0xff] 0.0
        %256 = vst [vmem:[#allocation2 + $0x18] sm:$0xff] 0.0
        %257 = vst [vmem:[#allocation2 + $0x20] sm:$0xff] 0.0
        %258 = vst [vmem:[#allocation2 + $0x28] sm:$0xff] 0.0
        %259 = vst [vmem:[#allocation3] sm:$0xff] 0.0
        %260 = vst [vmem:[#allocation3 + $0x8] sm:$0xff] 0.0
        %261 = vst [vmem:[#allocation3 + $0x10] sm:$0xff] 0.0
        %262 = vst [vmem:[#allocation3 + $0x18] sm:$0xff] 0.0
        %263 = vst [vmem:[#allocation3 + $0x20] sm:$0xff] 0.0
        %264 = vst [vmem:[#allocation3 + $0x28] sm:$0xff] 0.0
        %265 = vst [vmem:[%s246] sm:$0xff] 0.0
        %266 = vst [vmem:[%s246 + $0x8] sm:$0xff] 0.0
        %267 = vst [vmem:[%s246 + $0x10] sm:$0xff] 0.0
        %268 = vst [vmem:[%s246 + $0x18] sm:$0xff] 0.0
        %269 = vst [vmem:[%s246 + $0x20] sm:$0xff] 0.0
        %270 = vst [vmem:[%s246 + $0x28] sm:$0xff] 0.0
        %271 = vst [vmem:[%s240] sm:$0xf] 0
        %272 = vst [vmem:[%s240 + $0x4] sm:$0xf] 0
        %273 = vst [vmem:[%s240 + $0x8] sm:$0xf] 0
        %274 = vst [vmem:[%s240 + $0xc] sm:$0xf] 0
        %275 = vst [vmem:[%s240 + $0x10] sm:$0xf] 0
        %276 = vst [vmem:[%s240 + $0x14] sm:$0xf] 0
      $region32: #{conv_class_forward.9} parent=27 // pred_fallthru
        _
      %p277 = scmp.gt.s32.totalorder %s20, 0
      // Predicated region
      $region33: #{conv_class_forward.9} parent=27 // pred_check
        %p278 = pneg %p277
      $region34: #{conv_class_forward.9} parent=27 // pred_check_branch
        %280 = sbr.rel (%p278) target = $region36
      $region35: #{conv_class_forward.9} parent=27 // pred_region
        %v281 = vld [vmem:[%s227] sm:$0xff]
        %v282 = vld [vmem:[%s227 + $0x8] sm:$0xff]
        %v283 = vld [vmem:[%s227 + $0x10] sm:$0xf]
        %v284 = vld [vmem:[%s227 + $0x14] sm:$0xff]
        %v285 = vld [vmem:[%s227 + $0x1c] sm:$0xff]
        %v286 = vld [vmem:[%s227 + $0x24] sm:$0xf]
        %v287 = vld [vmem:[%s227 + $0x28] sm:$0xff]
        %v288 = vld [vmem:[%s227 + $0x30] sm:$0xff]
        %v289 = vld [vmem:[%s227 + $0x38] sm:$0xf]
        %v290 = vld [vmem:[%s227 + $0x3c] sm:$0xff]
        %v291 = vld [vmem:[%s227 + $0x44] sm:$0xff]
        %v292 = vld [vmem:[%s227 + $0x4c] sm:$0xf]
        %v293 = vld [vmem:[%s227 + $0x50] sm:$0xff]
        %v294 = vld [vmem:[%s227 + $0x58] sm:$0xff]
        %v295 = vld [vmem:[%s227 + $0x60] sm:$0xf]
        %v296 = vld [vmem:[%s227 + $0x64] sm:$0xff]
        %v297 = vld [vmem:[%s227 + $0x6c] sm:$0xff]
        %v298 = vld [vmem:[%s227 + $0x74] sm:$0xf]
        %v299 = vld [vmem:[%s1] sm:$0xf]
        %v300 = vld [vmem:[%s1 + $0x4] sm:$0xf]
        %v301 = vld [vmem:[%s1 + $0x8] sm:$0xf]
        %v302 = vld [vmem:[%s1 + $0xc] sm:$0xf]
        %v303 = vld [vmem:[%s1 + $0x10] sm:$0xf]
        %v304 = vld [vmem:[%s1 + $0x14] sm:$0xf]
        %v305 = vld [vmem:[%s1 + $0x18] sm:$0xf]
        %v306 = vld [vmem:[%s1 + $0x1c] sm:$0xf]
        %v307 = vld [vmem:[%s1 + $0x20] sm:$0xf]
        %v308 = vld [vmem:[%s1 + $0x24] sm:$0xf]
        %v309 = vld [vmem:[%s1 + $0x28] sm:$0xf]
        %v310 = vld [vmem:[%s1 + $0x2c] sm:$0xf]
        %v311 = vld [vmem:[%s1 + $0x30] sm:$0xf]
        %v312 = vld [vmem:[%s1 + $0x34] sm:$0xf]
        %v313 = vld [vmem:[%s1 + $0x38] sm:$0xf]
        %v314 = vld [vmem:[%s1 + $0x3c] sm:$0xf]
        %v315 = vld [vmem:[%s1 + $0x40] sm:$0xf]
        %v316 = vld [vmem:[%s1 + $0x44] sm:$0xf]
        %v317 = vld [vmem:[%s1 + $0x48] sm:$0xf]
        %v318 = vld [vmem:[%s1 + $0x4c] sm:$0xf]
        %v319 = vld [vmem:[%s1 + $0x50] sm:$0xf]
        %v320 = vld [vmem:[%s1 + $0x54] sm:$0xf]
        %v321 = vld [vmem:[%s1 + $0x58] sm:$0xf]
        %v322 = vld [vmem:[%s1 + $0x5c] sm:$0xf]
        %v323 = vld [vmem:[%s1 + $0x60] sm:$0xf]
        %v324 = vld [vmem:[%s1 + $0x64] sm:$0xf]
        %v325 = vld [vmem:[%s1 + $0x68] sm:$0xf]
        %v326 = vld [vmem:[%s1 + $0x6c] sm:$0xf]
        %v327 = vld [vmem:[%s1 + $0x70] sm:$0xf]
        %v328 = vld [vmem:[%s1 + $0x74] sm:$0xf]
        %v329 = vld [vmem:[%s1 + $0x78] sm:$0xf]
        %v330 = vld [vmem:[%s1 + $0x7c] sm:$0xf]
        %v331 = vld [vmem:[%s1 + $0x80] sm:$0xf]
        %v332 = vld [vmem:[%s1 + $0x84] sm:$0xf]
        %v333 = vld [vmem:[%s1 + $0x88] sm:$0xf]
        %v334 = vld [vmem:[%s1 + $0x8c] sm:$0xf]
        %v335 = vld [vmem:[%s1 + $0x90] sm:$0xf]
        %v336 = vld [vmem:[%s1 + $0x94] sm:$0xf]
        %v337 = vld [vmem:[%s1 + $0x98] sm:$0xf]
        %v338 = vld [vmem:[%s1 + $0x9c] sm:$0xf]
        %v339 = vld [vmem:[%s1 + $0xa0] sm:$0xf]
        %v340 = vld [vmem:[%s1 + $0xa4] sm:$0xf]
        %v341 = vld [vmem:[%s1 + $0xa8] sm:$0xf]
        %v342 = vld [vmem:[%s1 + $0xac] sm:$0xf]
        %v343 = vld [vmem:[%s1 + $0xb0] sm:$0xf]
        %v344 = vld [vmem:[%s1 + $0xb4] sm:$0xf]
        %v345 = vld [vmem:[%s1 + $0xb8] sm:$0xf]
        %v346 = vld [vmem:[%s1 + $0xbc] sm:$0xf]
        %v347 = vld [vmem:[%s1 + $0xc0] sm:$0xf]
        %v348 = vld [vmem:[%s1 + $0xc4] sm:$0xf]
        %v349 = vld [vmem:[%s1 + $0xc8] sm:$0xf]
        %v350 = vld [vmem:[%s1 + $0xcc] sm:$0xf]
        %v351 = vld [vmem:[%s1 + $0xd0] sm:$0xf]
        %v352 = vld [vmem:[%s1 + $0xd4] sm:$0xf]
        %v353 = vld [vmem:[%s1 + $0xd8] sm:$0xf]
        %v354 = vld [vmem:[%s1 + $0xdc] sm:$0xf]
        %v355 = vld [vmem:[%s1 + $0xe0] sm:$0xf]
        %v356 = vld [vmem:[%s1 + $0xe4] sm:$0xf]
        %v357 = vld [vmem:[%s1 + $0xe8] sm:$0xf]
        %v358 = vld [vmem:[%s1 + $0xec] sm:$0xf]
        %v359 = vld [vmem:[%s1 + $0xf0] sm:$0xf]
        %v360 = vld [vmem:[%s1 + $0xf4] sm:$0xf]
        %v361 = vld [vmem:[%s1 + $0xf8] sm:$0xf]
        %v362 = vld [vmem:[%s1 + $0xfc] sm:$0xf]
        %v363 = vld [vmem:[%s1 + $0x100] sm:$0xf]
        %v364 = vld [vmem:[%s1 + $0x104] sm:$0xf]
        %v365 = vld [vmem:[%s1 + $0x108] sm:$0xf]
        %v366 = vld [vmem:[%s1 + $0x10c] sm:$0xf]
        %v367 = vld [vmem:[%s1 + $0x110] sm:$0xf]
        %v368 = vld [vmem:[%s1 + $0x114] sm:$0xf]
        %v369 = vld [vmem:[%s1 + $0x118] sm:$0xf]
        %v370 = vld [vmem:[%s1 + $0x11c] sm:$0xf]
        %v371 = vld [vmem:[%s1 + $0x120] sm:$0xf]
        %v372 = vld [vmem:[%s1 + $0x124] sm:$0xf]
        %v373 = vld [vmem:[%s1 + $0x128] sm:$0xf]
        %v374 = vld [vmem:[%s1 + $0x12c] sm:$0xf]
        %v375 = vld [vmem:[%s1 + $0x130] sm:$0xf]
        %v376 = vld [vmem:[%s1 + $0x134] sm:$0xf]
        %v377 = vld [vmem:[%s1 + $0x138] sm:$0xf]
        %v378 = vld [vmem:[%s1 + $0x13c] sm:$0xf]
        %v397 = vunpack.c.l.b16 %v281
        %v398 = vunpack.c.h.b16 %v281
        %v399 = vunpack.c.l.b16 %v282
        %v400 = vunpack.c.h.b16 %v282
        %v401 = vunpack.c.l.b16 %v283
        %v402 = vunpack.c.l.b16 %v284
        %v403 = vunpack.c.h.b16 %v284
        %v404 = vunpack.c.l.b16 %v285
        %v405 = vunpack.c.h.b16 %v285
        %v406 = vunpack.c.l.b16 %v286
        %v407 = vunpack.c.l.b16 %v287
        %v408 = vunpack.c.h.b16 %v287
        %v409 = vunpack.c.l.b16 %v288
        %v410 = vunpack.c.h.b16 %v288
        %v411 = vunpack.c.l.b16 %v289
        %v412 = vunpack.c.l.b16 %v290
        %v413 = vunpack.c.h.b16 %v290
        %v414 = vunpack.c.l.b16 %v291
        %v415 = vunpack.c.h.b16 %v291
        %v416 = vunpack.c.l.b16 %v292
        %v417 = vunpack.c.l.b16 %v293
        %v418 = vunpack.c.h.b16 %v293
        %v419 = vunpack.c.l.b16 %v294
        %v420 = vunpack.c.h.b16 %v294
        %v421 = vunpack.c.l.b16 %v295
        %v422 = vunpack.c.l.b16 %v296
        %v423 = vunpack.c.h.b16 %v296
        %v424 = vunpack.c.l.b16 %v297
        %v425 = vunpack.c.h.b16 %v297
        %v426 = vunpack.c.l.b16 %v298
        %v427 = vpack.c.b16 %v402, %v397
        %v428 = vpack.c.b16 %v403, %v398
        %v429 = vpack.c.b16 %v404, %v399
        %v430 = vpack.c.b16 %v405, %v400
        %v431 = vpack.c.b16 %v406, %v401
        %v432 = vpack.c.b16 %v412, %v407
        %v433 = vpack.c.b16 %v413, %v408
        %v434 = vpack.c.b16 %v414, %v409
        %v435 = vpack.c.b16 %v415, %v410
        %v436 = vpack.c.b16 %v416, %v411
        %v437 = vpack.c.b16 %v422, %v417
        %v438 = vpack.c.b16 %v423, %v418
        %v439 = vpack.c.b16 %v424, %v419
        %v440 = vpack.c.b16 %v425, %v420
        %v441 = vpack.c.b16 %v426, %v421
        %v537 = vunpack.c.l.b16 %v299
        %v538 = vunpack.c.l.b16 %v300
        %v539 = vunpack.c.l.b16 %v301
        %v540 = vunpack.c.l.b16 %v302
        %v541 = vunpack.c.l.b16 %v303
        %v542 = vunpack.c.l.b16 %v304
        %v543 = vunpack.c.l.b16 %v305
        %v544 = vunpack.c.l.b16 %v306
        %v545 = vunpack.c.l.b16 %v307
        %v546 = vunpack.c.l.b16 %v308
        %v547 = vunpack.c.l.b16 %v309
        %v548 = vunpack.c.l.b16 %v310
        %v549 = vunpack.c.l.b16 %v311
        %v550 = vunpack.c.l.b16 %v312
        %v551 = vunpack.c.l.b16 %v313
        %v552 = vunpack.c.l.b16 %v314
        %v553 = vunpack.c.l.b16 %v315
        %v554 = vunpack.c.l.b16 %v316
        %v555 = vunpack.c.l.b16 %v317
        %v556 = vunpack.c.l.b16 %v318
        %v557 = vunpack.c.l.b16 %v319
        %v558 = vunpack.c.l.b16 %v320
        %v559 = vunpack.c.l.b16 %v321
        %v560 = vunpack.c.l.b16 %v322
        %v561 = vunpack.c.l.b16 %v323
        %v562 = vunpack.c.l.b16 %v324
        %v563 = vunpack.c.l.b16 %v325
        %v564 = vunpack.c.l.b16 %v326
        %v565 = vunpack.c.l.b16 %v327
        %v566 = vunpack.c.l.b16 %v328
        %v567 = vunpack.c.l.b16 %v329
        %v568 = vunpack.c.l.b16 %v330
        %v569 = vunpack.c.l.b16 %v331
        %v570 = vunpack.c.l.b16 %v332
        %v571 = vunpack.c.l.b16 %v333
        %v572 = vunpack.c.l.b16 %v334
        %v573 = vunpack.c.l.b16 %v335
        %v574 = vunpack.c.l.b16 %v336
        %v575 = vunpack.c.l.b16 %v337
        %v576 = vunpack.c.l.b16 %v338
        %v577 = vunpack.c.l.b16 %v339
        %v578 = vunpack.c.l.b16 %v340
        %v579 = vunpack.c.l.b16 %v341
        %v580 = vunpack.c.l.b16 %v342
        %v581 = vunpack.c.l.b16 %v343
        %v582 = vunpack.c.l.b16 %v344
        %v583 = vunpack.c.l.b16 %v345
        %v584 = vunpack.c.l.b16 %v346
        %v585 = vunpack.c.l.b16 %v347
        %v586 = vunpack.c.l.b16 %v348
        %v587 = vunpack.c.l.b16 %v349
        %v588 = vunpack.c.l.b16 %v350
        %v589 = vunpack.c.l.b16 %v351
        %v590 = vunpack.c.l.b16 %v352
        %v591 = vunpack.c.l.b16 %v353
        %v592 = vunpack.c.l.b16 %v354
        %v593 = vunpack.c.l.b16 %v355
        %v594 = vunpack.c.l.b16 %v356
        %v595 = vunpack.c.l.b16 %v357
        %v596 = vunpack.c.l.b16 %v358
        %v597 = vunpack.c.l.b16 %v359
        %v598 = vunpack.c.l.b16 %v360
        %v599 = vunpack.c.l.b16 %v361
        %v600 = vunpack.c.l.b16 %v362
        %v601 = vunpack.c.l.b16 %v363
        %v602 = vunpack.c.l.b16 %v364
        %v603 = vunpack.c.l.b16 %v365
        %v604 = vunpack.c.l.b16 %v366
        %v605 = vunpack.c.l.b16 %v367
        %v606 = vunpack.c.l.b16 %v368
        %v607 = vunpack.c.l.b16 %v369
        %v608 = vunpack.c.l.b16 %v370
        %v609 = vunpack.c.l.b16 %v371
        %v610 = vunpack.c.l.b16 %v372
        %v611 = vunpack.c.l.b16 %v373
        %v612 = vunpack.c.l.b16 %v374
        %v613 = vunpack.c.l.b16 %v375
        %v614 = vunpack.c.l.b16 %v376
        %v615 = vunpack.c.l.b16 %v377
        %v616 = vunpack.c.l.b16 %v378
        %v617 = vpack.c.b16 %v538, %v537
        %v618 = vpack.c.b16 %v540, %v539
        %v619 = vpack.c.b16 %v542, %v541
        %v620 = vpack.c.b16 %v544, %v543
        %v621 = vpack.c.b16 %v546, %v545
        %v622 = vpack.c.b16 %v548, %v547
        %v623 = vpack.c.b16 %v550, %v549
        %v624 = vpack.c.b16 %v552, %v551
        %v625 = vpack.c.b16 %v554, %v553
        %v626 = vpack.c.b16 %v556, %v555
        %v627 = vpack.c.b16 %v558, %v557
        %v628 = vpack.c.b16 %v560, %v559
        %v629 = vpack.c.b16 %v562, %v561
        %v630 = vpack.c.b16 %v564, %v563
        %v631 = vpack.c.b16 %v566, %v565
        %v632 = vpack.c.b16 %v568, %v567
        %v633 = vpack.c.b16 %v570, %v569
        %v634 = vpack.c.b16 %v572, %v571
        %v635 = vpack.c.b16 %v574, %v573
        %v636 = vpack.c.b16 %v576, %v575
        %v637 = vpack.c.b16 %v578, %v577
        %v638 = vpack.c.b16 %v580, %v579
        %v639 = vpack.c.b16 %v582, %v581
        %v640 = vpack.c.b16 %v584, %v583
        %v641 = vpack.c.b16 %v586, %v585
        %v642 = vpack.c.b16 %v588, %v587
        %v643 = vpack.c.b16 %v590, %v589
        %v644 = vpack.c.b16 %v592, %v591
        %v645 = vpack.c.b16 %v594, %v593
        %v646 = vpack.c.b16 %v596, %v595
        %v647 = vpack.c.b16 %v598, %v597
        %v648 = vpack.c.b16 %v600, %v599
        %v649 = vpack.c.b16 %v602, %v601
        %v650 = vpack.c.b16 %v604, %v603
        %v651 = vpack.c.b16 %v606, %v605
        %v652 = vpack.c.b16 %v608, %v607
        %v653 = vpack.c.b16 %v610, %v609
        %v654 = vpack.c.b16 %v612, %v611
        %v655 = vpack.c.b16 %v614, %v613
        %v656 = vpack.c.b16 %v616, %v615
        %697 = vmatprep.subr.bf16.mxu0 0
        %698 = vmatpush1.bf16.msra.mxu0 %v617
        %699 = vmatprep.subr.bf16.mxu0 0
        %700 = vmatpush1.bf16.msra.mxu0 %v618
        %701 = vmatprep.subr.bf16.mxu0 0
        %702 = vmatpush1.bf16.msra.mxu0 %v619
        %703 = vmatprep.subr.bf16.mxu0 0
        %704 = vmatpush1.bf16.msra.mxu0 %v620
        %705 = vmatprep.subr.bf16.mxu0 0
        %706 = vmatpush1.bf16.msra.mxu0 %v621
        %707 = vmatprep.subr.bf16.mxu0 0
        %708 = vmatpush1.bf16.msra.mxu0 %v622
        %709 = vmatprep.subr.bf16.mxu0 0
        %710 = vmatpush1.bf16.msra.mxu0 %v623
        %711 = vmatprep.subr.bf16.mxu0 0
        %712 = vmatpush1.bf16.msra.mxu0 %v624
        %713 = vmatprep.subr.bf16.mxu0 0
        %714 = vmatpush1.bf16.msra.mxu0 %v625
        %715 = vmatprep.subr.bf16.mxu0 0
        %716 = vmatpush1.bf16.msra.mxu0 %v626
        %717 = vmatprep.subr.bf16.mxu0 0
        %718 = vmatpush1.bf16.msra.mxu0 %v627
        %719 = vmatprep.subr.bf16.mxu0 0
        %720 = vmatpush1.bf16.msra.mxu0 %v628
        %721 = vmatprep.subr.bf16.mxu0 0
        %722 = vmatpush1.bf16.msra.mxu0 %v629
        %723 = vmatprep.subr.bf16.mxu0 0
        %724 = vmatpush1.bf16.msra.mxu0 %v630
        %725 = vmatprep.subr.bf16.mxu0 0
        %726 = vmatpush1.bf16.msra.mxu0 %v631
        %727 = vmatprep.subr.bf16.mxu0 0
        %728 = vmatpush1.bf16.msra.mxu0 %v632
        %729 = vmatprep.mubr.bf16.mxu0 %v428
        %730 = vmatmul.mubr.bf16.gmra.mrb[0].mxu0 %v427
        %v731 = vpop.f32.mrb[0].mxu0
        %v732 = vadd.f32 0.0, %v731
        %v733 = vpop.f32.mrb[0].mxu0
        %v734 = vpop.f32.mrb[0].mxu0
        %v735 = vadd.f32 0.0, %v734
        %v736 = vpop.f32.mrb[0].mxu0
        %737 = vmatprep.mubr.bf16.mxu0 %v433
        %738 = vmatmul.mubr.bf16.gmra.mrb[0].mxu0 %v432
        %v739 = vpop.f32.mrb[0].mxu0
        %v740 = vadd.f32 0.0, %v739
        %v741 = vpop.f32.mrb[0].mxu0
        %v742 = vpop.f32.mrb[0].mxu0
        %v743 = vadd.f32 0.0, %v742
        %v744 = vpop.f32.mrb[0].mxu0
        %745 = vmatprep.mubr.bf16.mxu0 %v438
        %746 = vmatmul.mubr.bf16.gmra.mrb[0].mxu0 %v437
        %v747 = vpop.f32.mrb[0].mxu0
        %v748 = vadd.f32 0.0, %v747
        %v749 = vpop.f32.mrb[0].mxu0
        %v750 = vpop.f32.mrb[0].mxu0
        %v751 = vadd.f32 0.0, %v750
        %v752 = vpop.f32.mrb[0].mxu0
        %753 = vdwg.mxu0
        %754 = vmatprep.subr.bf16.mxu0 0
        %755 = vmatpush1.bf16.msra.mxu0 %v633
        %756 = vmatprep.subr.bf16.mxu0 0
        %757 = vmatpush1.bf16.msra.mxu0 %v634
        %758 = vmatprep.subr.bf16.mxu0 0
        %759 = vmatpush1.bf16.msra.mxu0 %v635
        %760 = vmatprep.subr.bf16.mxu0 0
        %761 = vmatpush1.bf16.msra.mxu0 %v636
        %762 = vmatprep.subr.bf16.mxu0 0
        %763 = vmatpush1.bf16.msra.mxu0 %v637
        %764 = vmatprep.subr.bf16.mxu0 0
        %765 = vmatpush1.bf16.msra.mxu0 %v638
        %766 = vmatprep.subr.bf16.mxu0 0
        %767 = vmatpush1.bf16.msra.mxu0 %v639
        %768 = vmatprep.subr.bf16.mxu0 0
        %769 = vmatpush1.bf16.msra.mxu0 %v640
        %770 = vmatprep.subr.bf16.mxu0 0
        %771 = vmatpush1.bf16.msra.mxu0 %v641
        %772 = vmatprep.subr.bf16.mxu0 0
        %773 = vmatpush1.bf16.msra.mxu0 %v642
        %774 = vmatprep.subr.bf16.mxu0 0
        %775 = vmatpush1.bf16.msra.mxu0 %v643
        %776 = vmatprep.subr.bf16.mxu0 0
        %777 = vmatpush1.bf16.msra.mxu0 %v644
        %778 = vmatprep.subr.bf16.mxu0 0
        %779 = vmatpush1.bf16.msra.mxu0 %v645
        %780 = vmatprep.subr.bf16.mxu0 0
        %781 = vmatpush1.bf16.msra.mxu0 %v646
        %782 = vmatprep.subr.bf16.mxu0 0
        %783 = vmatpush1.bf16.msra.mxu0 %v647
        %784 = vmatprep.subr.bf16.mxu0 0
        %785 = vmatpush1.bf16.msra.mxu0 %v648
        %786 = vmatprep.mubr.bf16.mxu0 %v430
        %787 = vmatmul.mubr.bf16.gmra.mrb[0].mxu0 %v429
        %v788 = vpop.f32.mrb[0].mxu0
        %v789 = vadd.f32 %v732, %v788
        %v790 = vpop.f32.mrb[0].mxu0
        %v791 = vpop.f32.mrb[0].mxu0
        %v792 = vadd.f32 %v735, %v791
        %v793 = vpop.f32.mrb[0].mxu0
        %794 = vmatprep.mubr.bf16.mxu0 %v435
        %795 = vmatmul.mubr.bf16.gmra.mrb[0].mxu0 %v434
        %v796 = vpop.f32.mrb[0].mxu0
        %v797 = vadd.f32 %v740, %v796
        %v798 = vpop.f32.mrb[0].mxu0
        %v799 = vpop.f32.mrb[0].mxu0
        %v800 = vadd.f32 %v743, %v799
        %v801 = vpop.f32.mrb[0].mxu0
        %802 = vmatprep.mubr.bf16.mxu0 %v440
        %803 = vmatmul.mubr.bf16.gmra.mrb[0].mxu0 %v439
        %v804 = vpop.f32.mrb[0].mxu0
        %v805 = vadd.f32 %v748, %v804
        %v806 = vpop.f32.mrb[0].mxu0
        %v807 = vpop.f32.mrb[0].mxu0
        %v808 = vadd.f32 %v751, %v807
        %v809 = vpop.f32.mrb[0].mxu0
        %810 = vdwg.mxu0
        %811 = vmatprep.subr.bf16.mxu0 0
        %812 = vmatpush1.bf16.msra.mxu0 %v649
        %813 = vmatprep.subr.bf16.mxu0 0
        %814 = vmatpush1.bf16.msra.mxu0 %v650
        %815 = vmatprep.subr.bf16.mxu0 0
        %816 = vmatpush1.bf16.msra.mxu0 %v651
        %817 = vmatprep.subr.bf16.mxu0 0
        %818 = vmatpush1.bf16.msra.mxu0 %v652
        %819 = vmatprep.subr.bf16.mxu0 0
        %820 = vmatpush1.bf16.msra.mxu0 %v653
        %821 = vmatprep.subr.bf16.mxu0 0
        %822 = vmatpush1.bf16.msra.mxu0 %v654
        %823 = vmatprep.subr.bf16.mxu0 0
        %824 = vmatpush1.bf16.msra.mxu0 %v655
        %825 = vmatprep.subr.bf16.mxu0 0
        %826 = vmatpush1.bf16.msra.mxu0 %v656
        %827 = vmatprep.subr.bf16.mxu0 0
        %828 = vmatpush1.bf16.msra.mxu0 0
        %829 = vmatprep.subr.bf16.mxu0 0
        %830 = vmatpush1.bf16.msra.mxu0 0
        %831 = vmatprep.subr.bf16.mxu0 0
        %832 = vmatpush1.bf16.msra.mxu0 0
        %833 = vmatprep.subr.bf16.mxu0 0
        %834 = vmatpush1.bf16.msra.mxu0 0
        %835 = vmatprep.subr.bf16.mxu0 0
        %836 = vmatpush1.bf16.msra.mxu0 0
        %837 = vmatprep.subr.bf16.mxu0 0
        %838 = vmatpush1.bf16.msra.mxu0 0
        %839 = vmatprep.subr.bf16.mxu0 0
        %840 = vmatpush1.bf16.msra.mxu0 0
        %841 = vmatprep.subr.bf16.mxu0 0
        %842 = vmatpush1.bf16.msra.mxu0 0
        %843 = vmatprep.mubr.bf16.mxu0 0
        %844 = vmatmul.mubr.bf16.gmra.mrb[0].mxu0 %v431
        %v845 = vpop.f32.mrb[0].mxu0
        %v846 = vadd.f32 %v789, %v845
        %v847 = vpop.f32.mrb[0].mxu0
        %v848 = vpop.f32.mrb[0].mxu0
        %v849 = vadd.f32 %v792, %v848
        %v850 = vpop.f32.mrb[0].mxu0
        %851 = vmatprep.mubr.bf16.mxu0 0
        %852 = vmatmul.mubr.bf16.gmra.mrb[0].mxu0 %v436
        %v853 = vpop.f32.mrb[0].mxu0
        %v854 = vadd.f32 %v797, %v853
        %v855 = vpop.f32.mrb[0].mxu0
        %v856 = vpop.f32.mrb[0].mxu0
        %v857 = vadd.f32 %v800, %v856
        %v858 = vpop.f32.mrb[0].mxu0
        %859 = vmatprep.mubr.bf16.mxu0 0
        %860 = vmatmul.mubr.bf16.gmra.mrb[0].mxu0 %v441
        %v861 = vpop.f32.mrb[0].mxu0
        %v862 = vadd.f32 %v805, %v861
        %v863 = vpop.f32.mrb[0].mxu0
        %v864 = vpop.f32.mrb[0].mxu0
        %v865 = vadd.f32 %v808, %v864
        %v866 = vpop.f32.mrb[0].mxu0
        %867 = vdwg.mxu0
        %v868 = vld [vmem:[#allocation2] sm:$0xff]
        %v869 = vld [vmem:[#allocation2 + $0x8] sm:$0xff]
        %v870 = vld [vmem:[#allocation2 + $0x10] sm:$0xff]
        %v871 = vld [vmem:[#allocation2 + $0x18] sm:$0xff]
        %v872 = vld [vmem:[#allocation2 + $0x20] sm:$0xff]
        %v873 = vld [vmem:[#allocation2 + $0x28] sm:$0xff]
        %v874 = vmul.f32 %v868, 0.75
        %v875 = vmul.f32 %v869, 0.75
        %v876 = vmul.f32 %v870, 0.75
        %v877 = vmul.f32 %v871, 0.75
        %v878 = vmul.f32 %v872, 0.75
        %v879 = vmul.f32 %v873, 0.75
        %v880 = vadd.f32 %v874, %v846
        %v881 = vadd.f32 %v875, %v849
        %v882 = vadd.f32 %v876, %v854
        %v883 = vadd.f32 %v877, %v857
        %v884 = vadd.f32 %v878, %v862
        %v885 = vadd.f32 %v879, %v865
        %v886 = vld [vmem:[#allocation3] sm:$0xff]
        %v887 = vld [vmem:[#allocation3 + $0x8] sm:$0xff]
        %v888 = vld [vmem:[#allocation3 + $0x10] sm:$0xff]
        %v889 = vld [vmem:[#allocation3 + $0x18] sm:$0xff]
        %v890 = vld [vmem:[#allocation3 + $0x20] sm:$0xff]
        %v891 = vld [vmem:[#allocation3 + $0x28] sm:$0xff]
        %v892 = vmul.f32 %v886, 0.97
        %v893 = vmul.f32 %v887, 0.97
        %v894 = vmul.f32 %v888, 0.97
        %v895 = vmul.f32 %v889, 0.97
        %v896 = vmul.f32 %v890, 0.97
        %v897 = vmul.f32 %v891, 0.97
        %v898 = vadd.f32 %v892, %v880
        %v899 = vadd.f32 %v893, %v881
        %v900 = vadd.f32 %v894, %v882
        %v901 = vadd.f32 %v895, %v883
        %v902 = vadd.f32 %v896, %v884
        %v903 = vadd.f32 %v897, %v885
        %vm904 = vcmp.ge.f32.partialorder %v898, 1.0
        %vm905 = vcmp.ge.f32.partialorder %v899, 1.0
        %vm906 = vcmp.ge.f32.partialorder %v900, 1.0
        %vm907 = vcmp.ge.f32.partialorder %v901, 1.0
        %vm908 = vcmp.ge.f32.partialorder %v902, 1.0
        %vm909 = vcmp.ge.f32.partialorder %v903, 1.0
        %v910 = vsel %vm904, 1.0, 0.0
        %v911 = vsel %vm905, 1.0, 0.0
        %v912 = vsel %vm906, 1.0, 0.0
        %v913 = vsel %vm907, 1.0, 0.0
        %v914 = vsel %vm908, 1.0, 0.0
        %v915 = vsel %vm909, 1.0, 0.0
        %916 = vst [vmem:[#allocation2] sm:$0xff] %v880
        %917 = vst [vmem:[#allocation2 + $0x8] sm:$0xff] %v881
        %918 = vst [vmem:[#allocation2 + $0x10] sm:$0xff] %v882
        %919 = vst [vmem:[#allocation2 + $0x18] sm:$0xff] %v883
        %920 = vst [vmem:[#allocation2 + $0x20] sm:$0xff] %v884
        %921 = vst [vmem:[#allocation2 + $0x28] sm:$0xff] %v885
        %v922 = vsel %vm904, 0.0, %v898
        %v923 = vsel %vm905, 0.0, %v899
        %v924 = vsel %vm906, 0.0, %v900
        %v925 = vsel %vm907, 0.0, %v901
        %v926 = vsel %vm908, 0.0, %v902
        %v927 = vsel %vm909, 0.0, %v903
        %928 = vst [vmem:[#allocation3] sm:$0xff] %v922
        %929 = vst [vmem:[#allocation3 + $0x8] sm:$0xff] %v923
        %930 = vst [vmem:[#allocation3 + $0x10] sm:$0xff] %v924
        %931 = vst [vmem:[#allocation3 + $0x18] sm:$0xff] %v925
        %932 = vst [vmem:[#allocation3 + $0x20] sm:$0xff] %v926
        %933 = vst [vmem:[#allocation3 + $0x28] sm:$0xff] %v927
        %v934 = vld [vmem:[%s246] sm:$0xff]
        %v935 = vld [vmem:[%s246 + $0x8] sm:$0xff]
        %v936 = vld [vmem:[%s246 + $0x10] sm:$0xff]
        %v937 = vld [vmem:[%s246 + $0x18] sm:$0xff]
        %v938 = vld [vmem:[%s246 + $0x20] sm:$0xff]
        %v939 = vld [vmem:[%s246 + $0x28] sm:$0xff]
        %v940 = vadd.f32 %v934, %v910
        %v941 = vadd.f32 %v935, %v911
        %v942 = vadd.f32 %v936, %v912
        %v943 = vadd.f32 %v937, %v913
        %v944 = vadd.f32 %v938, %v914
        %v945 = vadd.f32 %v939, %v915
        %946 = vst [vmem:[%s246] sm:$0xff] %v940
        %947 = vst [vmem:[%s246 + $0x8] sm:$0xff] %v941
        %948 = vst [vmem:[%s246 + $0x10] sm:$0xff] %v942
        %949 = vst [vmem:[%s246 + $0x18] sm:$0xff] %v943
        %950 = vst [vmem:[%s246 + $0x20] sm:$0xff] %v944
        %951 = vst [vmem:[%s246 + $0x28] sm:$0xff] %v945
        %v952 = vpack.c.bf16 %v911, %v910
        %v953 = vpack.c.bf16 %v913, %v912
        %v954 = vpack.c.bf16 %v915, %v914
        %v958 = vunpack.c.l.b16 %v952
        %v959 = vunpack.c.h.b16 %v952
        %v960 = vunpack.c.l.b16 %v953
        %v961 = vunpack.c.h.b16 %v953
        %v962 = vunpack.c.l.b16 %v954
        %v963 = vunpack.c.h.b16 %v954
        %v964 = vpack.c.b16 %v958, %v958
        %v965 = vpack.c.b16 %v959, %v959
        %v966 = vpack.c.b16 %v960, %v960
        %v967 = vpack.c.b16 %v961, %v961
        %v968 = vpack.c.b16 %v962, %v962
        %v969 = vpack.c.b16 %v963, %v963
        %976 = vst [vmem:[%s240] sm:$0xf] %v964
        %977 = vst [vmem:[%s240 + $0x4] sm:$0xf] %v965
        %978 = vst [vmem:[%s240 + $0x8] sm:$0xf] %v966
        %979 = vst [vmem:[%s240 + $0xc] sm:$0xf] %v967
        %980 = vst [vmem:[%s240 + $0x10] sm:$0xf] %v968
        %981 = vst [vmem:[%s240 + $0x14] sm:$0xf] %v969
      $region36: #{conv_class_forward.9} parent=27 // pred_fallthru
        _
      %s982 = smul.u32 6, %s19
      %p983 = scmp.lt.s32.totalorder %s20, 7
      %s984 = scalar_select %p983, %s20, 7
      %p985 = scmp.lt.s32.totalorder %s982, 11
      %s986 = scalar_select %p985, %s982, 11
      %s987 = smul.addr %s984, 12
      %s988 = sadd.s32 %s986, %s987
      %s989 = smul.addr %s988, 4
      %s990 = scalar_lea.vmem %s2, %s989
      %s991 = smul.u32 6, %s19
      %p992 = scmp.lt.s32.totalorder %s991, 11
      %s993 = scalar_select %p992, %s991, 11
      %s994 = smul.addr %s993, 8
      %s995 = scalar_lea.vmem %s3, %s994
      // Predicated region
      $region37: #{conv_class_forward.9} parent=27 // pred_check
        %p996 = pneg %p102
      $region38: #{conv_class_forward.9} parent=27 // pred_check_branch
        %998 = sbr.rel (%p996) target = $region40
      $region39: #{conv_class_forward.9} parent=27 // pred_region
        %s999 = smul.u32 6, %s19
      $region40: #{conv_class_forward.9} parent=27 // pred_fallthru
        _
      // Predicated region
      $region41: #{conv_class_forward.9} parent=27 // pred_check
        %p1000 = pneg %p128
      $region42: #{conv_class_forward.9} parent=27 // pred_check_branch
        %1002 = sbr.rel (%p1000) target = $region44
      $region43: #{conv_class_forward.9} parent=27 // pred_region
        %s1003 = smul.u32 6, %s19
      $region44: #{conv_class_forward.9} parent=27 // pred_fallthru
        _
    $region28: #{conv_class_forward.9} parent=5 // pred_fallthru
      _
    %p1004 = scmp.le.s32.totalorder 2, %s10
    // Predicated region
    $region45: #{conv_class_forward.9} parent=5 // pred_check
      %p1005 = pneg %p1004
    $region46: #{conv_class_forward.9} parent=5 // pred_check_branch
      %1007 = sbr.rel (%p1005) target = $region48
    $region47: #{conv_class_forward.9} parent=5 // pred_region
      %s1008 = ssub.s32 %s10, 2
      // Predicated region
      $region49: #{conv_class_forward.9} parent=47 // pred_check
        %p1009 = pneg %p108
      $region50: #{conv_class_forward.9} parent=47 // pred_check_branch
        %1011 = sbr.rel (%p1009) target = $region52
      $region51: #{conv_class_forward.9} parent=47 // pred_region
        %s1012 = smul.u32 6, %s21
        %p1013 = scmp.lt.s32.totalorder %s22, 7
        %s1014 = scalar_select %p1013, %s22, 7
        %p1015 = scmp.lt.s32.totalorder %s1012, 11
        %s1016 = scalar_select %p1015, %s1012, 11
        %s1017 = smul.addr %s1014, 12
        %s1018 = sadd.s32 %s1016, %s1017
        %s1019 = smul.addr %s1018, 4
        %s1020 = scalar_lea.vmem %s2, %s1019
      $region52: #{conv_class_forward.9} parent=47 // pred_fallthru
        _
      // Predicated region
      $region53: #{conv_class_forward.9} parent=47 // pred_check
        %p1021 = pneg %p134
      $region54: #{conv_class_forward.9} parent=47 // pred_check_branch
        %1023 = sbr.rel (%p1021) target = $region56
      $region55: #{conv_class_forward.9} parent=47 // pred_region
        %s1024 = smul.u32 6, %s21
        %p1025 = scmp.lt.s32.totalorder %s1024, 11
        %s1026 = scalar_select %p1025, %s1024, 11
        %s1027 = smul.addr %s1026, 8
        %s1028 = scalar_lea.vmem %s3, %s1027
      $region56: #{conv_class_forward.9} parent=47 // pred_fallthru
        _
    $region48: #{conv_class_forward.9} parent=5 // pred_fallthru
      _
  $region6: #{conv_class_forward.9} parent=0 // loop_footer
    %s14 = sadd.s32 1, %s10
  $region7: #{conv_class_forward.9} parent=0 // loop_footer_branch
    %9 = sbr.rel target = $region3
  $region8: #{conv_class_forward.9} parent=0 // loop_exit
    _

// kernel: conv_class_forward.10
$region0: #{conv_class_forward.10}
  #allocation0 [shape = 'u32[]', space=smem, size = 0x4, offset = 0x4, fixed_abs, tag = 'smem constant byte address 0x4 - core index']
  #allocation1 [shape = 'u32[144,128]{1,0:T(1,128)}', space=vmem, size = 0x12000, scoped, tag = 'internal scratch']
  #allocation2 [shape = 'f32[16,256]{1,0:T(8,128)}', space=vmem, size = 0x4000, scoped, tag = 'scratch operand']
  #allocation3 [shape = 'f32[16,256]{1,0:T(8,128)}', space=vmem, size = 0x4000, scoped, tag = 'scratch operand']
  %s0 = inlined_call_operand.vmem [shape: bf16[8,32,1152], index: 0, kind: input, shape index: {}]
  %s1 = inlined_call_operand.vmem [shape: bf16[1152,256], index: 1, kind: input, shape index: {}]
  %s2 = inlined_call_operand.vmem [shape: bf16[8,32,256], index: 2, kind: output, shape index: {0}]
  %s3 = inlined_call_operand.vmem [shape: f32[32,256], index: 3, kind: output, shape index: {1}]
  %4 = xla_tuple %s2, %s3
  %s5 = sld [smem:[#allocation0]]
  $region57: #{conv_class_forward.10} parent=0
    _
  %s7 = ssub.s32 1, %s5
  %s8 = scalar_select 0, %s7, %s5
  loop: start=0, step=1, limit=18
  $region2: #{conv_class_forward.10} parent=0 // loop_pre_header
    _
  $region3: #{conv_class_forward.10} parent=0 // loop_header
    %s10 = sphi 0, %s14
    %p11 = scmp.ge.s32.totalorder %s10, 18
    %s17 = sphi 0, %s29
    %s18 = sphi 0, %s25
    %s19 = sphi 0, %s17
    %s20 = sphi 0, %s18
    %s21 = sphi 0, %s19
    %s22 = sphi 0, %s20
    %s40 = sphi 0, %s42
    %s43 = sphi 0, %s40
    %s44 = sphi 0, %s43
    %s60 = sphi 0, %s44
    %s64 = sphi 0, %s64
    %s66 = sphi 0, %s64
    %s67 = sphi 0, %s66
    %s81 = sphi 0, %s67
    %s89 = sphi 0, %s91
    %s92 = sphi 0, %s89
    %s93 = sphi 0, %s92
    %s109 = sphi 0, %s93
    %s115 = sphi 0, %s117
    %s118 = sphi 0, %s115
    %s119 = sphi 0, %s118
    %s135 = sphi 0, %s119
  $region4: #{conv_class_forward.10} parent=0 // loop_header_branch
    %13 = sbr.rel (%p11) target = $region8
  $region5: #{conv_class_forward.10} parent=0 // loop_body
    %s15 = ssub.s32 %s10, 1
    %s16 = ssub.s32 %s10, 2
    %s23 = sadd.s32 1, %s18
    %p24 = scmp.ge.s32.totalorder %s23, 8
    %s25 = scalar_select %p24, 0, %s23
    %s26 = sadd.s32 1, %s17
    %s27 = scalar_select %p24, %s26, %s17
    %p28 = scmp.ge.s32.totalorder %s27, 2
    %s29 = scalar_select %p28, 0, %s27
    %s30 = ssub.s32 %s18, 1
    %p31 = scmp.gt.s32.totalorder %s30, 0
    %s32 = scalar_select %p31, %s30, 0
    %s33 = ssub.s32 %s25, 1
    %p34 = scmp.gt.s32.totalorder %s33, 0
    %s35 = scalar_select %p34, %s33, 0
    %s36 = ssub.s32 %s32, %s35
    %s37 = ssub.s32 %s17, %s29
    %s38 = sor.u32 %s36, %s37
    %p39 = scmp.eq.s32.totalorder %s38, 0
    %s41 = sadd.s32 %s40, 1
    %s42 = scalar_select %p39, %s40, %s41
    %p45 = pneg %p39
    %p46 = scmp.eq.s32.totalorder %s10, 15
    %p47 = por %p45, %p46
    %p48 = scmp.ne.s32.totalorder %s40, %s43
    %p49 = scmp.eq.s32.totalorder %s10, 0
    %p50 = por %p48, %p49
    %p51 = scmp.ne.s32.totalorder %s40, %s43
    %p52 = scmp.eq.s32.totalorder %s15, 15
    %p53 = por %p51, %p52
    %p54 = scmp.ne.s32.totalorder %s43, %s44
    %p55 = scmp.eq.s32.totalorder %s15, 0
    %p56 = por %p54, %p55
    %p57 = scmp.ne.s32.totalorder %s43, %s44
    %p58 = scmp.eq.s32.totalorder %s16, 15
    %p59 = por %p57, %p58
    %p61 = scmp.ne.s32.totalorder %s44, %s60
    %p62 = scmp.eq.s32.totalorder %s16, 0
    %p63 = por %p61, %p62
    %s65 = sadd.s32 %s64, 1
    %p68 = scmp.eq.s32.totalorder %s10, 15
    %p69 = scmp.ne.s32.totalorder %s64, %s66
    %p70 = scmp.eq.s32.totalorder %s10, 0
    %p71 = por %p69, %p70
    %p72 = scmp.ne.s32.totalorder %s64, %s66
    %p73 = scmp.eq.s32.totalorder %s15, 15
    %p74 = por %p72, %p73
    %p75 = scmp.ne.s32.totalorder %s66, %s67
    %p76 = scmp.eq.s32.totalorder %s15, 0
    %p77 = por %p75, %p76
    %p78 = scmp.ne.s32.totalorder %s66, %s67
    %p79 = scmp.eq.s32.totalorder %s16, 15
    %p80 = por %p78, %p79
    %p82 = scmp.ne.s32.totalorder %s67, %s81
    %p83 = scmp.eq.s32.totalorder %s16, 0
    %p84 = por %p82, %p83
    %s85 = ssub.s32 %s18, %s25
    %s86 = ssub.s32 %s17, %s29
    %s87 = sor.u32 %s85, %s86
    %p88 = scmp.eq.s32.totalorder %s87, 0
    %s90 = sadd.s32 %s89, 1
    %s91 = scalar_select %p88, %s89, %s90
    %p94 = pneg %p88
    %p95 = scmp.eq.s32.totalorder %s10, 15
    %p96 = por %p94, %p95
    %p97 = scmp.ne.s32.totalorder %s89, %s92
    %p98 = scmp.eq.s32.totalorder %s10, 0
    %p99 = por %p97, %p98
    %p100 = scmp.ne.s32.totalorder %s89, %s92
    %p101 = scmp.eq.s32.totalorder %s15, 15
    %p102 = por %p100, %p101
    %p103 = scmp.ne.s32.totalorder %s92, %s93
    %p104 = scmp.eq.s32.totalorder %s15, 0
    %p105 = por %p103, %p104
    %p106 = scmp.ne.s32.totalorder %s92, %s93
    %p107 = scmp.eq.s32.totalorder %s16, 15
    %p108 = por %p106, %p107
    %p110 = scmp.ne.s32.totalorder %s93, %s109
    %p111 = scmp.eq.s32.totalorder %s16, 0
    %p112 = por %p110, %p111
    %s113 = ssub.s32 %s17, %s29
    %p114 = scmp.eq.s32.totalorder %s113, 0
    %s116 = sadd.s32 %s115, 1
    %s117 = scalar_select %p114, %s115, %s116
    %p120 = pneg %p114
    %p121 = scmp.eq.s32.totalorder %s10, 15
    %p122 = por %p120, %p121
    %p123 = scmp.ne.s32.totalorder %s115, %s118
    %p124 = scmp.eq.s32.totalorder %s10, 0
    %p125 = por %p123, %p124
    %p126 = scmp.ne.s32.totalorder %s115, %s118
    %p127 = scmp.eq.s32.totalorder %s15, 15
    %p128 = por %p126, %p127
    %p129 = scmp.ne.s32.totalorder %s118, %s119
    %p130 = scmp.eq.s32.totalorder %s15, 0
    %p131 = por %p129, %p130
    %p132 = scmp.ne.s32.totalorder %s118, %s119
    %p133 = scmp.eq.s32.totalorder %s16, 15
    %p134 = por %p132, %p133
    %p136 = scmp.ne.s32.totalorder %s119, %s135
    %p137 = scmp.eq.s32.totalorder %s16, 0
    %p138 = por %p136, %p137
    %p139 = scmp.le.s32.totalorder 1, %s10
    %p140 = scmp.lt.s32.totalorder %s10, 17
    %p141 = pnand %p139, %p140
    %p142 = pneg %p141
    // Predicated region
    $region9: #{conv_class_forward.10} parent=5 // pred_check
      _
    $region10: #{conv_class_forward.10} parent=5 // pred_check_branch
      %144 = sbr.rel (%p141) target = $region12
    $region11: #{conv_class_forward.10} parent=5 // pred_region
      %s145 = ssub.s32 %s10, 1
      // Predicated region
      $region13: #{conv_class_forward.10} parent=11 // pred_check
        %p146 = pneg %p77
      $region14: #{conv_class_forward.10} parent=11 // pred_check_branch
        %148 = sbr.rel (%p146) target = $region16
      $region15: #{conv_class_forward.10} parent=11 // pred_region
        _
      $region16: #{conv_class_forward.10} parent=11 // pred_fallthru
        _
    $region12: #{conv_class_forward.10} parent=5 // pred_fallthru
      _
    %p149 = scmp.lt.s32.totalorder %s10, 16
    // Predicated region
    $region17: #{conv_class_forward.10} parent=5 // pred_check
      %p150 = pneg %p149
    $region18: #{conv_class_forward.10} parent=5 // pred_check_branch
      %152 = sbr.rel (%p150) target = $region20
    $region19: #{conv_class_forward.10} parent=5 // pred_region
      // Predicated region
      $region21: #{conv_class_forward.10} parent=19 // pred_check
        %p153 = pneg %p50
      $region22: #{conv_class_forward.10} parent=19 // pred_check_branch
        %155 = sbr.rel (%p153) target = $region24
      $region23: #{conv_class_forward.10} parent=19 // pred_region
        %s156 = ssub.s32 %s18, 1
        %p157 = scmp.gt.s32.totalorder %s156, 0
        %s158 = scalar_select %p157, %s156, 0
        %s159 = smul.u32 2, %s17
        %p160 = scmp.lt.s32.totalorder %s158, 7
        %s161 = scalar_select %p160, %s158, 7
        %p162 = scmp.lt.s32.totalorder %s159, 3
        %s163 = scalar_select %p162, %s159, 3
        %s164 = smul.addr %s163, 9
        %s165 = smul.addr %s161, 36
        %s166 = sadd.s32 %s164, %s165
        %s167 = smul.addr %s166, 4
        %s168 = scalar_lea.vmem %s0, %s167
        %s169 = ssub.s32 %s18, 1
        %p170 = scmp.gt.s32.totalorder %s169, 0
        %s171 = scalar_select %p170, %s169, 0
        %s172 = smul.u32 2, %s17
      $region24: #{conv_class_forward.10} parent=19 // pred_fallthru
        _
    $region20: #{conv_class_forward.10} parent=5 // pred_fallthru
      _
    %p173 = scmp.le.s32.totalorder 1, %s10
    %p174 = scmp.lt.s32.totalorder %s10, 17
    %p175 = pnand %p173, %p174
    %p176 = pneg %p175
    // Predicated region
    $region25: #{conv_class_forward.10} parent=5 // pred_check
      _
    $region26: #{conv_class_forward.10} parent=5 // pred_check_branch
      %178 = sbr.rel (%p175) target = $region28
    $region27: #{conv_class_forward.10} parent=5 // pred_region
      %s179 = ssub.s32 %s10, 1
      %s180 = ssub.s32 %s20, 1
      %p181 = scmp.gt.s32.totalorder %s180, 0
      %s182 = scalar_select %p181, %s180, 0
      %s183 = smul.u32 2, %s19
      %p184 = scmp.lt.s32.totalorder %s182, 7
      %s185 = scalar_select %p184, %s182, 7
      %p186 = scmp.lt.s32.totalorder %s183, 3
      %s187 = scalar_select %p186, %s183, 3
      %s188 = smul.addr %s187, 9
      %s189 = smul.addr %s185, 36
      %s190 = sadd.s32 %s188, %s189
      %s191 = smul.addr %s190, 4
      %s192 = scalar_lea.vmem %s0, %s191
      %p193 = pneg %p56
      %p194 = pneg %p53
      %p195 = pneg %p77
      %p196 = pneg %p74
      %p197 = pneg %p105
      %p198 = pneg %p102
      %s199 = smul.u32 2, %s19
      %p200 = scmp.lt.s32.totalorder %s20, 7
      %s201 = scalar_select %p200, %s20, 7
      %p202 = scmp.lt.s32.totalorder %s199, 3
      %s203 = scalar_select %p202, %s199, 3
      %s204 = smul.addr %s203, 2
      %s205 = smul.addr %s201, 8
      %s206 = sadd.s32 %s204, %s205
      %s207 = smul.addr %s206, 4
      %s208 = scalar_lea.vmem %s2, %s207
      %p209 = pneg %p131
      %p210 = pneg %p128
      %s211 = smul.u32 2, %s19
      %p212 = scmp.lt.s32.totalorder %s211, 3
      %s213 = scalar_select %p212, %s211, 3
      %s214 = smul.addr %s213, 2
      %s215 = smul.addr %s214, 8
      %s216 = scalar_lea.vmem %s3, %s215
      %s217 = ssub.s32 %s20, 1
      %p218 = scmp.gt.s32.totalorder %s217, 0
      %s219 = scalar_select %p218, %s217, 0
      %s220 = smul.u32 2, %s19
      %p221 = scmp.lt.s32.totalorder %s219, 7
      %s222 = scalar_select %p221, %s219, 7
      %p223 = scmp.lt.s32.totalorder %s220, 3
      %s224 = scalar_select %p223, %s220, 3
      %s225 = smul.addr %s224, 9
      %s226 = smul.addr %s222, 36
      %s227 = sadd.s32 %s225, %s226
      %s228 = smul.addr %s227, 4
      %s229 = scalar_lea.vmem %s0, %s228
      %s230 = ssub.s32 %s20, 1
      %p231 = scmp.gt.s32.totalorder %s230, 0
      %s232 = scalar_select %p231, %s230, 0
      %s233 = smul.u32 2, %s19
      %s234 = smul.u32 2, %s19
      %p235 = scmp.lt.s32.totalorder %s20, 7
      %s236 = scalar_select %p235, %s20, 7
      %p237 = scmp.lt.s32.totalorder %s234, 3
      %s238 = scalar_select %p237, %s234, 3
      %s239 = smul.addr %s238, 2
      %s240 = smul.addr %s236, 8
      %s241 = sadd.s32 %s239, %s240
      %s242 = smul.addr %s241, 4
      %s243 = scalar_lea.vmem %s2, %s242
      %s244 = smul.u32 2, %s19
      %s245 = smul.u32 2, %s19
      %p246 = scmp.lt.s32.totalorder %s245, 3
      %s247 = scalar_select %p246, %s245, 3
      %s248 = smul.addr %s247, 2
      %s249 = smul.addr %s248, 8
      %s250 = scalar_lea.vmem %s3, %s249
      %s251 = smul.u32 2, %s19
      %p253 = scmp.eq.s32.totalorder %s20, 0
      // Predicated region
      $region29: #{conv_class_forward.10} parent=27 // pred_check
        %p254 = pneg %p253
      $region30: #{conv_class_forward.10} parent=27 // pred_check_branch
        %256 = sbr.rel (%p254) target = $region32
      $region31: #{conv_class_forward.10} parent=27 // pred_region
        %257 = vst [vmem:[#allocation2] sm:$0xff] 0.0
        %258 = vst [vmem:[#allocation2 + $0x8] sm:$0xff] 0.0
        %259 = vst [vmem:[#allocation2 + $0x10] sm:$0xff] 0.0
        %260 = vst [vmem:[#allocation2 + $0x18] sm:$0xff] 0.0
        %261 = vst [vmem:[#allocation3] sm:$0xff] 0.0
        %262 = vst [vmem:[#allocation3 + $0x8] sm:$0xff] 0.0
        %263 = vst [vmem:[#allocation3 + $0x10] sm:$0xff] 0.0
        %264 = vst [vmem:[#allocation3 + $0x18] sm:$0xff] 0.0
        %265 = vst [vmem:[%s250] sm:$0xff] 0.0
        %266 = vst [vmem:[%s250 + $0x8] sm:$0xff] 0.0
        %267 = vst [vmem:[%s250 + $0x10] sm:$0xff] 0.0
        %268 = vst [vmem:[%s250 + $0x18] sm:$0xff] 0.0
        %269 = vst [vmem:[%s243] sm:$0xff] 0
        %270 = vst [vmem:[%s243 + $0x8] sm:$0xff] 0
      $region32: #{conv_class_forward.10} parent=27 // pred_fallthru
        _
      %p271 = scmp.gt.s32.totalorder %s20, 0
      // Predicated region
      $region33: #{conv_class_forward.10} parent=27 // pred_check
        %p272 = pneg %p271
      $region34: #{conv_class_forward.10} parent=27 // pred_check_branch
        %274 = sbr.rel (%p272) target = $region36
      $region35: #{conv_class_forward.10} parent=27 // pred_region
        %v275 = vld [vmem:[%s229] sm:$0xff]
        %v276 = vld [vmem:[%s229 + $0x8] sm:$0xff]
        %v277 = vld [vmem:[%s229 + $0x10] sm:$0xff]
        %v278 = vld [vmem:[%s229 + $0x18] sm:$0xff]
        %v279 = vld [vmem:[%s229 + $0x20] sm:$0xf]
        %v280 = vld [vmem:[%s229 + $0x24] sm:$0xff]
        %v281 = vld [vmem:[%s229 + $0x2c] sm:$0xff]
        %v282 = vld [vmem:[%s229 + $0x34] sm:$0xff]
        %v283 = vld [vmem:[%s229 + $0x3c] sm:$0xff]
        %v284 = vld [vmem:[%s229 + $0x44] sm:$0xf]
        %v285 = vld [vmem:[%s1] sm:$0xff]
        %v286 = vld [vmem:[%s1 + $0x8] sm:$0xff]
        %v287 = vld [vmem:[%s1 + $0x10] sm:$0xff]
        %v288 = vld [vmem:[%s1 + $0x18] sm:$0xff]
        %v289 = vld [vmem:[%s1 + $0x20] sm:$0xff]
        %v290 = vld [vmem:[%s1 + $0x28] sm:$0xff]
        %v291 = vld [vmem:[%s1 + $0x30] sm:$0xff]
        %v292 = vld [vmem:[%s1 + $0x38] sm:$0xff]
        %v293 = vld [vmem:[%s1 + $0x40] sm:$0xff]
        %v294 = vld [vmem:[%s1 + $0x48] sm:$0xff]
        %v295 = vld [vmem:[%s1 + $0x50] sm:$0xff]
        %v296 = vld [vmem:[%s1 + $0x58] sm:$0xff]
        %v297 = vld [vmem:[%s1 + $0x60] sm:$0xff]
        %v298 = vld [vmem:[%s1 + $0x68] sm:$0xff]
        %v299 = vld [vmem:[%s1 + $0x70] sm:$0xff]
        %v300 = vld [vmem:[%s1 + $0x78] sm:$0xff]
        %v301 = vld [vmem:[%s1 + $0x80] sm:$0xff]
        %v302 = vld [vmem:[%s1 + $0x88] sm:$0xff]
        %v303 = vld [vmem:[%s1 + $0x90] sm:$0xff]
        %v304 = vld [vmem:[%s1 + $0x98] sm:$0xff]
        %v305 = vld [vmem:[%s1 + $0xa0] sm:$0xff]
        %v306 = vld [vmem:[%s1 + $0xa8] sm:$0xff]
        %v307 = vld [vmem:[%s1 + $0xb0] sm:$0xff]
        %v308 = vld [vmem:[%s1 + $0xb8] sm:$0xff]
        %v309 = vld [vmem:[%s1 + $0xc0] sm:$0xff]
        %v310 = vld [vmem:[%s1 + $0xc8] sm:$0xff]
        %v311 = vld [vmem:[%s1 + $0xd0] sm:$0xff]
        %v312 = vld [vmem:[%s1 + $0xd8] sm:$0xff]
        %v313 = vld [vmem:[%s1 + $0xe0] sm:$0xff]
        %v314 = vld [vmem:[%s1 + $0xe8] sm:$0xff]
        %v315 = vld [vmem:[%s1 + $0xf0] sm:$0xff]
        %v316 = vld [vmem:[%s1 + $0xf8] sm:$0xff]
        %v317 = vld [vmem:[%s1 + $0x100] sm:$0xff]
        %v318 = vld [vmem:[%s1 + $0x108] sm:$0xff]
        %v319 = vld [vmem:[%s1 + $0x110] sm:$0xff]
        %v320 = vld [vmem:[%s1 + $0x118] sm:$0xff]
        %v321 = vld [vmem:[%s1 + $0x120] sm:$0xff]
        %v322 = vld [vmem:[%s1 + $0x128] sm:$0xff]
        %v323 = vld [vmem:[%s1 + $0x130] sm:$0xff]
        %v324 = vld [vmem:[%s1 + $0x138] sm:$0xff]
        %v325 = vld [vmem:[%s1 + $0x140] sm:$0xff]
        %v326 = vld [vmem:[%s1 + $0x148] sm:$0xff]
        %v327 = vld [vmem:[%s1 + $0x150] sm:$0xff]
        %v328 = vld [vmem:[%s1 + $0x158] sm:$0xff]
        %v329 = vld [vmem:[%s1 + $0x160] sm:$0xff]
        %v330 = vld [vmem:[%s1 + $0x168] sm:$0xff]
        %v331 = vld [vmem:[%s1 + $0x170] sm:$0xff]
        %v332 = vld [vmem:[%s1 + $0x178] sm:$0xff]
        %v333 = vld [vmem:[%s1 + $0x180] sm:$0xff]
        %v334 = vld [vmem:[%s1 + $0x188] sm:$0xff]
        %v335 = vld [vmem:[%s1 + $0x190] sm:$0xff]
        %v336 = vld [vmem:[%s1 + $0x198] sm:$0xff]
        %v337 = vld [vmem:[%s1 + $0x1a0] sm:$0xff]
        %v338 = vld [vmem:[%s1 + $0x1a8] sm:$0xff]
        %v339 = vld [vmem:[%s1 + $0x1b0] sm:$0xff]
        %v340 = vld [vmem:[%s1 + $0x1b8] sm:$0xff]
        %v341 = vld [vmem:[%s1 + $0x1c0] sm:$0xff]
        %v342 = vld [vmem:[%s1 + $0x1c8] sm:$0xff]
        %v343 = vld [vmem:[%s1 + $0x1d0] sm:$0xff]
        %v344 = vld [vmem:[%s1 + $0x1d8] sm:$0xff]
        %v345 = vld [vmem:[%s1 + $0x1e0] sm:$0xff]
        %v346 = vld [vmem:[%s1 + $0x1e8] sm:$0xff]
        %v347 = vld [vmem:[%s1 + $0x1f0] sm:$0xff]
        %v348 = vld [vmem:[%s1 + $0x1f8] sm:$0xff]
        %v349 = vld [vmem:[%s1 + $0x200] sm:$0xff]
        %v350 = vld [vmem:[%s1 + $0x208] sm:$0xff]
        %v351 = vld [vmem:[%s1 + $0x210] sm:$0xff]
        %v352 = vld [vmem:[%s1 + $0x218] sm:$0xff]
        %v353 = vld [vmem:[%s1 + $0x220] sm:$0xff]
        %v354 = vld [vmem:[%s1 + $0x228] sm:$0xff]
        %v355 = vld [vmem:[%s1 + $0x230] sm:$0xff]
        %v356 = vld [vmem:[%s1 + $0x238] sm:$0xff]
        %v357 = vld [vmem:[%s1 + $0x240] sm:$0xff]
        %v358 = vld [vmem:[%s1 + $0x248] sm:$0xff]
        %v359 = vld [vmem:[%s1 + $0x250] sm:$0xff]
        %v360 = vld [vmem:[%s1 + $0x258] sm:$0xff]
        %v361 = vld [vmem:[%s1 + $0x260] sm:$0xff]
        %v362 = vld [vmem:[%s1 + $0x268] sm:$0xff]
        %v363 = vld [vmem:[%s1 + $0x270] sm:$0xff]
        %v364 = vld [vmem:[%s1 + $0x278] sm:$0xff]
        %v365 = vld [vmem:[%s1 + $0x280] sm:$0xff]
        %v366 = vld [vmem:[%s1 + $0x288] sm:$0xff]
        %v367 = vld [vmem:[%s1 + $0x290] sm:$0xff]
        %v368 = vld [vmem:[%s1 + $0x298] sm:$0xff]
        %v369 = vld [vmem:[%s1 + $0x2a0] sm:$0xff]
        %v370 = vld [vmem:[%s1 + $0x2a8] sm:$0xff]
        %v371 = vld [vmem:[%s1 + $0x2b0] sm:$0xff]
        %v372 = vld [vmem:[%s1 + $0x2b8] sm:$0xff]
        %v373 = vld [vmem:[%s1 + $0x2c0] sm:$0xff]
        %v374 = vld [vmem:[%s1 + $0x2c8] sm:$0xff]
        %v375 = vld [vmem:[%s1 + $0x2d0] sm:$0xff]
        %v376 = vld [vmem:[%s1 + $0x2d8] sm:$0xff]
        %v377 = vld [vmem:[%s1 + $0x2e0] sm:$0xff]
        %v378 = vld [vmem:[%s1 + $0x2e8] sm:$0xff]
        %v379 = vld [vmem:[%s1 + $0x2f0] sm:$0xff]
        %v380 = vld [vmem:[%s1 + $0x2f8] sm:$0xff]
        %v381 = vld [vmem:[%s1 + $0x300] sm:$0xff]
        %v382 = vld [vmem:[%s1 + $0x308] sm:$0xff]
        %v383 = vld [vmem:[%s1 + $0x310] sm:$0xff]
        %v384 = vld [vmem:[%s1 + $0x318] sm:$0xff]
        %v385 = vld [vmem:[%s1 + $0x320] sm:$0xff]
        %v386 = vld [vmem:[%s1 + $0x328] sm:$0xff]
        %v387 = vld [vmem:[%s1 + $0x330] sm:$0xff]
        %v388 = vld [vmem:[%s1 + $0x338] sm:$0xff]
        %v389 = vld [vmem:[%s1 + $0x340] sm:$0xff]
        %v390 = vld [vmem:[%s1 + $0x348] sm:$0xff]
        %v391 = vld [vmem:[%s1 + $0x350] sm:$0xff]
        %v392 = vld [vmem:[%s1 + $0x358] sm:$0xff]
        %v393 = vld [vmem:[%s1 + $0x360] sm:$0xff]
        %v394 = vld [vmem:[%s1 + $0x368] sm:$0xff]
        %v395 = vld [vmem:[%s1 + $0x370] sm:$0xff]
        %v396 = vld [vmem:[%s1 + $0x378] sm:$0xff]
        %v397 = vld [vmem:[%s1 + $0x380] sm:$0xff]
        %v398 = vld [vmem:[%s1 + $0x388] sm:$0xff]
        %v399 = vld [vmem:[%s1 + $0x390] sm:$0xff]
        %v400 = vld [vmem:[%s1 + $0x398] sm:$0xff]
        %v401 = vld [vmem:[%s1 + $0x3a0] sm:$0xff]
        %v402 = vld [vmem:[%s1 + $0x3a8] sm:$0xff]
        %v403 = vld [vmem:[%s1 + $0x3b0] sm:$0xff]
        %v404 = vld [vmem:[%s1 + $0x3b8] sm:$0xff]
        %v405 = vld [vmem:[%s1 + $0x3c0] sm:$0xff]
        %v406 = vld [vmem:[%s1 + $0x3c8] sm:$0xff]
        %v407 = vld [vmem:[%s1 + $0x3d0] sm:$0xff]
        %v408 = vld [vmem:[%s1 + $0x3d8] sm:$0xff]
        %v409 = vld [vmem:[%s1 + $0x3e0] sm:$0xff]
        %v410 = vld [vmem:[%s1 + $0x3e8] sm:$0xff]
        %v411 = vld [vmem:[%s1 + $0x3f0] sm:$0xff]
        %v412 = vld [vmem:[%s1 + $0x3f8] sm:$0xff]
        %v413 = vld [vmem:[%s1 + $0x400] sm:$0xff]
        %v414 = vld [vmem:[%s1 + $0x408] sm:$0xff]
        %v415 = vld [vmem:[%s1 + $0x410] sm:$0xff]
        %v416 = vld [vmem:[%s1 + $0x418] sm:$0xff]
        %v417 = vld [vmem:[%s1 + $0x420] sm:$0xff]
        %v418 = vld [vmem:[%s1 + $0x428] sm:$0xff]
        %v419 = vld [vmem:[%s1 + $0x430] sm:$0xff]
        %v420 = vld [vmem:[%s1 + $0x438] sm:$0xff]
        %v421 = vld [vmem:[%s1 + $0x440] sm:$0xff]
        %v422 = vld [vmem:[%s1 + $0x448] sm:$0xff]
        %v423 = vld [vmem:[%s1 + $0x450] sm:$0xff]
        %v424 = vld [vmem:[%s1 + $0x458] sm:$0xff]
        %v425 = vld [vmem:[%s1 + $0x460] sm:$0xff]
        %v426 = vld [vmem:[%s1 + $0x468] sm:$0xff]
        %v427 = vld [vmem:[%s1 + $0x470] sm:$0xff]
        %v428 = vld [vmem:[%s1 + $0x478] sm:$0xff]
        %v439 = vunpack.c.l.b16 %v275
        %v440 = vunpack.c.h.b16 %v275
        %v441 = vunpack.c.l.b16 %v276
        %v442 = vunpack.c.h.b16 %v276
        %v443 = vunpack.c.l.b16 %v277
        %v444 = vunpack.c.h.b16 %v277
        %v445 = vunpack.c.l.b16 %v278
        %v446 = vunpack.c.h.b16 %v278
        %v447 = vunpack.c.l.b16 %v279
        %v448 = vunpack.c.l.b16 %v280
        %v449 = vunpack.c.h.b16 %v280
        %v450 = vunpack.c.l.b16 %v281
        %v451 = vunpack.c.h.b16 %v281
        %v452 = vunpack.c.l.b16 %v282
        %v453 = vunpack.c.h.b16 %v282
        %v454 = vunpack.c.l.b16 %v283
        %v455 = vunpack.c.h.b16 %v283
        %v456 = vunpack.c.l.b16 %v284
        %v457 = vpack.c.b16 %v448, %v439
        %v458 = vpack.c.b16 %v449, %v440
        %v459 = vpack.c.b16 %v450, %v441
        %v460 = vpack.c.b16 %v451, %v442
        %v461 = vpack.c.b16 %v452, %v443
        %v462 = vpack.c.b16 %v453, %v444
        %v463 = vpack.c.b16 %v454, %v445
        %v464 = vpack.c.b16 %v455, %v446
        %v465 = vpack.c.b16 %v456, %v447
        %v619 = vunpack.c.l.b16 %v285
        %v620 = vunpack.c.h.b16 %v285
        %v621 = vunpack.c.l.b16 %v286
        %v622 = vunpack.c.h.b16 %v286
        %v623 = vunpack.c.l.b16 %v287
        %v624 = vunpack.c.h.b16 %v287
        %v625 = vunpack.c.l.b16 %v288
        %v626 = vunpack.c.h.b16 %v288
        %v627 = vunpack.c.l.b16 %v289
        %v628 = vunpack.c.h.b16 %v289
        %v629 = vunpack.c.l.b16 %v290
        %v630 = vunpack.c.h.b16 %v290
        %v631 = vunpack.c.l.b16 %v291
        %v632 = vunpack.c.h.b16 %v291
        %v633 = vunpack.c.l.b16 %v292
        %v634 = vunpack.c.h.b16 %v292
        %v635 = vunpack.c.l.b16 %v293
        %v636 = vunpack.c.h.b16 %v293
        %v637 = vunpack.c.l.b16 %v294
        %v638 = vunpack.c.h.b16 %v294
        %v639 = vunpack.c.l.b16 %v295
        %v640 = vunpack.c.h.b16 %v295
        %v641 = vunpack.c.l.b16 %v296
        %v642 = vunpack.c.h.b16 %v296
        %v643 = vunpack.c.l.b16 %v297
        %v644 = vunpack.c.h.b16 %v297
        %v645 = vunpack.c.l.b16 %v298
        %v646 = vunpack.c.h.b16 %v298
        %v647 = vunpack.c.l.b16 %v299
        %v648 = vunpack.c.h.b16 %v299
        %v649 = vunpack.c.l.b16 %v300
        %v650 = vunpack.c.h.b16 %v300
        %v651 = vunpack.c.l.b16 %v301
        %v652 = vunpack.c.h.b16 %v301
        %v653 = vunpack.c.l.b16 %v302
        %v654 = vunpack.c.h.b16 %v302
        %v655 = vunpack.c.l.b16 %v303
        %v656 = vunpack.c.h.b16 %v303
        %v657 = vunpack.c.l.b16 %v304
        %v658 = vunpack.c.h.b16 %v304
        %v659 = vunpack.c.l.b16 %v305
        %v660 = vunpack.c.h.b16 %v305
        %v661 = vunpack.c.l.b16 %v306
        %v662 = vunpack.c.h.b16 %v306
        %v663 = vunpack.c.l.b16 %v307
        %v664 = vunpack.c.h.b16 %v307
        %v665 = vunpack.c.l.b16 %v308
        %v666 = vunpack.c.h.b16 %v308
        %v667 = vunpack.c.l.b16 %v309
        %v668 = vunpack.c.h.b16 %v309
        %v669 = vunpack.c.l.b16 %v310
        %v670 = vunpack.c.h.b16 %v310
        %v671 = vunpack.c.l.b16 %v311
        %v672 = vunpack.c.h.b16 %v311
        %v673 = vunpack.c.l.b16 %v312
        %v674 = vunpack.c.h.b16 %v312
        %v675 = vunpack.c.l.b16 %v313
        %v676 = vunpack.c.h.b16 %v313
        %v677 = vunpack.c.l.b16 %v314
        %v678 = vunpack.c.h.b16 %v314
        %v679 = vunpack.c.l.b16 %v315
        %v680 = vunpack.c.h.b16 %v315
        %v681 = vunpack.c.l.b16 %v316
        %v682 = vunpack.c.h.b16 %v316
        %v683 = vunpack.c.l.b16 %v317
        %v684 = vunpack.c.h.b16 %v317
        %v685 = vunpack.c.l.b16 %v318
        %v686 = vunpack.c.h.b16 %v318
        %v687 = vunpack.c.l.b16 %v319
        %v688 = vunpack.c.h.b16 %v319
        %v689 = vunpack.c.l.b16 %v320
        %v690 = vunpack.c.h.b16 %v320
        %v691 = vunpack.c.l.b16 %v321
        %v692 = vunpack.c.h.b16 %v321
        %v693 = vunpack.c.l.b16 %v322
        %v694 = vunpack.c.h.b16 %v322
        %v695 = vunpack.c.l.b16 %v323
        %v696 = vunpack.c.h.b16 %v323
        %v697 = vunpack.c.l.b16 %v324
        %v698 = vunpack.c.h.b16 %v324
        %v699 = vunpack.c.l.b16 %v325
        %v700 = vunpack.c.h.b16 %v325
        %v701 = vunpack.c.l.b16 %v326
        %v702 = vunpack.c.h.b16 %v326
        %v703 = vunpack.c.l.b16 %v327
        %v704 = vunpack.c.h.b16 %v327
        %v705 = vunpack.c.l.b16 %v328
        %v706 = vunpack.c.h.b16 %v328
        %v707 = vunpack.c.l.b16 %v329
        %v708 = vunpack.c.h.b16 %v329
        %v709 = vunpack.c.l.b16 %v330
        %v710 = vunpack.c.h.b16 %v330
        %v711 = vunpack.c.l.b16 %v331
        %v712 = vunpack.c.h.b16 %v331
        %v713 = vunpack.c.l.b16 %v332
        %v714 = vunpack.c.h.b16 %v332
        %v715 = vunpack.c.l.b16 %v333
        %v716 = vunpack.c.h.b16 %v333
        %v717 = vunpack.c.l.b16 %v334
        %v718 = vunpack.c.h.b16 %v334
        %v719 = vunpack.c.l.b16 %v335
        %v720 = vunpack.c.h.b16 %v335
        %v721 = vunpack.c.l.b16 %v336
        %v722 = vunpack.c.h.b16 %v336
        %v723 = vunpack.c.l.b16 %v337
        %v724 = vunpack.c.h.b16 %v337
        %v725 = vunpack.c.l.b16 %v338
        %v726 = vunpack.c.h.b16 %v338
        %v727 = vunpack.c.l.b16 %v339
        %v728 = vunpack.c.h.b16 %v339
        %v729 = vunpack.c.l.b16 %v340
        %v730 = vunpack.c.h.b16 %v340
        %v731 = vunpack.c.l.b16 %v341
        %v732 = vunpack.c.h.b16 %v341
        %v733 = vunpack.c.l.b16 %v342
        %v734 = vunpack.c.h.b16 %v342
        %v735 = vunpack.c.l.b16 %v343
        %v736 = vunpack.c.h.b16 %v343
        %v737 = vunpack.c.l.b16 %v344
        %v738 = vunpack.c.h.b16 %v344
        %v739 = vunpack.c.l.b16 %v345
        %v740 = vunpack.c.h.b16 %v345
        %v741 = vunpack.c.l.b16 %v346
        %v742 = vunpack.c.h.b16 %v346
        %v743 = vunpack.c.l.b16 %v347
        %v744 = vunpack.c.h.b16 %v347
        %v745 = vunpack.c.l.b16 %v348
        %v746 = vunpack.c.h.b16 %v348
        %v747 = vunpack.c.l.b16 %v349
        %v748 = vunpack.c.h.b16 %v349
        %v749 = vunpack.c.l.b16 %v350
        %v750 = vunpack.c.h.b16 %v350
        %v751 = vunpack.c.l.b16 %v351
        %v752 = vunpack.c.h.b16 %v351
        %v753 = vunpack.c.l.b16 %v352
        %v754 = vunpack.c.h.b16 %v352
        %v755 = vunpack.c.l.b16 %v353
        %v756 = vunpack.c.h.b16 %v353
        %v757 = vunpack.c.l.b16 %v354
        %v758 = vunpack.c.h.b16 %v354
        %v759 = vunpack.c.l.b16 %v355
        %v760 = vunpack.c.h.b16 %v355
        %v761 = vunpack.c.l.b16 %v356
        %v762 = vunpack.c.h.b16 %v356
        %v763 = vunpack.c.l.b16 %v357
        %v764 = vunpack.c.h.b16 %v357
        %v765 = vunpack.c.l.b16 %v358
        %v766 = vunpack.c.h.b16 %v358
        %v767 = vunpack.c.l.b16 %v359
        %v768 = vunpack.c.h.b16 %v359
        %v769 = vunpack.c.l.b16 %v360
        %v770 = vunpack.c.h.b16 %v360
        %v771 = vunpack.c.l.b16 %v361
        %v772 = vunpack.c.h.b16 %v361
        %v773 = vunpack.c.l.b16 %v362
        %v774 = vunpack.c.h.b16 %v362
        %v775 = vunpack.c.l.b16 %v363
        %v776 = vunpack.c.h.b16 %v363
        %v777 = vunpack.c.l.b16 %v364
        %v778 = vunpack.c.h.b16 %v364
        %v779 = vunpack.c.l.b16 %v365
        %v780 = vunpack.c.h.b16 %v365
        %v781 = vunpack.c.l.b16 %v366
        %v782 = vunpack.c.h.b16 %v366
        %v783 = vunpack.c.l.b16 %v367
        %v784 = vunpack.c.h.b16 %v367
        %v785 = vunpack.c.l.b16 %v368
        %v786 = vunpack.c.h.b16 %v368
        %v787 = vunpack.c.l.b16 %v369
        %v788 = vunpack.c.h.b16 %v369
        %v789 = vunpack.c.l.b16 %v370
        %v790 = vunpack.c.h.b16 %v370
        %v791 = vunpack.c.l.b16 %v371
        %v792 = vunpack.c.h.b16 %v371
        %v793 = vunpack.c.l.b16 %v372
        %v794 = vunpack.c.h.b16 %v372
        %v795 = vunpack.c.l.b16 %v373
        %v796 = vunpack.c.h.b16 %v373
        %v797 = vunpack.c.l.b16 %v374
        %v798 = vunpack.c.h.b16 %v374
        %v799 = vunpack.c.l.b16 %v375
        %v800 = vunpack.c.h.b16 %v375
        %v801 = vunpack.c.l.b16 %v376
        %v802 = vunpack.c.h.b16 %v376
        %v803 = vunpack.c.l.b16 %v377
        %v804 = vunpack.c.h.b16 %v377
        %v805 = vunpack.c.l.b16 %v378
        %v806 = vunpack.c.h.b16 %v378
        %v807 = vunpack.c.l.b16 %v379
        %v808 = vunpack.c.h.b16 %v379
        %v809 = vunpack.c.l.b16 %v380
        %v810 = vunpack.c.h.b16 %v380
        %v811 = vunpack.c.l.b16 %v381
        %v812 = vunpack.c.h.b16 %v381
        %v813 = vunpack.c.l.b16 %v382
        %v814 = vunpack.c.h.b16 %v382
        %v815 = vunpack.c.l.b16 %v383
        %v816 = vunpack.c.h.b16 %v383
        %v817 = vunpack.c.l.b16 %v384
        %v818 = vunpack.c.h.b16 %v384
        %v819 = vunpack.c.l.b16 %v385
        %v820 = vunpack.c.h.b16 %v385
        %v821 = vunpack.c.l.b16 %v386
        %v822 = vunpack.c.h.b16 %v386
        %v823 = vunpack.c.l.b16 %v387
        %v824 = vunpack.c.h.b16 %v387
        %v825 = vunpack.c.l.b16 %v388
        %v826 = vunpack.c.h.b16 %v388
        %v827 = vunpack.c.l.b16 %v389
        %v828 = vunpack.c.h.b16 %v389
        %v829 = vunpack.c.l.b16 %v390
        %v830 = vunpack.c.h.b16 %v390
        %v831 = vunpack.c.l.b16 %v391
        %v832 = vunpack.c.h.b16 %v391
        %v833 = vunpack.c.l.b16 %v392
        %v834 = vunpack.c.h.b16 %v392
        %v835 = vunpack.c.l.b16 %v393
        %v836 = vunpack.c.h.b16 %v393
        %v837 = vunpack.c.l.b16 %v394
        %v838 = vunpack.c.h.b16 %v394
        %v839 = vunpack.c.l.b16 %v395
        %v840 = vunpack.c.h.b16 %v395
        %v841 = vunpack.c.l.b16 %v396
        %v842 = vunpack.c.h.b16 %v396
        %v843 = vunpack.c.l.b16 %v397
        %v844 = vunpack.c.h.b16 %v397
        %v845 = vunpack.c.l.b16 %v398
        %v846 = vunpack.c.h.b16 %v398
        %v847 = vunpack.c.l.b16 %v399
        %v848 = vunpack.c.h.b16 %v399
        %v849 = vunpack.c.l.b16 %v400
        %v850 = vunpack.c.h.b16 %v400
        %v851 = vunpack.c.l.b16 %v401
        %v852 = vunpack.c.h.b16 %v401
        %v853 = vunpack.c.l.b16 %v402
        %v854 = vunpack.c.h.b16 %v402
        %v855 = vunpack.c.l.b16 %v403
        %v856 = vunpack.c.h.b16 %v403
        %v857 = vunpack.c.l.b16 %v404
        %v858 = vunpack.c.h.b16 %v404
        %v859 = vunpack.c.l.b16 %v405
        %v860 = vunpack.c.h.b16 %v405
        %v861 = vunpack.c.l.b16 %v406
        %v862 = vunpack.c.h.b16 %v406
        %v863 = vunpack.c.l.b16 %v407
        %v864 = vunpack.c.h.b16 %v407
        %v865 = vunpack.c.l.b16 %v408
        %v866 = vunpack.c.h.b16 %v408
        %v867 = vunpack.c.l.b16 %v409
        %v868 = vunpack.c.h.b16 %v409
        %v869 = vunpack.c.l.b16 %v410
        %v870 = vunpack.c.h.b16 %v410
        %v871 = vunpack.c.l.b16 %v411
        %v872 = vunpack.c.h.b16 %v411
        %v873 = vunpack.c.l.b16 %v412
        %v874 = vunpack.c.h.b16 %v412
        %v875 = vunpack.c.l.b16 %v413
        %v876 = vunpack.c.h.b16 %v413
        %v877 = vunpack.c.l.b16 %v414
        %v878 = vunpack.c.h.b16 %v414
        %v879 = vunpack.c.l.b16 %v415
        %v880 = vunpack.c.h.b16 %v415
        %v881 = vunpack.c.l.b16 %v416
        %v882 = vunpack.c.h.b16 %v416
        %v883 = vunpack.c.l.b16 %v417
        %v884 = vunpack.c.h.b16 %v417
        %v885 = vunpack.c.l.b16 %v418
        %v886 = vunpack.c.h.b16 %v418
        %v887 = vunpack.c.l.b16 %v419
        %v888 = vunpack.c.h.b16 %v419
        %v889 = vunpack.c.l.b16 %v420
        %v890 = vunpack.c.h.b16 %v420
        %v891 = vunpack.c.l.b16 %v421
        %v892 = vunpack.c.h.b16 %v421
        %v893 = vunpack.c.l.b16 %v422
        %v894 = vunpack.c.h.b16 %v422
        %v895 = vunpack.c.l.b16 %v423
        %v896 = vunpack.c.h.b16 %v423
        %v897 = vunpack.c.l.b16 %v424
        %v898 = vunpack.c.h.b16 %v424
        %v899 = vunpack.c.l.b16 %v425
        %v900 = vunpack.c.h.b16 %v425
        %v901 = vunpack.c.l.b16 %v426
        %v902 = vunpack.c.h.b16 %v426
        %v903 = vunpack.c.l.b16 %v427
        %v904 = vunpack.c.h.b16 %v427
        %v905 = vunpack.c.l.b16 %v428
        %v906 = vunpack.c.h.b16 %v428
        %v907 = vpack.c.b16 %v621, %v619
        %v908 = vpack.c.b16 %v622, %v620
        %v909 = vpack.c.b16 %v625, %v623
        %v910 = vpack.c.b16 %v626, %v624
        %v911 = vpack.c.b16 %v629, %v627
        %v912 = vpack.c.b16 %v630, %v628
        %v913 = vpack.c.b16 %v633, %v631
        %v914 = vpack.c.b16 %v634, %v632
        %v915 = vpack.c.b16 %v637, %v635
        %v916 = vpack.c.b16 %v638, %v636
        %v917 = vpack.c.b16 %v641, %v639
        %v918 = vpack.c.b16 %v642, %v640
        %v919 = vpack.c.b16 %v645, %v643
        %v920 = vpack.c.b16 %v646, %v644
        %v921 = vpack.c.b16 %v649, %v647
        %v922 = vpack.c.b16 %v650, %v648
        %v923 = vpack.c.b16 %v653, %v651
        %v924 = vpack.c.b16 %v654, %v652
        %v925 = vpack.c.b16 %v657, %v655
        %v926 = vpack.c.b16 %v658, %v656
        %v927 = vpack.c.b16 %v661, %v659
        %v928 = vpack.c.b16 %v662, %v660
        %v929 = vpack.c.b16 %v665, %v663
        %v930 = vpack.c.b16 %v666, %v664
        %v931 = vpack.c.b16 %v669, %v667
        %v932 = vpack.c.b16 %v670, %v668
        %v933 = vpack.c.b16 %v673, %v671
        %v934 = vpack.c.b16 %v674, %v672
        %v935 = vpack.c.b16 %v677, %v675
        %v936 = vpack.c.b16 %v678, %v676
        %v937 = vpack.c.b16 %v681, %v679
        %v938 = vpack.c.b16 %v682, %v680
        %v939 = vpack.c.b16 %v685, %v683
        %v940 = vpack.c.b16 %v686, %v684
        %v941 = vpack.c.b16 %v689, %v687
        %v942 = vpack.c.b16 %v690, %v688
        %v943 = vpack.c.b16 %v693, %v691
        %v944 = vpack.c.b16 %v694, %v692
        %v945 = vpack.c.b16 %v697, %v695
        %v946 = vpack.c.b16 %v698, %v696
        %v947 = vpack.c.b16 %v701, %v699
        %v948 = vpack.c.b16 %v702, %v700
        %v949 = vpack.c.b16 %v705, %v703
        %v950 = vpack.c.b16 %v706, %v704
        %v951 = vpack.c.b16 %v709, %v707
        %v952 = vpack.c.b16 %v710, %v708
        %v953 = vpack.c.b16 %v713, %v711
        %v954 = vpack.c.b16 %v714, %v712
        %v955 = vpack.c.b16 %v717, %v715
        %v956 = vpack.c.b16 %v718, %v716
        %v957 = vpack.c.b16 %v721, %v719
        %v958 = vpack.c.b16 %v722, %v720
        %v959 = vpack.c.b16 %v725, %v723
        %v960 = vpack.c.b16 %v726, %v724
        %v961 = vpack.c.b16 %v729, %v727
        %v962 = vpack.c.b16 %v730, %v728
        %v963 = vpack.c.b16 %v733, %v731
        %v964 = vpack.c.b16 %v734, %v732
        %v965 = vpack.c.b16 %v737, %v735
        %v966 = vpack.c.b16 %v738, %v736
        %v967 = vpack.c.b16 %v741, %v739
        %v968 = vpack.c.b16 %v742, %v740
        %v969 = vpack.c.b16 %v745, %v743
        %v970 = vpack.c.b16 %v746, %v744
        %v971 = vpack.c.b16 %v749, %v747
        %v972 = vpack.c.b16 %v750, %v748
        %v973 = vpack.c.b16 %v753, %v751
        %v974 = vpack.c.b16 %v754, %v752
        %v975 = vpack.c.b16 %v757, %v755
        %v976 = vpack.c.b16 %v758, %v756
        %v977 = vpack.c.b16 %v761, %v759
        %v978 = vpack.c.b16 %v762, %v760
        %v979 = vpack.c.b16 %v765, %v763
        %v980 = vpack.c.b16 %v766, %v764
        %v981 = vpack.c.b16 %v769, %v767
        %v982 = vpack.c.b16 %v770, %v768
        %v983 = vpack.c.b16 %v773, %v771
        %v984 = vpack.c.b16 %v774, %v772
        %v985 = vpack.c.b16 %v777, %v775
        %v986 = vpack.c.b16 %v778, %v776
        %v987 = vpack.c.b16 %v781, %v779
        %v988 = vpack.c.b16 %v782, %v780
        %v989 = vpack.c.b16 %v785, %v783
        %v990 = vpack.c.b16 %v786, %v784
        %v991 = vpack.c.b16 %v789, %v787
        %v992 = vpack.c.b16 %v790, %v788
        %v993 = vpack.c.b16 %v793, %v791
        %v994 = vpack.c.b16 %v794, %v792
        %v995 = vpack.c.b16 %v797, %v795
        %v996 = vpack.c.b16 %v798, %v796
        %v997 = vpack.c.b16 %v801, %v799
        %v998 = vpack.c.b16 %v802, %v800
        %v999 = vpack.c.b16 %v805, %v803
        %v1000 = vpack.c.b16 %v806, %v804
        %v1001 = vpack.c.b16 %v809, %v807
        %v1002 = vpack.c.b16 %v810, %v808
        %v1003 = vpack.c.b16 %v813, %v811
        %v1004 = vpack.c.b16 %v814, %v812
        %v1005 = vpack.c.b16 %v817, %v815
        %v1006 = vpack.c.b16 %v818, %v816
        %v1007 = vpack.c.b16 %v821, %v819
        %v1008 = vpack.c.b16 %v822, %v820
        %v1009 = vpack.c.b16 %v825, %v823
        %v1010 = vpack.c.b16 %v826, %v824
        %v1011 = vpack.c.b16 %v829, %v827
        %v1012 = vpack.c.b16 %v830, %v828
        %v1013 = vpack.c.b16 %v833, %v831
        %v1014 = vpack.c.b16 %v834, %v832
        %v1015 = vpack.c.b16 %v837, %v835
        %v1016 = vpack.c.b16 %v838, %v836
        %v1017 = vpack.c.b16 %v841, %v839
        %v1018 = vpack.c.b16 %v842, %v840
        %v1019 = vpack.c.b16 %v845, %v843
        %v1020 = vpack.c.b16 %v846, %v844
        %v1021 = vpack.c.b16 %v849, %v847
        %v1022 = vpack.c.b16 %v850, %v848
        %v1023 = vpack.c.b16 %v853, %v851
        %v1024 = vpack.c.b16 %v854, %v852
        %v1025 = vpack.c.b16 %v857, %v855
        %v1026 = vpack.c.b16 %v858, %v856
        %v1027 = vpack.c.b16 %v861, %v859
        %v1028 = vpack.c.b16 %v862, %v860
        %v1029 = vpack.c.b16 %v865, %v863
        %v1030 = vpack.c.b16 %v866, %v864
        %v1031 = vpack.c.b16 %v869, %v867
        %v1032 = vpack.c.b16 %v870, %v868
        %v1033 = vpack.c.b16 %v873, %v871
        %v1034 = vpack.c.b16 %v874, %v872
        %v1035 = vpack.c.b16 %v877, %v875
        %v1036 = vpack.c.b16 %v878, %v876
        %v1037 = vpack.c.b16 %v881, %v879
        %v1038 = vpack.c.b16 %v882, %v880
        %v1039 = vpack.c.b16 %v885, %v883
        %v1040 = vpack.c.b16 %v886, %v884
        %v1041 = vpack.c.b16 %v889, %v887
        %v1042 = vpack.c.b16 %v890, %v888
        %v1043 = vpack.c.b16 %v893, %v891
        %v1044 = vpack.c.b16 %v894, %v892
        %v1045 = vpack.c.b16 %v897, %v895
        %v1046 = vpack.c.b16 %v898, %v896
        %v1047 = vpack.c.b16 %v901, %v899
        %v1048 = vpack.c.b16 %v902, %v900
        %v1049 = vpack.c.b16 %v905, %v903
        %v1050 = vpack.c.b16 %v906, %v904
        %1195 = vmatprep.subr.bf16.mxu0 %v908
        %1196 = vmatpush1.bf16.msra.mxu0 %v907
        %1197 = vmatprep.subr.bf16.mxu0 %v910
        %1198 = vmatpush1.bf16.msra.mxu0 %v909
        %1199 = vmatprep.subr.bf16.mxu0 %v912
        %1200 = vmatpush1.bf16.msra.mxu0 %v911
        %1201 = vmatprep.subr.bf16.mxu0 %v914
        %1202 = vmatpush1.bf16.msra.mxu0 %v913
        %1203 = vmatprep.subr.bf16.mxu0 %v916
        %1204 = vmatpush1.bf16.msra.mxu0 %v915
        %1205 = vmatprep.subr.bf16.mxu0 %v918
        %1206 = vmatpush1.bf16.msra.mxu0 %v917
        %1207 = vmatprep.subr.bf16.mxu0 %v920
        %1208 = vmatpush1.bf16.msra.mxu0 %v919
        %1209 = vmatprep.subr.bf16.mxu0 %v922
        %1210 = vmatpush1.bf16.msra.mxu0 %v921
        %1211 = vmatprep.subr.bf16.mxu0 %v924
        %1212 = vmatpush1.bf16.msra.mxu0 %v923
        %1213 = vmatprep.subr.bf16.mxu0 %v926
        %1214 = vmatpush1.bf16.msra.mxu0 %v925
        %1215 = vmatprep.subr.bf16.mxu0 %v928
        %1216 = vmatpush1.bf16.msra.mxu0 %v927
        %1217 = vmatprep.subr.bf16.mxu0 %v930
        %1218 = vmatpush1.bf16.msra.mxu0 %v929
        %1219 = vmatprep.subr.bf16.mxu0 %v932
        %1220 = vmatpush1.bf16.msra.mxu0 %v931
        %1221 = vmatprep.subr.bf16.mxu0 %v934
        %1222 = vmatpush1.bf16.msra.mxu0 %v933
        %1223 = vmatprep.subr.bf16.mxu0 %v936
        %1224 = vmatpush1.bf16.msra.mxu0 %v935
        %1225 = vmatprep.subr.bf16.mxu0 %v938
        %1226 = vmatpush1.bf16.msra.mxu0 %v937
        %1227 = vmatprep.mubr.bf16.mxu0 %v458
        %1228 = vmatmul.mubr.bf16.gmra.mrb[0].mxu0 %v457
        %v1229 = vpop.f32.mrb[0].mxu0
        %v1230 = vadd.f32 0.0, %v1229
        %v1231 = vpop.f32.mrb[0].mxu0
        %v1232 = vadd.f32 0.0, %v1231
        %v1233 = vpop.f32.mrb[0].mxu0
        %v1234 = vadd.f32 0.0, %v1233
        %v1235 = vpop.f32.mrb[0].mxu0
        %v1236 = vadd.f32 0.0, %v1235
        %1237 = vdwg.mxu0
        %1238 = vmatprep.subr.bf16.mxu0 %v940
        %1239 = vmatpush1.bf16.msra.mxu0 %v939
        %1240 = vmatprep.subr.bf16.mxu0 %v942
        %1241 = vmatpush1.bf16.msra.mxu0 %v941
        %1242 = vmatprep.subr.bf16.mxu0 %v944
        %1243 = vmatpush1.bf16.msra.mxu0 %v943
        %1244 = vmatprep.subr.bf16.mxu0 %v946
        %1245 = vmatpush1.bf16.msra.mxu0 %v945
        %1246 = vmatprep.subr.bf16.mxu0 %v948
        %1247 = vmatpush1.bf16.msra.mxu0 %v947
        %1248 = vmatprep.subr.bf16.mxu0 %v950
        %1249 = vmatpush1.bf16.msra.mxu0 %v949
        %1250 = vmatprep.subr.bf16.mxu0 %v952
        %1251 = vmatpush1.bf16.msra.mxu0 %v951
        %1252 = vmatprep.subr.bf16.mxu0 %v954
        %1253 = vmatpush1.bf16.msra.mxu0 %v953
        %1254 = vmatprep.subr.bf16.mxu0 %v956
        %1255 = vmatpush1.bf16.msra.mxu0 %v955
        %1256 = vmatprep.subr.bf16.mxu0 %v958
        %1257 = vmatpush1.bf16.msra.mxu0 %v957
        %1258 = vmatprep.subr.bf16.mxu0 %v960
        %1259 = vmatpush1.bf16.msra.mxu0 %v959
        %1260 = vmatprep.subr.bf16.mxu0 %v962
        %1261 = vmatpush1.bf16.msra.mxu0 %v961
        %1262 = vmatprep.subr.bf16.mxu0 %v964
        %1263 = vmatpush1.bf16.msra.mxu0 %v963
        %1264 = vmatprep.subr.bf16.mxu0 %v966
        %1265 = vmatpush1.bf16.msra.mxu0 %v965
        %1266 = vmatprep.subr.bf16.mxu0 %v968
        %1267 = vmatpush1.bf16.msra.mxu0 %v967
        %1268 = vmatprep.subr.bf16.mxu0 %v970
        %1269 = vmatpush1.bf16.msra.mxu0 %v969
        %1270 = vmatprep.mubr.bf16.mxu0 %v460
        %1271 = vmatmul.mubr.bf16.gmra.mrb[0].mxu0 %v459
        %v1272 = vpop.f32.mrb[0].mxu0
        %v1273 = vadd.f32 %v1230, %v1272
        %v1274 = vpop.f32.mrb[0].mxu0
        %v1275 = vadd.f32 %v1232, %v1274
        %v1276 = vpop.f32.mrb[0].mxu0
        %v1277 = vadd.f32 %v1234, %v1276
        %v1278 = vpop.f32.mrb[0].mxu0
        %v1279 = vadd.f32 %v1236, %v1278
        %1280 = vdwg.mxu0
        %1281 = vmatprep.subr.bf16.mxu0 %v972
        %1282 = vmatpush1.bf16.msra.mxu0 %v971
        %1283 = vmatprep.subr.bf16.mxu0 %v974
        %1284 = vmatpush1.bf16.msra.mxu0 %v973
        %1285 = vmatprep.subr.bf16.mxu0 %v976
        %1286 = vmatpush1.bf16.msra.mxu0 %v975
        %1287 = vmatprep.subr.bf16.mxu0 %v978
        %1288 = vmatpush1.bf16.msra.mxu0 %v977
        %1289 = vmatprep.subr.bf16.mxu0 %v980
        %1290 = vmatpush1.bf16.msra.mxu0 %v979
        %1291 = vmatprep.subr.bf16.mxu0 %v982
        %1292 = vmatpush1.bf16.msra.mxu0 %v981
        %1293 = vmatprep.subr.bf16.mxu0 %v984
        %1294 = vmatpush1.bf16.msra.mxu0 %v983
        %1295 = vmatprep.subr.bf16.mxu0 %v986
        %1296 = vmatpush1.bf16.msra.mxu0 %v985
        %1297 = vmatprep.subr.bf16.mxu0 %v988
        %1298 = vmatpush1.bf16.msra.mxu0 %v987
        %1299 = vmatprep.subr.bf16.mxu0 %v990
        %1300 = vmatpush1.bf16.msra.mxu0 %v989
        %1301 = vmatprep.subr.bf16.mxu0 %v992
        %1302 = vmatpush1.bf16.msra.mxu0 %v991
        %1303 = vmatprep.subr.bf16.mxu0 %v994
        %1304 = vmatpush1.bf16.msra.mxu0 %v993
        %1305 = vmatprep.subr.bf16.mxu0 %v996
        %1306 = vmatpush1.bf16.msra.mxu0 %v995
        %1307 = vmatprep.subr.bf16.mxu0 %v998
        %1308 = vmatpush1.bf16.msra.mxu0 %v997
        %1309 = vmatprep.subr.bf16.mxu0 %v1000
        %1310 = vmatpush1.bf16.msra.mxu0 %v999
        %1311 = vmatprep.subr.bf16.mxu0 %v1002
        %1312 = vmatpush1.bf16.msra.mxu0 %v1001
        %1313 = vmatprep.mubr.bf16.mxu0 %v462
        %1314 = vmatmul.mubr.bf16.gmra.mrb[0].mxu0 %v461
        %v1315 = vpop.f32.mrb[0].mxu0
        %v1316 = vadd.f32 %v1273, %v1315
        %v1317 = vpop.f32.mrb[0].mxu0
        %v1318 = vadd.f32 %v1275, %v1317
        %v1319 = vpop.f32.mrb[0].mxu0
        %v1320 = vadd.f32 %v1277, %v1319
        %v1321 = vpop.f32.mrb[0].mxu0
        %v1322 = vadd.f32 %v1279, %v1321
        %1323 = vdwg.mxu0
        %1324 = vmatprep.subr.bf16.mxu0 %v1004
        %1325 = vmatpush1.bf16.msra.mxu0 %v1003
        %1326 = vmatprep.subr.bf16.mxu0 %v1006
        %1327 = vmatpush1.bf16.msra.mxu0 %v1005
        %1328 = vmatprep.subr.bf16.mxu0 %v1008
        %1329 = vmatpush1.bf16.msra.mxu0 %v1007
        %1330 = vmatprep.subr.bf16.mxu0 %v1010
        %1331 = vmatpush1.bf16.msra.mxu0 %v1009
        %1332 = vmatprep.subr.bf16.mxu0 %v1012
        %1333 = vmatpush1.bf16.msra.mxu0 %v1011
        %1334 = vmatprep.subr.bf16.mxu0 %v1014
        %1335 = vmatpush1.bf16.msra.mxu0 %v1013
        %1336 = vmatprep.subr.bf16.mxu0 %v1016
        %1337 = vmatpush1.bf16.msra.mxu0 %v1015
        %1338 = vmatprep.subr.bf16.mxu0 %v1018
        %1339 = vmatpush1.bf16.msra.mxu0 %v1017
        %1340 = vmatprep.subr.bf16.mxu0 %v1020
        %1341 = vmatpush1.bf16.msra.mxu0 %v1019
        %1342 = vmatprep.subr.bf16.mxu0 %v1022
        %1343 = vmatpush1.bf16.msra.mxu0 %v1021
        %1344 = vmatprep.subr.bf16.mxu0 %v1024
        %1345 = vmatpush1.bf16.msra.mxu0 %v1023
        %1346 = vmatprep.subr.bf16.mxu0 %v1026
        %1347 = vmatpush1.bf16.msra.mxu0 %v1025
        %1348 = vmatprep.subr.bf16.mxu0 %v1028
        %1349 = vmatpush1.bf16.msra.mxu0 %v1027
        %1350 = vmatprep.subr.bf16.mxu0 %v1030
        %1351 = vmatpush1.bf16.msra.mxu0 %v1029
        %1352 = vmatprep.subr.bf16.mxu0 %v1032
        %1353 = vmatpush1.bf16.msra.mxu0 %v1031
        %1354 = vmatprep.subr.bf16.mxu0 %v1034
        %1355 = vmatpush1.bf16.msra.mxu0 %v1033
        %1356 = vmatprep.mubr.bf16.mxu0 %v464
        %1357 = vmatmul.mubr.bf16.gmra.mrb[0].mxu0 %v463
        %v1358 = vpop.f32.mrb[0].mxu0
        %v1359 = vadd.f32 %v1316, %v1358
        %v1360 = vpop.f32.mrb[0].mxu0
        %v1361 = vadd.f32 %v1318, %v1360
        %v1362 = vpop.f32.mrb[0].mxu0
        %v1363 = vadd.f32 %v1320, %v1362
        %v1364 = vpop.f32.mrb[0].mxu0
        %v1365 = vadd.f32 %v1322, %v1364
        %1366 = vdwg.mxu0
        %1367 = vmatprep.subr.bf16.mxu0 %v1036
        %1368 = vmatpush1.bf16.msra.mxu0 %v1035
        %1369 = vmatprep.subr.bf16.mxu0 %v1038
        %1370 = vmatpush1.bf16.msra.mxu0 %v1037
        %1371 = vmatprep.subr.bf16.mxu0 %v1040
        %1372 = vmatpush1.bf16.msra.mxu0 %v1039
        %1373 = vmatprep.subr.bf16.mxu0 %v1042
        %1374 = vmatpush1.bf16.msra.mxu0 %v1041
        %1375 = vmatprep.subr.bf16.mxu0 %v1044
        %1376 = vmatpush1.bf16.msra.mxu0 %v1043
        %1377 = vmatprep.subr.bf16.mxu0 %v1046
        %1378 = vmatpush1.bf16.msra.mxu0 %v1045
        %1379 = vmatprep.subr.bf16.mxu0 %v1048
        %1380 = vmatpush1.bf16.msra.mxu0 %v1047
        %1381 = vmatprep.subr.bf16.mxu0 %v1050
        %1382 = vmatpush1.bf16.msra.mxu0 %v1049
        %1383 = vmatprep.subr.bf16.mxu0 0
        %1384 = vmatpush1.bf16.msra.mxu0 0
        %1385 = vmatprep.subr.bf16.mxu0 0
        %1386 = vmatpush1.bf16.msra.mxu0 0
        %1387 = vmatprep.subr.bf16.mxu0 0
        %1388 = vmatpush1.bf16.msra.mxu0 0
        %1389 = vmatprep.subr.bf16.mxu0 0
        %1390 = vmatpush1.bf16.msra.mxu0 0
        %1391 = vmatprep.subr.bf16.mxu0 0
        %1392 = vmatpush1.bf16.msra.mxu0 0
        %1393 = vmatprep.subr.bf16.mxu0 0
        %1394 = vmatpush1.bf16.msra.mxu0 0
        %1395 = vmatprep.subr.bf16.mxu0 0
        %1396 = vmatpush1.bf16.msra.mxu0 0
        %1397 = vmatprep.subr.bf16.mxu0 0
        %1398 = vmatpush1.bf16.msra.mxu0 0
        %1399 = vmatprep.mubr.bf16.mxu0 0
        %1400 = vmatmul.mubr.bf16.gmra.mrb[0].mxu0 %v465
        %v1401 = vpop.f32.mrb[0].mxu0
        %v1402 = vadd.f32 %v1359, %v1401
        %v1403 = vpop.f32.mrb[0].mxu0
        %v1404 = vadd.f32 %v1361, %v1403
        %v1405 = vpop.f32.mrb[0].mxu0
        %v1406 = vadd.f32 %v1363, %v1405
        %v1407 = vpop.f32.mrb[0].mxu0
        %v1408 = vadd.f32 %v1365, %v1407
        %1409 = vdwg.mxu0
        %v1410 = vld [vmem:[#allocation2] sm:$0xff]
        %v1411 = vld [vmem:[#allocation2 + $0x8] sm:$0xff]
        %v1412 = vld [vmem:[#allocation2 + $0x10] sm:$0xff]
        %v1413 = vld [vmem:[#allocation2 + $0x18] sm:$0xff]
        %v1414 = vmul.f32 %v1410, 0.75
        %v1415 = vmul.f32 %v1411, 0.75
        %v1416 = vmul.f32 %v1412, 0.75
        %v1417 = vmul.f32 %v1413, 0.75
        %v1418 = vadd.f32 %v1414, %v1402
        %v1419 = vadd.f32 %v1415, %v1404
        %v1420 = vadd.f32 %v1416, %v1406
        %v1421 = vadd.f32 %v1417, %v1408
        %v1422 = vld [vmem:[#allocation3] sm:$0xff]
        %v1423 = vld [vmem:[#allocation3 + $0x8] sm:$0xff]
        %v1424 = vld [vmem:[#allocation3 + $0x10] sm:$0xff]
        %v1425 = vld [vmem:[#allocation3 + $0x18] sm:$0xff]
        %v1426 = vmul.f32 %v1422, 0.97
        %v1427 = vmul.f32 %v1423, 0.97
        %v1428 = vmul.f32 %v1424, 0.97
        %v1429 = vmul.f32 %v1425, 0.97
        %v1430 = vadd.f32 %v1426, %v1418
        %v1431 = vadd.f32 %v1427, %v1419
        %v1432 = vadd.f32 %v1428, %v1420
        %v1433 = vadd.f32 %v1429, %v1421
        %vm1434 = vcmp.ge.f32.partialorder %v1430, 1.0
        %vm1435 = vcmp.ge.f32.partialorder %v1431, 1.0
        %vm1436 = vcmp.ge.f32.partialorder %v1432, 1.0
        %vm1437 = vcmp.ge.f32.partialorder %v1433, 1.0
        %v1438 = vsel %vm1434, 1.0, 0.0
        %v1439 = vsel %vm1435, 1.0, 0.0
        %v1440 = vsel %vm1436, 1.0, 0.0
        %v1441 = vsel %vm1437, 1.0, 0.0
        %1442 = vst [vmem:[#allocation2] sm:$0xff] %v1418
        %1443 = vst [vmem:[#allocation2 + $0x8] sm:$0xff] %v1419
        %1444 = vst [vmem:[#allocation2 + $0x10] sm:$0xff] %v1420
        %1445 = vst [vmem:[#allocation2 + $0x18] sm:$0xff] %v1421
        %v1446 = vsel %vm1434, 0.0, %v1430
        %v1447 = vsel %vm1435, 0.0, %v1431
        %v1448 = vsel %vm1436, 0.0, %v1432
        %v1449 = vsel %vm1437, 0.0, %v1433
        %1450 = vst [vmem:[#allocation3] sm:$0xff] %v1446
        %1451 = vst [vmem:[#allocation3 + $0x8] sm:$0xff] %v1447
        %1452 = vst [vmem:[#allocation3 + $0x10] sm:$0xff] %v1448
        %1453 = vst [vmem:[#allocation3 + $0x18] sm:$0xff] %v1449
        %v1454 = vld [vmem:[%s250] sm:$0xff]
        %v1455 = vld [vmem:[%s250 + $0x8] sm:$0xff]
        %v1456 = vld [vmem:[%s250 + $0x10] sm:$0xff]
        %v1457 = vld [vmem:[%s250 + $0x18] sm:$0xff]
        %v1458 = vadd.f32 %v1454, %v1438
        %v1459 = vadd.f32 %v1455, %v1439
        %v1460 = vadd.f32 %v1456, %v1440
        %v1461 = vadd.f32 %v1457, %v1441
        %1462 = vst [vmem:[%s250] sm:$0xff] %v1458
        %1463 = vst [vmem:[%s250 + $0x8] sm:$0xff] %v1459
        %1464 = vst [vmem:[%s250 + $0x10] sm:$0xff] %v1460
        %1465 = vst [vmem:[%s250 + $0x18] sm:$0xff] %v1461
        %v1466 = vpack.c.bf16 %v1440, %v1438
        %v1467 = vpack.c.bf16 %v1441, %v1439
        %v1470 = vunpack.c.l.b16 %v1466
        %v1471 = vunpack.c.l.b16 %v1467
        %v1472 = vunpack.c.h.b16 %v1466
        %v1473 = vunpack.c.h.b16 %v1467
        %v1474 = vpack.c.b16 %v1471, %v1470
        %v1475 = vpack.c.b16 %v1473, %v1472
        %1478 = vst [vmem:[%s243] sm:$0xff] %v1474
        %1479 = vst [vmem:[%s243 + $0x8] sm:$0xff] %v1475
      $region36: #{conv_class_forward.10} parent=27 // pred_fallthru
        _
      %s1480 = smul.u32 2, %s19
      %p1481 = scmp.lt.s32.totalorder %s20, 7
      %s1482 = scalar_select %p1481, %s20, 7
      %p1483 = scmp.lt.s32.totalorder %s1480, 3
      %s1484 = scalar_select %p1483, %s1480, 3
      %s1485 = smul.addr %s1484, 2
      %s1486 = smul.addr %s1482, 8
      %s1487 = sadd.s32 %s1485, %s1486
      %s1488 = smul.addr %s1487, 4
      %s1489 = scalar_lea.vmem %s2, %s1488
      %s1490 = smul.u32 2, %s19
      %p1491 = scmp.lt.s32.totalorder %s1490, 3
      %s1492 = scalar_select %p1491, %s1490, 3
      %s1493 = smul.addr %s1492, 2
      %s1494 = smul.addr %s1493, 8
      %s1495 = scalar_lea.vmem %s3, %s1494
      // Predicated region
      $region37: #{conv_class_forward.10} parent=27 // pred_check
        %p1496 = pneg %p102
      $region38: #{conv_class_forward.10} parent=27 // pred_check_branch
        %1498 = sbr.rel (%p1496) target = $region40
      $region39: #{conv_class_forward.10} parent=27 // pred_region
        %s1499 = smul.u32 2, %s19
      $region40: #{conv_class_forward.10} parent=27 // pred_fallthru
        _
      // Predicated region
      $region41: #{conv_class_forward.10} parent=27 // pred_check
        %p1500 = pneg %p128
      $region42: #{conv_class_forward.10} parent=27 // pred_check_branch
        %1502 = sbr.rel (%p1500) target = $region44
      $region43: #{conv_class_forward.10} parent=27 // pred_region
        %s1503 = smul.u32 2, %s19
      $region44: #{conv_class_forward.10} parent=27 // pred_fallthru
        _
    $region28: #{conv_class_forward.10} parent=5 // pred_fallthru
      _
    %p1504 = scmp.le.s32.totalorder 2, %s10
    // Predicated region
    $region45: #{conv_class_forward.10} parent=5 // pred_check
      %p1505 = pneg %p1504
    $region46: #{conv_class_forward.10} parent=5 // pred_check_branch
      %1507 = sbr.rel (%p1505) target = $region48
    $region47: #{conv_class_forward.10} parent=5 // pred_region
      %s1508 = ssub.s32 %s10, 2
      // Predicated region
      $region49: #{conv_class_forward.10} parent=47 // pred_check
        %p1509 = pneg %p108
      $region50: #{conv_class_forward.10} parent=47 // pred_check_branch
        %1511 = sbr.rel (%p1509) target = $region52
      $region51: #{conv_class_forward.10} parent=47 // pred_region
        %s1512 = smul.u32 2, %s21
        %p1513 = scmp.lt.s32.totalorder %s22, 7
        %s1514 = scalar_select %p1513, %s22, 7
        %p1515 = scmp.lt.s32.totalorder %s1512, 3
        %s1516 = scalar_select %p1515, %s1512, 3
        %s1517 = smul.addr %s1516, 2
        %s1518 = smul.addr %s1514, 8
        %s1519 = sadd.s32 %s1517, %s1518
        %s1520 = smul.addr %s1519, 4
        %s1521 = scalar_lea.vmem %s2, %s1520
      $region52: #{conv_class_forward.10} parent=47 // pred_fallthru
        _
      // Predicated region
      $region53: #{conv_class_forward.10} parent=47 // pred_check
        %p1522 = pneg %p134
      $region54: #{conv_class_forward.10} parent=47 // pred_check_branch
        %1524 = sbr.rel (%p1522) target = $region56
      $region55: #{conv_class_forward.10} parent=47 // pred_region
        %s1525 = smul.u32 2, %s21
        %p1526 = scmp.lt.s32.totalorder %s1525, 3
        %s1527 = scalar_select %p1526, %s1525, 3
        %s1528 = smul.addr %s1527, 2
        %s1529 = smul.addr %s1528, 8
        %s1530 = scalar_lea.vmem %s3, %s1529
      $region56: #{conv_class_forward.10} parent=47 // pred_fallthru
        _
    $region48: #{conv_class_forward.10} parent=5 // pred_fallthru
      _
  $region6: #{conv_class_forward.10} parent=0 // loop_footer
    %s14 = sadd.s32 1, %s10
  $region7: #{conv_class_forward.10} parent=0 // loop_footer_branch
    %9 = sbr.rel target = $region3
  $region8: #{conv_class_forward.10} parent=0 // loop_exit
    _

// kernel: conv_class_forward.12
$region0: #{conv_class_forward.12}
  #allocation0 [shape = 'u32[]', space=smem, size = 0x4, offset = 0x4, fixed_abs, tag = 'smem constant byte address 0x4 - core index']
  #allocation1 [shape = 'u32[144,128]{1,0:T(1,128)}', space=vmem, size = 0x12000, scoped, tag = 'internal scratch']
  #allocation2 [shape = 'f32[16,128]{1,0:T(8,128)}', space=vmem, size = 0x2000, scoped, tag = 'scratch operand']
  #allocation3 [shape = 'f32[16,128]{1,0:T(8,128)}', space=vmem, size = 0x2000, scoped, tag = 'scratch operand']
  %s0 = inlined_call_operand.vmem [shape: bf16[8,16,128], index: 0, kind: input, shape index: {}]
  %s1 = inlined_call_operand.vmem [shape: bf16[128,128], index: 1, kind: input, shape index: {}]
  %s2 = inlined_call_operand.vmem [shape: bf16[8,16,128], index: 2, kind: output, shape index: {0}]
  %s3 = inlined_call_operand.vmem [shape: f32[16,128], index: 3, kind: output, shape index: {1}]
  %4 = xla_tuple %s2, %s3
  %s5 = sld [smem:[#allocation0]]
  $region57: #{conv_class_forward.12} parent=0
    _
  %s7 = ssub.s32 1, %s5
  %s8 = scalar_select 0, %s7, %s5
  loop: start=0, step=1, limit=10
  $region2: #{conv_class_forward.12} parent=0 // loop_pre_header
    _
  $region3: #{conv_class_forward.12} parent=0 // loop_header
    %s10 = sphi 0, %s14
    %p11 = scmp.ge.s32.totalorder %s10, 10
    %s17 = sphi 0, %s29
    %s18 = sphi 0, %s25
    %s19 = sphi 0, %s17
    %s20 = sphi 0, %s18
    %s21 = sphi 0, %s19
    %s22 = sphi 0, %s20
    %s40 = sphi 0, %s42
    %s43 = sphi 0, %s40
    %s44 = sphi 0, %s43
    %s60 = sphi 0, %s44
    %s64 = sphi 0, %s64
    %s66 = sphi 0, %s64
    %s67 = sphi 0, %s66
    %s81 = sphi 0, %s67
    %s89 = sphi 0, %s91
    %s92 = sphi 0, %s89
    %s93 = sphi 0, %s92
    %s109 = sphi 0, %s93
    %s115 = sphi 0, %s117
    %s118 = sphi 0, %s115
    %s119 = sphi 0, %s118
    %s135 = sphi 0, %s119
  $region4: #{conv_class_forward.12} parent=0 // loop_header_branch
    %13 = sbr.rel (%p11) target = $region8
  $region5: #{conv_class_forward.12} parent=0 // loop_body
    %s15 = ssub.s32 %s10, 1
    %s16 = ssub.s32 %s10, 2
    %s23 = sadd.s32 1, %s18
    %p24 = scmp.ge.s32.totalorder %s23, 8
    %s25 = scalar_select %p24, 0, %s23
    %s26 = sadd.s32 1, %s17
    %s27 = scalar_select %p24, %s26, %s17
    %p28 = scmp.ge.s32.totalorder %s27, 1
    %s29 = scalar_select %p28, 0, %s27
    %s30 = ssub.s32 %s18, 1
    %p31 = scmp.gt.s32.totalorder %s30, 0
    %s32 = scalar_select %p31, %s30, 0
    %s33 = ssub.s32 %s25, 1
    %p34 = scmp.gt.s32.totalorder %s33, 0
    %s35 = scalar_select %p34, %s33, 0
    %s36 = ssub.s32 %s32, %s35
    %s37 = ssub.s32 %s17, %s29
    %s38 = sor.u32 %s36, %s37
    %p39 = scmp.eq.s32.totalorder %s38, 0
    %s41 = sadd.s32 %s40, 1
    %s42 = scalar_select %p39, %s40, %s41
    %p45 = pneg %p39
    %p46 = scmp.eq.s32.totalorder %s10, 7
    %p47 = por %p45, %p46
    %p48 = scmp.ne.s32.totalorder %s40, %s43
    %p49 = scmp.eq.s32.totalorder %s10, 0
    %p50 = por %p48, %p49
    %p51 = scmp.ne.s32.totalorder %s40, %s43
    %p52 = scmp.eq.s32.totalorder %s15, 7
    %p53 = por %p51, %p52
    %p54 = scmp.ne.s32.totalorder %s43, %s44
    %p55 = scmp.eq.s32.totalorder %s15, 0
    %p56 = por %p54, %p55
    %p57 = scmp.ne.s32.totalorder %s43, %s44
    %p58 = scmp.eq.s32.totalorder %s16, 7
    %p59 = por %p57, %p58
    %p61 = scmp.ne.s32.totalorder %s44, %s60
    %p62 = scmp.eq.s32.totalorder %s16, 0
    %p63 = por %p61, %p62
    %s65 = sadd.s32 %s64, 1
    %p68 = scmp.eq.s32.totalorder %s10, 7
    %p69 = scmp.ne.s32.totalorder %s64, %s66
    %p70 = scmp.eq.s32.totalorder %s10, 0
    %p71 = por %p69, %p70
    %p72 = scmp.ne.s32.totalorder %s64, %s66
    %p73 = scmp.eq.s32.totalorder %s15, 7
    %p74 = por %p72, %p73
    %p75 = scmp.ne.s32.totalorder %s66, %s67
    %p76 = scmp.eq.s32.totalorder %s15, 0
    %p77 = por %p75, %p76
    %p78 = scmp.ne.s32.totalorder %s66, %s67
    %p79 = scmp.eq.s32.totalorder %s16, 7
    %p80 = por %p78, %p79
    %p82 = scmp.ne.s32.totalorder %s67, %s81
    %p83 = scmp.eq.s32.totalorder %s16, 0
    %p84 = por %p82, %p83
    %s85 = ssub.s32 %s18, %s25
    %s86 = ssub.s32 %s17, %s29
    %s87 = sor.u32 %s85, %s86
    %p88 = scmp.eq.s32.totalorder %s87, 0
    %s90 = sadd.s32 %s89, 1
    %s91 = scalar_select %p88, %s89, %s90
    %p94 = pneg %p88
    %p95 = scmp.eq.s32.totalorder %s10, 7
    %p96 = por %p94, %p95
    %p97 = scmp.ne.s32.totalorder %s89, %s92
    %p98 = scmp.eq.s32.totalorder %s10, 0
    %p99 = por %p97, %p98
    %p100 = scmp.ne.s32.totalorder %s89, %s92
    %p101 = scmp.eq.s32.totalorder %s15, 7
    %p102 = por %p100, %p101
    %p103 = scmp.ne.s32.totalorder %s92, %s93
    %p104 = scmp.eq.s32.totalorder %s15, 0
    %p105 = por %p103, %p104
    %p106 = scmp.ne.s32.totalorder %s92, %s93
    %p107 = scmp.eq.s32.totalorder %s16, 7
    %p108 = por %p106, %p107
    %p110 = scmp.ne.s32.totalorder %s93, %s109
    %p111 = scmp.eq.s32.totalorder %s16, 0
    %p112 = por %p110, %p111
    %s113 = ssub.s32 %s17, %s29
    %p114 = scmp.eq.s32.totalorder %s113, 0
    %s116 = sadd.s32 %s115, 1
    %s117 = scalar_select %p114, %s115, %s116
    %p120 = pneg %p114
    %p121 = scmp.eq.s32.totalorder %s10, 7
    %p122 = por %p120, %p121
    %p123 = scmp.ne.s32.totalorder %s115, %s118
    %p124 = scmp.eq.s32.totalorder %s10, 0
    %p125 = por %p123, %p124
    %p126 = scmp.ne.s32.totalorder %s115, %s118
    %p127 = scmp.eq.s32.totalorder %s15, 7
    %p128 = por %p126, %p127
    %p129 = scmp.ne.s32.totalorder %s118, %s119
    %p130 = scmp.eq.s32.totalorder %s15, 0
    %p131 = por %p129, %p130
    %p132 = scmp.ne.s32.totalorder %s118, %s119
    %p133 = scmp.eq.s32.totalorder %s16, 7
    %p134 = por %p132, %p133
    %p136 = scmp.ne.s32.totalorder %s119, %s135
    %p137 = scmp.eq.s32.totalorder %s16, 0
    %p138 = por %p136, %p137
    %p139 = scmp.le.s32.totalorder 1, %s10
    %p140 = scmp.lt.s32.totalorder %s10, 9
    %p141 = pnand %p139, %p140
    %p142 = pneg %p141
    // Predicated region
    $region9: #{conv_class_forward.12} parent=5 // pred_check
      _
    $region10: #{conv_class_forward.12} parent=5 // pred_check_branch
      %144 = sbr.rel (%p141) target = $region12
    $region11: #{conv_class_forward.12} parent=5 // pred_region
      %s145 = ssub.s32 %s10, 1
      // Predicated region
      $region13: #{conv_class_forward.12} parent=11 // pred_check
        %p146 = pneg %p77
      $region14: #{conv_class_forward.12} parent=11 // pred_check_branch
        %148 = sbr.rel (%p146) target = $region16
      $region15: #{conv_class_forward.12} parent=11 // pred_region
        _
      $region16: #{conv_class_forward.12} parent=11 // pred_fallthru
        _
    $region12: #{conv_class_forward.12} parent=5 // pred_fallthru
      _
    %p149 = scmp.lt.s32.totalorder %s10, 8
    // Predicated region
    $region17: #{conv_class_forward.12} parent=5 // pred_check
      %p150 = pneg %p149
    $region18: #{conv_class_forward.12} parent=5 // pred_check_branch
      %152 = sbr.rel (%p150) target = $region20
    $region19: #{conv_class_forward.12} parent=5 // pred_region
      // Predicated region
      $region21: #{conv_class_forward.12} parent=19 // pred_check
        %p153 = pneg %p50
      $region22: #{conv_class_forward.12} parent=19 // pred_check_branch
        %155 = sbr.rel (%p153) target = $region24
      $region23: #{conv_class_forward.12} parent=19 // pred_region
        %s156 = ssub.s32 %s18, 1
        %p157 = scmp.gt.s32.totalorder %s156, 0
        %s158 = scalar_select %p157, %s156, 0
        %s159 = smul.u32 2, %s17
        %p160 = scmp.lt.s32.totalorder %s158, 7
        %s161 = scalar_select %p160, %s158, 7
        %p162 = scmp.lt.s32.totalorder %s159, 1
        %s163 = scalar_select %p162, %s159, 1
        %s164 = smul.addr %s161, 2
        %s165 = sadd.s32 %s163, %s164
        %s166 = smul.addr %s165, 4
        %s167 = scalar_lea.vmem %s0, %s166
        %s168 = ssub.s32 %s18, 1
        %p169 = scmp.gt.s32.totalorder %s168, 0
        %s170 = scalar_select %p169, %s168, 0
        %s171 = smul.u32 2, %s17
      $region24: #{conv_class_forward.12} parent=19 // pred_fallthru
        _
    $region20: #{conv_class_forward.12} parent=5 // pred_fallthru
      _
    %p172 = scmp.le.s32.totalorder 1, %s10
    %p173 = scmp.lt.s32.totalorder %s10, 9
    %p174 = pnand %p172, %p173
    %p175 = pneg %p174
    // Predicated region
    $region25: #{conv_class_forward.12} parent=5 // pred_check
      _
    $region26: #{conv_class_forward.12} parent=5 // pred_check_branch
      %177 = sbr.rel (%p174) target = $region28
    $region27: #{conv_class_forward.12} parent=5 // pred_region
      %s178 = ssub.s32 %s10, 1
      %s179 = ssub.s32 %s20, 1
      %p180 = scmp.gt.s32.totalorder %s179, 0
      %s181 = scalar_select %p180, %s179, 0
      %s182 = smul.u32 2, %s19
      %p183 = scmp.lt.s32.totalorder %s181, 7
      %s184 = scalar_select %p183, %s181, 7
      %p185 = scmp.lt.s32.totalorder %s182, 1
      %s186 = scalar_select %p185, %s182, 1
      %s187 = smul.addr %s184, 2
      %s188 = sadd.s32 %s186, %s187
      %s189 = smul.addr %s188, 4
      %s190 = scalar_lea.vmem %s0, %s189
      %p191 = pneg %p56
      %p192 = pneg %p53
      %p193 = pneg %p77
      %p194 = pneg %p74
      %p195 = pneg %p105
      %p196 = pneg %p102
      %s197 = smul.u32 2, %s19
      %p198 = scmp.lt.s32.totalorder %s20, 7
      %s199 = scalar_select %p198, %s20, 7
      %p200 = scmp.lt.s32.totalorder %s197, 1
      %s201 = scalar_select %p200, %s197, 1
      %s202 = smul.addr %s199, 2
      %s203 = sadd.s32 %s201, %s202
      %s204 = smul.addr %s203, 4
      %s205 = scalar_lea.vmem %s2, %s204
      %p206 = pneg %p131
      %p207 = pneg %p128
      %s208 = smul.u32 2, %s19
      %p209 = scmp.lt.s32.totalorder %s208, 1
      %s210 = scalar_select %p209, %s208, 1
      %s211 = smul.addr %s210, 8
      %s212 = scalar_lea.vmem %s3, %s211
      %s213 = ssub.s32 %s20, 1
      %p214 = scmp.gt.s32.totalorder %s213, 0
      %s215 = scalar_select %p214, %s213, 0
      %s216 = smul.u32 2, %s19
      %p217 = scmp.lt.s32.totalorder %s215, 7
      %s218 = scalar_select %p217, %s215, 7
      %p219 = scmp.lt.s32.totalorder %s216, 1
      %s220 = scalar_select %p219, %s216, 1
      %s221 = smul.addr %s218, 2
      %s222 = sadd.s32 %s220, %s221
      %s223 = smul.addr %s222, 4
      %s224 = scalar_lea.vmem %s0, %s223
      %s225 = ssub.s32 %s20, 1
      %p226 = scmp.gt.s32.totalorder %s225, 0
      %s227 = scalar_select %p226, %s225, 0
      %s228 = smul.u32 2, %s19
      %s229 = smul.u32 2, %s19
      %p230 = scmp.lt.s32.totalorder %s20, 7
      %s231 = scalar_select %p230, %s20, 7
      %p232 = scmp.lt.s32.totalorder %s229, 1
      %s233 = scalar_select %p232, %s229, 1
      %s234 = smul.addr %s231, 2
      %s235 = sadd.s32 %s233, %s234
      %s236 = smul.addr %s235, 4
      %s237 = scalar_lea.vmem %s2, %s236
      %s238 = smul.u32 2, %s19
      %s239 = smul.u32 2, %s19
      %p240 = scmp.lt.s32.totalorder %s239, 1
      %s241 = scalar_select %p240, %s239, 1
      %s242 = smul.addr %s241, 8
      %s243 = scalar_lea.vmem %s3, %s242
      %s244 = smul.u32 2, %s19
      %p246 = scmp.eq.s32.totalorder %s20, 0
      // Predicated region
      $region29: #{conv_class_forward.12} parent=27 // pred_check
        %p247 = pneg %p246
      $region30: #{conv_class_forward.12} parent=27 // pred_check_branch
        %249 = sbr.rel (%p247) target = $region32
      $region31: #{conv_class_forward.12} parent=27 // pred_region
        %250 = vst [vmem:[#allocation2] sm:$0xff] 0.0
        %251 = vst [vmem:[#allocation2 + $0x8] sm:$0xff] 0.0
        %252 = vst [vmem:[#allocation3] sm:$0xff] 0.0
        %253 = vst [vmem:[#allocation3 + $0x8] sm:$0xff] 0.0
        %254 = vst [vmem:[%s243] sm:$0xff] 0.0
        %255 = vst [vmem:[%s243 + $0x8] sm:$0xff] 0.0
        %256 = vst [vmem:[%s237] sm:$0xf] 0
        %257 = vst [vmem:[%s237 + $0x4] sm:$0xf] 0
      $region32: #{conv_class_forward.12} parent=27 // pred_fallthru
        _
      %p258 = scmp.gt.s32.totalorder %s20, 0
      // Predicated region
      $region33: #{conv_class_forward.12} parent=27 // pred_check
        %p259 = pneg %p258
      $region34: #{conv_class_forward.12} parent=27 // pred_check_branch
        %261 = sbr.rel (%p259) target = $region36
      $region35: #{conv_class_forward.12} parent=27 // pred_region
        %v262 = vld [vmem:[%s224] sm:$0xf]
        %v263 = vld [vmem:[%s224 + $0x4] sm:$0xf]
        %v264 = vld [vmem:[%s1] sm:$0xf]
        %v265 = vld [vmem:[%s1 + $0x4] sm:$0xf]
        %v266 = vld [vmem:[%s1 + $0x8] sm:$0xf]
        %v267 = vld [vmem:[%s1 + $0xc] sm:$0xf]
        %v268 = vld [vmem:[%s1 + $0x10] sm:$0xf]
        %v269 = vld [vmem:[%s1 + $0x14] sm:$0xf]
        %v270 = vld [vmem:[%s1 + $0x18] sm:$0xf]
        %v271 = vld [vmem:[%s1 + $0x1c] sm:$0xf]
        %v272 = vld [vmem:[%s1 + $0x20] sm:$0xf]
        %v273 = vld [vmem:[%s1 + $0x24] sm:$0xf]
        %v274 = vld [vmem:[%s1 + $0x28] sm:$0xf]
        %v275 = vld [vmem:[%s1 + $0x2c] sm:$0xf]
        %v276 = vld [vmem:[%s1 + $0x30] sm:$0xf]
        %v277 = vld [vmem:[%s1 + $0x34] sm:$0xf]
        %v278 = vld [vmem:[%s1 + $0x38] sm:$0xf]
        %v279 = vld [vmem:[%s1 + $0x3c] sm:$0xf]
        %v282 = vunpack.c.l.b16 %v262
        %v283 = vunpack.c.l.b16 %v263
        %v284 = vpack.c.b16 %v283, %v282
        %v302 = vunpack.c.l.b16 %v264
        %v303 = vunpack.c.l.b16 %v265
        %v304 = vunpack.c.l.b16 %v266
        %v305 = vunpack.c.l.b16 %v267
        %v306 = vunpack.c.l.b16 %v268
        %v307 = vunpack.c.l.b16 %v269
        %v308 = vunpack.c.l.b16 %v270
        %v309 = vunpack.c.l.b16 %v271
        %v310 = vunpack.c.l.b16 %v272
        %v311 = vunpack.c.l.b16 %v273
        %v312 = vunpack.c.l.b16 %v274
        %v313 = vunpack.c.l.b16 %v275
        %v314 = vunpack.c.l.b16 %v276
        %v315 = vunpack.c.l.b16 %v277
        %v316 = vunpack.c.l.b16 %v278
        %v317 = vunpack.c.l.b16 %v279
        %v318 = vpack.c.b16 %v303, %v302
        %v319 = vpack.c.b16 %v305, %v304
        %v320 = vpack.c.b16 %v307, %v306
        %v321 = vpack.c.b16 %v309, %v308
        %v322 = vpack.c.b16 %v311, %v310
        %v323 = vpack.c.b16 %v313, %v312
        %v324 = vpack.c.b16 %v315, %v314
        %v325 = vpack.c.b16 %v317, %v316
        %334 = vmatprep.subr.bf16.mxu0 0
        %335 = vmatpush1.bf16.msra.mxu0 %v318
        %336 = vmatprep.subr.bf16.mxu0 0
        %337 = vmatpush1.bf16.msra.mxu0 %v319
        %338 = vmatprep.subr.bf16.mxu0 0
        %339 = vmatpush1.bf16.msra.mxu0 %v320
        %340 = vmatprep.subr.bf16.mxu0 0
        %341 = vmatpush1.bf16.msra.mxu0 %v321
        %342 = vmatprep.subr.bf16.mxu0 0
        %343 = vmatpush1.bf16.msra.mxu0 %v322
        %344 = vmatprep.subr.bf16.mxu0 0
        %345 = vmatpush1.bf16.msra.mxu0 %v323
        %346 = vmatprep.subr.bf16.mxu0 0
        %347 = vmatpush1.bf16.msra.mxu0 %v324
        %348 = vmatprep.subr.bf16.mxu0 0
        %349 = vmatpush1.bf16.msra.mxu0 %v325
        %350 = vmatprep.subr.bf16.mxu0 0
        %351 = vmatpush1.bf16.msra.mxu0 0
        %352 = vmatprep.subr.bf16.mxu0 0
        %353 = vmatpush1.bf16.msra.mxu0 0
        %354 = vmatprep.subr.bf16.mxu0 0
        %355 = vmatpush1.bf16.msra.mxu0 0
        %356 = vmatprep.subr.bf16.mxu0 0
        %357 = vmatpush1.bf16.msra.mxu0 0
        %358 = vmatprep.subr.bf16.mxu0 0
        %359 = vmatpush1.bf16.msra.mxu0 0
        %360 = vmatprep.subr.bf16.mxu0 0
        %361 = vmatpush1.bf16.msra.mxu0 0
        %362 = vmatprep.subr.bf16.mxu0 0
        %363 = vmatpush1.bf16.msra.mxu0 0
        %364 = vmatprep.subr.bf16.mxu0 0
        %365 = vmatpush1.bf16.msra.mxu0 0
        %366 = vmatprep.mubr.bf16.mxu0 0
        %367 = vmatmul.mubr.bf16.gmra.mrb[0].mxu0 %v284
        %v368 = vpop.f32.mrb[0].mxu0
        %v369 = vadd.f32 0.0, %v368
        %v370 = vpop.f32.mrb[0].mxu0
        %v371 = vpop.f32.mrb[0].mxu0
        %v372 = vadd.f32 0.0, %v371
        %v373 = vpop.f32.mrb[0].mxu0
        %374 = vdwg.mxu0
        %v375 = vld [vmem:[#allocation2] sm:$0xff]
        %v376 = vld [vmem:[#allocation2 + $0x8] sm:$0xff]
        %v377 = vmul.f32 %v375, 0.75
        %v378 = vmul.f32 %v376, 0.75
        %v379 = vadd.f32 %v377, %v369
        %v380 = vadd.f32 %v378, %v372
        %v381 = vld [vmem:[#allocation3] sm:$0xff]
        %v382 = vld [vmem:[#allocation3 + $0x8] sm:$0xff]
        %v383 = vmul.f32 %v381, 0.97
        %v384 = vmul.f32 %v382, 0.97
        %v385 = vadd.f32 %v383, %v379
        %v386 = vadd.f32 %v384, %v380
        %vm387 = vcmp.ge.f32.partialorder %v385, 1.0
        %vm388 = vcmp.ge.f32.partialorder %v386, 1.0
        %v389 = vsel %vm387, 1.0, 0.0
        %v390 = vsel %vm388, 1.0, 0.0
        %391 = vst [vmem:[#allocation2] sm:$0xff] %v379
        %392 = vst [vmem:[#allocation2 + $0x8] sm:$0xff] %v380
        %v393 = vsel %vm387, 0.0, %v385
        %v394 = vsel %vm388, 0.0, %v386
        %395 = vst [vmem:[#allocation3] sm:$0xff] %v393
        %396 = vst [vmem:[#allocation3 + $0x8] sm:$0xff] %v394
        %v397 = vld [vmem:[%s243] sm:$0xff]
        %v398 = vld [vmem:[%s243 + $0x8] sm:$0xff]
        %v399 = vadd.f32 %v397, %v389
        %v400 = vadd.f32 %v398, %v390
        %401 = vst [vmem:[%s243] sm:$0xff] %v399
        %402 = vst [vmem:[%s243 + $0x8] sm:$0xff] %v400
        %v403 = vpack.c.bf16 %v390, %v389
        %v405 = vunpack.c.l.b16 %v403
        %v406 = vunpack.c.h.b16 %v403
        %v407 = vpack.c.b16 %v405, %v405
        %v408 = vpack.c.b16 %v406, %v406
        %411 = vst [vmem:[%s237] sm:$0xf] %v407
        %412 = vst [vmem:[%s237 + $0x4] sm:$0xf] %v408
      $region36: #{conv_class_forward.12} parent=27 // pred_fallthru
        _
      %s413 = smul.u32 2, %s19
      %p414 = scmp.lt.s32.totalorder %s20, 7
      %s415 = scalar_select %p414, %s20, 7
      %p416 = scmp.lt.s32.totalorder %s413, 1
      %s417 = scalar_select %p416, %s413, 1
      %s418 = smul.addr %s415, 2
      %s419 = sadd.s32 %s417, %s418
      %s420 = smul.addr %s419, 4
      %s421 = scalar_lea.vmem %s2, %s420
      %s422 = smul.u32 2, %s19
      %p423 = scmp.lt.s32.totalorder %s422, 1
      %s424 = scalar_select %p423, %s422, 1
      %s425 = smul.addr %s424, 8
      %s426 = scalar_lea.vmem %s3, %s425
      // Predicated region
      $region37: #{conv_class_forward.12} parent=27 // pred_check
        %p427 = pneg %p102
      $region38: #{conv_class_forward.12} parent=27 // pred_check_branch
        %429 = sbr.rel (%p427) target = $region40
      $region39: #{conv_class_forward.12} parent=27 // pred_region
        %s430 = smul.u32 2, %s19
      $region40: #{conv_class_forward.12} parent=27 // pred_fallthru
        _
      // Predicated region
      $region41: #{conv_class_forward.12} parent=27 // pred_check
        %p431 = pneg %p128
      $region42: #{conv_class_forward.12} parent=27 // pred_check_branch
        %433 = sbr.rel (%p431) target = $region44
      $region43: #{conv_class_forward.12} parent=27 // pred_region
        %s434 = smul.u32 2, %s19
      $region44: #{conv_class_forward.12} parent=27 // pred_fallthru
        _
      // Predicated region
      $region45: #{conv_class_forward.12} parent=27 // pred_check
        %p435 = pneg %p128
      $region46: #{conv_class_forward.12} parent=27 // pred_check_branch
        %437 = sbr.rel (%p435) target = $region48
      $region47: #{conv_class_forward.12} parent=27 // pred_region
        %s438 = smul.u32 2, %s19
        %p439 = scmp.lt.s32.totalorder %s438, 1
        %s440 = scalar_select %p439, %s438, 1
        %s441 = smul.addr %s440, 8
        %s442 = scalar_lea.vmem %s3, %s441
      $region48: #{conv_class_forward.12} parent=27 // pred_fallthru
        _
    $region28: #{conv_class_forward.12} parent=5 // pred_fallthru
      _
    %p443 = scmp.le.s32.totalorder 2, %s10
    // Predicated region
    $region49: #{conv_class_forward.12} parent=5 // pred_check
      %p444 = pneg %p443
    $region50: #{conv_class_forward.12} parent=5 // pred_check_branch
      %446 = sbr.rel (%p444) target = $region52
    $region51: #{conv_class_forward.12} parent=5 // pred_region
      %s447 = ssub.s32 %s10, 2
      // Predicated region
      $region53: #{conv_class_forward.12} parent=51 // pred_check
        %p448 = pneg %p108
      $region54: #{conv_class_forward.12} parent=51 // pred_check_branch
        %450 = sbr.rel (%p448) target = $region56
      $region55: #{conv_class_forward.12} parent=51 // pred_region
        %s451 = smul.u32 2, %s21
        %p452 = scmp.lt.s32.totalorder %s22, 7
        %s453 = scalar_select %p452, %s22, 7
        %p454 = scmp.lt.s32.totalorder %s451, 1
        %s455 = scalar_select %p454, %s451, 1
        %s456 = smul.addr %s453, 2
        %s457 = sadd.s32 %s455, %s456
        %s458 = smul.addr %s457, 4
        %s459 = scalar_lea.vmem %s2, %s458
      $region56: #{conv_class_forward.12} parent=51 // pred_fallthru
        _
    $region52: #{conv_class_forward.12} parent=5 // pred_fallthru
      _
  $region6: #{conv_class_forward.12} parent=0 // loop_footer
    %s14 = sadd.s32 1, %s10
  $region7: #{conv_class_forward.12} parent=0 // loop_footer_branch
    %9 = sbr.rel target = $region3
  $region8: #{conv_class_forward.12} parent=0 // loop_exit
    _

// kernel: conv_class_forward.11
$region0: #{conv_class_forward.11}
  #allocation0 [shape = 'u32[]', space=smem, size = 0x4, offset = 0x4, fixed_abs, tag = 'smem constant byte address 0x4 - core index']
  #allocation1 [shape = 'u32[144,128]{1,0:T(1,128)}', space=vmem, size = 0x12000, scoped, tag = 'internal scratch']
  #allocation2 [shape = 'f32[16,128]{1,0:T(8,128)}', space=vmem, size = 0x2000, scoped, tag = 'scratch operand']
  #allocation3 [shape = 'f32[16,128]{1,0:T(8,128)}', space=vmem, size = 0x2000, scoped, tag = 'scratch operand']
  %s0 = inlined_call_operand.vmem [shape: bf16[8,16,2304], index: 0, kind: input, shape index: {}]
  %s1 = inlined_call_operand.vmem [shape: bf16[2304,128], index: 1, kind: input, shape index: {}]
  %s2 = inlined_call_operand.vmem [shape: bf16[8,16,128], index: 2, kind: output, shape index: {0}]
  %s3 = inlined_call_operand.vmem [shape: f32[16,128], index: 3, kind: output, shape index: {1}]
  %4 = xla_tuple %s2, %s3
  %s5 = sld [smem:[#allocation0]]
  $region57: #{conv_class_forward.11} parent=0
    _
  %s7 = ssub.s32 1, %s5
  %s8 = scalar_select 0, %s7, %s5
  loop: start=0, step=1, limit=10
  $region2: #{conv_class_forward.11} parent=0 // loop_pre_header
    _
  $region3: #{conv_class_forward.11} parent=0 // loop_header
    %s10 = sphi 0, %s14
    %p11 = scmp.ge.s32.totalorder %s10, 10
    %s17 = sphi 0, %s29
    %s18 = sphi 0, %s25
    %s19 = sphi 0, %s17
    %s20 = sphi 0, %s18
    %s21 = sphi 0, %s19
    %s22 = sphi 0, %s20
    %s40 = sphi 0, %s42
    %s43 = sphi 0, %s40
    %s44 = sphi 0, %s43
    %s60 = sphi 0, %s44
    %s64 = sphi 0, %s64
    %s66 = sphi 0, %s64
    %s67 = sphi 0, %s66
    %s81 = sphi 0, %s67
    %s89 = sphi 0, %s91
    %s92 = sphi 0, %s89
    %s93 = sphi 0, %s92
    %s109 = sphi 0, %s93
    %s115 = sphi 0, %s117
    %s118 = sphi 0, %s115
    %s119 = sphi 0, %s118
    %s135 = sphi 0, %s119
  $region4: #{conv_class_forward.11} parent=0 // loop_header_branch
    %13 = sbr.rel (%p11) target = $region8
  $region5: #{conv_class_forward.11} parent=0 // loop_body
    %s15 = ssub.s32 %s10, 1
    %s16 = ssub.s32 %s10, 2
    %s23 = sadd.s32 1, %s18
    %p24 = scmp.ge.s32.totalorder %s23, 8
    %s25 = scalar_select %p24, 0, %s23
    %s26 = sadd.s32 1, %s17
    %s27 = scalar_select %p24, %s26, %s17
    %p28 = scmp.ge.s32.totalorder %s27, 1
    %s29 = scalar_select %p28, 0, %s27
    %s30 = ssub.s32 %s18, 1
    %p31 = scmp.gt.s32.totalorder %s30, 0
    %s32 = scalar_select %p31, %s30, 0
    %s33 = ssub.s32 %s25, 1
    %p34 = scmp.gt.s32.totalorder %s33, 0
    %s35 = scalar_select %p34, %s33, 0
    %s36 = ssub.s32 %s32, %s35
    %s37 = ssub.s32 %s17, %s29
    %s38 = sor.u32 %s36, %s37
    %p39 = scmp.eq.s32.totalorder %s38, 0
    %s41 = sadd.s32 %s40, 1
    %s42 = scalar_select %p39, %s40, %s41
    %p45 = pneg %p39
    %p46 = scmp.eq.s32.totalorder %s10, 7
    %p47 = por %p45, %p46
    %p48 = scmp.ne.s32.totalorder %s40, %s43
    %p49 = scmp.eq.s32.totalorder %s10, 0
    %p50 = por %p48, %p49
    %p51 = scmp.ne.s32.totalorder %s40, %s43
    %p52 = scmp.eq.s32.totalorder %s15, 7
    %p53 = por %p51, %p52
    %p54 = scmp.ne.s32.totalorder %s43, %s44
    %p55 = scmp.eq.s32.totalorder %s15, 0
    %p56 = por %p54, %p55
    %p57 = scmp.ne.s32.totalorder %s43, %s44
    %p58 = scmp.eq.s32.totalorder %s16, 7
    %p59 = por %p57, %p58
    %p61 = scmp.ne.s32.totalorder %s44, %s60
    %p62 = scmp.eq.s32.totalorder %s16, 0
    %p63 = por %p61, %p62
    %s65 = sadd.s32 %s64, 1
    %p68 = scmp.eq.s32.totalorder %s10, 7
    %p69 = scmp.ne.s32.totalorder %s64, %s66
    %p70 = scmp.eq.s32.totalorder %s10, 0
    %p71 = por %p69, %p70
    %p72 = scmp.ne.s32.totalorder %s64, %s66
    %p73 = scmp.eq.s32.totalorder %s15, 7
    %p74 = por %p72, %p73
    %p75 = scmp.ne.s32.totalorder %s66, %s67
    %p76 = scmp.eq.s32.totalorder %s15, 0
    %p77 = por %p75, %p76
    %p78 = scmp.ne.s32.totalorder %s66, %s67
    %p79 = scmp.eq.s32.totalorder %s16, 7
    %p80 = por %p78, %p79
    %p82 = scmp.ne.s32.totalorder %s67, %s81
    %p83 = scmp.eq.s32.totalorder %s16, 0
    %p84 = por %p82, %p83
    %s85 = ssub.s32 %s18, %s25
    %s86 = ssub.s32 %s17, %s29
    %s87 = sor.u32 %s85, %s86
    %p88 = scmp.eq.s32.totalorder %s87, 0
    %s90 = sadd.s32 %s89, 1
    %s91 = scalar_select %p88, %s89, %s90
    %p94 = pneg %p88
    %p95 = scmp.eq.s32.totalorder %s10, 7
    %p96 = por %p94, %p95
    %p97 = scmp.ne.s32.totalorder %s89, %s92
    %p98 = scmp.eq.s32.totalorder %s10, 0
    %p99 = por %p97, %p98
    %p100 = scmp.ne.s32.totalorder %s89, %s92
    %p101 = scmp.eq.s32.totalorder %s15, 7
    %p102 = por %p100, %p101
    %p103 = scmp.ne.s32.totalorder %s92, %s93
    %p104 = scmp.eq.s32.totalorder %s15, 0
    %p105 = por %p103, %p104
    %p106 = scmp.ne.s32.totalorder %s92, %s93
    %p107 = scmp.eq.s32.totalorder %s16, 7
    %p108 = por %p106, %p107
    %p110 = scmp.ne.s32.totalorder %s93, %s109
    %p111 = scmp.eq.s32.totalorder %s16, 0
    %p112 = por %p110, %p111
    %s113 = ssub.s32 %s17, %s29
    %p114 = scmp.eq.s32.totalorder %s113, 0
    %s116 = sadd.s32 %s115, 1
    %s117 = scalar_select %p114, %s115, %s116
    %p120 = pneg %p114
    %p121 = scmp.eq.s32.totalorder %s10, 7
    %p122 = por %p120, %p121
    %p123 = scmp.ne.s32.totalorder %s115, %s118
    %p124 = scmp.eq.s32.totalorder %s10, 0
    %p125 = por %p123, %p124
    %p126 = scmp.ne.s32.totalorder %s115, %s118
    %p127 = scmp.eq.s32.totalorder %s15, 7
    %p128 = por %p126, %p127
    %p129 = scmp.ne.s32.totalorder %s118, %s119
    %p130 = scmp.eq.s32.totalorder %s15, 0
    %p131 = por %p129, %p130
    %p132 = scmp.ne.s32.totalorder %s118, %s119
    %p133 = scmp.eq.s32.totalorder %s16, 7
    %p134 = por %p132, %p133
    %p136 = scmp.ne.s32.totalorder %s119, %s135
    %p137 = scmp.eq.s32.totalorder %s16, 0
    %p138 = por %p136, %p137
    %p139 = scmp.le.s32.totalorder 1, %s10
    %p140 = scmp.lt.s32.totalorder %s10, 9
    %p141 = pnand %p139, %p140
    %p142 = pneg %p141
    // Predicated region
    $region9: #{conv_class_forward.11} parent=5 // pred_check
      _
    $region10: #{conv_class_forward.11} parent=5 // pred_check_branch
      %144 = sbr.rel (%p141) target = $region12
    $region11: #{conv_class_forward.11} parent=5 // pred_region
      %s145 = ssub.s32 %s10, 1
      // Predicated region
      $region13: #{conv_class_forward.11} parent=11 // pred_check
        %p146 = pneg %p77
      $region14: #{conv_class_forward.11} parent=11 // pred_check_branch
        %148 = sbr.rel (%p146) target = $region16
      $region15: #{conv_class_forward.11} parent=11 // pred_region
        _
      $region16: #{conv_class_forward.11} parent=11 // pred_fallthru
        _
    $region12: #{conv_class_forward.11} parent=5 // pred_fallthru
      _
    %p149 = scmp.lt.s32.totalorder %s10, 8
    // Predicated region
    $region17: #{conv_class_forward.11} parent=5 // pred_check
      %p150 = pneg %p149
    $region18: #{conv_class_forward.11} parent=5 // pred_check_branch
      %152 = sbr.rel (%p150) target = $region20
    $region19: #{conv_class_forward.11} parent=5 // pred_region
      // Predicated region
      $region21: #{conv_class_forward.11} parent=19 // pred_check
        %p153 = pneg %p50
      $region22: #{conv_class_forward.11} parent=19 // pred_check_branch
        %155 = sbr.rel (%p153) target = $region24
      $region23: #{conv_class_forward.11} parent=19 // pred_region
        %s156 = ssub.s32 %s18, 1
        %p157 = scmp.gt.s32.totalorder %s156, 0
        %s158 = scalar_select %p157, %s156, 0
        %s159 = smul.u32 2, %s17
        %p160 = scmp.lt.s32.totalorder %s158, 7
        %s161 = scalar_select %p160, %s158, 7
        %p162 = scmp.lt.s32.totalorder %s159, 1
        %s163 = scalar_select %p162, %s159, 1
        %s164 = smul.addr %s163, 18
        %s165 = smul.addr %s161, 36
        %s166 = sadd.s32 %s164, %s165
        %s167 = smul.addr %s166, 4
        %s168 = scalar_lea.vmem %s0, %s167
        %s169 = ssub.s32 %s18, 1
        %p170 = scmp.gt.s32.totalorder %s169, 0
        %s171 = scalar_select %p170, %s169, 0
        %s172 = smul.u32 2, %s17
      $region24: #{conv_class_forward.11} parent=19 // pred_fallthru
        _
    $region20: #{conv_class_forward.11} parent=5 // pred_fallthru
      _
    %p173 = scmp.le.s32.totalorder 1, %s10
    %p174 = scmp.lt.s32.totalorder %s10, 9
    %p175 = pnand %p173, %p174
    %p176 = pneg %p175
    // Predicated region
    $region25: #{conv_class_forward.11} parent=5 // pred_check
      _
    $region26: #{conv_class_forward.11} parent=5 // pred_check_branch
      %178 = sbr.rel (%p175) target = $region28
    $region27: #{conv_class_forward.11} parent=5 // pred_region
      %s179 = ssub.s32 %s10, 1
      %s180 = ssub.s32 %s20, 1
      %p181 = scmp.gt.s32.totalorder %s180, 0
      %s182 = scalar_select %p181, %s180, 0
      %s183 = smul.u32 2, %s19
      %p184 = scmp.lt.s32.totalorder %s182, 7
      %s185 = scalar_select %p184, %s182, 7
      %p186 = scmp.lt.s32.totalorder %s183, 1
      %s187 = scalar_select %p186, %s183, 1
      %s188 = smul.addr %s187, 18
      %s189 = smul.addr %s185, 36
      %s190 = sadd.s32 %s188, %s189
      %s191 = smul.addr %s190, 4
      %s192 = scalar_lea.vmem %s0, %s191
      %p193 = pneg %p56
      %p194 = pneg %p53
      %p195 = pneg %p77
      %p196 = pneg %p74
      %p197 = pneg %p105
      %p198 = pneg %p102
      %s199 = smul.u32 2, %s19
      %p200 = scmp.lt.s32.totalorder %s20, 7
      %s201 = scalar_select %p200, %s20, 7
      %p202 = scmp.lt.s32.totalorder %s199, 1
      %s203 = scalar_select %p202, %s199, 1
      %s204 = smul.addr %s201, 2
      %s205 = sadd.s32 %s203, %s204
      %s206 = smul.addr %s205, 4
      %s207 = scalar_lea.vmem %s2, %s206
      %p208 = pneg %p131
      %p209 = pneg %p128
      %s210 = smul.u32 2, %s19
      %p211 = scmp.lt.s32.totalorder %s210, 1
      %s212 = scalar_select %p211, %s210, 1
      %s213 = smul.addr %s212, 8
      %s214 = scalar_lea.vmem %s3, %s213
      %s215 = ssub.s32 %s20, 1
      %p216 = scmp.gt.s32.totalorder %s215, 0
      %s217 = scalar_select %p216, %s215, 0
      %s218 = smul.u32 2, %s19
      %p219 = scmp.lt.s32.totalorder %s217, 7
      %s220 = scalar_select %p219, %s217, 7
      %p221 = scmp.lt.s32.totalorder %s218, 1
      %s222 = scalar_select %p221, %s218, 1
      %s223 = smul.addr %s222, 18
      %s224 = smul.addr %s220, 36
      %s225 = sadd.s32 %s223, %s224
      %s226 = smul.addr %s225, 4
      %s227 = scalar_lea.vmem %s0, %s226
      %s228 = ssub.s32 %s20, 1
      %p229 = scmp.gt.s32.totalorder %s228, 0
      %s230 = scalar_select %p229, %s228, 0
      %s231 = smul.u32 2, %s19
      %s232 = smul.u32 2, %s19
      %p233 = scmp.lt.s32.totalorder %s20, 7
      %s234 = scalar_select %p233, %s20, 7
      %p235 = scmp.lt.s32.totalorder %s232, 1
      %s236 = scalar_select %p235, %s232, 1
      %s237 = smul.addr %s234, 2
      %s238 = sadd.s32 %s236, %s237
      %s239 = smul.addr %s238, 4
      %s240 = scalar_lea.vmem %s2, %s239
      %s241 = smul.u32 2, %s19
      %s242 = smul.u32 2, %s19
      %p243 = scmp.lt.s32.totalorder %s242, 1
      %s244 = scalar_select %p243, %s242, 1
      %s245 = smul.addr %s244, 8
      %s246 = scalar_lea.vmem %s3, %s245
      %s247 = smul.u32 2, %s19
      %p249 = scmp.eq.s32.totalorder %s20, 0
      // Predicated region
      $region29: #{conv_class_forward.11} parent=27 // pred_check
        %p250 = pneg %p249
      $region30: #{conv_class_forward.11} parent=27 // pred_check_branch
        %252 = sbr.rel (%p250) target = $region32
      $region31: #{conv_class_forward.11} parent=27 // pred_region
        %253 = vst [vmem:[#allocation2] sm:$0xff] 0.0
        %254 = vst [vmem:[#allocation2 + $0x8] sm:$0xff] 0.0
        %255 = vst [vmem:[#allocation3] sm:$0xff] 0.0
        %256 = vst [vmem:[#allocation3 + $0x8] sm:$0xff] 0.0
        %257 = vst [vmem:[%s246] sm:$0xff] 0.0
        %258 = vst [vmem:[%s246 + $0x8] sm:$0xff] 0.0
        %259 = vst [vmem:[%s240] sm:$0xf] 0
        %260 = vst [vmem:[%s240 + $0x4] sm:$0xf] 0
      $region32: #{conv_class_forward.11} parent=27 // pred_fallthru
        _
      %p261 = scmp.gt.s32.totalorder %s20, 0
      // Predicated region
      $region33: #{conv_class_forward.11} parent=27 // pred_check
        %p262 = pneg %p261
      $region34: #{conv_class_forward.11} parent=27 // pred_check_branch
        %264 = sbr.rel (%p262) target = $region36
      $region35: #{conv_class_forward.11} parent=27 // pred_region
        %v265 = vld [vmem:[%s227] sm:$0xff]
        %v266 = vld [vmem:[%s227 + $0x8] sm:$0xff]
        %v267 = vld [vmem:[%s227 + $0x10] sm:$0xff]
        %v268 = vld [vmem:[%s227 + $0x18] sm:$0xff]
        %v269 = vld [vmem:[%s227 + $0x20] sm:$0xff]
        %v270 = vld [vmem:[%s227 + $0x28] sm:$0xff]
        %v271 = vld [vmem:[%s227 + $0x30] sm:$0xff]
        %v272 = vld [vmem:[%s227 + $0x38] sm:$0xff]
        %v273 = vld [vmem:[%s227 + $0x40] sm:$0xff]
        %v274 = vld [vmem:[%s227 + $0x48] sm:$0xff]
        %v275 = vld [vmem:[%s227 + $0x50] sm:$0xff]
        %v276 = vld [vmem:[%s227 + $0x58] sm:$0xff]
        %v277 = vld [vmem:[%s227 + $0x60] sm:$0xff]
        %v278 = vld [vmem:[%s227 + $0x68] sm:$0xff]
        %v279 = vld [vmem:[%s227 + $0x70] sm:$0xff]
        %v280 = vld [vmem:[%s227 + $0x78] sm:$0xff]
        %v281 = vld [vmem:[%s227 + $0x80] sm:$0xff]
        %v282 = vld [vmem:[%s227 + $0x88] sm:$0xff]
        %v283 = vld [vmem:[%s1] sm:$0xf]
        %v284 = vld [vmem:[%s1 + $0x4] sm:$0xf]
        %v285 = vld [vmem:[%s1 + $0x8] sm:$0xf]
        %v286 = vld [vmem:[%s1 + $0xc] sm:$0xf]
        %v287 = vld [vmem:[%s1 + $0x10] sm:$0xf]
        %v288 = vld [vmem:[%s1 + $0x14] sm:$0xf]
        %v289 = vld [vmem:[%s1 + $0x18] sm:$0xf]
        %v290 = vld [vmem:[%s1 + $0x1c] sm:$0xf]
        %v291 = vld [vmem:[%s1 + $0x20] sm:$0xf]
        %v292 = vld [vmem:[%s1 + $0x24] sm:$0xf]
        %v293 = vld [vmem:[%s1 + $0x28] sm:$0xf]
        %v294 = vld [vmem:[%s1 + $0x2c] sm:$0xf]
        %v295 = vld [vmem:[%s1 + $0x30] sm:$0xf]
        %v296 = vld [vmem:[%s1 + $0x34] sm:$0xf]
        %v297 = vld [vmem:[%s1 + $0x38] sm:$0xf]
        %v298 = vld [vmem:[%s1 + $0x3c] sm:$0xf]
        %v299 = vld [vmem:[%s1 + $0x40] sm:$0xf]
        %v300 = vld [vmem:[%s1 + $0x44] sm:$0xf]
        %v301 = vld [vmem:[%s1 + $0x48] sm:$0xf]
        %v302 = vld [vmem:[%s1 + $0x4c] sm:$0xf]
        %v303 = vld [vmem:[%s1 + $0x50] sm:$0xf]
        %v304 = vld [vmem:[%s1 + $0x54] sm:$0xf]
        %v305 = vld [vmem:[%s1 + $0x58] sm:$0xf]
        %v306 = vld [vmem:[%s1 + $0x5c] sm:$0xf]
        %v307 = vld [vmem:[%s1 + $0x60] sm:$0xf]
        %v308 = vld [vmem:[%s1 + $0x64] sm:$0xf]
        %v309 = vld [vmem:[%s1 + $0x68] sm:$0xf]
        %v310 = vld [vmem:[%s1 + $0x6c] sm:$0xf]
        %v311 = vld [vmem:[%s1 + $0x70] sm:$0xf]
        %v312 = vld [vmem:[%s1 + $0x74] sm:$0xf]
        %v313 = vld [vmem:[%s1 + $0x78] sm:$0xf]
        %v314 = vld [vmem:[%s1 + $0x7c] sm:$0xf]
        %v315 = vld [vmem:[%s1 + $0x80] sm:$0xf]
        %v316 = vld [vmem:[%s1 + $0x84] sm:$0xf]
        %v317 = vld [vmem:[%s1 + $0x88] sm:$0xf]
        %v318 = vld [vmem:[%s1 + $0x8c] sm:$0xf]
        %v319 = vld [vmem:[%s1 + $0x90] sm:$0xf]
        %v320 = vld [vmem:[%s1 + $0x94] sm:$0xf]
        %v321 = vld [vmem:[%s1 + $0x98] sm:$0xf]
        %v322 = vld [vmem:[%s1 + $0x9c] sm:$0xf]
        %v323 = vld [vmem:[%s1 + $0xa0] sm:$0xf]
        %v324 = vld [vmem:[%s1 + $0xa4] sm:$0xf]
        %v325 = vld [vmem:[%s1 + $0xa8] sm:$0xf]
        %v326 = vld [vmem:[%s1 + $0xac] sm:$0xf]
        %v327 = vld [vmem:[%s1 + $0xb0] sm:$0xf]
        %v328 = vld [vmem:[%s1 + $0xb4] sm:$0xf]
        %v329 = vld [vmem:[%s1 + $0xb8] sm:$0xf]
        %v330 = vld [vmem:[%s1 + $0xbc] sm:$0xf]
        %v331 = vld [vmem:[%s1 + $0xc0] sm:$0xf]
        %v332 = vld [vmem:[%s1 + $0xc4] sm:$0xf]
        %v333 = vld [vmem:[%s1 + $0xc8] sm:$0xf]
        %v334 = vld [vmem:[%s1 + $0xcc] sm:$0xf]
        %v335 = vld [vmem:[%s1 + $0xd0] sm:$0xf]
        %v336 = vld [vmem:[%s1 + $0xd4] sm:$0xf]
        %v337 = vld [vmem:[%s1 + $0xd8] sm:$0xf]
        %v338 = vld [vmem:[%s1 + $0xdc] sm:$0xf]
        %v339 = vld [vmem:[%s1 + $0xe0] sm:$0xf]
        %v340 = vld [vmem:[%s1 + $0xe4] sm:$0xf]
        %v341 = vld [vmem:[%s1 + $0xe8] sm:$0xf]
        %v342 = vld [vmem:[%s1 + $0xec] sm:$0xf]
        %v343 = vld [vmem:[%s1 + $0xf0] sm:$0xf]
        %v344 = vld [vmem:[%s1 + $0xf4] sm:$0xf]
        %v345 = vld [vmem:[%s1 + $0xf8] sm:$0xf]
        %v346 = vld [vmem:[%s1 + $0xfc] sm:$0xf]
        %v347 = vld [vmem:[%s1 + $0x100] sm:$0xf]
        %v348 = vld [vmem:[%s1 + $0x104] sm:$0xf]
        %v349 = vld [vmem:[%s1 + $0x108] sm:$0xf]
        %v350 = vld [vmem:[%s1 + $0x10c] sm:$0xf]
        %v351 = vld [vmem:[%s1 + $0x110] sm:$0xf]
        %v352 = vld [vmem:[%s1 + $0x114] sm:$0xf]
        %v353 = vld [vmem:[%s1 + $0x118] sm:$0xf]
        %v354 = vld [vmem:[%s1 + $0x11c] sm:$0xf]
        %v355 = vld [vmem:[%s1 + $0x120] sm:$0xf]
        %v356 = vld [vmem:[%s1 + $0x124] sm:$0xf]
        %v357 = vld [vmem:[%s1 + $0x128] sm:$0xf]
        %v358 = vld [vmem:[%s1 + $0x12c] sm:$0xf]
        %v359 = vld [vmem:[%s1 + $0x130] sm:$0xf]
        %v360 = vld [vmem:[%s1 + $0x134] sm:$0xf]
        %v361 = vld [vmem:[%s1 + $0x138] sm:$0xf]
        %v362 = vld [vmem:[%s1 + $0x13c] sm:$0xf]
        %v363 = vld [vmem:[%s1 + $0x140] sm:$0xf]
        %v364 = vld [vmem:[%s1 + $0x144] sm:$0xf]
        %v365 = vld [vmem:[%s1 + $0x148] sm:$0xf]
        %v366 = vld [vmem:[%s1 + $0x14c] sm:$0xf]
        %v367 = vld [vmem:[%s1 + $0x150] sm:$0xf]
        %v368 = vld [vmem:[%s1 + $0x154] sm:$0xf]
        %v369 = vld [vmem:[%s1 + $0x158] sm:$0xf]
        %v370 = vld [vmem:[%s1 + $0x15c] sm:$0xf]
        %v371 = vld [vmem:[%s1 + $0x160] sm:$0xf]
        %v372 = vld [vmem:[%s1 + $0x164] sm:$0xf]
        %v373 = vld [vmem:[%s1 + $0x168] sm:$0xf]
        %v374 = vld [vmem:[%s1 + $0x16c] sm:$0xf]
        %v375 = vld [vmem:[%s1 + $0x170] sm:$0xf]
        %v376 = vld [vmem:[%s1 + $0x174] sm:$0xf]
        %v377 = vld [vmem:[%s1 + $0x178] sm:$0xf]
        %v378 = vld [vmem:[%s1 + $0x17c] sm:$0xf]
        %v379 = vld [vmem:[%s1 + $0x180] sm:$0xf]
        %v380 = vld [vmem:[%s1 + $0x184] sm:$0xf]
        %v381 = vld [vmem:[%s1 + $0x188] sm:$0xf]
        %v382 = vld [vmem:[%s1 + $0x18c] sm:$0xf]
        %v383 = vld [vmem:[%s1 + $0x190] sm:$0xf]
        %v384 = vld [vmem:[%s1 + $0x194] sm:$0xf]
        %v385 = vld [vmem:[%s1 + $0x198] sm:$0xf]
        %v386 = vld [vmem:[%s1 + $0x19c] sm:$0xf]
        %v387 = vld [vmem:[%s1 + $0x1a0] sm:$0xf]
        %v388 = vld [vmem:[%s1 + $0x1a4] sm:$0xf]
        %v389 = vld [vmem:[%s1 + $0x1a8] sm:$0xf]
        %v390 = vld [vmem:[%s1 + $0x1ac] sm:$0xf]
        %v391 = vld [vmem:[%s1 + $0x1b0] sm:$0xf]
        %v392 = vld [vmem:[%s1 + $0x1b4] sm:$0xf]
        %v393 = vld [vmem:[%s1 + $0x1b8] sm:$0xf]
        %v394 = vld [vmem:[%s1 + $0x1bc] sm:$0xf]
        %v395 = vld [vmem:[%s1 + $0x1c0] sm:$0xf]
        %v396 = vld [vmem:[%s1 + $0x1c4] sm:$0xf]
        %v397 = vld [vmem:[%s1 + $0x1c8] sm:$0xf]
        %v398 = vld [vmem:[%s1 + $0x1cc] sm:$0xf]
        %v399 = vld [vmem:[%s1 + $0x1d0] sm:$0xf]
        %v400 = vld [vmem:[%s1 + $0x1d4] sm:$0xf]
        %v401 = vld [vmem:[%s1 + $0x1d8] sm:$0xf]
        %v402 = vld [vmem:[%s1 + $0x1dc] sm:$0xf]
        %v403 = vld [vmem:[%s1 + $0x1e0] sm:$0xf]
        %v404 = vld [vmem:[%s1 + $0x1e4] sm:$0xf]
        %v405 = vld [vmem:[%s1 + $0x1e8] sm:$0xf]
        %v406 = vld [vmem:[%s1 + $0x1ec] sm:$0xf]
        %v407 = vld [vmem:[%s1 + $0x1f0] sm:$0xf]
        %v408 = vld [vmem:[%s1 + $0x1f4] sm:$0xf]
        %v409 = vld [vmem:[%s1 + $0x1f8] sm:$0xf]
        %v410 = vld [vmem:[%s1 + $0x1fc] sm:$0xf]
        %v411 = vld [vmem:[%s1 + $0x200] sm:$0xf]
        %v412 = vld [vmem:[%s1 + $0x204] sm:$0xf]
        %v413 = vld [vmem:[%s1 + $0x208] sm:$0xf]
        %v414 = vld [vmem:[%s1 + $0x20c] sm:$0xf]
        %v415 = vld [vmem:[%s1 + $0x210] sm:$0xf]
        %v416 = vld [vmem:[%s1 + $0x214] sm:$0xf]
        %v417 = vld [vmem:[%s1 + $0x218] sm:$0xf]
        %v418 = vld [vmem:[%s1 + $0x21c] sm:$0xf]
        %v419 = vld [vmem:[%s1 + $0x220] sm:$0xf]
        %v420 = vld [vmem:[%s1 + $0x224] sm:$0xf]
        %v421 = vld [vmem:[%s1 + $0x228] sm:$0xf]
        %v422 = vld [vmem:[%s1 + $0x22c] sm:$0xf]
        %v423 = vld [vmem:[%s1 + $0x230] sm:$0xf]
        %v424 = vld [vmem:[%s1 + $0x234] sm:$0xf]
        %v425 = vld [vmem:[%s1 + $0x238] sm:$0xf]
        %v426 = vld [vmem:[%s1 + $0x23c] sm:$0xf]
        %v427 = vld [vmem:[%s1 + $0x240] sm:$0xf]
        %v428 = vld [vmem:[%s1 + $0x244] sm:$0xf]
        %v429 = vld [vmem:[%s1 + $0x248] sm:$0xf]
        %v430 = vld [vmem:[%s1 + $0x24c] sm:$0xf]
        %v431 = vld [vmem:[%s1 + $0x250] sm:$0xf]
        %v432 = vld [vmem:[%s1 + $0x254] sm:$0xf]
        %v433 = vld [vmem:[%s1 + $0x258] sm:$0xf]
        %v434 = vld [vmem:[%s1 + $0x25c] sm:$0xf]
        %v435 = vld [vmem:[%s1 + $0x260] sm:$0xf]
        %v436 = vld [vmem:[%s1 + $0x264] sm:$0xf]
        %v437 = vld [vmem:[%s1 + $0x268] sm:$0xf]
        %v438 = vld [vmem:[%s1 + $0x26c] sm:$0xf]
        %v439 = vld [vmem:[%s1 + $0x270] sm:$0xf]
        %v440 = vld [vmem:[%s1 + $0x274] sm:$0xf]
        %v441 = vld [vmem:[%s1 + $0x278] sm:$0xf]
        %v442 = vld [vmem:[%s1 + $0x27c] sm:$0xf]
        %v443 = vld [vmem:[%s1 + $0x280] sm:$0xf]
        %v444 = vld [vmem:[%s1 + $0x284] sm:$0xf]
        %v445 = vld [vmem:[%s1 + $0x288] sm:$0xf]
        %v446 = vld [vmem:[%s1 + $0x28c] sm:$0xf]
        %v447 = vld [vmem:[%s1 + $0x290] sm:$0xf]
        %v448 = vld [vmem:[%s1 + $0x294] sm:$0xf]
        %v449 = vld [vmem:[%s1 + $0x298] sm:$0xf]
        %v450 = vld [vmem:[%s1 + $0x29c] sm:$0xf]
        %v451 = vld [vmem:[%s1 + $0x2a0] sm:$0xf]
        %v452 = vld [vmem:[%s1 + $0x2a4] sm:$0xf]
        %v453 = vld [vmem:[%s1 + $0x2a8] sm:$0xf]
        %v454 = vld [vmem:[%s1 + $0x2ac] sm:$0xf]
        %v455 = vld [vmem:[%s1 + $0x2b0] sm:$0xf]
        %v456 = vld [vmem:[%s1 + $0x2b4] sm:$0xf]
        %v457 = vld [vmem:[%s1 + $0x2b8] sm:$0xf]
        %v458 = vld [vmem:[%s1 + $0x2bc] sm:$0xf]
        %v459 = vld [vmem:[%s1 + $0x2c0] sm:$0xf]
        %v460 = vld [vmem:[%s1 + $0x2c4] sm:$0xf]
        %v461 = vld [vmem:[%s1 + $0x2c8] sm:$0xf]
        %v462 = vld [vmem:[%s1 + $0x2cc] sm:$0xf]
        %v463 = vld [vmem:[%s1 + $0x2d0] sm:$0xf]
        %v464 = vld [vmem:[%s1 + $0x2d4] sm:$0xf]
        %v465 = vld [vmem:[%s1 + $0x2d8] sm:$0xf]
        %v466 = vld [vmem:[%s1 + $0x2dc] sm:$0xf]
        %v467 = vld [vmem:[%s1 + $0x2e0] sm:$0xf]
        %v468 = vld [vmem:[%s1 + $0x2e4] sm:$0xf]
        %v469 = vld [vmem:[%s1 + $0x2e8] sm:$0xf]
        %v470 = vld [vmem:[%s1 + $0x2ec] sm:$0xf]
        %v471 = vld [vmem:[%s1 + $0x2f0] sm:$0xf]
        %v472 = vld [vmem:[%s1 + $0x2f4] sm:$0xf]
        %v473 = vld [vmem:[%s1 + $0x2f8] sm:$0xf]
        %v474 = vld [vmem:[%s1 + $0x2fc] sm:$0xf]
        %v475 = vld [vmem:[%s1 + $0x300] sm:$0xf]
        %v476 = vld [vmem:[%s1 + $0x304] sm:$0xf]
        %v477 = vld [vmem:[%s1 + $0x308] sm:$0xf]
        %v478 = vld [vmem:[%s1 + $0x30c] sm:$0xf]
        %v479 = vld [vmem:[%s1 + $0x310] sm:$0xf]
        %v480 = vld [vmem:[%s1 + $0x314] sm:$0xf]
        %v481 = vld [vmem:[%s1 + $0x318] sm:$0xf]
        %v482 = vld [vmem:[%s1 + $0x31c] sm:$0xf]
        %v483 = vld [vmem:[%s1 + $0x320] sm:$0xf]
        %v484 = vld [vmem:[%s1 + $0x324] sm:$0xf]
        %v485 = vld [vmem:[%s1 + $0x328] sm:$0xf]
        %v486 = vld [vmem:[%s1 + $0x32c] sm:$0xf]
        %v487 = vld [vmem:[%s1 + $0x330] sm:$0xf]
        %v488 = vld [vmem:[%s1 + $0x334] sm:$0xf]
        %v489 = vld [vmem:[%s1 + $0x338] sm:$0xf]
        %v490 = vld [vmem:[%s1 + $0x33c] sm:$0xf]
        %v491 = vld [vmem:[%s1 + $0x340] sm:$0xf]
        %v492 = vld [vmem:[%s1 + $0x344] sm:$0xf]
        %v493 = vld [vmem:[%s1 + $0x348] sm:$0xf]
        %v494 = vld [vmem:[%s1 + $0x34c] sm:$0xf]
        %v495 = vld [vmem:[%s1 + $0x350] sm:$0xf]
        %v496 = vld [vmem:[%s1 + $0x354] sm:$0xf]
        %v497 = vld [vmem:[%s1 + $0x358] sm:$0xf]
        %v498 = vld [vmem:[%s1 + $0x35c] sm:$0xf]
        %v499 = vld [vmem:[%s1 + $0x360] sm:$0xf]
        %v500 = vld [vmem:[%s1 + $0x364] sm:$0xf]
        %v501 = vld [vmem:[%s1 + $0x368] sm:$0xf]
        %v502 = vld [vmem:[%s1 + $0x36c] sm:$0xf]
        %v503 = vld [vmem:[%s1 + $0x370] sm:$0xf]
        %v504 = vld [vmem:[%s1 + $0x374] sm:$0xf]
        %v505 = vld [vmem:[%s1 + $0x378] sm:$0xf]
        %v506 = vld [vmem:[%s1 + $0x37c] sm:$0xf]
        %v507 = vld [vmem:[%s1 + $0x380] sm:$0xf]
        %v508 = vld [vmem:[%s1 + $0x384] sm:$0xf]
        %v509 = vld [vmem:[%s1 + $0x388] sm:$0xf]
        %v510 = vld [vmem:[%s1 + $0x38c] sm:$0xf]
        %v511 = vld [vmem:[%s1 + $0x390] sm:$0xf]
        %v512 = vld [vmem:[%s1 + $0x394] sm:$0xf]
        %v513 = vld [vmem:[%s1 + $0x398] sm:$0xf]
        %v514 = vld [vmem:[%s1 + $0x39c] sm:$0xf]
        %v515 = vld [vmem:[%s1 + $0x3a0] sm:$0xf]
        %v516 = vld [vmem:[%s1 + $0x3a4] sm:$0xf]
        %v517 = vld [vmem:[%s1 + $0x3a8] sm:$0xf]
        %v518 = vld [vmem:[%s1 + $0x3ac] sm:$0xf]
        %v519 = vld [vmem:[%s1 + $0x3b0] sm:$0xf]
        %v520 = vld [vmem:[%s1 + $0x3b4] sm:$0xf]
        %v521 = vld [vmem:[%s1 + $0x3b8] sm:$0xf]
        %v522 = vld [vmem:[%s1 + $0x3bc] sm:$0xf]
        %v523 = vld [vmem:[%s1 + $0x3c0] sm:$0xf]
        %v524 = vld [vmem:[%s1 + $0x3c4] sm:$0xf]
        %v525 = vld [vmem:[%s1 + $0x3c8] sm:$0xf]
        %v526 = vld [vmem:[%s1 + $0x3cc] sm:$0xf]
        %v527 = vld [vmem:[%s1 + $0x3d0] sm:$0xf]
        %v528 = vld [vmem:[%s1 + $0x3d4] sm:$0xf]
        %v529 = vld [vmem:[%s1 + $0x3d8] sm:$0xf]
        %v530 = vld [vmem:[%s1 + $0x3dc] sm:$0xf]
        %v531 = vld [vmem:[%s1 + $0x3e0] sm:$0xf]
        %v532 = vld [vmem:[%s1 + $0x3e4] sm:$0xf]
        %v533 = vld [vmem:[%s1 + $0x3e8] sm:$0xf]
        %v534 = vld [vmem:[%s1 + $0x3ec] sm:$0xf]
        %v535 = vld [vmem:[%s1 + $0x3f0] sm:$0xf]
        %v536 = vld [vmem:[%s1 + $0x3f4] sm:$0xf]
        %v537 = vld [vmem:[%s1 + $0x3f8] sm:$0xf]
        %v538 = vld [vmem:[%s1 + $0x3fc] sm:$0xf]
        %v539 = vld [vmem:[%s1 + $0x400] sm:$0xf]
        %v540 = vld [vmem:[%s1 + $0x404] sm:$0xf]
        %v541 = vld [vmem:[%s1 + $0x408] sm:$0xf]
        %v542 = vld [vmem:[%s1 + $0x40c] sm:$0xf]
        %v543 = vld [vmem:[%s1 + $0x410] sm:$0xf]
        %v544 = vld [vmem:[%s1 + $0x414] sm:$0xf]
        %v545 = vld [vmem:[%s1 + $0x418] sm:$0xf]
        %v546 = vld [vmem:[%s1 + $0x41c] sm:$0xf]
        %v547 = vld [vmem:[%s1 + $0x420] sm:$0xf]
        %v548 = vld [vmem:[%s1 + $0x424] sm:$0xf]
        %v549 = vld [vmem:[%s1 + $0x428] sm:$0xf]
        %v550 = vld [vmem:[%s1 + $0x42c] sm:$0xf]
        %v551 = vld [vmem:[%s1 + $0x430] sm:$0xf]
        %v552 = vld [vmem:[%s1 + $0x434] sm:$0xf]
        %v553 = vld [vmem:[%s1 + $0x438] sm:$0xf]
        %v554 = vld [vmem:[%s1 + $0x43c] sm:$0xf]
        %v555 = vld [vmem:[%s1 + $0x440] sm:$0xf]
        %v556 = vld [vmem:[%s1 + $0x444] sm:$0xf]
        %v557 = vld [vmem:[%s1 + $0x448] sm:$0xf]
        %v558 = vld [vmem:[%s1 + $0x44c] sm:$0xf]
        %v559 = vld [vmem:[%s1 + $0x450] sm:$0xf]
        %v560 = vld [vmem:[%s1 + $0x454] sm:$0xf]
        %v561 = vld [vmem:[%s1 + $0x458] sm:$0xf]
        %v562 = vld [vmem:[%s1 + $0x45c] sm:$0xf]
        %v563 = vld [vmem:[%s1 + $0x460] sm:$0xf]
        %v564 = vld [vmem:[%s1 + $0x464] sm:$0xf]
        %v565 = vld [vmem:[%s1 + $0x468] sm:$0xf]
        %v566 = vld [vmem:[%s1 + $0x46c] sm:$0xf]
        %v567 = vld [vmem:[%s1 + $0x470] sm:$0xf]
        %v568 = vld [vmem:[%s1 + $0x474] sm:$0xf]
        %v569 = vld [vmem:[%s1 + $0x478] sm:$0xf]
        %v570 = vld [vmem:[%s1 + $0x47c] sm:$0xf]
        %v589 = vunpack.c.l.b16 %v265
        %v590 = vunpack.c.h.b16 %v265
        %v591 = vunpack.c.l.b16 %v266
        %v592 = vunpack.c.h.b16 %v266
        %v593 = vunpack.c.l.b16 %v267
        %v594 = vunpack.c.h.b16 %v267
        %v595 = vunpack.c.l.b16 %v268
        %v596 = vunpack.c.h.b16 %v268
        %v597 = vunpack.c.l.b16 %v269
        %v598 = vunpack.c.h.b16 %v269
        %v599 = vunpack.c.l.b16 %v270
        %v600 = vunpack.c.h.b16 %v270
        %v601 = vunpack.c.l.b16 %v271
        %v602 = vunpack.c.h.b16 %v271
        %v603 = vunpack.c.l.b16 %v272
        %v604 = vunpack.c.h.b16 %v272
        %v605 = vunpack.c.l.b16 %v273
        %v606 = vunpack.c.h.b16 %v273
        %v607 = vunpack.c.l.b16 %v274
        %v608 = vunpack.c.h.b16 %v274
        %v609 = vunpack.c.l.b16 %v275
        %v610 = vunpack.c.h.b16 %v275
        %v611 = vunpack.c.l.b16 %v276
        %v612 = vunpack.c.h.b16 %v276
        %v613 = vunpack.c.l.b16 %v277
        %v614 = vunpack.c.h.b16 %v277
        %v615 = vunpack.c.l.b16 %v278
        %v616 = vunpack.c.h.b16 %v278
        %v617 = vunpack.c.l.b16 %v279
        %v618 = vunpack.c.h.b16 %v279
        %v619 = vunpack.c.l.b16 %v280
        %v620 = vunpack.c.h.b16 %v280
        %v621 = vunpack.c.l.b16 %v281
        %v622 = vunpack.c.h.b16 %v281
        %v623 = vunpack.c.l.b16 %v282
        %v624 = vunpack.c.h.b16 %v282
        %v625 = vpack.c.b16 %v607, %v589
        %v626 = vpack.c.b16 %v608, %v590
        %v627 = vpack.c.b16 %v609, %v591
        %v628 = vpack.c.b16 %v610, %v592
        %v629 = vpack.c.b16 %v611, %v593
        %v630 = vpack.c.b16 %v612, %v594
        %v631 = vpack.c.b16 %v613, %v595
        %v632 = vpack.c.b16 %v614, %v596
        %v633 = vpack.c.b16 %v615, %v597
        %v634 = vpack.c.b16 %v616, %v598
        %v635 = vpack.c.b16 %v617, %v599
        %v636 = vpack.c.b16 %v618, %v600
        %v637 = vpack.c.b16 %v619, %v601
        %v638 = vpack.c.b16 %v620, %v602
        %v639 = vpack.c.b16 %v621, %v603
        %v640 = vpack.c.b16 %v622, %v604
        %v641 = vpack.c.b16 %v623, %v605
        %v642 = vpack.c.b16 %v624, %v606
        %v949 = vunpack.c.l.b16 %v283
        %v950 = vunpack.c.l.b16 %v284
        %v951 = vunpack.c.l.b16 %v285
        %v952 = vunpack.c.l.b16 %v286
        %v953 = vunpack.c.l.b16 %v287
        %v954 = vunpack.c.l.b16 %v288
        %v955 = vunpack.c.l.b16 %v289
        %v956 = vunpack.c.l.b16 %v290
        %v957 = vunpack.c.l.b16 %v291
        %v958 = vunpack.c.l.b16 %v292
        %v959 = vunpack.c.l.b16 %v293
        %v960 = vunpack.c.l.b16 %v294
        %v961 = vunpack.c.l.b16 %v295
        %v962 = vunpack.c.l.b16 %v296
        %v963 = vunpack.c.l.b16 %v297
        %v964 = vunpack.c.l.b16 %v298
        %v965 = vunpack.c.l.b16 %v299
        %v966 = vunpack.c.l.b16 %v300
        %v967 = vunpack.c.l.b16 %v301
        %v968 = vunpack.c.l.b16 %v302
        %v969 = vunpack.c.l.b16 %v303
        %v970 = vunpack.c.l.b16 %v304
        %v971 = vunpack.c.l.b16 %v305
        %v972 = vunpack.c.l.b16 %v306
        %v973 = vunpack.c.l.b16 %v307
        %v974 = vunpack.c.l.b16 %v308
        %v975 = vunpack.c.l.b16 %v309
        %v976 = vunpack.c.l.b16 %v310
        %v977 = vunpack.c.l.b16 %v311
        %v978 = vunpack.c.l.b16 %v312
        %v979 = vunpack.c.l.b16 %v313
        %v980 = vunpack.c.l.b16 %v314
        %v981 = vunpack.c.l.b16 %v315
        %v982 = vunpack.c.l.b16 %v316
        %v983 = vunpack.c.l.b16 %v317
        %v984 = vunpack.c.l.b16 %v318
        %v985 = vunpack.c.l.b16 %v319
        %v986 = vunpack.c.l.b16 %v320
        %v987 = vunpack.c.l.b16 %v321
        %v988 = vunpack.c.l.b16 %v322
        %v989 = vunpack.c.l.b16 %v323
        %v990 = vunpack.c.l.b16 %v324
        %v991 = vunpack.c.l.b16 %v325
        %v992 = vunpack.c.l.b16 %v326
        %v993 = vunpack.c.l.b16 %v327
        %v994 = vunpack.c.l.b16 %v328
        %v995 = vunpack.c.l.b16 %v329
        %v996 = vunpack.c.l.b16 %v330
        %v997 = vunpack.c.l.b16 %v331
        %v998 = vunpack.c.l.b16 %v332
        %v999 = vunpack.c.l.b16 %v333
        %v1000 = vunpack.c.l.b16 %v334
        %v1001 = vunpack.c.l.b16 %v335
        %v1002 = vunpack.c.l.b16 %v336
        %v1003 = vunpack.c.l.b16 %v337
        %v1004 = vunpack.c.l.b16 %v338
        %v1005 = vunpack.c.l.b16 %v339
        %v1006 = vunpack.c.l.b16 %v340
        %v1007 = vunpack.c.l.b16 %v341
        %v1008 = vunpack.c.l.b16 %v342
        %v1009 = vunpack.c.l.b16 %v343
        %v1010 = vunpack.c.l.b16 %v344
        %v1011 = vunpack.c.l.b16 %v345
        %v1012 = vunpack.c.l.b16 %v346
        %v1013 = vunpack.c.l.b16 %v347
        %v1014 = vunpack.c.l.b16 %v348
        %v1015 = vunpack.c.l.b16 %v349
        %v1016 = vunpack.c.l.b16 %v350
        %v1017 = vunpack.c.l.b16 %v351
        %v1018 = vunpack.c.l.b16 %v352
        %v1019 = vunpack.c.l.b16 %v353
        %v1020 = vunpack.c.l.b16 %v354
        %v1021 = vunpack.c.l.b16 %v355
        %v1022 = vunpack.c.l.b16 %v356
        %v1023 = vunpack.c.l.b16 %v357
        %v1024 = vunpack.c.l.b16 %v358
        %v1025 = vunpack.c.l.b16 %v359
        %v1026 = vunpack.c.l.b16 %v360
        %v1027 = vunpack.c.l.b16 %v361
        %v1028 = vunpack.c.l.b16 %v362
        %v1029 = vunpack.c.l.b16 %v363
        %v1030 = vunpack.c.l.b16 %v364
        %v1031 = vunpack.c.l.b16 %v365
        %v1032 = vunpack.c.l.b16 %v366
        %v1033 = vunpack.c.l.b16 %v367
        %v1034 = vunpack.c.l.b16 %v368
        %v1035 = vunpack.c.l.b16 %v369
        %v1036 = vunpack.c.l.b16 %v370
        %v1037 = vunpack.c.l.b16 %v371
        %v1038 = vunpack.c.l.b16 %v372
        %v1039 = vunpack.c.l.b16 %v373
        %v1040 = vunpack.c.l.b16 %v374
        %v1041 = vunpack.c.l.b16 %v375
        %v1042 = vunpack.c.l.b16 %v376
        %v1043 = vunpack.c.l.b16 %v377
        %v1044 = vunpack.c.l.b16 %v378
        %v1045 = vunpack.c.l.b16 %v379
        %v1046 = vunpack.c.l.b16 %v380
        %v1047 = vunpack.c.l.b16 %v381
        %v1048 = vunpack.c.l.b16 %v382
        %v1049 = vunpack.c.l.b16 %v383
        %v1050 = vunpack.c.l.b16 %v384
        %v1051 = vunpack.c.l.b16 %v385
        %v1052 = vunpack.c.l.b16 %v386
        %v1053 = vunpack.c.l.b16 %v387
        %v1054 = vunpack.c.l.b16 %v388
        %v1055 = vunpack.c.l.b16 %v389
        %v1056 = vunpack.c.l.b16 %v390
        %v1057 = vunpack.c.l.b16 %v391
        %v1058 = vunpack.c.l.b16 %v392
        %v1059 = vunpack.c.l.b16 %v393
        %v1060 = vunpack.c.l.b16 %v394
        %v1061 = vunpack.c.l.b16 %v395
        %v1062 = vunpack.c.l.b16 %v396
        %v1063 = vunpack.c.l.b16 %v397
        %v1064 = vunpack.c.l.b16 %v398
        %v1065 = vunpack.c.l.b16 %v399
        %v1066 = vunpack.c.l.b16 %v400
        %v1067 = vunpack.c.l.b16 %v401
        %v1068 = vunpack.c.l.b16 %v402
        %v1069 = vunpack.c.l.b16 %v403
        %v1070 = vunpack.c.l.b16 %v404
        %v1071 = vunpack.c.l.b16 %v405
        %v1072 = vunpack.c.l.b16 %v406
        %v1073 = vunpack.c.l.b16 %v407
        %v1074 = vunpack.c.l.b16 %v408
        %v1075 = vunpack.c.l.b16 %v409
        %v1076 = vunpack.c.l.b16 %v410
        %v1077 = vunpack.c.l.b16 %v411
        %v1078 = vunpack.c.l.b16 %v412
        %v1079 = vunpack.c.l.b16 %v413
        %v1080 = vunpack.c.l.b16 %v414
        %v1081 = vunpack.c.l.b16 %v415
        %v1082 = vunpack.c.l.b16 %v416
        %v1083 = vunpack.c.l.b16 %v417
        %v1084 = vunpack.c.l.b16 %v418
        %v1085 = vunpack.c.l.b16 %v419
        %v1086 = vunpack.c.l.b16 %v420
        %v1087 = vunpack.c.l.b16 %v421
        %v1088 = vunpack.c.l.b16 %v422
        %v1089 = vunpack.c.l.b16 %v423
        %v1090 = vunpack.c.l.b16 %v424
        %v1091 = vunpack.c.l.b16 %v425
        %v1092 = vunpack.c.l.b16 %v426
        %v1093 = vunpack.c.l.b16 %v427
        %v1094 = vunpack.c.l.b16 %v428
        %v1095 = vunpack.c.l.b16 %v429
        %v1096 = vunpack.c.l.b16 %v430
        %v1097 = vunpack.c.l.b16 %v431
        %v1098 = vunpack.c.l.b16 %v432
        %v1099 = vunpack.c.l.b16 %v433
        %v1100 = vunpack.c.l.b16 %v434
        %v1101 = vunpack.c.l.b16 %v435
        %v1102 = vunpack.c.l.b16 %v436
        %v1103 = vunpack.c.l.b16 %v437
        %v1104 = vunpack.c.l.b16 %v438
        %v1105 = vunpack.c.l.b16 %v439
        %v1106 = vunpack.c.l.b16 %v440
        %v1107 = vunpack.c.l.b16 %v441
        %v1108 = vunpack.c.l.b16 %v442
        %v1109 = vunpack.c.l.b16 %v443
        %v1110 = vunpack.c.l.b16 %v444
        %v1111 = vunpack.c.l.b16 %v445
        %v1112 = vunpack.c.l.b16 %v446
        %v1113 = vunpack.c.l.b16 %v447
        %v1114 = vunpack.c.l.b16 %v448
        %v1115 = vunpack.c.l.b16 %v449
        %v1116 = vunpack.c.l.b16 %v450
        %v1117 = vunpack.c.l.b16 %v451
        %v1118 = vunpack.c.l.b16 %v452
        %v1119 = vunpack.c.l.b16 %v453
        %v1120 = vunpack.c.l.b16 %v454
        %v1121 = vunpack.c.l.b16 %v455
        %v1122 = vunpack.c.l.b16 %v456
        %v1123 = vunpack.c.l.b16 %v457
        %v1124 = vunpack.c.l.b16 %v458
        %v1125 = vunpack.c.l.b16 %v459
        %v1126 = vunpack.c.l.b16 %v460
        %v1127 = vunpack.c.l.b16 %v461
        %v1128 = vunpack.c.l.b16 %v462
        %v1129 = vunpack.c.l.b16 %v463
        %v1130 = vunpack.c.l.b16 %v464
        %v1131 = vunpack.c.l.b16 %v465
        %v1132 = vunpack.c.l.b16 %v466
        %v1133 = vunpack.c.l.b16 %v467
        %v1134 = vunpack.c.l.b16 %v468
        %v1135 = vunpack.c.l.b16 %v469
        %v1136 = vunpack.c.l.b16 %v470
        %v1137 = vunpack.c.l.b16 %v471
        %v1138 = vunpack.c.l.b16 %v472
        %v1139 = vunpack.c.l.b16 %v473
        %v1140 = vunpack.c.l.b16 %v474
        %v1141 = vunpack.c.l.b16 %v475
        %v1142 = vunpack.c.l.b16 %v476
        %v1143 = vunpack.c.l.b16 %v477
        %v1144 = vunpack.c.l.b16 %v478
        %v1145 = vunpack.c.l.b16 %v479
        %v1146 = vunpack.c.l.b16 %v480
        %v1147 = vunpack.c.l.b16 %v481
        %v1148 = vunpack.c.l.b16 %v482
        %v1149 = vunpack.c.l.b16 %v483
        %v1150 = vunpack.c.l.b16 %v484
        %v1151 = vunpack.c.l.b16 %v485
        %v1152 = vunpack.c.l.b16 %v486
        %v1153 = vunpack.c.l.b16 %v487
        %v1154 = vunpack.c.l.b16 %v488
        %v1155 = vunpack.c.l.b16 %v489
        %v1156 = vunpack.c.l.b16 %v490
        %v1157 = vunpack.c.l.b16 %v491
        %v1158 = vunpack.c.l.b16 %v492
        %v1159 = vunpack.c.l.b16 %v493
        %v1160 = vunpack.c.l.b16 %v494
        %v1161 = vunpack.c.l.b16 %v495
        %v1162 = vunpack.c.l.b16 %v496
        %v1163 = vunpack.c.l.b16 %v497
        %v1164 = vunpack.c.l.b16 %v498
        %v1165 = vunpack.c.l.b16 %v499
        %v1166 = vunpack.c.l.b16 %v500
        %v1167 = vunpack.c.l.b16 %v501
        %v1168 = vunpack.c.l.b16 %v502
        %v1169 = vunpack.c.l.b16 %v503
        %v1170 = vunpack.c.l.b16 %v504
        %v1171 = vunpack.c.l.b16 %v505
        %v1172 = vunpack.c.l.b16 %v506
        %v1173 = vunpack.c.l.b16 %v507
        %v1174 = vunpack.c.l.b16 %v508
        %v1175 = vunpack.c.l.b16 %v509
        %v1176 = vunpack.c.l.b16 %v510
        %v1177 = vunpack.c.l.b16 %v511
        %v1178 = vunpack.c.l.b16 %v512
        %v1179 = vunpack.c.l.b16 %v513
        %v1180 = vunpack.c.l.b16 %v514
        %v1181 = vunpack.c.l.b16 %v515
        %v1182 = vunpack.c.l.b16 %v516
        %v1183 = vunpack.c.l.b16 %v517
        %v1184 = vunpack.c.l.b16 %v518
        %v1185 = vunpack.c.l.b16 %v519
        %v1186 = vunpack.c.l.b16 %v520
        %v1187 = vunpack.c.l.b16 %v521
        %v1188 = vunpack.c.l.b16 %v522
        %v1189 = vunpack.c.l.b16 %v523
        %v1190 = vunpack.c.l.b16 %v524
        %v1191 = vunpack.c.l.b16 %v525
        %v1192 = vunpack.c.l.b16 %v526
        %v1193 = vunpack.c.l.b16 %v527
        %v1194 = vunpack.c.l.b16 %v528
        %v1195 = vunpack.c.l.b16 %v529
        %v1196 = vunpack.c.l.b16 %v530
        %v1197 = vunpack.c.l.b16 %v531
        %v1198 = vunpack.c.l.b16 %v532
        %v1199 = vunpack.c.l.b16 %v533
        %v1200 = vunpack.c.l.b16 %v534
        %v1201 = vunpack.c.l.b16 %v535
        %v1202 = vunpack.c.l.b16 %v536
        %v1203 = vunpack.c.l.b16 %v537
        %v1204 = vunpack.c.l.b16 %v538
        %v1205 = vunpack.c.l.b16 %v539
        %v1206 = vunpack.c.l.b16 %v540
        %v1207 = vunpack.c.l.b16 %v541
        %v1208 = vunpack.c.l.b16 %v542
        %v1209 = vunpack.c.l.b16 %v543
        %v1210 = vunpack.c.l.b16 %v544
        %v1211 = vunpack.c.l.b16 %v545
        %v1212 = vunpack.c.l.b16 %v546
        %v1213 = vunpack.c.l.b16 %v547
        %v1214 = vunpack.c.l.b16 %v548
        %v1215 = vunpack.c.l.b16 %v549
        %v1216 = vunpack.c.l.b16 %v550
        %v1217 = vunpack.c.l.b16 %v551
        %v1218 = vunpack.c.l.b16 %v552
        %v1219 = vunpack.c.l.b16 %v553
        %v1220 = vunpack.c.l.b16 %v554
        %v1221 = vunpack.c.l.b16 %v555
        %v1222 = vunpack.c.l.b16 %v556
        %v1223 = vunpack.c.l.b16 %v557
        %v1224 = vunpack.c.l.b16 %v558
        %v1225 = vunpack.c.l.b16 %v559
        %v1226 = vunpack.c.l.b16 %v560
        %v1227 = vunpack.c.l.b16 %v561
        %v1228 = vunpack.c.l.b16 %v562
        %v1229 = vunpack.c.l.b16 %v563
        %v1230 = vunpack.c.l.b16 %v564
        %v1231 = vunpack.c.l.b16 %v565
        %v1232 = vunpack.c.l.b16 %v566
        %v1233 = vunpack.c.l.b16 %v567
        %v1234 = vunpack.c.l.b16 %v568
        %v1235 = vunpack.c.l.b16 %v569
        %v1236 = vunpack.c.l.b16 %v570
        %v1237 = vpack.c.b16 %v950, %v949
        %v1238 = vpack.c.b16 %v952, %v951
        %v1239 = vpack.c.b16 %v954, %v953
        %v1240 = vpack.c.b16 %v956, %v955
        %v1241 = vpack.c.b16 %v958, %v957
        %v1242 = vpack.c.b16 %v960, %v959
        %v1243 = vpack.c.b16 %v962, %v961
        %v1244 = vpack.c.b16 %v964, %v963
        %v1245 = vpack.c.b16 %v966, %v965
        %v1246 = vpack.c.b16 %v968, %v967
        %v1247 = vpack.c.b16 %v970, %v969
        %v1248 = vpack.c.b16 %v972, %v971
        %v1249 = vpack.c.b16 %v974, %v973
        %v1250 = vpack.c.b16 %v976, %v975
        %v1251 = vpack.c.b16 %v978, %v977
        %v1252 = vpack.c.b16 %v980, %v979
        %v1253 = vpack.c.b16 %v982, %v981
        %v1254 = vpack.c.b16 %v984, %v983
        %v1255 = vpack.c.b16 %v986, %v985
        %v1256 = vpack.c.b16 %v988, %v987
        %v1257 = vpack.c.b16 %v990, %v989
        %v1258 = vpack.c.b16 %v992, %v991
        %v1259 = vpack.c.b16 %v994, %v993
        %v1260 = vpack.c.b16 %v996, %v995
        %v1261 = vpack.c.b16 %v998, %v997
        %v1262 = vpack.c.b16 %v1000, %v999
        %v1263 = vpack.c.b16 %v1002, %v1001
        %v1264 = vpack.c.b16 %v1004, %v1003
        %v1265 = vpack.c.b16 %v1006, %v1005
        %v1266 = vpack.c.b16 %v1008, %v1007
        %v1267 = vpack.c.b16 %v1010, %v1009
        %v1268 = vpack.c.b16 %v1012, %v1011
        %v1269 = vpack.c.b16 %v1014, %v1013
        %v1270 = vpack.c.b16 %v1016, %v1015
        %v1271 = vpack.c.b16 %v1018, %v1017
        %v1272 = vpack.c.b16 %v1020, %v1019
        %v1273 = vpack.c.b16 %v1022, %v1021
        %v1274 = vpack.c.b16 %v1024, %v1023
        %v1275 = vpack.c.b16 %v1026, %v1025
        %v1276 = vpack.c.b16 %v1028, %v1027
        %v1277 = vpack.c.b16 %v1030, %v1029
        %v1278 = vpack.c.b16 %v1032, %v1031
        %v1279 = vpack.c.b16 %v1034, %v1033
        %v1280 = vpack.c.b16 %v1036, %v1035
        %v1281 = vpack.c.b16 %v1038, %v1037
        %v1282 = vpack.c.b16 %v1040, %v1039
        %v1283 = vpack.c.b16 %v1042, %v1041
        %v1284 = vpack.c.b16 %v1044, %v1043
        %v1285 = vpack.c.b16 %v1046, %v1045
        %v1286 = vpack.c.b16 %v1048, %v1047
        %v1287 = vpack.c.b16 %v1050, %v1049
        %v1288 = vpack.c.b16 %v1052, %v1051
        %v1289 = vpack.c.b16 %v1054, %v1053
        %v1290 = vpack.c.b16 %v1056, %v1055
        %v1291 = vpack.c.b16 %v1058, %v1057
        %v1292 = vpack.c.b16 %v1060, %v1059
        %v1293 = vpack.c.b16 %v1062, %v1061
        %v1294 = vpack.c.b16 %v1064, %v1063
        %v1295 = vpack.c.b16 %v1066, %v1065
        %v1296 = vpack.c.b16 %v1068, %v1067
        %v1297 = vpack.c.b16 %v1070, %v1069
        %v1298 = vpack.c.b16 %v1072, %v1071
        %v1299 = vpack.c.b16 %v1074, %v1073
        %v1300 = vpack.c.b16 %v1076, %v1075
        %v1301 = vpack.c.b16 %v1078, %v1077
        %v1302 = vpack.c.b16 %v1080, %v1079
        %v1303 = vpack.c.b16 %v1082, %v1081
        %v1304 = vpack.c.b16 %v1084, %v1083
        %v1305 = vpack.c.b16 %v1086, %v1085
        %v1306 = vpack.c.b16 %v1088, %v1087
        %v1307 = vpack.c.b16 %v1090, %v1089
        %v1308 = vpack.c.b16 %v1092, %v1091
        %v1309 = vpack.c.b16 %v1094, %v1093
        %v1310 = vpack.c.b16 %v1096, %v1095
        %v1311 = vpack.c.b16 %v1098, %v1097
        %v1312 = vpack.c.b16 %v1100, %v1099
        %v1313 = vpack.c.b16 %v1102, %v1101
        %v1314 = vpack.c.b16 %v1104, %v1103
        %v1315 = vpack.c.b16 %v1106, %v1105
        %v1316 = vpack.c.b16 %v1108, %v1107
        %v1317 = vpack.c.b16 %v1110, %v1109
        %v1318 = vpack.c.b16 %v1112, %v1111
        %v1319 = vpack.c.b16 %v1114, %v1113
        %v1320 = vpack.c.b16 %v1116, %v1115
        %v1321 = vpack.c.b16 %v1118, %v1117
        %v1322 = vpack.c.b16 %v1120, %v1119
        %v1323 = vpack.c.b16 %v1122, %v1121
        %v1324 = vpack.c.b16 %v1124, %v1123
        %v1325 = vpack.c.b16 %v1126, %v1125
        %v1326 = vpack.c.b16 %v1128, %v1127
        %v1327 = vpack.c.b16 %v1130, %v1129
        %v1328 = vpack.c.b16 %v1132, %v1131
        %v1329 = vpack.c.b16 %v1134, %v1133
        %v1330 = vpack.c.b16 %v1136, %v1135
        %v1331 = vpack.c.b16 %v1138, %v1137
        %v1332 = vpack.c.b16 %v1140, %v1139
        %v1333 = vpack.c.b16 %v1142, %v1141
        %v1334 = vpack.c.b16 %v1144, %v1143
        %v1335 = vpack.c.b16 %v1146, %v1145
        %v1336 = vpack.c.b16 %v1148, %v1147
        %v1337 = vpack.c.b16 %v1150, %v1149
        %v1338 = vpack.c.b16 %v1152, %v1151
        %v1339 = vpack.c.b16 %v1154, %v1153
        %v1340 = vpack.c.b16 %v1156, %v1155
        %v1341 = vpack.c.b16 %v1158, %v1157
        %v1342 = vpack.c.b16 %v1160, %v1159
        %v1343 = vpack.c.b16 %v1162, %v1161
        %v1344 = vpack.c.b16 %v1164, %v1163
        %v1345 = vpack.c.b16 %v1166, %v1165
        %v1346 = vpack.c.b16 %v1168, %v1167
        %v1347 = vpack.c.b16 %v1170, %v1169
        %v1348 = vpack.c.b16 %v1172, %v1171
        %v1349 = vpack.c.b16 %v1174, %v1173
        %v1350 = vpack.c.b16 %v1176, %v1175
        %v1351 = vpack.c.b16 %v1178, %v1177
        %v1352 = vpack.c.b16 %v1180, %v1179
        %v1353 = vpack.c.b16 %v1182, %v1181
        %v1354 = vpack.c.b16 %v1184, %v1183
        %v1355 = vpack.c.b16 %v1186, %v1185
        %v1356 = vpack.c.b16 %v1188, %v1187
        %v1357 = vpack.c.b16 %v1190, %v1189
        %v1358 = vpack.c.b16 %v1192, %v1191
        %v1359 = vpack.c.b16 %v1194, %v1193
        %v1360 = vpack.c.b16 %v1196, %v1195
        %v1361 = vpack.c.b16 %v1198, %v1197
        %v1362 = vpack.c.b16 %v1200, %v1199
        %v1363 = vpack.c.b16 %v1202, %v1201
        %v1364 = vpack.c.b16 %v1204, %v1203
        %v1365 = vpack.c.b16 %v1206, %v1205
        %v1366 = vpack.c.b16 %v1208, %v1207
        %v1367 = vpack.c.b16 %v1210, %v1209
        %v1368 = vpack.c.b16 %v1212, %v1211
        %v1369 = vpack.c.b16 %v1214, %v1213
        %v1370 = vpack.c.b16 %v1216, %v1215
        %v1371 = vpack.c.b16 %v1218, %v1217
        %v1372 = vpack.c.b16 %v1220, %v1219
        %v1373 = vpack.c.b16 %v1222, %v1221
        %v1374 = vpack.c.b16 %v1224, %v1223
        %v1375 = vpack.c.b16 %v1226, %v1225
        %v1376 = vpack.c.b16 %v1228, %v1227
        %v1377 = vpack.c.b16 %v1230, %v1229
        %v1378 = vpack.c.b16 %v1232, %v1231
        %v1379 = vpack.c.b16 %v1234, %v1233
        %v1380 = vpack.c.b16 %v1236, %v1235
        %1525 = vmatprep.subr.bf16.mxu0 0
        %1526 = vmatpush1.bf16.msra.mxu0 %v1237
        %1527 = vmatprep.subr.bf16.mxu0 0
        %1528 = vmatpush1.bf16.msra.mxu0 %v1238
        %1529 = vmatprep.subr.bf16.mxu0 0
        %1530 = vmatpush1.bf16.msra.mxu0 %v1239
        %1531 = vmatprep.subr.bf16.mxu0 0
        %1532 = vmatpush1.bf16.msra.mxu0 %v1240
        %1533 = vmatprep.subr.bf16.mxu0 0
        %1534 = vmatpush1.bf16.msra.mxu0 %v1241
        %1535 = vmatprep.subr.bf16.mxu0 0
        %1536 = vmatpush1.bf16.msra.mxu0 %v1242
        %1537 = vmatprep.subr.bf16.mxu0 0
        %1538 = vmatpush1.bf16.msra.mxu0 %v1243
        %1539 = vmatprep.subr.bf16.mxu0 0
        %1540 = vmatpush1.bf16.msra.mxu0 %v1244
        %1541 = vmatprep.subr.bf16.mxu0 0
        %1542 = vmatpush1.bf16.msra.mxu0 %v1245
        %1543 = vmatprep.subr.bf16.mxu0 0
        %1544 = vmatpush1.bf16.msra.mxu0 %v1246
        %1545 = vmatprep.subr.bf16.mxu0 0
        %1546 = vmatpush1.bf16.msra.mxu0 %v1247
        %1547 = vmatprep.subr.bf16.mxu0 0
        %1548 = vmatpush1.bf16.msra.mxu0 %v1248
        %1549 = vmatprep.subr.bf16.mxu0 0
        %1550 = vmatpush1.bf16.msra.mxu0 %v1249
        %1551 = vmatprep.subr.bf16.mxu0 0
        %1552 = vmatpush1.bf16.msra.mxu0 %v1250
        %1553 = vmatprep.subr.bf16.mxu0 0
        %1554 = vmatpush1.bf16.msra.mxu0 %v1251
        %1555 = vmatprep.subr.bf16.mxu0 0
        %1556 = vmatpush1.bf16.msra.mxu0 %v1252
        %1557 = vmatprep.mubr.bf16.mxu0 %v626
        %1558 = vmatmul.mubr.bf16.gmra.mrb[0].mxu0 %v625
        %v1559 = vpop.f32.mrb[0].mxu0
        %v1560 = vadd.f32 0.0, %v1559
        %v1561 = vpop.f32.mrb[0].mxu0
        %v1562 = vpop.f32.mrb[0].mxu0
        %v1563 = vadd.f32 0.0, %v1562
        %v1564 = vpop.f32.mrb[0].mxu0
        %1565 = vdwg.mxu0
        %1566 = vmatprep.subr.bf16.mxu0 0
        %1567 = vmatpush1.bf16.msra.mxu0 %v1253
        %1568 = vmatprep.subr.bf16.mxu0 0
        %1569 = vmatpush1.bf16.msra.mxu0 %v1254
        %1570 = vmatprep.subr.bf16.mxu0 0
        %1571 = vmatpush1.bf16.msra.mxu0 %v1255
        %1572 = vmatprep.subr.bf16.mxu0 0
        %1573 = vmatpush1.bf16.msra.mxu0 %v1256
        %1574 = vmatprep.subr.bf16.mxu0 0
        %1575 = vmatpush1.bf16.msra.mxu0 %v1257
        %1576 = vmatprep.subr.bf16.mxu0 0
        %1577 = vmatpush1.bf16.msra.mxu0 %v1258
        %1578 = vmatprep.subr.bf16.mxu0 0
        %1579 = vmatpush1.bf16.msra.mxu0 %v1259
        %1580 = vmatprep.subr.bf16.mxu0 0
        %1581 = vmatpush1.bf16.msra.mxu0 %v1260
        %1582 = vmatprep.subr.bf16.mxu0 0
        %1583 = vmatpush1.bf16.msra.mxu0 %v1261
        %1584 = vmatprep.subr.bf16.mxu0 0
        %1585 = vmatpush1.bf16.msra.mxu0 %v1262
        %1586 = vmatprep.subr.bf16.mxu0 0
        %1587 = vmatpush1.bf16.msra.mxu0 %v1263
        %1588 = vmatprep.subr.bf16.mxu0 0
        %1589 = vmatpush1.bf16.msra.mxu0 %v1264
        %1590 = vmatprep.subr.bf16.mxu0 0
        %1591 = vmatpush1.bf16.msra.mxu0 %v1265
        %1592 = vmatprep.subr.bf16.mxu0 0
        %1593 = vmatpush1.bf16.msra.mxu0 %v1266
        %1594 = vmatprep.subr.bf16.mxu0 0
        %1595 = vmatpush1.bf16.msra.mxu0 %v1267
        %1596 = vmatprep.subr.bf16.mxu0 0
        %1597 = vmatpush1.bf16.msra.mxu0 %v1268
        %1598 = vmatprep.mubr.bf16.mxu0 %v628
        %1599 = vmatmul.mubr.bf16.gmra.mrb[0].mxu0 %v627
        %v1600 = vpop.f32.mrb[0].mxu0
        %v1601 = vadd.f32 %v1560, %v1600
        %v1602 = vpop.f32.mrb[0].mxu0
        %v1603 = vpop.f32.mrb[0].mxu0
        %v1604 = vadd.f32 %v1563, %v1603
        %v1605 = vpop.f32.mrb[0].mxu0
        %1606 = vdwg.mxu0
        %1607 = vmatprep.subr.bf16.mxu0 0
        %1608 = vmatpush1.bf16.msra.mxu0 %v1269
        %1609 = vmatprep.subr.bf16.mxu0 0
        %1610 = vmatpush1.bf16.msra.mxu0 %v1270
        %1611 = vmatprep.subr.bf16.mxu0 0
        %1612 = vmatpush1.bf16.msra.mxu0 %v1271
        %1613 = vmatprep.subr.bf16.mxu0 0
        %1614 = vmatpush1.bf16.msra.mxu0 %v1272
        %1615 = vmatprep.subr.bf16.mxu0 0
        %1616 = vmatpush1.bf16.msra.mxu0 %v1273
        %1617 = vmatprep.subr.bf16.mxu0 0
        %1618 = vmatpush1.bf16.msra.mxu0 %v1274
        %1619 = vmatprep.subr.bf16.mxu0 0
        %1620 = vmatpush1.bf16.msra.mxu0 %v1275
        %1621 = vmatprep.subr.bf16.mxu0 0
        %1622 = vmatpush1.bf16.msra.mxu0 %v1276
        %1623 = vmatprep.subr.bf16.mxu0 0
        %1624 = vmatpush1.bf16.msra.mxu0 %v1277
        %1625 = vmatprep.subr.bf16.mxu0 0
        %1626 = vmatpush1.bf16.msra.mxu0 %v1278
        %1627 = vmatprep.subr.bf16.mxu0 0
        %1628 = vmatpush1.bf16.msra.mxu0 %v1279
        %1629 = vmatprep.subr.bf16.mxu0 0
        %1630 = vmatpush1.bf16.msra.mxu0 %v1280
        %1631 = vmatprep.subr.bf16.mxu0 0
        %1632 = vmatpush1.bf16.msra.mxu0 %v1281
        %1633 = vmatprep.subr.bf16.mxu0 0
        %1634 = vmatpush1.bf16.msra.mxu0 %v1282
        %1635 = vmatprep.subr.bf16.mxu0 0
        %1636 = vmatpush1.bf16.msra.mxu0 %v1283
        %1637 = vmatprep.subr.bf16.mxu0 0
        %1638 = vmatpush1.bf16.msra.mxu0 %v1284
        %1639 = vmatprep.mubr.bf16.mxu0 %v630
        %1640 = vmatmul.mubr.bf16.gmra.mrb[0].mxu0 %v629
        %v1641 = vpop.f32.mrb[0].mxu0
        %v1642 = vadd.f32 %v1601, %v1641
        %v1643 = vpop.f32.mrb[0].mxu0
        %v1644 = vpop.f32.mrb[0].mxu0
        %v1645 = vadd.f32 %v1604, %v1644
        %v1646 = vpop.f32.mrb[0].mxu0
        %1647 = vdwg.mxu0
        %1648 = vmatprep.subr.bf16.mxu0 0
        %1649 = vmatpush1.bf16.msra.mxu0 %v1285
        %1650 = vmatprep.subr.bf16.mxu0 0
        %1651 = vmatpush1.bf16.msra.mxu0 %v1286
        %1652 = vmatprep.subr.bf16.mxu0 0
        %1653 = vmatpush1.bf16.msra.mxu0 %v1287
        %1654 = vmatprep.subr.bf16.mxu0 0
        %1655 = vmatpush1.bf16.msra.mxu0 %v1288
        %1656 = vmatprep.subr.bf16.mxu0 0
        %1657 = vmatpush1.bf16.msra.mxu0 %v1289
        %1658 = vmatprep.subr.bf16.mxu0 0
        %1659 = vmatpush1.bf16.msra.mxu0 %v1290
        %1660 = vmatprep.subr.bf16.mxu0 0
        %1661 = vmatpush1.bf16.msra.mxu0 %v1291
        %1662 = vmatprep.subr.bf16.mxu0 0
        %1663 = vmatpush1.bf16.msra.mxu0 %v1292
        %1664 = vmatprep.subr.bf16.mxu0 0
        %1665 = vmatpush1.bf16.msra.mxu0 %v1293
        %1666 = vmatprep.subr.bf16.mxu0 0
        %1667 = vmatpush1.bf16.msra.mxu0 %v1294
        %1668 = vmatprep.subr.bf16.mxu0 0
        %1669 = vmatpush1.bf16.msra.mxu0 %v1295
        %1670 = vmatprep.subr.bf16.mxu0 0
        %1671 = vmatpush1.bf16.msra.mxu0 %v1296
        %1672 = vmatprep.subr.bf16.mxu0 0
        %1673 = vmatpush1.bf16.msra.mxu0 %v1297
        %1674 = vmatprep.subr.bf16.mxu0 0
        %1675 = vmatpush1.bf16.msra.mxu0 %v1298
        %1676 = vmatprep.subr.bf16.mxu0 0
        %1677 = vmatpush1.bf16.msra.mxu0 %v1299
        %1678 = vmatprep.subr.bf16.mxu0 0
        %1679 = vmatpush1.bf16.msra.mxu0 %v1300
        %1680 = vmatprep.mubr.bf16.mxu0 %v632
        %1681 = vmatmul.mubr.bf16.gmra.mrb[0].mxu0 %v631
        %v1682 = vpop.f32.mrb[0].mxu0
        %v1683 = vadd.f32 %v1642, %v1682
        %v1684 = vpop.f32.mrb[0].mxu0
        %v1685 = vpop.f32.mrb[0].mxu0
        %v1686 = vadd.f32 %v1645, %v1685
        %v1687 = vpop.f32.mrb[0].mxu0
        %1688 = vdwg.mxu0
        %1689 = vmatprep.subr.bf16.mxu0 0
        %1690 = vmatpush1.bf16.msra.mxu0 %v1301
        %1691 = vmatprep.subr.bf16.mxu0 0
        %1692 = vmatpush1.bf16.msra.mxu0 %v1302
        %1693 = vmatprep.subr.bf16.mxu0 0
        %1694 = vmatpush1.bf16.msra.mxu0 %v1303
        %1695 = vmatprep.subr.bf16.mxu0 0
        %1696 = vmatpush1.bf16.msra.mxu0 %v1304
        %1697 = vmatprep.subr.bf16.mxu0 0
        %1698 = vmatpush1.bf16.msra.mxu0 %v1305
        %1699 = vmatprep.subr.bf16.mxu0 0
        %1700 = vmatpush1.bf16.msra.mxu0 %v1306
        %1701 = vmatprep.subr.bf16.mxu0 0
        %1702 = vmatpush1.bf16.msra.mxu0 %v1307
        %1703 = vmatprep.subr.bf16.mxu0 0
        %1704 = vmatpush1.bf16.msra.mxu0 %v1308
        %1705 = vmatprep.subr.bf16.mxu0 0
        %1706 = vmatpush1.bf16.msra.mxu0 %v1309
        %1707 = vmatprep.subr.bf16.mxu0 0
        %1708 = vmatpush1.bf16.msra.mxu0 %v1310
        %1709 = vmatprep.subr.bf16.mxu0 0
        %1710 = vmatpush1.bf16.msra.mxu0 %v1311
        %1711 = vmatprep.subr.bf16.mxu0 0
        %1712 = vmatpush1.bf16.msra.mxu0 %v1312
        %1713 = vmatprep.subr.bf16.mxu0 0
        %1714 = vmatpush1.bf16.msra.mxu0 %v1313
        %1715 = vmatprep.subr.bf16.mxu0 0
        %1716 = vmatpush1.bf16.msra.mxu0 %v1314
        %1717 = vmatprep.subr.bf16.mxu0 0
        %1718 = vmatpush1.bf16.msra.mxu0 %v1315
        %1719 = vmatprep.subr.bf16.mxu0 0
        %1720 = vmatpush1.bf16.msra.mxu0 %v1316
        %1721 = vmatprep.mubr.bf16.mxu0 %v634
        %1722 = vmatmul.mubr.bf16.gmra.mrb[0].mxu0 %v633
        %v1723 = vpop.f32.mrb[0].mxu0
        %v1724 = vadd.f32 %v1683, %v1723
        %v1725 = vpop.f32.mrb[0].mxu0
        %v1726 = vpop.f32.mrb[0].mxu0
        %v1727 = vadd.f32 %v1686, %v1726
        %v1728 = vpop.f32.mrb[0].mxu0
        %1729 = vdwg.mxu0
        %1730 = vmatprep.subr.bf16.mxu0 0
        %1731 = vmatpush1.bf16.msra.mxu0 %v1317
        %1732 = vmatprep.subr.bf16.mxu0 0
        %1733 = vmatpush1.bf16.msra.mxu0 %v1318
        %1734 = vmatprep.subr.bf16.mxu0 0
        %1735 = vmatpush1.bf16.msra.mxu0 %v1319
        %1736 = vmatprep.subr.bf16.mxu0 0
        %1737 = vmatpush1.bf16.msra.mxu0 %v1320
        %1738 = vmatprep.subr.bf16.mxu0 0
        %1739 = vmatpush1.bf16.msra.mxu0 %v1321
        %1740 = vmatprep.subr.bf16.mxu0 0
        %1741 = vmatpush1.bf16.msra.mxu0 %v1322
        %1742 = vmatprep.subr.bf16.mxu0 0
        %1743 = vmatpush1.bf16.msra.mxu0 %v1323
        %1744 = vmatprep.subr.bf16.mxu0 0
        %1745 = vmatpush1.bf16.msra.mxu0 %v1324
        %1746 = vmatprep.subr.bf16.mxu0 0
        %1747 = vmatpush1.bf16.msra.mxu0 %v1325
        %1748 = vmatprep.subr.bf16.mxu0 0
        %1749 = vmatpush1.bf16.msra.mxu0 %v1326
        %1750 = vmatprep.subr.bf16.mxu0 0
        %1751 = vmatpush1.bf16.msra.mxu0 %v1327
        %1752 = vmatprep.subr.bf16.mxu0 0
        %1753 = vmatpush1.bf16.msra.mxu0 %v1328
        %1754 = vmatprep.subr.bf16.mxu0 0
        %1755 = vmatpush1.bf16.msra.mxu0 %v1329
        %1756 = vmatprep.subr.bf16.mxu0 0
        %1757 = vmatpush1.bf16.msra.mxu0 %v1330
        %1758 = vmatprep.subr.bf16.mxu0 0
        %1759 = vmatpush1.bf16.msra.mxu0 %v1331
        %1760 = vmatprep.subr.bf16.mxu0 0
        %1761 = vmatpush1.bf16.msra.mxu0 %v1332
        %1762 = vmatprep.mubr.bf16.mxu0 %v636
        %1763 = vmatmul.mubr.bf16.gmra.mrb[0].mxu0 %v635
        %v1764 = vpop.f32.mrb[0].mxu0
        %v1765 = vadd.f32 %v1724, %v1764
        %v1766 = vpop.f32.mrb[0].mxu0
        %v1767 = vpop.f32.mrb[0].mxu0
        %v1768 = vadd.f32 %v1727, %v1767
        %v1769 = vpop.f32.mrb[0].mxu0
        %1770 = vdwg.mxu0
        %1771 = vmatprep.subr.bf16.mxu0 0
        %1772 = vmatpush1.bf16.msra.mxu0 %v1333
        %1773 = vmatprep.subr.bf16.mxu0 0
        %1774 = vmatpush1.bf16.msra.mxu0 %v1334
        %1775 = vmatprep.subr.bf16.mxu0 0
        %1776 = vmatpush1.bf16.msra.mxu0 %v1335
        %1777 = vmatprep.subr.bf16.mxu0 0
        %1778 = vmatpush1.bf16.msra.mxu0 %v1336
        %1779 = vmatprep.subr.bf16.mxu0 0
        %1780 = vmatpush1.bf16.msra.mxu0 %v1337
        %1781 = vmatprep.subr.bf16.mxu0 0
        %1782 = vmatpush1.bf16.msra.mxu0 %v1338
        %1783 = vmatprep.subr.bf16.mxu0 0
        %1784 = vmatpush1.bf16.msra.mxu0 %v1339
        %1785 = vmatprep.subr.bf16.mxu0 0
        %1786 = vmatpush1.bf16.msra.mxu0 %v1340
        %1787 = vmatprep.subr.bf16.mxu0 0
        %1788 = vmatpush1.bf16.msra.mxu0 %v1341
        %1789 = vmatprep.subr.bf16.mxu0 0
        %1790 = vmatpush1.bf16.msra.mxu0 %v1342
        %1791 = vmatprep.subr.bf16.mxu0 0
        %1792 = vmatpush1.bf16.msra.mxu0 %v1343
        %1793 = vmatprep.subr.bf16.mxu0 0
        %1794 = vmatpush1.bf16.msra.mxu0 %v1344
        %1795 = vmatprep.subr.bf16.mxu0 0
        %1796 = vmatpush1.bf16.msra.mxu0 %v1345
        %1797 = vmatprep.subr.bf16.mxu0 0
        %1798 = vmatpush1.bf16.msra.mxu0 %v1346
        %1799 = vmatprep.subr.bf16.mxu0 0
        %1800 = vmatpush1.bf16.msra.mxu0 %v1347
        %1801 = vmatprep.subr.bf16.mxu0 0
        %1802 = vmatpush1.bf16.msra.mxu0 %v1348
        %1803 = vmatprep.mubr.bf16.mxu0 %v638
        %1804 = vmatmul.mubr.bf16.gmra.mrb[0].mxu0 %v637
        %v1805 = vpop.f32.mrb[0].mxu0
        %v1806 = vadd.f32 %v1765, %v1805
        %v1807 = vpop.f32.mrb[0].mxu0
        %v1808 = vpop.f32.mrb[0].mxu0
        %v1809 = vadd.f32 %v1768, %v1808
        %v1810 = vpop.f32.mrb[0].mxu0
        %1811 = vdwg.mxu0
        %1812 = vmatprep.subr.bf16.mxu0 0
        %1813 = vmatpush1.bf16.msra.mxu0 %v1349
        %1814 = vmatprep.subr.bf16.mxu0 0
        %1815 = vmatpush1.bf16.msra.mxu0 %v1350
        %1816 = vmatprep.subr.bf16.mxu0 0
        %1817 = vmatpush1.bf16.msra.mxu0 %v1351
        %1818 = vmatprep.subr.bf16.mxu0 0
        %1819 = vmatpush1.bf16.msra.mxu0 %v1352
        %1820 = vmatprep.subr.bf16.mxu0 0
        %1821 = vmatpush1.bf16.msra.mxu0 %v1353
        %1822 = vmatprep.subr.bf16.mxu0 0
        %1823 = vmatpush1.bf16.msra.mxu0 %v1354
        %1824 = vmatprep.subr.bf16.mxu0 0
        %1825 = vmatpush1.bf16.msra.mxu0 %v1355
        %1826 = vmatprep.subr.bf16.mxu0 0
        %1827 = vmatpush1.bf16.msra.mxu0 %v1356
        %1828 = vmatprep.subr.bf16.mxu0 0
        %1829 = vmatpush1.bf16.msra.mxu0 %v1357
        %1830 = vmatprep.subr.bf16.mxu0 0
        %1831 = vmatpush1.bf16.msra.mxu0 %v1358
        %1832 = vmatprep.subr.bf16.mxu0 0
        %1833 = vmatpush1.bf16.msra.mxu0 %v1359
        %1834 = vmatprep.subr.bf16.mxu0 0
        %1835 = vmatpush1.bf16.msra.mxu0 %v1360
        %1836 = vmatprep.subr.bf16.mxu0 0
        %1837 = vmatpush1.bf16.msra.mxu0 %v1361
        %1838 = vmatprep.subr.bf16.mxu0 0
        %1839 = vmatpush1.bf16.msra.mxu0 %v1362
        %1840 = vmatprep.subr.bf16.mxu0 0
        %1841 = vmatpush1.bf16.msra.mxu0 %v1363
        %1842 = vmatprep.subr.bf16.mxu0 0
        %1843 = vmatpush1.bf16.msra.mxu0 %v1364
        %1844 = vmatprep.mubr.bf16.mxu0 %v640
        %1845 = vmatmul.mubr.bf16.gmra.mrb[0].mxu0 %v639
        %v1846 = vpop.f32.mrb[0].mxu0
        %v1847 = vadd.f32 %v1806, %v1846
        %v1848 = vpop.f32.mrb[0].mxu0
        %v1849 = vpop.f32.mrb[0].mxu0
        %v1850 = vadd.f32 %v1809, %v1849
        %v1851 = vpop.f32.mrb[0].mxu0
        %1852 = vdwg.mxu0
        %1853 = vmatprep.subr.bf16.mxu0 0
        %1854 = vmatpush1.bf16.msra.mxu0 %v1365
        %1855 = vmatprep.subr.bf16.mxu0 0
        %1856 = vmatpush1.bf16.msra.mxu0 %v1366
        %1857 = vmatprep.subr.bf16.mxu0 0
        %1858 = vmatpush1.bf16.msra.mxu0 %v1367
        %1859 = vmatprep.subr.bf16.mxu0 0
        %1860 = vmatpush1.bf16.msra.mxu0 %v1368
        %1861 = vmatprep.subr.bf16.mxu0 0
        %1862 = vmatpush1.bf16.msra.mxu0 %v1369
        %1863 = vmatprep.subr.bf16.mxu0 0
        %1864 = vmatpush1.bf16.msra.mxu0 %v1370
        %1865 = vmatprep.subr.bf16.mxu0 0
        %1866 = vmatpush1.bf16.msra.mxu0 %v1371
        %1867 = vmatprep.subr.bf16.mxu0 0
        %1868 = vmatpush1.bf16.msra.mxu0 %v1372
        %1869 = vmatprep.subr.bf16.mxu0 0
        %1870 = vmatpush1.bf16.msra.mxu0 %v1373
        %1871 = vmatprep.subr.bf16.mxu0 0
        %1872 = vmatpush1.bf16.msra.mxu0 %v1374
        %1873 = vmatprep.subr.bf16.mxu0 0
        %1874 = vmatpush1.bf16.msra.mxu0 %v1375
        %1875 = vmatprep.subr.bf16.mxu0 0
        %1876 = vmatpush1.bf16.msra.mxu0 %v1376
        %1877 = vmatprep.subr.bf16.mxu0 0
        %1878 = vmatpush1.bf16.msra.mxu0 %v1377
        %1879 = vmatprep.subr.bf16.mxu0 0
        %1880 = vmatpush1.bf16.msra.mxu0 %v1378
        %1881 = vmatprep.subr.bf16.mxu0 0
        %1882 = vmatpush1.bf16.msra.mxu0 %v1379
        %1883 = vmatprep.subr.bf16.mxu0 0
        %1884 = vmatpush1.bf16.msra.mxu0 %v1380
        %1885 = vmatprep.mubr.bf16.mxu0 %v642
        %1886 = vmatmul.mubr.bf16.gmra.mrb[0].mxu0 %v641
        %v1887 = vpop.f32.mrb[0].mxu0
        %v1888 = vadd.f32 %v1847, %v1887
        %v1889 = vpop.f32.mrb[0].mxu0
        %v1890 = vpop.f32.mrb[0].mxu0
        %v1891 = vadd.f32 %v1850, %v1890
        %v1892 = vpop.f32.mrb[0].mxu0
        %1893 = vdwg.mxu0
        %v1894 = vld [vmem:[#allocation2] sm:$0xff]
        %v1895 = vld [vmem:[#allocation2 + $0x8] sm:$0xff]
        %v1896 = vmul.f32 %v1894, 0.75
        %v1897 = vmul.f32 %v1895, 0.75
        %v1898 = vadd.f32 %v1896, %v1888
        %v1899 = vadd.f32 %v1897, %v1891
        %v1900 = vld [vmem:[#allocation3] sm:$0xff]
        %v1901 = vld [vmem:[#allocation3 + $0x8] sm:$0xff]
        %v1902 = vmul.f32 %v1900, 0.97
        %v1903 = vmul.f32 %v1901, 0.97
        %v1904 = vadd.f32 %v1902, %v1898
        %v1905 = vadd.f32 %v1903, %v1899
        %vm1906 = vcmp.ge.f32.partialorder %v1904, 1.0
        %vm1907 = vcmp.ge.f32.partialorder %v1905, 1.0
        %v1908 = vsel %vm1906, 1.0, 0.0
        %v1909 = vsel %vm1907, 1.0, 0.0
        %1910 = vst [vmem:[#allocation2] sm:$0xff] %v1898
        %1911 = vst [vmem:[#allocation2 + $0x8] sm:$0xff] %v1899
        %v1912 = vsel %vm1906, 0.0, %v1904
        %v1913 = vsel %vm1907, 0.0, %v1905
        %1914 = vst [vmem:[#allocation3] sm:$0xff] %v1912
        %1915 = vst [vmem:[#allocation3 + $0x8] sm:$0xff] %v1913
        %v1916 = vld [vmem:[%s246] sm:$0xff]
        %v1917 = vld [vmem:[%s246 + $0x8] sm:$0xff]
        %v1918 = vadd.f32 %v1916, %v1908
        %v1919 = vadd.f32 %v1917, %v1909
        %1920 = vst [vmem:[%s246] sm:$0xff] %v1918
        %1921 = vst [vmem:[%s246 + $0x8] sm:$0xff] %v1919
        %v1922 = vpack.c.bf16 %v1909, %v1908
        %v1924 = vunpack.c.l.b16 %v1922
        %v1925 = vunpack.c.h.b16 %v1922
        %v1926 = vpack.c.b16 %v1924, %v1924
        %v1927 = vpack.c.b16 %v1925, %v1925
        %1930 = vst [vmem:[%s240] sm:$0xf] %v1926
        %1931 = vst [vmem:[%s240 + $0x4] sm:$0xf] %v1927
      $region36: #{conv_class_forward.11} parent=27 // pred_fallthru
        _
      %s1932 = smul.u32 2, %s19
      %p1933 = scmp.lt.s32.totalorder %s20, 7
      %s1934 = scalar_select %p1933, %s20, 7
      %p1935 = scmp.lt.s32.totalorder %s1932, 1
      %s1936 = scalar_select %p1935, %s1932, 1
      %s1937 = smul.addr %s1934, 2
      %s1938 = sadd.s32 %s1936, %s1937
      %s1939 = smul.addr %s1938, 4
      %s1940 = scalar_lea.vmem %s2, %s1939
      %s1941 = smul.u32 2, %s19
      %p1942 = scmp.lt.s32.totalorder %s1941, 1
      %s1943 = scalar_select %p1942, %s1941, 1
      %s1944 = smul.addr %s1943, 8
      %s1945 = scalar_lea.vmem %s3, %s1944
      // Predicated region
      $region37: #{conv_class_forward.11} parent=27 // pred_check
        %p1946 = pneg %p102
      $region38: #{conv_class_forward.11} parent=27 // pred_check_branch
        %1948 = sbr.rel (%p1946) target = $region40
      $region39: #{conv_class_forward.11} parent=27 // pred_region
        %s1949 = smul.u32 2, %s19
      $region40: #{conv_class_forward.11} parent=27 // pred_fallthru
        _
      // Predicated region
      $region41: #{conv_class_forward.11} parent=27 // pred_check
        %p1950 = pneg %p128
      $region42: #{conv_class_forward.11} parent=27 // pred_check_branch
        %1952 = sbr.rel (%p1950) target = $region44
      $region43: #{conv_class_forward.11} parent=27 // pred_region
        %s1953 = smul.u32 2, %s19
      $region44: #{conv_class_forward.11} parent=27 // pred_fallthru
        _
      // Predicated region
      $region45: #{conv_class_forward.11} parent=27 // pred_check
        %p1954 = pneg %p128
      $region46: #{conv_class_forward.11} parent=27 // pred_check_branch
        %1956 = sbr.rel (%p1954) target = $region48
      $region47: #{conv_class_forward.11} parent=27 // pred_region
        %s1957 = smul.u32 2, %s19
        %p1958 = scmp.lt.s32.totalorder %s1957, 1
        %s1959 = scalar_select %p1958, %s1957, 1
        %s1960 = smul.addr %s1959, 8
        %s1961 = scalar_lea.vmem %s3, %s1960
      $region48: #{conv_class_forward.11} parent=27 // pred_fallthru
        _
    $region28: #{conv_class_forward.11} parent=5 // pred_fallthru
      _
    %p1962 = scmp.le.s32.totalorder 2, %s10
    // Predicated region
    $region49: #{conv_class_forward.11} parent=5 // pred_check
      %p1963 = pneg %p1962
    $region50: #{conv_class_forward.11} parent=5 // pred_check_branch
      %1965 = sbr.rel (%p1963) target = $region52
    $region51: #{conv_class_forward.11} parent=5 // pred_region
      %s1966 = ssub.s32 %s10, 2
      // Predicated region
      $region53: #{conv_class_forward.11} parent=51 // pred_check
        %p1967 = pneg %p108
      $region54: #{conv_class_forward.11} parent=51 // pred_check_branch
        %1969 = sbr.rel (%p1967) target = $region56
      $region55: #{conv_class_forward.11} parent=51 // pred_region
        %s1970 = smul.u32 2, %s21
        %p1971 = scmp.lt.s32.totalorder %s22, 7
        %s1972 = scalar_select %p1971, %s22, 7
        %p1973 = scmp.lt.s32.totalorder %s1970, 1
        %s1974 = scalar_select %p1973, %s1970, 1
        %s1975 = smul.addr %s1972, 2
        %s1976 = sadd.s32 %s1974, %s1975
        %s1977 = smul.addr %s1976, 4
        %s1978 = scalar_lea.vmem %s2, %s1977
      $region56: #{conv_class_forward.11} parent=51 // pred_fallthru
        _
    $region52: #{conv_class_forward.11} parent=5 // pred_fallthru
      _
  $region6: #{conv_class_forward.11} parent=0 // loop_footer
    %s14 = sadd.s32 1, %s10
  $region7: #{conv_class_forward.11} parent=0 // loop_footer_branch
    %9 = sbr.rel target = $region3
  $region8: #{conv_class_forward.11} parent=0 // loop_exit
    _

</llo_original>
